<compile_context>
chip_gen: v7x
topology: tpu7x:2x2x1
jax: 0.10.0
libtpu: 0.0.40
codegen_flags: <defaults>
</compile_context>

<pallas_src>
import functools

import jax
import jax.numpy as jnp
from jax import lax
from jax.experimental import pallas as pl
from jax.experimental.pallas import tpu as pltpu

KW = 4               # conv kernel size
PADW = 2             # int(ceil((kw - 1) / 2)) -- exactly as in the reference module
LEAKY_SLOPE = 0.2
BN_EPS = 1e-5
TILE_M_TARGET = 512  # target output pixels (rows * width) per grid step (MXU M)
COUT_TILE = 256      # max output-channel tile (native MXU N width on v6e/v7x)


def _rup(x, m):
    return ((x + m - 1) // m) * m


@functools.lru_cache(maxsize=None)
def _vmem_limit_bytes():
    try:
        cap = int(pltpu.get_tpu_info().vmem_capacity_bytes)
    except Exception:
        cap = 64 * 1024 * 1024          # conservative default (v7x per-core VMEM)
    return max(32 * 1024 * 1024, cap - 4 * 1024 * 1024)


# ---------------------------------------------------------------------------
# Pallas kernel: implicit-GEMM conv tile (sum of per-tap MXU matmuls)
#                + folded-BN shift + LeakyReLU, zero-masked lane-pad columns.
# ---------------------------------------------------------------------------
def _conv_kernel(x_ref, w_ref, shift_ref, o_ref, *, tr, wout_p, wout, taps, leaky):
    # taps == 1: x_ref is the (tr, wout_p, C_eff) row block (no halo needed).
    # taps >  1: x_ref is the full padded sample (He, We, C_eff); the row tile
    #            is addressed with program_id(1)*tr (halo of taps-1 rows).
    tn = o_ref.shape[-1]
    mm = tr * wout_p

    if taps == 1:
        lhs = x_ref[...].reshape(mm, x_ref.shape[-1])
        acc = jnp.dot(lhs, w_ref[0, 0], preferred_element_type=jnp.float32)
    else:
        row0 = pl.program_id(1) * tr
        acc = jnp.zeros((mm, tn), jnp.float32)
        for tw in range(taps):
            # one sublane-offset slice per tap column (hoisted out of any row loop)
            xt = x_ref[pl.ds(row0, tr + taps - 1), pl.ds(tw, wout_p), :]
            for th in range(taps):
                lhs = xt[th:th + tr].reshape(mm, xt.shape[-1])
                acc = acc + jnp.dot(lhs, w_ref[th, tw],
                                    preferred_element_type=jnp.float32)

    y = acc + shift_ref[...]                         # (mm, tn) + (1, tn), f32
    if leaky:
        y = jnp.where(y > 0, y, LEAKY_SLOPE * y)
    y = y.reshape(tr, wout_p, tn)
    if wout < wout_p:
        # Zero the width lane-padding columns so they are exact zeros and can be
        # reused as the next layer's conv zero-padding.
        col = lax.broadcasted_iota(jnp.int32, (1, wout_p, 1), 1)
        y = jnp.where(col < wout, y, 0.0)
    o_ref[...] = y.astype(o_ref.dtype)


def conv_pallas(x_eff, w_eff, shift, *, tr, hout, wout, wout_p, taps, leaky):
    n, he, we, c_eff = x_eff.shape
    cout_p = w_eff.shape[-1]
    if cout_p <= COUT_TILE:
        tn = cout_p
    elif cout_p % COUT_TILE == 0:
        tn = COUT_TILE
    else:
        tn = 128
    n_row = pl.cdiv(hout, tr)
    n_co = cout_p // tn

    if taps == 1:
        # layer 1: single tap -> plain row-blocked input, pipelined small DMAs
        x_spec = pl.BlockSpec((None, tr, wout_p, c_eff), lambda b, i, j: (b, i, 0, 0))
    else:
        # TODO(synk): for very large images on v7x (64 MiB VMEM/core) this resident
        # sample should be row-blocked with a halo via manual DMA double-buffering.
        x_spec = pl.BlockSpec((None, he, we, c_eff), lambda b, i, j: (b, 0, 0, 0))

    kernel = functools.partial(_conv_kernel, tr=tr, wout_p=wout_p, wout=wout,
                               taps=taps, leaky=leaky)
    return pl.pallas_call(
        kernel,
        out_shape=jax.ShapeDtypeStruct((n, hout, wout_p, cout_p), jnp.bfloat16),
        grid=(n, n_row, n_co),
        in_specs=[
            x_spec,
            pl.BlockSpec((taps, taps, c_eff, tn), lambda b, i, j: (0, 0, 0, j)),
            pl.BlockSpec((1, tn), lambda b, i, j: (0, j)),
        ],
        out_specs=pl.BlockSpec((None, tr, wout_p, tn), lambda b, i, j: (b, i, 0, j)),
        compiler_params=pltpu.CompilerParams(
            dimension_semantics=("parallel", "parallel", "parallel"),
            vmem_limit_bytes=_vmem_limit_bytes()),
    )(x_eff, w_eff, shift)


# ---------------------------------------------------------------------------
# Per-layer glue (plain-JAX layout transforms only: pad / space-to-depth)
# ---------------------------------------------------------------------------
def apply_conv_layer(x, h, w, lp):
    """x: stored activation (N, h, Ws, Cs) with Ws >= w (exact zero columns
    beyond w) and Cs >= true channels (exact zero channels beyond).
    Returns (out, hout, wout) with out stored the same way."""
    n, _, ws, cs = x.shape
    s, taps = lp["stride"], lp["taps"]
    hout = (h + 2 * PADW - KW) // s + 1
    wout = (w + 2 * PADW - KW) // s + 1
    wout_p = _rup(wout, 8)                             # sublane-aligned output width
    tr = max(1, min(hout, TILE_M_TARGET // wout_p))    # output rows per grid step
    n_tiles = pl.cdiv(hout, tr)

    if taps == 1:          # layer 1: stride-2 conv as single-tap K=16*Cin GEMM
        rows_e, cols_e = n_tiles * tr, wout_p
        rt, ct = 2 * (rows_e + 1), 2 * (cols_e + 1)
    elif taps == 2:        # stride-2 conv as stride-1 2x2 taps over s2d input
        rows_e, cols_e = n_tiles * tr + 1, wout_p + 1
        rt, ct = 2 * rows_e, 2 * cols_e
    else:                  # stride-1 conv, 4x4 taps
        rows_e, cols_e = n_tiles * tr + 3, wout_p + 3
        rt, ct = rows_e, cols_e

    take_w = min(ws, ct - PADW)
    xs = x[:, :, :take_w, :] if take_w < ws else x
    x_pad = jnp.pad(xs, ((0, 0), (PADW, rt - PADW - h),
                         (PADW, ct - PADW - take_w), (0, 0)))

    if s == 2:
        y = (x_pad.reshape(n, rt // 2, 2, ct // 2, 2, cs)
             .transpose(0, 1, 3, 2, 4, 5)
             .reshape(n, rt // 2, ct // 2, 4 * cs))       # space-to-depth
        if taps == 1:
            x_eff = jnp.concatenate(
                [y[:, th:th + rows_e, tw:tw + cols_e, :]
                 for th in range(2) for tw in range(2)], axis=-1)   # K = 16*Cin
        else:
            x_eff = y
    else:
        x_eff = x_pad

    out = conv_pallas(x_eff, lp["w_eff"], lp["shift"], tr=tr, hout=hout,
                      wout=wout, wout_p=wout_p, taps=taps, leaky=lp["leaky"])
    return out, hout, wout


# ---------------------------------------------------------------------------
# Parameter construction (deterministic, mirrors NLayerDiscriminator.__init__)
# ---------------------------------------------------------------------------
def build_params(key, input_nc=3, ndf=64, n_layers=3, use_bias=False):
    layers = []

    def conv_w(k, cout, cin):
        return 0.02 * jax.random.normal(k, (cout, cin, KW, KW), jnp.float32)

    def bn_default(c):
        # PyTorch BatchNorm2d init: weight=1, bias=0, running_mean=0, running_var=1
        return (jnp.ones((c,), jnp.float32), jnp.zeros((c,), jnp.float32),
                jnp.zeros((c,), jnp.float32), jnp.ones((c,), jnp.float32))

    keys = jax.random.split(key, n_layers + 2)

    # first conv: bias=True, no norm, stride 2, LeakyReLU
    layers.append(dict(w=conv_w(keys[0], ndf, input_nc),
                       bias=jnp.zeros((ndf,), jnp.float32),
                       bn=None, stride=2, leaky=True))

    nf_mult = 1
    for n in range(1, n_layers):
        nf_prev, nf_mult = nf_mult, min(2 ** n, 8)
        c_in, c_out = ndf * nf_prev, ndf * nf_mult
        layers.append(dict(w=conv_w(keys[n], c_out, c_in),
                           bias=(jnp.zeros((c_out,), jnp.float32) if use_bias else None),
                           bn=bn_default(c_out), stride=2, leaky=True))

    nf_prev, nf_mult = nf_mult, min(2 ** n_layers, 8)
    c_in, c_out = ndf * nf_prev, ndf * nf_mult
    layers.append(dict(w=conv_w(keys[n_layers], c_out, c_in),
                       bias=(jnp.zeros((c_out,), jnp.float32) if use_bias else None),
                       bn=bn_default(c_out), stride=1, leaky=True))

    # final conv: -> 1 channel, bias=True, no norm, no activation
    layers.append(dict(w=conv_w(keys[n_layers + 1], 1, c_out),
                       bias=jnp.zeros((1,), jnp.float32),
                       bn=None, stride=1, leaky=False))
    return layers


def prepare_params(layers):
    """One-time: fold BN/bias into scale/shift, transpose to HWIO, stride-2 tap
    reshuffle (layer 1: full 16-tap fold -> single-tap K=16*Cin), pad Cin to the
    previous layer's stored (padded) channel count and Cout to a multiple of 128
    (lane-dense), cast weights to bf16."""
    prepared = []
    cs_prev = int(layers[0]["w"].shape[1])       # stored channels of the input image
    for idx, layer in enumerate(layers):
        w = layer["w"]                           # (Cout, Cin, 4, 4) f32
        cout, cin = int(w.shape[0]), int(w.shape[1])
        s = layer["stride"]

        if layer["bn"] is not None:
            gamma, beta, mean, var = layer["bn"]
            scale = gamma / jnp.sqrt(var + BN_EPS)
            shift = beta - mean * scale
            if layer["bias"] is not None:        # conv bias folded through eval-BN
                shift = shift + layer["bias"] * scale
        else:
            scale = jnp.ones((cout,), jnp.float32)
            shift = layer["bias"] if layer["bias"] is not None \
                else jnp.zeros((cout,), jnp.float32)

        w_hwio = jnp.transpose(w, (2, 3, 1, 0)) * scale[None, None, None, :]
        if cs_prev > cin:                        # match carried CoutP channels
            w_hwio = jnp.pad(w_hwio, ((0, 0), (0, 0), (0, cs_prev - cin), (0, 0)))
        cin_p = cs_prev
        cout_p = _rup(cout, 128)

        if idx == 0:
            assert s == 2
            # layer 1: fold all 16 taps into K -> single-tap GEMM, K = 16*Cin
            w_eff = (w_hwio.reshape(2, 2, 2, 2, cin_p, cout)
                     .transpose(0, 2, 1, 3, 4, 5)
                     .reshape(1, 1, 16 * cin_p, cout))
            taps = 1
        elif s == 2:
            # stride-2 4x4 conv -> stride-1 2x2 taps over space-to-depth input
            w_eff = (w_hwio.reshape(2, 2, 2, 2, cin_p, cout)
                     .transpose(0, 2, 1, 3, 4, 5)
                     .reshape(2, 2, 4 * cin_p, cout))
            taps = 2
        else:
            w_eff = w_hwio
            taps = 4

        if cout_p > cout:                        # lane-dense Cout (zero columns)
            w_eff = jnp.pad(w_eff, ((0, 0), (0, 0), (0, 0), (0, cout_p - cout)))
            shift = jnp.pad(shift, (0, cout_p - cout))

        prepared.append(dict(
            w_eff=w_eff.astype(jnp.bfloat16),
            shift=shift.reshape(1, cout_p).astype(jnp.float32),
            stride=s, taps=taps, cout=cout, leaky=layer["leaky"]))
        cs_prev = cout_p
    return prepared


def nlayer_discriminator_forward(x_nchw, prepared):
    x = jnp.transpose(x_nchw, (0, 2, 3, 1)).astype(jnp.bfloat16)     # NCHW -> NHWC
    h, w = x.shape[1], x.shape[2]
    for lp in prepared:
        x, h, w = apply_conv_layer(x, h, w, lp)
    out = x[:, :, :w, :1]                    # drop width / channel lane-padding
    return jnp.transpose(out, (0, 3, 1, 2)).astype(jnp.float32)      # NHWC -> NCHW


# ---------------------------------------------------------------------------
# Pure-JAX reference (same folded parameters, f32 intermediates) for validation
# ---------------------------------------------------------------------------
def build_reference_layers(layers):
    refs = []
    for layer in layers:
        w = layer["w"]
        cout = int(w.shape[0])
        if layer["bn"] is not None:
            gamma, beta, mean, var = layer["bn"]
            scale = gamma / jnp.sqrt(var + BN_EPS)
            shift = beta - mean * scale
            if layer["bias"] is not None:
                shift = shift + layer["bias"] * scale
        else:
            scale = jnp.ones((cout,), jnp.float32)
            shift = layer["bias"] if layer["bias"] is not None \
                else jnp.zeros((cout,), jnp.float32)
        w_hwio = (jnp.transpose(w, (2, 3, 1, 0)) * scale[None, None, None, :]
                  ).astype(jnp.bfloat16)
        refs.append(dict(w_hwio=w_hwio, shift=shift.astype(jnp.float32),
                         stride=layer["stride"], leaky=layer["leaky"]))
    return refs


def reference_forward(x_nchw, ref_layers):
    x = jnp.transpose(x_nchw, (0, 2, 3, 1)).astype(jnp.bfloat16).astype(jnp.float32)
    for rl in ref_layers:
        x = lax.conv_general_dilated(
            x, rl["w_hwio"].astype(jnp.float32),
            window_strides=(rl["stride"], rl["stride"]),
            padding=((PADW, PADW), (PADW, PADW)),
            dimension_numbers=("NHWC", "HWIO", "NHWC"),
            precision=lax.Precision.HIGHEST)
        x = x + rl["shift"][None, None, None, :]
        if rl["leaky"]:
            x = jnp.where(x > 0, x, LEAKY_SLOPE * x)
    return jnp.transpose(x, (0, 3, 1, 2)).astype(jnp.float32)


# ---------------------------------------------------------------------------
if __name__ == "__main__":
    key = jax.random.PRNGKey(0)
    k_x, k_p = jax.random.split(key)

    # small config consistent with the module: input_nc=3, ndf=8, n_layers=3
    N, C, H, W = 2, 3, 16, 16
    x = jax.random.normal(k_x, (N, C, H, W), jnp.float32)

    layers = build_params(k_p, input_nc=C, ndf=8, n_layers=3, use_bias=False)
    prepared = prepare_params(layers)

    fwd = jax.jit(lambda inp: nlayer_discriminator_forward(inp, prepared))
    out = jax.block_until_ready(fwd(x))

    # padw = ceil((4-1)/2) = 2: 16 ->9 ->5 ->3 (stride 2 x3) ->4 ->5 (stride 1 x2)
    assert out.shape == (N, 1, 5, 5), out.shape
    assert out.dtype == jnp.float32
    assert bool(jnp.isfinite(out).all())

    ref_layers = build_reference_layers(layers)
    ref = jax.block_until_ready(
        jax.jit(lambda inp: reference_forward(inp, ref_layers))(x))
    assert bool(jnp.allclose(out, ref, rtol=0.1, atol=2e-4)), \
        float(jnp.max(jnp.abs(out - ref)))

    print("KERNEL_OK")
</pallas_src>

<mosaic_0001>
module attributes {stable_mosaic.version = 11 : i64} {
  func.func @_conv_kernel(%arg0: i32, %arg1: i32, %arg2: i32, %arg3: memref<1x9x16x48xbf16, #tpu.memory_space<vmem>>, %arg4: memref<1x1x48x128xbf16, #tpu.memory_space<vmem>>, %arg5: memref<1x128xf32, #tpu.memory_space<vmem>>, %arg6: memref<1x9x16x128xbf16, #tpu.memory_space<vmem>>) attributes {dimension_semantics = [#tpu.dimension_semantics<parallel>, #tpu.dimension_semantics<parallel>, #tpu.dimension_semantics<parallel>], iteration_bounds = array<i64: 2, 1, 1>, scalar_prefetch = 0 : i64, scratch_operands = 0 : i64, tpu.core_type = #tpu.core_type<tc>, window_params = [{transform_indices = @transform_0, window_bounds = array<i64: 1, 9, 16, 48>}, {transform_indices = @transform_1, window_bounds = array<i64: 1, 1, 48, 128>}, {transform_indices = @transform_2, window_bounds = array<i64: 1, 128>}, {transform_indices = @transform_3, window_bounds = array<i64: 1, 9, 16, 128>}]} {
    %c0 = arith.constant 0 : index
    %c0_0 = arith.constant 0 : index
    %c0_1 = arith.constant 0 : index
    %c0_2 = arith.constant 0 : index
    %0 = vector.load %arg3[%c0, %c0_0, %c0_1, %c0_2] : memref<1x9x16x48xbf16, #tpu.memory_space<vmem>>, vector<1x9x16x48xbf16>
    %1 = vector.shape_cast %0 : vector<1x9x16x48xbf16> to vector<9x16x48xbf16>
    %2 = vector.shape_cast %1 : vector<9x16x48xbf16> to vector<144x48xbf16>
    %c0_3 = arith.constant 0 : index
    %c0_4 = arith.constant 0 : index
    %c0_5 = arith.constant 0 : index
    %c0_6 = arith.constant 0 : index
    %3 = vector.load %arg4[%c0_3, %c0_4, %c0_5, %c0_6] : memref<1x1x48x128xbf16, #tpu.memory_space<vmem>>, vector<1x1x48x128xbf16>
    %4 = vector.shape_cast %3 : vector<1x1x48x128xbf16> to vector<48x128xbf16>
    %cst = arith.constant dense<0.000000e+00> : vector<144x128xf32>
    %5 = tpu.matmul %2, %4, %cst {dimension_numbers = #tpu.dot_dimension_numbers<[1], [0], [0], [1], [0, 0, 1, 1], [], []>} : vector<144x48xbf16>, vector<48x128xbf16>, vector<144x128xf32> -> vector<144x128xf32>
    %c0_7 = arith.constant 0 : index
    %c0_8 = arith.constant 0 : index
    %6 = vector.load %arg5[%c0_7, %c0_8] : memref<1x128xf32, #tpu.memory_space<vmem>>, vector<1x128xf32>
    %7 = vector.broadcast %6 : vector<1x128xf32> to vector<144x128xf32>
    %8 = arith.addf %5, %7 : vector<144x128xf32>
    %cst_9 = arith.constant 0.000000e+00 : f32
    %9 = vector.broadcast %cst_9 : f32 to vector<144x128xf32>
    %10 = arith.cmpf ogt, %8, %9 : vector<144x128xf32>
    %cst_10 = arith.constant 2.000000e-01 : f32
    %11 = vector.broadcast %cst_10 : f32 to vector<144x128xf32>
    %12 = arith.mulf %11, %8 : vector<144x128xf32>
    %13 = arith.select %10, %8, %12 : vector<144x128xi1>, vector<144x128xf32>
    %14 = vector.shape_cast %13 : vector<144x128xf32> to vector<9x16x128xf32>
    %15 = tpu.iota {dimensions = array<i32: 1>} : vector<1x16x1xi32>
    %c9_i32 = arith.constant 9 : i32
    %16 = vector.broadcast %c9_i32 : i32 to vector<1x16x1xi32>
    %17 = arith.cmpi slt, %15, %16 : vector<1x16x1xi32>
    %cst_11 = arith.constant 0.000000e+00 : f32
    %18 = vector.shape_cast %17 : vector<1x16x1xi1> to vector<1x16x1xi1>
    %19 = vector.broadcast %18 : vector<1x16x1xi1> to vector<9x16x128xi1>
    %20 = vector.broadcast %cst_11 : f32 to vector<9x16x128xf32>
    %21 = arith.select %19, %14, %20 : vector<9x16x128xi1>, vector<9x16x128xf32>
    %22 = arith.truncf %21 : vector<9x16x128xf32> to vector<9x16x128xbf16>
    %c0_12 = arith.constant 0 : index
    %c0_13 = arith.constant 0 : index
    %c0_14 = arith.constant 0 : index
    %c0_15 = arith.constant 0 : index
    %23 = vector.load %arg6[%c0_12, %c0_13, %c0_14, %c0_15] : memref<1x9x16x128xbf16, #tpu.memory_space<vmem>>, vector<1x9x16x128xbf16>
    %24 = vector.shape_cast %23 : vector<1x9x16x128xbf16> to vector<9x16x128xbf16>
    %25 = vector.shape_cast %22 : vector<9x16x128xbf16> to vector<1x9x16x128xbf16>
    tpu.vector_store %arg6[%c0_12, %c0_13, %c0_14, %c0_15], %25 {strides = array<i32>} : memref<1x9x16x128xbf16, #tpu.memory_space<vmem>>, vector<1x9x16x128xbf16>,
    return
  }
  func.func @transform_0(%arg0: i32, %arg1: i32, %arg2: i32) -> (i32, i32, i32, i32) {
    %c0_i32 = arith.constant 0 : i32
    %c0_i32_0 = arith.constant 0 : i32
    %c0_i32_1 = arith.constant 0 : i32
    return %arg0, %arg1, %c0_i32, %c0_i32_0 : i32, i32, i32, i32
  }
  func.func @transform_1(%arg0: i32, %arg1: i32, %arg2: i32) -> (i32, i32, i32, i32) {
    %c0_i32 = arith.constant 0 : i32
    %c0_i32_0 = arith.constant 0 : i32
    %c0_i32_1 = arith.constant 0 : i32
    %c0_i32_2 = arith.constant 0 : i32
    return %c0_i32, %c0_i32_0, %c0_i32_1, %arg2 : i32, i32, i32, i32
  }
  func.func @transform_2(%arg0: i32, %arg1: i32, %arg2: i32) -> (i32, i32) {
    %c0_i32 = arith.constant 0 : i32
    %c0_i32_0 = arith.constant 0 : i32
    return %c0_i32, %arg2 : i32, i32
  }
  func.func @transform_3(%arg0: i32, %arg1: i32, %arg2: i32) -> (i32, i32, i32, i32) {
    %c0_i32 = arith.constant 0 : i32
    %c0_i32_0 = arith.constant 0 : i32
    return %arg0, %arg1, %c0_i32, %arg2 : i32, i32, i32, i32
  }
}

module attributes {stable_mosaic.version = 11 : i64} {
  func.func @_conv_kernel(%arg0: i32, %arg1: i32, %arg2: i32, %arg3: memref<1x6x9x512xbf16, #tpu.memory_space<vmem>>, %arg4: memref<2x2x512x128xbf16, #tpu.memory_space<vmem>>, %arg5: memref<1x128xf32, #tpu.memory_space<vmem>>, %arg6: memref<1x5x8x128xbf16, #tpu.memory_space<vmem>>) attributes {dimension_semantics = [#tpu.dimension_semantics<parallel>, #tpu.dimension_semantics<parallel>, #tpu.dimension_semantics<parallel>], iteration_bounds = array<i64: 2, 1, 1>, scalar_prefetch = 0 : i64, scratch_operands = 0 : i64, tpu.core_type = #tpu.core_type<tc>, window_params = [{transform_indices = @transform_0, window_bounds = array<i64: 1, 6, 9, 512>}, {transform_indices = @transform_1, window_bounds = array<i64: 2, 2, 512, 128>}, {transform_indices = @transform_2, window_bounds = array<i64: 1, 128>}, {transform_indices = @transform_3, window_bounds = array<i64: 1, 5, 8, 128>}]} {
    %c5_i32 = arith.constant 5 : i32
    %0 = arith.muli %arg1, %c5_i32 : i32
    %cst = arith.constant 0.000000e+00 : f32
    %1 = vector.broadcast %cst : f32 to vector<40x128xf32>
    %c0 = arith.constant 0 : index
    %2 = arith.index_cast %0 : i32 to index
    %c0_0 = arith.constant 0 : index
    %c0_1 = arith.constant 0 : index
    %3 = vector.load %arg3[%c0, %2, %c0_0, %c0_1] : memref<1x6x9x512xbf16, #tpu.memory_space<vmem>>, vector<1x6x8x512xbf16>
    %4 = vector.shape_cast %3 : vector<1x6x8x512xbf16> to vector<6x8x512xbf16>
    %5 = vector.extract_strided_slice %4 {offsets = [0, 0, 0], sizes = [5, 8, 512], strides = [1, 1, 1]} : vector<6x8x512xbf16> to vector<5x8x512xbf16>
    %6 = vector.shape_cast %5 : vector<5x8x512xbf16> to vector<40x512xbf16>
    %c0_2 = arith.constant 0 : index
    %c0_3 = arith.constant 0 : index
    %c0_4 = arith.constant 0 : index
    %c0_5 = arith.constant 0 : index
    %7 = vector.load %arg4[%c0_2, %c0_3, %c0_4, %c0_5] : memref<2x2x512x128xbf16, #tpu.memory_space<vmem>>, vector<1x1x512x128xbf16>
    %8 = vector.shape_cast %7 : vector<1x1x512x128xbf16> to vector<512x128xbf16>
    %cst_6 = arith.constant dense<0.000000e+00> : vector<40x128xf32>
    %9 = tpu.matmul %6, %8, %cst_6 {dimension_numbers = #tpu.dot_dimension_numbers<[1], [0], [0], [1], [0, 0, 1, 1], [], []>} : vector<40x512xbf16>, vector<512x128xbf16>, vector<40x128xf32> -> vector<40x128xf32>
    %10 = arith.addf %1, %9 : vector<40x128xf32>
    %11 = vector.extract_strided_slice %4 {offsets = [1, 0, 0], sizes = [5, 8, 512], strides = [1, 1, 1]} : vector<6x8x512xbf16> to vector<5x8x512xbf16>
    %12 = vector.shape_cast %11 : vector<5x8x512xbf16> to vector<40x512xbf16>
    %c1 = arith.constant 1 : index
    %c0_7 = arith.constant 0 : index
    %c0_8 = arith.constant 0 : index
    %c0_9 = arith.constant 0 : index
    %13 = vector.load %arg4[%c1, %c0_7, %c0_8, %c0_9] : memref<2x2x512x128xbf16, #tpu.memory_space<vmem>>, vector<1x1x512x128xbf16>
    %14 = vector.shape_cast %13 : vector<1x1x512x128xbf16> to vector<512x128xbf16>
    %cst_10 = arith.constant dense<0.000000e+00> : vector<40x128xf32>
    %15 = tpu.matmul %12, %14, %cst_10 {dimension_numbers = #tpu.dot_dimension_numbers<[1], [0], [0], [1], [0, 0, 1, 1], [], []>} : vector<40x512xbf16>, vector<512x128xbf16>, vector<40x128xf32> -> vector<40x128xf32>
    %16 = arith.addf %10, %15 : vector<40x128xf32>
    %c0_11 = arith.constant 0 : index
    %17 = arith.index_cast %0 : i32 to index
    %c1_12 = arith.constant 1 : index
    %c0_13 = arith.constant 0 : index
    %18 = vector.load %arg3[%c0_11, %17, %c1_12, %c0_13] : memref<1x6x9x512xbf16, #tpu.memory_space<vmem>>, vector<1x6x8x512xbf16>
    %19 = vector.shape_cast %18 : vector<1x6x8x512xbf16> to vector<6x8x512xbf16>
    %20 = vector.extract_strided_slice %19 {offsets = [0, 0, 0], sizes = [5, 8, 512], strides = [1, 1, 1]} : vector<6x8x512xbf16> to vector<5x8x512xbf16>
    %21 = vector.shape_cast %20 : vector<5x8x512xbf16> to vector<40x512xbf16>
    %c0_14 = arith.constant 0 : index
    %c1_15 = arith.constant 1 : index
    %c0_16 = arith.constant 0 : index
    %c0_17 = arith.constant 0 : index
    %22 = vector.load %arg4[%c0_14, %c1_15, %c0_16, %c0_17] : memref<2x2x512x128xbf16, #tpu.memory_space<vmem>>, vector<1x1x512x128xbf16>
    %23 = vector.shape_cast %22 : vector<1x1x512x128xbf16> to vector<512x128xbf16>
    %cst_18 = arith.constant dense<0.000000e+00> : vector<40x128xf32>
    %24 = tpu.matmul %21, %23, %cst_18 {dimension_numbers = #tpu.dot_dimension_numbers<[1], [0], [0], [1], [0, 0, 1, 1], [], []>} : vector<40x512xbf16>, vector<512x128xbf16>, vector<40x128xf32> -> vector<40x128xf32>
    %25 = arith.addf %16, %24 : vector<40x128xf32>
    %26 = vector.extract_strided_slice %19 {offsets = [1, 0, 0], sizes = [5, 8, 512], strides = [1, 1, 1]} : vector<6x8x512xbf16> to vector<5x8x512xbf16>
    %27 = vector.shape_cast %26 : vector<5x8x512xbf16> to vector<40x512xbf16>
    %c1_19 = arith.constant 1 : index
    %c1_20 = arith.constant 1 : index
    %c0_21 = arith.constant 0 : index
    %c0_22 = arith.constant 0 : index
    %28 = vector.load %arg4[%c1_19, %c1_20, %c0_21, %c0_22] : memref<2x2x512x128xbf16, #tpu.memory_space<vmem>>, vector<1x1x512x128xbf16>
    %29 = vector.shape_cast %28 : vector<1x1x512x128xbf16> to vector<512x128xbf16>
    %cst_23 = arith.constant dense<0.000000e+00> : vector<40x128xf32>
    %30 = tpu.matmul %27, %29, %cst_23 {dimension_numbers = #tpu.dot_dimension_numbers<[1], [0], [0], [1], [0, 0, 1, 1], [], []>} : vector<40x512xbf16>, vector<512x128xbf16>, vector<40x128xf32> -> vector<40x128xf32>
    %31 = arith.addf %25, %30 : vector<40x128xf32>
    %c0_24 = arith.constant 0 : index
    %c0_25 = arith.constant 0 : index
    %32 = vector.load %arg5[%c0_24, %c0_25] : memref<1x128xf32, #tpu.memory_space<vmem>>, vector<1x128xf32>
    %33 = vector.broadcast %32 : vector<1x128xf32> to vector<40x128xf32>
    %34 = arith.addf %31, %33 : vector<40x128xf32>
    %cst_26 = arith.constant 0.000000e+00 : f32
    %35 = vector.broadcast %cst_26 : f32 to vector<40x128xf32>
    %36 = arith.cmpf ogt, %34, %35 : vector<40x128xf32>
    %cst_27 = arith.constant 2.000000e-01 : f32
    %37 = vector.broadcast %cst_27 : f32 to vector<40x128xf32>
    %38 = arith.mulf %37, %34 : vector<40x128xf32>
    %39 = arith.select %36, %34, %38 : vector<40x128xi1>, vector<40x128xf32>
    %40 = vector.shape_cast %39 : vector<40x128xf32> to vector<5x8x128xf32>
    %41 = tpu.iota {dimensions = array<i32: 1>} : vector<1x8x1xi32>
    %c5_i32_28 = arith.constant 5 : i32
    %42 = vector.broadcast %c5_i32_28 : i32 to vector<1x8x1xi32>
    %43 = arith.cmpi slt, %41, %42 : vector<1x8x1xi32>
    %cst_29 = arith.constant 0.000000e+00 : f32
    %44 = vector.shape_cast %43 : vector<1x8x1xi1> to vector<1x8x1xi1>
    %45 = vector.broadcast %44 : vector<1x8x1xi1> to vector<5x8x128xi1>
    %46 = vector.broadcast %cst_29 : f32 to vector<5x8x128xf32>
    %47 = arith.select %45, %40, %46 : vector<5x8x128xi1>, vector<5x8x128xf32>
    %48 = arith.truncf %47 : vector<5x8x128xf32> to vector<5x8x128xbf16>
    %c0_30 = arith.constant 0 : index
    %c0_31 = arith.constant 0 : index
    %c0_32 = arith.constant 0 : index
    %c0_33 = arith.constant 0 : index
    %49 = vector.load %arg6[%c0_30, %c0_31, %c0_32, %c0_33] : memref<1x5x8x128xbf16, #tpu.memory_space<vmem>>, vector<1x5x8x128xbf16>
    %50 = vector.shape_cast %49 : vector<1x5x8x128xbf16> to vector<5x8x128xbf16>
    %51 = vector.shape_cast %48 : vector<5x8x128xbf16> to vector<1x5x8x128xbf16>
    tpu.vector_store %arg6[%c0_30, %c0_31, %c0_32, %c0_33], %51 {strides = array<i32>} : memref<1x5x8x128xbf16, #tpu.memory_space<vmem>>, vector<1x5x8x128xbf16>,
    return
  }
  func.func @transform_0(%arg0: i32, %arg1: i32, %arg2: i32) -> (i32, i32, i32, i32) {
    %c0_i32 = arith.constant 0 : i32
    %c0_i32_0 = arith.constant 0 : i32
    %c0_i32_1 = arith.constant 0 : i32
    %c0_i32_2 = arith.constant 0 : i32
    return %arg0, %c0_i32, %c0_i32_0, %c0_i32_1 : i32, i32, i32, i32
  }
  func.func @transform_1(%arg0: i32, %arg1: i32, %arg2: i32) -> (i32, i32, i32, i32) {
    %c0_i32 = arith.constant 0 : i32
    %c0_i32_0 = arith.constant 0 : i32
    %c0_i32_1 = arith.constant 0 : i32
    %c0_i32_2 = arith.constant 0 : i32
    return %c0_i32, %c0_i32_0, %c0_i32_1, %arg2 : i32, i32, i32, i32
  }
  func.func @transform_2(%arg0: i32, %arg1: i32, %arg2: i32) -> (i32, i32) {
    %c0_i32 = arith.constant 0 : i32
    %c0_i32_0 = arith.constant 0 : i32
    return %c0_i32, %arg2 : i32, i32
  }
  func.func @transform_3(%arg0: i32, %arg1: i32, %arg2: i32) -> (i32, i32, i32, i32) {
    %c0_i32 = arith.constant 0 : i32
    %c0_i32_0 = arith.constant 0 : i32
    return %arg0, %arg1, %c0_i32, %arg2 : i32, i32, i32, i32
  }
}

module attributes {stable_mosaic.version = 11 : i64} {
  func.func @_conv_kernel(%arg0: i32, %arg1: i32, %arg2: i32, %arg3: memref<1x4x9x512xbf16, #tpu.memory_space<vmem>>, %arg4: memref<2x2x512x128xbf16, #tpu.memory_space<vmem>>, %arg5: memref<1x128xf32, #tpu.memory_space<vmem>>, %arg6: memref<1x3x8x128xbf16, #tpu.memory_space<vmem>>) attributes {dimension_semantics = [#tpu.dimension_semantics<parallel>, #tpu.dimension_semantics<parallel>, #tpu.dimension_semantics<parallel>], iteration_bounds = array<i64: 2, 1, 1>, scalar_prefetch = 0 : i64, scratch_operands = 0 : i64, tpu.core_type = #tpu.core_type<tc>, window_params = [{transform_indices = @transform_0, window_bounds = array<i64: 1, 4, 9, 512>}, {transform_indices = @transform_1, window_bounds = array<i64: 2, 2, 512, 128>}, {transform_indices = @transform_2, window_bounds = array<i64: 1, 128>}, {transform_indices = @transform_3, window_bounds = array<i64: 1, 3, 8, 128>}]} {
    %c3_i32 = arith.constant 3 : i32
    %0 = arith.muli %arg1, %c3_i32 : i32
    %cst = arith.constant 0.000000e+00 : f32
    %1 = vector.broadcast %cst : f32 to vector<24x128xf32>
    %c0 = arith.constant 0 : index
    %2 = arith.index_cast %0 : i32 to index
    %c0_0 = arith.constant 0 : index
    %c0_1 = arith.constant 0 : index
    %3 = vector.load %arg3[%c0, %2, %c0_0, %c0_1] : memref<1x4x9x512xbf16, #tpu.memory_space<vmem>>, vector<1x4x8x512xbf16>
    %4 = vector.shape_cast %3 : vector<1x4x8x512xbf16> to vector<4x8x512xbf16>
    %5 = vector.extract_strided_slice %4 {offsets = [0, 0, 0], sizes = [3, 8, 512], strides = [1, 1, 1]} : vector<4x8x512xbf16> to vector<3x8x512xbf16>
    %6 = vector.shape_cast %5 : vector<3x8x512xbf16> to vector<24x512xbf16>
    %c0_2 = arith.constant 0 : index
    %c0_3 = arith.constant 0 : index
    %c0_4 = arith.constant 0 : index
    %c0_5 = arith.constant 0 : index
    %7 = vector.load %arg4[%c0_2, %c0_3, %c0_4, %c0_5] : memref<2x2x512x128xbf16, #tpu.memory_space<vmem>>, vector<1x1x512x128xbf16>
    %8 = vector.shape_cast %7 : vector<1x1x512x128xbf16> to vector<512x128xbf16>
    %cst_6 = arith.constant dense<0.000000e+00> : vector<24x128xf32>
    %9 = tpu.matmul %6, %8, %cst_6 {dimension_numbers = #tpu.dot_dimension_numbers<[1], [0], [0], [1], [0, 0, 1, 1], [], []>} : vector<24x512xbf16>, vector<512x128xbf16>, vector<24x128xf32> -> vector<24x128xf32>
    %10 = arith.addf %1, %9 : vector<24x128xf32>
    %11 = vector.extract_strided_slice %4 {offsets = [1, 0, 0], sizes = [3, 8, 512], strides = [1, 1, 1]} : vector<4x8x512xbf16> to vector<3x8x512xbf16>
    %12 = vector.shape_cast %11 : vector<3x8x512xbf16> to vector<24x512xbf16>
    %c1 = arith.constant 1 : index
    %c0_7 = arith.constant 0 : index
    %c0_8 = arith.constant 0 : index
    %c0_9 = arith.constant 0 : index
    %13 = vector.load %arg4[%c1, %c0_7, %c0_8, %c0_9] : memref<2x2x512x128xbf16, #tpu.memory_space<vmem>>, vector<1x1x512x128xbf16>
    %14 = vector.shape_cast %13 : vector<1x1x512x128xbf16> to vector<512x128xbf16>
    %cst_10 = arith.constant dense<0.000000e+00> : vector<24x128xf32>
    %15 = tpu.matmul %12, %14, %cst_10 {dimension_numbers = #tpu.dot_dimension_numbers<[1], [0], [0], [1], [0, 0, 1, 1], [], []>} : vector<24x512xbf16>, vector<512x128xbf16>, vector<24x128xf32> -> vector<24x128xf32>
    %16 = arith.addf %10, %15 : vector<24x128xf32>
    %c0_11 = arith.constant 0 : index
    %17 = arith.index_cast %0 : i32 to index
    %c1_12 = arith.constant 1 : index
    %c0_13 = arith.constant 0 : index
    %18 = vector.load %arg3[%c0_11, %17, %c1_12, %c0_13] : memref<1x4x9x512xbf16, #tpu.memory_space<vmem>>, vector<1x4x8x512xbf16>
    %19 = vector.shape_cast %18 : vector<1x4x8x512xbf16> to vector<4x8x512xbf16>
    %20 = vector.extract_strided_slice %19 {offsets = [0, 0, 0], sizes = [3, 8, 512], strides = [1, 1, 1]} : vector<4x8x512xbf16> to vector<3x8x512xbf16>
    %21 = vector.shape_cast %20 : vector<3x8x512xbf16> to vector<24x512xbf16>
    %c0_14 = arith.constant 0 : index
    %c1_15 = arith.constant 1 : index
    %c0_16 = arith.constant 0 : index
    %c0_17 = arith.constant 0 : index
    %22 = vector.load %arg4[%c0_14, %c1_15, %c0_16, %c0_17] : memref<2x2x512x128xbf16, #tpu.memory_space<vmem>>, vector<1x1x512x128xbf16>
    %23 = vector.shape_cast %22 : vector<1x1x512x128xbf16> to vector<512x128xbf16>
    %cst_18 = arith.constant dense<0.000000e+00> : vector<24x128xf32>
    %24 = tpu.matmul %21, %23, %cst_18 {dimension_numbers = #tpu.dot_dimension_numbers<[1], [0], [0], [1], [0, 0, 1, 1], [], []>} : vector<24x512xbf16>, vector<512x128xbf16>, vector<24x128xf32> -> vector<24x128xf32>
    %25 = arith.addf %16, %24 : vector<24x128xf32>
    %26 = vector.extract_strided_slice %19 {offsets = [1, 0, 0], sizes = [3, 8, 512], strides = [1, 1, 1]} : vector<4x8x512xbf16> to vector<3x8x512xbf16>
    %27 = vector.shape_cast %26 : vector<3x8x512xbf16> to vector<24x512xbf16>
    %c1_19 = arith.constant 1 : index
    %c1_20 = arith.constant 1 : index
    %c0_21 = arith.constant 0 : index
    %c0_22 = arith.constant 0 : index
    %28 = vector.load %arg4[%c1_19, %c1_20, %c0_21, %c0_22] : memref<2x2x512x128xbf16, #tpu.memory_space<vmem>>, vector<1x1x512x128xbf16>
    %29 = vector.shape_cast %28 : vector<1x1x512x128xbf16> to vector<512x128xbf16>
    %cst_23 = arith.constant dense<0.000000e+00> : vector<24x128xf32>
    %30 = tpu.matmul %27, %29, %cst_23 {dimension_numbers = #tpu.dot_dimension_numbers<[1], [0], [0], [1], [0, 0, 1, 1], [], []>} : vector<24x512xbf16>, vector<512x128xbf16>, vector<24x128xf32> -> vector<24x128xf32>
    %31 = arith.addf %25, %30 : vector<24x128xf32>
    %c0_24 = arith.constant 0 : index
    %c0_25 = arith.constant 0 : index
    %32 = vector.load %arg5[%c0_24, %c0_25] : memref<1x128xf32, #tpu.memory_space<vmem>>, vector<1x128xf32>
    %33 = vector.broadcast %32 : vector<1x128xf32> to vector<24x128xf32>
    %34 = arith.addf %31, %33 : vector<24x128xf32>
    %cst_26 = arith.constant 0.000000e+00 : f32
    %35 = vector.broadcast %cst_26 : f32 to vector<24x128xf32>
    %36 = arith.cmpf ogt, %34, %35 : vector<24x128xf32>
    %cst_27 = arith.constant 2.000000e-01 : f32
    %37 = vector.broadcast %cst_27 : f32 to vector<24x128xf32>
    %38 = arith.mulf %37, %34 : vector<24x128xf32>
    %39 = arith.select %36, %34, %38 : vector<24x128xi1>, vector<24x128xf32>
    %40 = vector.shape_cast %39 : vector<24x128xf32> to vector<3x8x128xf32>
    %41 = tpu.iota {dimensions = array<i32: 1>} : vector<1x8x1xi32>
    %c3_i32_28 = arith.constant 3 : i32
    %42 = vector.broadcast %c3_i32_28 : i32 to vector<1x8x1xi32>
    %43 = arith.cmpi slt, %41, %42 : vector<1x8x1xi32>
    %cst_29 = arith.constant 0.000000e+00 : f32
    %44 = vector.shape_cast %43 : vector<1x8x1xi1> to vector<1x8x1xi1>
    %45 = vector.broadcast %44 : vector<1x8x1xi1> to vector<3x8x128xi1>
    %46 = vector.broadcast %cst_29 : f32 to vector<3x8x128xf32>
    %47 = arith.select %45, %40, %46 : vector<3x8x128xi1>, vector<3x8x128xf32>
    %48 = arith.truncf %47 : vector<3x8x128xf32> to vector<3x8x128xbf16>
    %c0_30 = arith.constant 0 : index
    %c0_31 = arith.constant 0 : index
    %c0_32 = arith.constant 0 : index
    %c0_33 = arith.constant 0 : index
    %49 = vector.load %arg6[%c0_30, %c0_31, %c0_32, %c0_33] : memref<1x3x8x128xbf16, #tpu.memory_space<vmem>>, vector<1x3x8x128xbf16>
    %50 = vector.shape_cast %49 : vector<1x3x8x128xbf16> to vector<3x8x128xbf16>
    %51 = vector.shape_cast %48 : vector<3x8x128xbf16> to vector<1x3x8x128xbf16>
    tpu.vector_store %arg6[%c0_30, %c0_31, %c0_32, %c0_33], %51 {strides = array<i32>} : memref<1x3x8x128xbf16, #tpu.memory_space<vmem>>, vector<1x3x8x128xbf16>,
    return
  }
  func.func @transform_0(%arg0: i32, %arg1: i32, %arg2: i32) -> (i32, i32, i32, i32) {
    %c0_i32 = arith.constant 0 : i32
    %c0_i32_0 = arith.constant 0 : i32
    %c0_i32_1 = arith.constant 0 : i32
    %c0_i32_2 = arith.constant 0 : i32
    return %arg0, %c0_i32, %c0_i32_0, %c0_i32_1 : i32, i32, i32, i32
  }
  func.func @transform_1(%arg0: i32, %arg1: i32, %arg2: i32) -> (i32, i32, i32, i32) {
    %c0_i32 = arith.constant 0 : i32
    %c0_i32_0 = arith.constant 0 : i32
    %c0_i32_1 = arith.constant 0 : i32
    %c0_i32_2 = arith.constant 0 : i32
    return %c0_i32, %c0_i32_0, %c0_i32_1, %arg2 : i32, i32, i32, i32
  }
  func.func @transform_2(%arg0: i32, %arg1: i32, %arg2: i32) -> (i32, i32) {
    %c0_i32 = arith.constant 0 : i32
    %c0_i32_0 = arith.constant 0 : i32
    return %c0_i32, %arg2 : i32, i32
  }
  func.func @transform_3(%arg0: i32, %arg1: i32, %arg2: i32) -> (i32, i32, i32, i32) {
    %c0_i32 = arith.constant 0 : i32
    %c0_i32_0 = arith.constant 0 : i32
    return %arg0, %arg1, %c0_i32, %arg2 : i32, i32, i32, i32
  }
}

module attributes {stable_mosaic.version = 11 : i64} {
  func.func @_conv_kernel(%arg0: i32, %arg1: i32, %arg2: i32, %arg3: memref<1x7x11x128xbf16, #tpu.memory_space<vmem>>, %arg4: memref<4x4x128x128xbf16, #tpu.memory_space<vmem>>, %arg5: memref<1x128xf32, #tpu.memory_space<vmem>>, %arg6: memref<1x4x8x128xbf16, #tpu.memory_space<vmem>>) attributes {dimension_semantics = [#tpu.dimension_semantics<parallel>, #tpu.dimension_semantics<parallel>, #tpu.dimension_semantics<parallel>], iteration_bounds = array<i64: 2, 1, 1>, scalar_prefetch = 0 : i64, scratch_operands = 0 : i64, tpu.core_type = #tpu.core_type<tc>, window_params = [{transform_indices = @transform_0, window_bounds = array<i64: 1, 7, 11, 128>}, {transform_indices = @transform_1, window_bounds = array<i64: 4, 4, 128, 128>}, {transform_indices = @transform_2, window_bounds = array<i64: 1, 128>}, {transform_indices = @transform_3, window_bounds = array<i64: 1, 4, 8, 128>}]} {
    %c4_i32 = arith.constant 4 : i32
    %0 = arith.muli %arg1, %c4_i32 : i32
    %cst = arith.constant 0.000000e+00 : f32
    %1 = vector.broadcast %cst : f32 to vector<32x128xf32>
    %c0 = arith.constant 0 : index
    %2 = arith.index_cast %0 : i32 to index
    %c0_0 = arith.constant 0 : index
    %c0_1 = arith.constant 0 : index
    %3 = vector.load %arg3[%c0, %2, %c0_0, %c0_1] : memref<1x7x11x128xbf16, #tpu.memory_space<vmem>>, vector<1x7x8x128xbf16>
    %4 = vector.shape_cast %3 : vector<1x7x8x128xbf16> to vector<7x8x128xbf16>
    %5 = vector.extract_strided_slice %4 {offsets = [0, 0, 0], sizes = [4, 8, 128], strides = [1, 1, 1]} : vector<7x8x128xbf16> to vector<4x8x128xbf16>
    %6 = vector.shape_cast %5 : vector<4x8x128xbf16> to vector<32x128xbf16>
    %c0_2 = arith.constant 0 : index
    %c0_3 = arith.constant 0 : index
    %c0_4 = arith.constant 0 : index
    %c0_5 = arith.constant 0 : index
    %7 = vector.load %arg4[%c0_2, %c0_3, %c0_4, %c0_5] : memref<4x4x128x128xbf16, #tpu.memory_space<vmem>>, vector<1x1x128x128xbf16>
    %8 = vector.shape_cast %7 : vector<1x1x128x128xbf16> to vector<128x128xbf16>
    %cst_6 = arith.constant dense<0.000000e+00> : vector<32x128xf32>
    %9 = tpu.matmul %6, %8, %cst_6 {dimension_numbers = #tpu.dot_dimension_numbers<[1], [0], [0], [1], [0, 0, 1, 1], [], []>} : vector<32x128xbf16>, vector<128x128xbf16>, vector<32x128xf32> -> vector<32x128xf32>
    %10 = arith.addf %1, %9 : vector<32x128xf32>
    %11 = vector.extract_strided_slice %4 {offsets = [1, 0, 0], sizes = [4, 8, 128], strides = [1, 1, 1]} : vector<7x8x128xbf16> to vector<4x8x128xbf16>
    %12 = vector.shape_cast %11 : vector<4x8x128xbf16> to vector<32x128xbf16>
    %c1 = arith.constant 1 : index
    %c0_7 = arith.constant 0 : index
    %c0_8 = arith.constant 0 : index
    %c0_9 = arith.constant 0 : index
    %13 = vector.load %arg4[%c1, %c0_7, %c0_8, %c0_9] : memref<4x4x128x128xbf16, #tpu.memory_space<vmem>>, vector<1x1x128x128xbf16>
    %14 = vector.shape_cast %13 : vector<1x1x128x128xbf16> to vector<128x128xbf16>
    %cst_10 = arith.constant dense<0.000000e+00> : vector<32x128xf32>
    %15 = tpu.matmul %12, %14, %cst_10 {dimension_numbers = #tpu.dot_dimension_numbers<[1], [0], [0], [1], [0, 0, 1, 1], [], []>} : vector<32x128xbf16>, vector<128x128xbf16>, vector<32x128xf32> -> vector<32x128xf32>
    %16 = arith.addf %10, %15 : vector<32x128xf32>
    %17 = vector.extract_strided_slice %4 {offsets = [2, 0, 0], sizes = [4, 8, 128], strides = [1, 1, 1]} : vector<7x8x128xbf16> to vector<4x8x128xbf16>
    %18 = vector.shape_cast %17 : vector<4x8x128xbf16> to vector<32x128xbf16>
    %c2 = arith.constant 2 : index
    %c0_11 = arith.constant 0 : index
    %c0_12 = arith.constant 0 : index
    %c0_13 = arith.constant 0 : index
    %19 = vector.load %arg4[%c2, %c0_11, %c0_12, %c0_13] : memref<4x4x128x128xbf16, #tpu.memory_space<vmem>>, vector<1x1x128x128xbf16>
    %20 = vector.shape_cast %19 : vector<1x1x128x128xbf16> to vector<128x128xbf16>
    %cst_14 = arith.constant dense<0.000000e+00> : vector<32x128xf32>
    %21 = tpu.matmul %18, %20, %cst_14 {dimension_numbers = #tpu.dot_dimension_numbers<[1], [0], [0], [1], [0, 0, 1, 1], [], []>} : vector<32x128xbf16>, vector<128x128xbf16>, vector<32x128xf32> -> vector<32x128xf32>
    %22 = arith.addf %16, %21 : vector<32x128xf32>
    %23 = vector.extract_strided_slice %4 {offsets = [3, 0, 0], sizes = [4, 8, 128], strides = [1, 1, 1]} : vector<7x8x128xbf16> to vector<4x8x128xbf16>
    %24 = vector.shape_cast %23 : vector<4x8x128xbf16> to vector<32x128xbf16>
    %c3 = arith.constant 3 : index
    %c0_15 = arith.constant 0 : index
    %c0_16 = arith.constant 0 : index
    %c0_17 = arith.constant 0 : index
    %25 = vector.load %arg4[%c3, %c0_15, %c0_16, %c0_17] : memref<4x4x128x128xbf16, #tpu.memory_space<vmem>>, vector<1x1x128x128xbf16>
    %26 = vector.shape_cast %25 : vector<1x1x128x128xbf16> to vector<128x128xbf16>
    %cst_18 = arith.constant dense<0.000000e+00> : vector<32x128xf32>
    %27 = tpu.matmul %24, %26, %cst_18 {dimension_numbers = #tpu.dot_dimension_numbers<[1], [0], [0], [1], [0, 0, 1, 1], [], []>} : vector<32x128xbf16>, vector<128x128xbf16>, vector<32x128xf32> -> vector<32x128xf32>
    %28 = arith.addf %22, %27 : vector<32x128xf32>
    %c0_19 = arith.constant 0 : index
    %29 = arith.index_cast %0 : i32 to index
    %c1_20 = arith.constant 1 : index
    %c0_21 = arith.constant 0 : index
    %30 = vector.load %arg3[%c0_19, %29, %c1_20, %c0_21] : memref<1x7x11x128xbf16, #tpu.memory_space<vmem>>, vector<1x7x8x128xbf16>
    %31 = vector.shape_cast %30 : vector<1x7x8x128xbf16> to vector<7x8x128xbf16>
    %32 = vector.extract_strided_slice %31 {offsets = [0, 0, 0], sizes = [4, 8, 128], strides = [1, 1, 1]} : vector<7x8x128xbf16> to vector<4x8x128xbf16>
    %33 = vector.shape_cast %32 : vector<4x8x128xbf16> to vector<32x128xbf16>
    %c0_22 = arith.constant 0 : index
    %c1_23 = arith.constant 1 : index
    %c0_24 = arith.constant 0 : index
    %c0_25 = arith.constant 0 : index
    %34 = vector.load %arg4[%c0_22, %c1_23, %c0_24, %c0_25] : memref<4x4x128x128xbf16, #tpu.memory_space<vmem>>, vector<1x1x128x128xbf16>
    %35 = vector.shape_cast %34 : vector<1x1x128x128xbf16> to vector<128x128xbf16>
    %cst_26 = arith.constant dense<0.000000e+00> : vector<32x128xf32>
    %36 = tpu.matmul %33, %35, %cst_26 {dimension_numbers = #tpu.dot_dimension_numbers<[1], [0], [0], [1], [0, 0, 1, 1], [], []>} : vector<32x128xbf16>, vector<128x128xbf16>, vector<32x128xf32> -> vector<32x128xf32>
    %37 = arith.addf %28, %36 : vector<32x128xf32>
    %38 = vector.extract_strided_slice %31 {offsets = [1, 0, 0], sizes = [4, 8, 128], strides = [1, 1, 1]} : vector<7x8x128xbf16> to vector<4x8x128xbf16>
    %39 = vector.shape_cast %38 : vector<4x8x128xbf16> to vector<32x128xbf16>
    %c1_27 = arith.constant 1 : index
    %c1_28 = arith.constant 1 : index
    %c0_29 = arith.constant 0 : index
    %c0_30 = arith.constant 0 : index
    %40 = vector.load %arg4[%c1_27, %c1_28, %c0_29, %c0_30] : memref<4x4x128x128xbf16, #tpu.memory_space<vmem>>, vector<1x1x128x128xbf16>
    %41 = vector.shape_cast %40 : vector<1x1x128x128xbf16> to vector<128x128xbf16>
    %cst_31 = arith.constant dense<0.000000e+00> : vector<32x128xf32>
    %42 = tpu.matmul %39, %41, %cst_31 {dimension_numbers = #tpu.dot_dimension_numbers<[1], [0], [0], [1], [0, 0, 1, 1], [], []>} : vector<32x128xbf16>, vector<128x128xbf16>, vector<32x128xf32> -> vector<32x128xf32>
    %43 = arith.addf %37, %42 : vector<32x128xf32>
    %44 = vector.extract_strided_slice %31 {offsets = [2, 0, 0], sizes = [4, 8, 128], strides = [1, 1, 1]} : vector<7x8x128xbf16> to vector<4x8x128xbf16>
    %45 = vector.shape_cast %44 : vector<4x8x128xbf16> to vector<32x128xbf16>
    %c2_32 = arith.constant 2 : index
    %c1_33 = arith.constant 1 : index
    %c0_34 = arith.constant 0 : index
    %c0_35 = arith.constant 0 : index
    %46 = vector.load %arg4[%c2_32, %c1_33, %c0_34, %c0_35] : memref<4x4x128x128xbf16, #tpu.memory_space<vmem>>, vector<1x1x128x128xbf16>
    %47 = vector.shape_cast %46 : vector<1x1x128x128xbf16> to vector<128x128xbf16>
    %cst_36 = arith.constant dense<0.000000e+00> : vector<32x128xf32>
    %48 = tpu.matmul %45, %47, %cst_36 {dimension_numbers = #tpu.dot_dimension_numbers<[1], [0], [0], [1], [0, 0, 1, 1], [], []>} : vector<32x128xbf16>, vector<128x128xbf16>, vector<32x128xf32> -> vector<32x128xf32>
    %49 = arith.addf %43, %48 : vector<32x128xf32>
    %50 = vector.extract_strided_slice %31 {offsets = [3, 0, 0], sizes = [4, 8, 128], strides = [1, 1, 1]} : vector<7x8x128xbf16> to vector<4x8x128xbf16>
    %51 = vector.shape_cast %50 : vector<4x8x128xbf16> to vector<32x128xbf16>
    %c3_37 = arith.constant 3 : index
    %c1_38 = arith.constant 1 : index
    %c0_39 = arith.constant 0 : index
    %c0_40 = arith.constant 0 : index
    %52 = vector.load %arg4[%c3_37, %c1_38, %c0_39, %c0_40] : memref<4x4x128x128xbf16, #tpu.memory_space<vmem>>, vector<1x1x128x128xbf16>
    %53 = vector.shape_cast %52 : vector<1x1x128x128xbf16> to vector<128x128xbf16>
    %cst_41 = arith.constant dense<0.000000e+00> : vector<32x128xf32>
    %54 = tpu.matmul %51, %53, %cst_41 {dimension_numbers = #tpu.dot_dimension_numbers<[1], [0], [0], [1], [0, 0, 1, 1], [], []>} : vector<32x128xbf16>, vector<128x128xbf16>, vector<32x128xf32> -> vector<32x128xf32>
    %55 = arith.addf %49, %54 : vector<32x128xf32>
    %c0_42 = arith.constant 0 : index
    %56 = arith.index_cast %0 : i32 to index
    %c2_43 = arith.constant 2 : index
    %c0_44 = arith.constant 0 : index
    %57 = vector.load %arg3[%c0_42, %56, %c2_43, %c0_44] : memref<1x7x11x128xbf16, #tpu.memory_space<vmem>>, vector<1x7x8x128xbf16>
    %58 = vector.shape_cast %57 : vector<1x7x8x128xbf16> to vector<7x8x128xbf16>
    %59 = vector.extract_strided_slice %58 {offsets = [0, 0, 0], sizes = [4, 8, 128], strides = [1, 1, 1]} : vector<7x8x128xbf16> to vector<4x8x128xbf16>
    %60 = vector.shape_cast %59 : vector<4x8x128xbf16> to vector<32x128xbf16>
    %c0_45 = arith.constant 0 : index
    %c2_46 = arith.constant 2 : index
    %c0_47 = arith.constant 0 : index
    %c0_48 = arith.constant 0 : index
    %61 = vector.load %arg4[%c0_45, %c2_46, %c0_47, %c0_48] : memref<4x4x128x128xbf16, #tpu.memory_space<vmem>>, vector<1x1x128x128xbf16>
    %62 = vector.shape_cast %61 : vector<1x1x128x128xbf16> to vector<128x128xbf16>
    %cst_49 = arith.constant dense<0.000000e+00> : vector<32x128xf32>
    %63 = tpu.matmul %60, %62, %cst_49 {dimension_numbers = #tpu.dot_dimension_numbers<[1], [0], [0], [1], [0, 0, 1, 1], [], []>} : vector<32x128xbf16>, vector<128x128xbf16>, vector<32x128xf32> -> vector<32x128xf32>
    %64 = arith.addf %55, %63 : vector<32x128xf32>
    %65 = vector.extract_strided_slice %58 {offsets = [1, 0, 0], sizes = [4, 8, 128], strides = [1, 1, 1]} : vector<7x8x128xbf16> to vector<4x8x128xbf16>
    %66 = vector.shape_cast %65 : vector<4x8x128xbf16> to vector<32x128xbf16>
    %c1_50 = arith.constant 1 : index
    %c2_51 = arith.constant 2 : index
    %c0_52 = arith.constant 0 : index
    %c0_53 = arith.constant 0 : index
    %67 = vector.load %arg4[%c1_50, %c2_51, %c0_52, %c0_53] : memref<4x4x128x128xbf16, #tpu.memory_space<vmem>>, vector<1x1x128x128xbf16>
    %68 = vector.shape_cast %67 : vector<1x1x128x128xbf16> to vector<128x128xbf16>
    %cst_54 = arith.constant dense<0.000000e+00> : vector<32x128xf32>
    %69 = tpu.matmul %66, %68, %cst_54 {dimension_numbers = #tpu.dot_dimension_numbers<[1], [0], [0], [1], [0, 0, 1, 1], [], []>} : vector<32x128xbf16>, vector<128x128xbf16>, vector<32x128xf32> -> vector<32x128xf32>
    %70 = arith.addf %64, %69 : vector<32x128xf32>
    %71 = vector.extract_strided_slice %58 {offsets = [2, 0, 0], sizes = [4, 8, 128], strides = [1, 1, 1]} : vector<7x8x128xbf16> to vector<4x8x128xbf16>
    %72 = vector.shape_cast %71 : vector<4x8x128xbf16> to vector<32x128xbf16>
    %c2_55 = arith.constant 2 : index
    %c2_56 = arith.constant 2 : index
    %c0_57 = arith.constant 0 : index
    %c0_58 = arith.constant 0 : index
    %73 = vector.load %arg4[%c2_55, %c2_56, %c0_57, %c0_58] : memref<4x4x128x128xbf16, #tpu.memory_space<vmem>>, vector<1x1x128x128xbf16>
    %74 = vector.shape_cast %73 : vector<1x1x128x128xbf16> to vector<128x128xbf16>
    %cst_59 = arith.constant dense<0.000000e+00> : vector<32x128xf32>
    %75 = tpu.matmul %72, %74, %cst_59 {dimension_numbers = #tpu.dot_dimension_numbers<[1], [0], [0], [1], [0, 0, 1, 1], [], []>} : vector<32x128xbf16>, vector<128x128xbf16>, vector<32x128xf32> -> vector<32x128xf32>
    %76 = arith.addf %70, %75 : vector<32x128xf32>
    %77 = vector.extract_strided_slice %58 {offsets = [3, 0, 0], sizes = [4, 8, 128], strides = [1, 1, 1]} : vector<7x8x128xbf16> to vector<4x8x128xbf16>
    %78 = vector.shape_cast %77 : vector<4x8x128xbf16> to vector<32x128xbf16>
    %c3_60 = arith.constant 3 : index
    %c2_61 = arith.constant 2 : index
    %c0_62 = arith.constant 0 : index
    %c0_63 = arith.constant 0 : index
    %79 = vector.load %arg4[%c3_60, %c2_61, %c0_62, %c0_63] : memref<4x4x128x128xbf16, #tpu.memory_space<vmem>>, vector<1x1x128x128xbf16>
    %80 = vector.shape_cast %79 : vector<1x1x128x128xbf16> to vector<128x128xbf16>
    %cst_64 = arith.constant dense<0.000000e+00> : vector<32x128xf32>
    %81 = tpu.matmul %78, %80, %cst_64 {dimension_numbers = #tpu.dot_dimension_numbers<[1], [0], [0], [1], [0, 0, 1, 1], [], []>} : vector<32x128xbf16>, vector<128x128xbf16>, vector<32x128xf32> -> vector<32x128xf32>
    %82 = arith.addf %76, %81 : vector<32x128xf32>
    %c0_65 = arith.constant 0 : index
    %83 = arith.index_cast %0 : i32 to index
    %c3_66 = arith.constant 3 : index
    %c0_67 = arith.constant 0 : index
    %84 = vector.load %arg3[%c0_65, %83, %c3_66, %c0_67] : memref<1x7x11x128xbf16, #tpu.memory_space<vmem>>, vector<1x7x8x128xbf16>
    %85 = vector.shape_cast %84 : vector<1x7x8x128xbf16> to vector<7x8x128xbf16>
    %86 = vector.extract_strided_slice %85 {offsets = [0, 0, 0], sizes = [4, 8, 128], strides = [1, 1, 1]} : vector<7x8x128xbf16> to vector<4x8x128xbf16>
    %87 = vector.shape_cast %86 : vector<4x8x128xbf16> to vector<32x128xbf16>
    %c0_68 = arith.constant 0 : index
    %c3_69 = arith.constant 3 : index
    %c0_70 = arith.constant 0 : index
    %c0_71 = arith.constant 0 : index
    %88 = vector.load %arg4[%c0_68, %c3_69, %c0_70, %c0_71] : memref<4x4x128x128xbf16, #tpu.memory_space<vmem>>, vector<1x1x128x128xbf16>
    %89 = vector.shape_cast %88 : vector<1x1x128x128xbf16> to vector<128x128xbf16>
    %cst_72 = arith.constant dense<0.000000e+00> : vector<32x128xf32>
    %90 = tpu.matmul %87, %89, %cst_72 {dimension_numbers = #tpu.dot_dimension_numbers<[1], [0], [0], [1], [0, 0, 1, 1], [], []>} : vector<32x128xbf16>, vector<128x128xbf16>, vector<32x128xf32> -> vector<32x128xf32>
    %91 = arith.addf %82, %90 : vector<32x128xf32>
    %92 = vector.extract_strided_slice %85 {offsets = [1, 0, 0], sizes = [4, 8, 128], strides = [1, 1, 1]} : vector<7x8x128xbf16> to vector<4x8x128xbf16>
    %93 = vector.shape_cast %92 : vector<4x8x128xbf16> to vector<32x128xbf16>
    %c1_73 = arith.constant 1 : index
    %c3_74 = arith.constant 3 : index
    %c0_75 = arith.constant 0 : index
    %c0_76 = arith.constant 0 : index
    %94 = vector.load %arg4[%c1_73, %c3_74, %c0_75, %c0_76] : memref<4x4x128x128xbf16, #tpu.memory_space<vmem>>, vector<1x1x128x128xbf16>
    %95 = vector.shape_cast %94 : vector<1x1x128x128xbf16> to vector<128x128xbf16>
    %cst_77 = arith.constant dense<0.000000e+00> : vector<32x128xf32>
    %96 = tpu.matmul %93, %95, %cst_77 {dimension_numbers = #tpu.dot_dimension_numbers<[1], [0], [0], [1], [0, 0, 1, 1], [], []>} : vector<32x128xbf16>, vector<128x128xbf16>, vector<32x128xf32> -> vector<32x128xf32>
    %97 = arith.addf %91, %96 : vector<32x128xf32>
    %98 = vector.extract_strided_slice %85 {offsets = [2, 0, 0], sizes = [4, 8, 128], strides = [1, 1, 1]} : vector<7x8x128xbf16> to vector<4x8x128xbf16>
    %99 = vector.shape_cast %98 : vector<4x8x128xbf16> to vector<32x128xbf16>
    %c2_78 = arith.constant 2 : index
    %c3_79 = arith.constant 3 : index
    %c0_80 = arith.constant 0 : index
    %c0_81 = arith.constant 0 : index
    %100 = vector.load %arg4[%c2_78, %c3_79, %c0_80, %c0_81] : memref<4x4x128x128xbf16, #tpu.memory_space<vmem>>, vector<1x1x128x128xbf16>
    %101 = vector.shape_cast %100 : vector<1x1x128x128xbf16> to vector<128x128xbf16>
    %cst_82 = arith.constant dense<0.000000e+00> : vector<32x128xf32>
    %102 = tpu.matmul %99, %101, %cst_82 {dimension_numbers = #tpu.dot_dimension_numbers<[1], [0], [0], [1], [0, 0, 1, 1], [], []>} : vector<32x128xbf16>, vector<128x128xbf16>, vector<32x128xf32> -> vector<32x128xf32>
    %103 = arith.addf %97, %102 : vector<32x128xf32>
    %104 = vector.extract_strided_slice %85 {offsets = [3, 0, 0], sizes = [4, 8, 128], strides = [1, 1, 1]} : vector<7x8x128xbf16> to vector<4x8x128xbf16>
    %105 = vector.shape_cast %104 : vector<4x8x128xbf16> to vector<32x128xbf16>
    %c3_83 = arith.constant 3 : index
    %c3_84 = arith.constant 3 : index
    %c0_85 = arith.constant 0 : index
    %c0_86 = arith.constant 0 : index
    %106 = vector.load %arg4[%c3_83, %c3_84, %c0_85, %c0_86] : memref<4x4x128x128xbf16, #tpu.memory_space<vmem>>, vector<1x1x128x128xbf16>
    %107 = vector.shape_cast %106 : vector<1x1x128x128xbf16> to vector<128x128xbf16>
    %cst_87 = arith.constant dense<0.000000e+00> : vector<32x128xf32>
    %108 = tpu.matmul %105, %107, %cst_87 {dimension_numbers = #tpu.dot_dimension_numbers<[1], [0], [0], [1], [0, 0, 1, 1], [], []>} : vector<32x128xbf16>, vector<128x128xbf16>, vector<32x128xf32> -> vector<32x128xf32>
    %109 = arith.addf %103, %108 : vector<32x128xf32>
    %c0_88 = arith.constant 0 : index
    %c0_89 = arith.constant 0 : index
    %110 = vector.load %arg5[%c0_88, %c0_89] : memref<1x128xf32, #tpu.memory_space<vmem>>, vector<1x128xf32>
    %111 = vector.broadcast %110 : vector<1x128xf32> to vector<32x128xf32>
    %112 = arith.addf %109, %111 : vector<32x128xf32>
    %cst_90 = arith.constant 0.000000e+00 : f32
    %113 = vector.broadcast %cst_90 : f32 to vector<32x128xf32>
    %114 = arith.cmpf ogt, %112, %113 : vector<32x128xf32>
    %cst_91 = arith.constant 2.000000e-01 : f32
    %115 = vector.broadcast %cst_91 : f32 to vector<32x128xf32>
    %116 = arith.mulf %115, %112 : vector<32x128xf32>
    %117 = arith.select %114, %112, %116 : vector<32x128xi1>, vector<32x128xf32>
    %118 = vector.shape_cast %117 : vector<32x128xf32> to vector<4x8x128xf32>
    %119 = tpu.iota {dimensions = array<i32: 1>} : vector<1x8x1xi32>
    %c4_i32_92 = arith.constant 4 : i32
    %120 = vector.broadcast %c4_i32_92 : i32 to vector<1x8x1xi32>
    %121 = arith.cmpi slt, %119, %120 : vector<1x8x1xi32>
    %cst_93 = arith.constant 0.000000e+00 : f32
    %122 = vector.shape_cast %121 : vector<1x8x1xi1> to vector<1x8x1xi1>
    %123 = vector.broadcast %122 : vector<1x8x1xi1> to vector<4x8x128xi1>
    %124 = vector.broadcast %cst_93 : f32 to vector<4x8x128xf32>
    %125 = arith.select %123, %118, %124 : vector<4x8x128xi1>, vector<4x8x128xf32>
    %126 = arith.truncf %125 : vector<4x8x128xf32> to vector<4x8x128xbf16>
    %c0_94 = arith.constant 0 : index
    %c0_95 = arith.constant 0 : index
    %c0_96 = arith.constant 0 : index
    %c0_97 = arith.constant 0 : index
    %127 = vector.load %arg6[%c0_94, %c0_95, %c0_96, %c0_97] : memref<1x4x8x128xbf16, #tpu.memory_space<vmem>>, vector<1x4x8x128xbf16>
    %128 = vector.shape_cast %127 : vector<1x4x8x128xbf16> to vector<4x8x128xbf16>
    %129 = vector.shape_cast %126 : vector<4x8x128xbf16> to vector<1x4x8x128xbf16>
    tpu.vector_store %arg6[%c0_94, %c0_95, %c0_96, %c0_97], %129 {strides = array<i32>} : memref<1x4x8x128xbf16, #tpu.memory_space<vmem>>, vector<1x4x8x128xbf16>,
    return
  }
  func.func @transform_0(%arg0: i32, %arg1: i32, %arg2: i32) -> (i32, i32, i32, i32) {
    %c0_i32 = arith.constant 0 : i32
    %c0_i32_0 = arith.constant 0 : i32
    %c0_i32_1 = arith.constant 0 : i32
    %c0_i32_2 = arith.constant 0 : i32
    return %arg0, %c0_i32, %c0_i32_0, %c0_i32_1 : i32, i32, i32, i32
  }
  func.func @transform_1(%arg0: i32, %arg1: i32, %arg2: i32) -> (i32, i32, i32, i32) {
    %c0_i32 = arith.constant 0 : i32
    %c0_i32_0 = arith.constant 0 : i32
    %c0_i32_1 = arith.constant 0 : i32
    %c0_i32_2 = arith.constant 0 : i32
    return %c0_i32, %c0_i32_0, %c0_i32_1, %arg2 : i32, i32, i32, i32
  }
  func.func @transform_2(%arg0: i32, %arg1: i32, %arg2: i32) -> (i32, i32) {
    %c0_i32 = arith.constant 0 : i32
    %c0_i32_0 = arith.constant 0 : i32
    return %c0_i32, %arg2 : i32, i32
  }
  func.func @transform_3(%arg0: i32, %arg1: i32, %arg2: i32) -> (i32, i32, i32, i32) {
    %c0_i32 = arith.constant 0 : i32
    %c0_i32_0 = arith.constant 0 : i32
    return %arg0, %arg1, %c0_i32, %arg2 : i32, i32, i32, i32
  }
}

module attributes {stable_mosaic.version = 11 : i64} {
  func.func @_conv_kernel(%arg0: i32, %arg1: i32, %arg2: i32, %arg3: memref<1x8x11x128xbf16, #tpu.memory_space<vmem>>, %arg4: memref<4x4x128x128xbf16, #tpu.memory_space<vmem>>, %arg5: memref<1x128xf32, #tpu.memory_space<vmem>>, %arg6: memref<1x5x8x128xbf16, #tpu.memory_space<vmem>>) attributes {dimension_semantics = [#tpu.dimension_semantics<parallel>, #tpu.dimension_semantics<parallel>, #tpu.dimension_semantics<parallel>], iteration_bounds = array<i64: 2, 1, 1>, scalar_prefetch = 0 : i64, scratch_operands = 0 : i64, tpu.core_type = #tpu.core_type<tc>, window_params = [{transform_indices = @transform_0, window_bounds = array<i64: 1, 8, 11, 128>}, {transform_indices = @transform_1, window_bounds = array<i64: 4, 4, 128, 128>}, {transform_indices = @transform_2, window_bounds = array<i64: 1, 128>}, {transform_indices = @transform_3, window_bounds = array<i64: 1, 5, 8, 128>}]} {
    %c5_i32 = arith.constant 5 : i32
    %0 = arith.muli %arg1, %c5_i32 : i32
    %cst = arith.constant 0.000000e+00 : f32
    %1 = vector.broadcast %cst : f32 to vector<40x128xf32>
    %c0 = arith.constant 0 : index
    %2 = arith.index_cast %0 : i32 to index
    %c0_0 = arith.constant 0 : index
    %c0_1 = arith.constant 0 : index
    %3 = vector.load %arg3[%c0, %2, %c0_0, %c0_1] : memref<1x8x11x128xbf16, #tpu.memory_space<vmem>>, vector<1x8x8x128xbf16>
    %4 = vector.shape_cast %3 : vector<1x8x8x128xbf16> to vector<8x8x128xbf16>
    %5 = vector.extract_strided_slice %4 {offsets = [0, 0, 0], sizes = [5, 8, 128], strides = [1, 1, 1]} : vector<8x8x128xbf16> to vector<5x8x128xbf16>
    %6 = vector.shape_cast %5 : vector<5x8x128xbf16> to vector<40x128xbf16>
    %c0_2 = arith.constant 0 : index
    %c0_3 = arith.constant 0 : index
    %c0_4 = arith.constant 0 : index
    %c0_5 = arith.constant 0 : index
    %7 = vector.load %arg4[%c0_2, %c0_3, %c0_4, %c0_5] : memref<4x4x128x128xbf16, #tpu.memory_space<vmem>>, vector<1x1x128x128xbf16>
    %8 = vector.shape_cast %7 : vector<1x1x128x128xbf16> to vector<128x128xbf16>
    %cst_6 = arith.constant dense<0.000000e+00> : vector<40x128xf32>
    %9 = tpu.matmul %6, %8, %cst_6 {dimension_numbers = #tpu.dot_dimension_numbers<[1], [0], [0], [1], [0, 0, 1, 1], [], []>} : vector<40x128xbf16>, vector<128x128xbf16>, vector<40x128xf32> -> vector<40x128xf32>
    %10 = arith.addf %1, %9 : vector<40x128xf32>
    %11 = vector.extract_strided_slice %4 {offsets = [1, 0, 0], sizes = [5, 8, 128], strides = [1, 1, 1]} : vector<8x8x128xbf16> to vector<5x8x128xbf16>
    %12 = vector.shape_cast %11 : vector<5x8x128xbf16> to vector<40x128xbf16>
    %c1 = arith.constant 1 : index
    %c0_7 = arith.constant 0 : index
    %c0_8 = arith.constant 0 : index
    %c0_9 = arith.constant 0 : index
    %13 = vector.load %arg4[%c1, %c0_7, %c0_8, %c0_9] : memref<4x4x128x128xbf16, #tpu.memory_space<vmem>>, vector<1x1x128x128xbf16>
    %14 = vector.shape_cast %13 : vector<1x1x128x128xbf16> to vector<128x128xbf16>
    %cst_10 = arith.constant dense<0.000000e+00> : vector<40x128xf32>
    %15 = tpu.matmul %12, %14, %cst_10 {dimension_numbers = #tpu.dot_dimension_numbers<[1], [0], [0], [1], [0, 0, 1, 1], [], []>} : vector<40x128xbf16>, vector<128x128xbf16>, vector<40x128xf32> -> vector<40x128xf32>
    %16 = arith.addf %10, %15 : vector<40x128xf32>
    %17 = vector.extract_strided_slice %4 {offsets = [2, 0, 0], sizes = [5, 8, 128], strides = [1, 1, 1]} : vector<8x8x128xbf16> to vector<5x8x128xbf16>
    %18 = vector.shape_cast %17 : vector<5x8x128xbf16> to vector<40x128xbf16>
    %c2 = arith.constant 2 : index
    %c0_11 = arith.constant 0 : index
    %c0_12 = arith.constant 0 : index
    %c0_13 = arith.constant 0 : index
    %19 = vector.load %arg4[%c2, %c0_11, %c0_12, %c0_13] : memref<4x4x128x128xbf16, #tpu.memory_space<vmem>>, vector<1x1x128x128xbf16>
    %20 = vector.shape_cast %19 : vector<1x1x128x128xbf16> to vector<128x128xbf16>
    %cst_14 = arith.constant dense<0.000000e+00> : vector<40x128xf32>
    %21 = tpu.matmul %18, %20, %cst_14 {dimension_numbers = #tpu.dot_dimension_numbers<[1], [0], [0], [1], [0, 0, 1, 1], [], []>} : vector<40x128xbf16>, vector<128x128xbf16>, vector<40x128xf32> -> vector<40x128xf32>
    %22 = arith.addf %16, %21 : vector<40x128xf32>
    %23 = vector.extract_strided_slice %4 {offsets = [3, 0, 0], sizes = [5, 8, 128], strides = [1, 1, 1]} : vector<8x8x128xbf16> to vector<5x8x128xbf16>
    %24 = vector.shape_cast %23 : vector<5x8x128xbf16> to vector<40x128xbf16>
    %c3 = arith.constant 3 : index
    %c0_15 = arith.constant 0 : index
    %c0_16 = arith.constant 0 : index
    %c0_17 = arith.constant 0 : index
    %25 = vector.load %arg4[%c3, %c0_15, %c0_16, %c0_17] : memref<4x4x128x128xbf16, #tpu.memory_space<vmem>>, vector<1x1x128x128xbf16>
    %26 = vector.shape_cast %25 : vector<1x1x128x128xbf16> to vector<128x128xbf16>
    %cst_18 = arith.constant dense<0.000000e+00> : vector<40x128xf32>
    %27 = tpu.matmul %24, %26, %cst_18 {dimension_numbers = #tpu.dot_dimension_numbers<[1], [0], [0], [1], [0, 0, 1, 1], [], []>} : vector<40x128xbf16>, vector<128x128xbf16>, vector<40x128xf32> -> vector<40x128xf32>
    %28 = arith.addf %22, %27 : vector<40x128xf32>
    %c0_19 = arith.constant 0 : index
    %29 = arith.index_cast %0 : i32 to index
    %c1_20 = arith.constant 1 : index
    %c0_21 = arith.constant 0 : index
    %30 = vector.load %arg3[%c0_19, %29, %c1_20, %c0_21] : memref<1x8x11x128xbf16, #tpu.memory_space<vmem>>, vector<1x8x8x128xbf16>
    %31 = vector.shape_cast %30 : vector<1x8x8x128xbf16> to vector<8x8x128xbf16>
    %32 = vector.extract_strided_slice %31 {offsets = [0, 0, 0], sizes = [5, 8, 128], strides = [1, 1, 1]} : vector<8x8x128xbf16> to vector<5x8x128xbf16>
    %33 = vector.shape_cast %32 : vector<5x8x128xbf16> to vector<40x128xbf16>
    %c0_22 = arith.constant 0 : index
    %c1_23 = arith.constant 1 : index
    %c0_24 = arith.constant 0 : index
    %c0_25 = arith.constant 0 : index
    %34 = vector.load %arg4[%c0_22, %c1_23, %c0_24, %c0_25] : memref<4x4x128x128xbf16, #tpu.memory_space<vmem>>, vector<1x1x128x128xbf16>
    %35 = vector.shape_cast %34 : vector<1x1x128x128xbf16> to vector<128x128xbf16>
    %cst_26 = arith.constant dense<0.000000e+00> : vector<40x128xf32>
    %36 = tpu.matmul %33, %35, %cst_26 {dimension_numbers = #tpu.dot_dimension_numbers<[1], [0], [0], [1], [0, 0, 1, 1], [], []>} : vector<40x128xbf16>, vector<128x128xbf16>, vector<40x128xf32> -> vector<40x128xf32>
    %37 = arith.addf %28, %36 : vector<40x128xf32>
    %38 = vector.extract_strided_slice %31 {offsets = [1, 0, 0], sizes = [5, 8, 128], strides = [1, 1, 1]} : vector<8x8x128xbf16> to vector<5x8x128xbf16>
    %39 = vector.shape_cast %38 : vector<5x8x128xbf16> to vector<40x128xbf16>
    %c1_27 = arith.constant 1 : index
    %c1_28 = arith.constant 1 : index
    %c0_29 = arith.constant 0 : index
    %c0_30 = arith.constant 0 : index
    %40 = vector.load %arg4[%c1_27, %c1_28, %c0_29, %c0_30] : memref<4x4x128x128xbf16, #tpu.memory_space<vmem>>, vector<1x1x128x128xbf16>
    %41 = vector.shape_cast %40 : vector<1x1x128x128xbf16> to vector<128x128xbf16>
    %cst_31 = arith.constant dense<0.000000e+00> : vector<40x128xf32>
    %42 = tpu.matmul %39, %41, %cst_31 {dimension_numbers = #tpu.dot_dimension_numbers<[1], [0], [0], [1], [0, 0, 1, 1], [], []>} : vector<40x128xbf16>, vector<128x128xbf16>, vector<40x128xf32> -> vector<40x128xf32>
    %43 = arith.addf %37, %42 : vector<40x128xf32>
    %44 = vector.extract_strided_slice %31 {offsets = [2, 0, 0], sizes = [5, 8, 128], strides = [1, 1, 1]} : vector<8x8x128xbf16> to vector<5x8x128xbf16>
    %45 = vector.shape_cast %44 : vector<5x8x128xbf16> to vector<40x128xbf16>
    %c2_32 = arith.constant 2 : index
    %c1_33 = arith.constant 1 : index
    %c0_34 = arith.constant 0 : index
    %c0_35 = arith.constant 0 : index
    %46 = vector.load %arg4[%c2_32, %c1_33, %c0_34, %c0_35] : memref<4x4x128x128xbf16, #tpu.memory_space<vmem>>, vector<1x1x128x128xbf16>
    %47 = vector.shape_cast %46 : vector<1x1x128x128xbf16> to vector<128x128xbf16>
    %cst_36 = arith.constant dense<0.000000e+00> : vector<40x128xf32>
    %48 = tpu.matmul %45, %47, %cst_36 {dimension_numbers = #tpu.dot_dimension_numbers<[1], [0], [0], [1], [0, 0, 1, 1], [], []>} : vector<40x128xbf16>, vector<128x128xbf16>, vector<40x128xf32> -> vector<40x128xf32>
    %49 = arith.addf %43, %48 : vector<40x128xf32>
    %50 = vector.extract_strided_slice %31 {offsets = [3, 0, 0], sizes = [5, 8, 128], strides = [1, 1, 1]} : vector<8x8x128xbf16> to vector<5x8x128xbf16>
    %51 = vector.shape_cast %50 : vector<5x8x128xbf16> to vector<40x128xbf16>
    %c3_37 = arith.constant 3 : index
    %c1_38 = arith.constant 1 : index
    %c0_39 = arith.constant 0 : index
    %c0_40 = arith.constant 0 : index
    %52 = vector.load %arg4[%c3_37, %c1_38, %c0_39, %c0_40] : memref<4x4x128x128xbf16, #tpu.memory_space<vmem>>, vector<1x1x128x128xbf16>
    %53 = vector.shape_cast %52 : vector<1x1x128x128xbf16> to vector<128x128xbf16>
    %cst_41 = arith.constant dense<0.000000e+00> : vector<40x128xf32>
    %54 = tpu.matmul %51, %53, %cst_41 {dimension_numbers = #tpu.dot_dimension_numbers<[1], [0], [0], [1], [0, 0, 1, 1], [], []>} : vector<40x128xbf16>, vector<128x128xbf16>, vector<40x128xf32> -> vector<40x128xf32>
    %55 = arith.addf %49, %54 : vector<40x128xf32>
    %c0_42 = arith.constant 0 : index
    %56 = arith.index_cast %0 : i32 to index
    %c2_43 = arith.constant 2 : index
    %c0_44 = arith.constant 0 : index
    %57 = vector.load %arg3[%c0_42, %56, %c2_43, %c0_44] : memref<1x8x11x128xbf16, #tpu.memory_space<vmem>>, vector<1x8x8x128xbf16>
    %58 = vector.shape_cast %57 : vector<1x8x8x128xbf16> to vector<8x8x128xbf16>
    %59 = vector.extract_strided_slice %58 {offsets = [0, 0, 0], sizes = [5, 8, 128], strides = [1, 1, 1]} : vector<8x8x128xbf16> to vector<5x8x128xbf16>
    %60 = vector.shape_cast %59 : vector<5x8x128xbf16> to vector<40x128xbf16>
    %c0_45 = arith.constant 0 : index
    %c2_46 = arith.constant 2 : index
    %c0_47 = arith.constant 0 : index
    %c0_48 = arith.constant 0 : index
    %61 = vector.load %arg4[%c0_45, %c2_46, %c0_47, %c0_48] : memref<4x4x128x128xbf16, #tpu.memory_space<vmem>>, vector<1x1x128x128xbf16>
    %62 = vector.shape_cast %61 : vector<1x1x128x128xbf16> to vector<128x128xbf16>
    %cst_49 = arith.constant dense<0.000000e+00> : vector<40x128xf32>
    %63 = tpu.matmul %60, %62, %cst_49 {dimension_numbers = #tpu.dot_dimension_numbers<[1], [0], [0], [1], [0, 0, 1, 1], [], []>} : vector<40x128xbf16>, vector<128x128xbf16>, vector<40x128xf32> -> vector<40x128xf32>
    %64 = arith.addf %55, %63 : vector<40x128xf32>
    %65 = vector.extract_strided_slice %58 {offsets = [1, 0, 0], sizes = [5, 8, 128], strides = [1, 1, 1]} : vector<8x8x128xbf16> to vector<5x8x128xbf16>
    %66 = vector.shape_cast %65 : vector<5x8x128xbf16> to vector<40x128xbf16>
    %c1_50 = arith.constant 1 : index
    %c2_51 = arith.constant 2 : index
    %c0_52 = arith.constant 0 : index
    %c0_53 = arith.constant 0 : index
    %67 = vector.load %arg4[%c1_50, %c2_51, %c0_52, %c0_53] : memref<4x4x128x128xbf16, #tpu.memory_space<vmem>>, vector<1x1x128x128xbf16>
    %68 = vector.shape_cast %67 : vector<1x1x128x128xbf16> to vector<128x128xbf16>
    %cst_54 = arith.constant dense<0.000000e+00> : vector<40x128xf32>
    %69 = tpu.matmul %66, %68, %cst_54 {dimension_numbers = #tpu.dot_dimension_numbers<[1], [0], [0], [1], [0, 0, 1, 1], [], []>} : vector<40x128xbf16>, vector<128x128xbf16>, vector<40x128xf32> -> vector<40x128xf32>
    %70 = arith.addf %64, %69 : vector<40x128xf32>
    %71 = vector.extract_strided_slice %58 {offsets = [2, 0, 0], sizes = [5, 8, 128], strides = [1, 1, 1]} : vector<8x8x128xbf16> to vector<5x8x128xbf16>
    %72 = vector.shape_cast %71 : vector<5x8x128xbf16> to vector<40x128xbf16>
    %c2_55 = arith.constant 2 : index
    %c2_56 = arith.constant 2 : index
    %c0_57 = arith.constant 0 : index
    %c0_58 = arith.constant 0 : index
    %73 = vector.load %arg4[%c2_55, %c2_56, %c0_57, %c0_58] : memref<4x4x128x128xbf16, #tpu.memory_space<vmem>>, vector<1x1x128x128xbf16>
    %74 = vector.shape_cast %73 : vector<1x1x128x128xbf16> to vector<128x128xbf16>
    %cst_59 = arith.constant dense<0.000000e+00> : vector<40x128xf32>
    %75 = tpu.matmul %72, %74, %cst_59 {dimension_numbers = #tpu.dot_dimension_numbers<[1], [0], [0], [1], [0, 0, 1, 1], [], []>} : vector<40x128xbf16>, vector<128x128xbf16>, vector<40x128xf32> -> vector<40x128xf32>
    %76 = arith.addf %70, %75 : vector<40x128xf32>
    %77 = vector.extract_strided_slice %58 {offsets = [3, 0, 0], sizes = [5, 8, 128], strides = [1, 1, 1]} : vector<8x8x128xbf16> to vector<5x8x128xbf16>
    %78 = vector.shape_cast %77 : vector<5x8x128xbf16> to vector<40x128xbf16>
    %c3_60 = arith.constant 3 : index
    %c2_61 = arith.constant 2 : index
    %c0_62 = arith.constant 0 : index
    %c0_63 = arith.constant 0 : index
    %79 = vector.load %arg4[%c3_60, %c2_61, %c0_62, %c0_63] : memref<4x4x128x128xbf16, #tpu.memory_space<vmem>>, vector<1x1x128x128xbf16>
    %80 = vector.shape_cast %79 : vector<1x1x128x128xbf16> to vector<128x128xbf16>
    %cst_64 = arith.constant dense<0.000000e+00> : vector<40x128xf32>
    %81 = tpu.matmul %78, %80, %cst_64 {dimension_numbers = #tpu.dot_dimension_numbers<[1], [0], [0], [1], [0, 0, 1, 1], [], []>} : vector<40x128xbf16>, vector<128x128xbf16>, vector<40x128xf32> -> vector<40x128xf32>
    %82 = arith.addf %76, %81 : vector<40x128xf32>
    %c0_65 = arith.constant 0 : index
    %83 = arith.index_cast %0 : i32 to index
    %c3_66 = arith.constant 3 : index
    %c0_67 = arith.constant 0 : index
    %84 = vector.load %arg3[%c0_65, %83, %c3_66, %c0_67] : memref<1x8x11x128xbf16, #tpu.memory_space<vmem>>, vector<1x8x8x128xbf16>
    %85 = vector.shape_cast %84 : vector<1x8x8x128xbf16> to vector<8x8x128xbf16>
    %86 = vector.extract_strided_slice %85 {offsets = [0, 0, 0], sizes = [5, 8, 128], strides = [1, 1, 1]} : vector<8x8x128xbf16> to vector<5x8x128xbf16>
    %87 = vector.shape_cast %86 : vector<5x8x128xbf16> to vector<40x128xbf16>
    %c0_68 = arith.constant 0 : index
    %c3_69 = arith.constant 3 : index
    %c0_70 = arith.constant 0 : index
    %c0_71 = arith.constant 0 : index
    %88 = vector.load %arg4[%c0_68, %c3_69, %c0_70, %c0_71] : memref<4x4x128x128xbf16, #tpu.memory_space<vmem>>, vector<1x1x128x128xbf16>
    %89 = vector.shape_cast %88 : vector<1x1x128x128xbf16> to vector<128x128xbf16>
    %cst_72 = arith.constant dense<0.000000e+00> : vector<40x128xf32>
    %90 = tpu.matmul %87, %89, %cst_72 {dimension_numbers = #tpu.dot_dimension_numbers<[1], [0], [0], [1], [0, 0, 1, 1], [], []>} : vector<40x128xbf16>, vector<128x128xbf16>, vector<40x128xf32> -> vector<40x128xf32>
    %91 = arith.addf %82, %90 : vector<40x128xf32>
    %92 = vector.extract_strided_slice %85 {offsets = [1, 0, 0], sizes = [5, 8, 128], strides = [1, 1, 1]} : vector<8x8x128xbf16> to vector<5x8x128xbf16>
    %93 = vector.shape_cast %92 : vector<5x8x128xbf16> to vector<40x128xbf16>
    %c1_73 = arith.constant 1 : index
    %c3_74 = arith.constant 3 : index
    %c0_75 = arith.constant 0 : index
    %c0_76 = arith.constant 0 : index
    %94 = vector.load %arg4[%c1_73, %c3_74, %c0_75, %c0_76] : memref<4x4x128x128xbf16, #tpu.memory_space<vmem>>, vector<1x1x128x128xbf16>
    %95 = vector.shape_cast %94 : vector<1x1x128x128xbf16> to vector<128x128xbf16>
    %cst_77 = arith.constant dense<0.000000e+00> : vector<40x128xf32>
    %96 = tpu.matmul %93, %95, %cst_77 {dimension_numbers = #tpu.dot_dimension_numbers<[1], [0], [0], [1], [0, 0, 1, 1], [], []>} : vector<40x128xbf16>, vector<128x128xbf16>, vector<40x128xf32> -> vector<40x128xf32>
    %97 = arith.addf %91, %96 : vector<40x128xf32>
    %98 = vector.extract_strided_slice %85 {offsets = [2, 0, 0], sizes = [5, 8, 128], strides = [1, 1, 1]} : vector<8x8x128xbf16> to vector<5x8x128xbf16>
    %99 = vector.shape_cast %98 : vector<5x8x128xbf16> to vector<40x128xbf16>
    %c2_78 = arith.constant 2 : index
    %c3_79 = arith.constant 3 : index
    %c0_80 = arith.constant 0 : index
    %c0_81 = arith.constant 0 : index
    %100 = vector.load %arg4[%c2_78, %c3_79, %c0_80, %c0_81] : memref<4x4x128x128xbf16, #tpu.memory_space<vmem>>, vector<1x1x128x128xbf16>
    %101 = vector.shape_cast %100 : vector<1x1x128x128xbf16> to vector<128x128xbf16>
    %cst_82 = arith.constant dense<0.000000e+00> : vector<40x128xf32>
    %102 = tpu.matmul %99, %101, %cst_82 {dimension_numbers = #tpu.dot_dimension_numbers<[1], [0], [0], [1], [0, 0, 1, 1], [], []>} : vector<40x128xbf16>, vector<128x128xbf16>, vector<40x128xf32> -> vector<40x128xf32>
    %103 = arith.addf %97, %102 : vector<40x128xf32>
    %104 = vector.extract_strided_slice %85 {offsets = [3, 0, 0], sizes = [5, 8, 128], strides = [1, 1, 1]} : vector<8x8x128xbf16> to vector<5x8x128xbf16>
    %105 = vector.shape_cast %104 : vector<5x8x128xbf16> to vector<40x128xbf16>
    %c3_83 = arith.constant 3 : index
    %c3_84 = arith.constant 3 : index
    %c0_85 = arith.constant 0 : index
    %c0_86 = arith.constant 0 : index
    %106 = vector.load %arg4[%c3_83, %c3_84, %c0_85, %c0_86] : memref<4x4x128x128xbf16, #tpu.memory_space<vmem>>, vector<1x1x128x128xbf16>
    %107 = vector.shape_cast %106 : vector<1x1x128x128xbf16> to vector<128x128xbf16>
    %cst_87 = arith.constant dense<0.000000e+00> : vector<40x128xf32>
    %108 = tpu.matmul %105, %107, %cst_87 {dimension_numbers = #tpu.dot_dimension_numbers<[1], [0], [0], [1], [0, 0, 1, 1], [], []>} : vector<40x128xbf16>, vector<128x128xbf16>, vector<40x128xf32> -> vector<40x128xf32>
    %109 = arith.addf %103, %108 : vector<40x128xf32>
    %c0_88 = arith.constant 0 : index
    %c0_89 = arith.constant 0 : index
    %110 = vector.load %arg5[%c0_88, %c0_89] : memref<1x128xf32, #tpu.memory_space<vmem>>, vector<1x128xf32>
    %111 = vector.broadcast %110 : vector<1x128xf32> to vector<40x128xf32>
    %112 = arith.addf %109, %111 : vector<40x128xf32>
    %113 = vector.shape_cast %112 : vector<40x128xf32> to vector<5x8x128xf32>
    %114 = tpu.iota {dimensions = array<i32: 1>} : vector<1x8x1xi32>
    %c5_i32_90 = arith.constant 5 : i32
    %115 = vector.broadcast %c5_i32_90 : i32 to vector<1x8x1xi32>
    %116 = arith.cmpi slt, %114, %115 : vector<1x8x1xi32>
    %cst_91 = arith.constant 0.000000e+00 : f32
    %117 = vector.shape_cast %116 : vector<1x8x1xi1> to vector<1x8x1xi1>
    %118 = vector.broadcast %117 : vector<1x8x1xi1> to vector<5x8x128xi1>
    %119 = vector.broadcast %cst_91 : f32 to vector<5x8x128xf32>
    %120 = arith.select %118, %113, %119 : vector<5x8x128xi1>, vector<5x8x128xf32>
    %121 = arith.truncf %120 : vector<5x8x128xf32> to vector<5x8x128xbf16>
    %c0_92 = arith.constant 0 : index
    %c0_93 = arith.constant 0 : index
    %c0_94 = arith.constant 0 : index
    %c0_95 = arith.constant 0 : index
    %122 = vector.load %arg6[%c0_92, %c0_93, %c0_94, %c0_95] : memref<1x5x8x128xbf16, #tpu.memory_space<vmem>>, vector<1x5x8x128xbf16>
    %123 = vector.shape_cast %122 : vector<1x5x8x128xbf16> to vector<5x8x128xbf16>
    %124 = vector.shape_cast %121 : vector<5x8x128xbf16> to vector<1x5x8x128xbf16>
    tpu.vector_store %arg6[%c0_92, %c0_93, %c0_94, %c0_95], %124 {strides = array<i32>} : memref<1x5x8x128xbf16, #tpu.memory_space<vmem>>, vector<1x5x8x128xbf16>,
    return
  }
  func.func @transform_0(%arg0: i32, %arg1: i32, %arg2: i32) -> (i32, i32, i32, i32) {
    %c0_i32 = arith.constant 0 : i32
    %c0_i32_0 = arith.constant 0 : i32
    %c0_i32_1 = arith.constant 0 : i32
    %c0_i32_2 = arith.constant 0 : i32
    return %arg0, %c0_i32, %c0_i32_0, %c0_i32_1 : i32, i32, i32, i32
  }
  func.func @transform_1(%arg0: i32, %arg1: i32, %arg2: i32) -> (i32, i32, i32, i32) {
    %c0_i32 = arith.constant 0 : i32
    %c0_i32_0 = arith.constant 0 : i32
    %c0_i32_1 = arith.constant 0 : i32
    %c0_i32_2 = arith.constant 0 : i32
    return %c0_i32, %c0_i32_0, %c0_i32_1, %arg2 : i32, i32, i32, i32
  }
  func.func @transform_2(%arg0: i32, %arg1: i32, %arg2: i32) -> (i32, i32) {
    %c0_i32 = arith.constant 0 : i32
    %c0_i32_0 = arith.constant 0 : i32
    return %c0_i32, %arg2 : i32, i32
  }
  func.func @transform_3(%arg0: i32, %arg1: i32, %arg2: i32) -> (i32, i32, i32, i32) {
    %c0_i32 = arith.constant 0 : i32
    %c0_i32_0 = arith.constant 0 : i32
    return %arg0, %arg1, %c0_i32, %arg2 : i32, i32, i32, i32
  }
}

</mosaic_0001>

<llo_original>
// kernel: _lambda_.5
$region0: #{_lambda_.5}
  #allocation0 [shape = 'u32[]', space=smem, size = 0x4, offset = 0x4, fixed_abs, tag = 'smem constant byte address 0x4 - core index']
  #allocation1 [shape = 'u32[144,128]{1,0:T(1,128)}', space=vmem, size = 0x12000, scoped, tag = 'internal scratch']
  %s0 = inlined_call_operand.vmem [shape: bf16[2,9,16,48], index: 0, kind: input, shape index: {}]
  %s1 = inlined_call_operand.vmem [shape: bf16[1,1,48,128], index: 1, kind: input, shape index: {}]
  %s2 = inlined_call_operand.vmem [shape: f32[1,128], index: 2, kind: input, shape index: {}]
  %s3 = inlined_call_operand.vmem [shape: bf16[2,9,16,128], index: 3, kind: output, shape index: {}]
  %s4 = sld [smem:[#allocation0]]
  $region45: #{_lambda_.5} parent=0
    _
  %s6 = ssub.s32 1, %s4
  %s7 = scalar_select 0, %s6, %s4
  loop: start=0, step=1, limit=4
  $region2: #{_lambda_.5} parent=0 // loop_pre_header
    _
  $region3: #{_lambda_.5} parent=0 // loop_header
    %s9 = sphi 0, %s13
    %p10 = scmp.ge.s32.totalorder %s9, 4
    %s16 = sphi 0, %s35
    %s17 = sphi 0, %s31
    %s18 = sphi 0, %s27
    %s19 = sphi 0, %s16
    %s20 = sphi 0, %s17
    %s21 = sphi 0, %s18
    %s22 = sphi 0, %s19
    %s23 = sphi 0, %s20
    %s24 = sphi 0, %s21
    %s40 = sphi 0, %s42
    %s43 = sphi 0, %s40
    %s44 = sphi 0, %s43
    %s60 = sphi 0, %s44
    %s66 = sphi 0, %s68
    %s69 = sphi 0, %s66
    %s70 = sphi 0, %s69
    %s86 = sphi 0, %s70
    %s92 = sphi 0, %s94
    %s95 = sphi 0, %s92
    %s96 = sphi 0, %s95
    %s112 = sphi 0, %s96
    %s122 = sphi 0, %s124
    %s125 = sphi 0, %s122
    %s126 = sphi 0, %s125
    %s142 = sphi 0, %s126
  $region4: #{_lambda_.5} parent=0 // loop_header_branch
    %12 = sbr.rel (%p10) target = $region8
  $region5: #{_lambda_.5} parent=0 // loop_body
    %s14 = ssub.s32 %s9, 1
    %s15 = ssub.s32 %s9, 2
    %s25 = sadd.s32 1, %s18
    %p26 = scmp.ge.s32.totalorder %s25, 1
    %s27 = scalar_select %p26, 0, %s25
    %s28 = sadd.s32 1, %s17
    %s29 = scalar_select %p26, %s28, %s17
    %p30 = scmp.ge.s32.totalorder %s29, 1
    %s31 = scalar_select %p30, 0, %s29
    %s32 = sadd.s32 1, %s16
    %s33 = scalar_select %p30, %s32, %s16
    %p34 = scmp.ge.s32.totalorder %s33, 2
    %s35 = scalar_select %p34, 0, %s33
    %s36 = ssub.s32 %s16, %s35
    %s37 = ssub.s32 %s17, %s31
    %s38 = sor.u32 %s36, %s37
    %p39 = scmp.eq.s32.totalorder %s38, 0
    %s41 = sadd.s32 %s40, 1
    %s42 = scalar_select %p39, %s40, %s41
    %p45 = pneg %p39
    %p46 = scmp.eq.s32.totalorder %s9, 1
    %p47 = por %p45, %p46
    %p48 = scmp.ne.s32.totalorder %s40, %s43
    %p49 = scmp.eq.s32.totalorder %s9, 0
    %p50 = por %p48, %p49
    %p51 = scmp.ne.s32.totalorder %s40, %s43
    %p52 = scmp.eq.s32.totalorder %s14, 1
    %p53 = por %p51, %p52
    %p54 = scmp.ne.s32.totalorder %s43, %s44
    %p55 = scmp.eq.s32.totalorder %s14, 0
    %p56 = por %p54, %p55
    %p57 = scmp.ne.s32.totalorder %s43, %s44
    %p58 = scmp.eq.s32.totalorder %s15, 1
    %p59 = por %p57, %p58
    %p61 = scmp.ne.s32.totalorder %s44, %s60
    %p62 = scmp.eq.s32.totalorder %s15, 0
    %p63 = por %p61, %p62
    %s64 = ssub.s32 %s18, %s27
    %p65 = scmp.eq.s32.totalorder %s64, 0
    %s67 = sadd.s32 %s66, 1
    %s68 = scalar_select %p65, %s66, %s67
    %p71 = pneg %p65
    %p72 = scmp.eq.s32.totalorder %s9, 1
    %p73 = por %p71, %p72
    %p74 = scmp.ne.s32.totalorder %s66, %s69
    %p75 = scmp.eq.s32.totalorder %s9, 0
    %p76 = por %p74, %p75
    %p77 = scmp.ne.s32.totalorder %s66, %s69
    %p78 = scmp.eq.s32.totalorder %s14, 1
    %p79 = por %p77, %p78
    %p80 = scmp.ne.s32.totalorder %s69, %s70
    %p81 = scmp.eq.s32.totalorder %s14, 0
    %p82 = por %p80, %p81
    %p83 = scmp.ne.s32.totalorder %s69, %s70
    %p84 = scmp.eq.s32.totalorder %s15, 1
    %p85 = por %p83, %p84
    %p87 = scmp.ne.s32.totalorder %s70, %s86
    %p88 = scmp.eq.s32.totalorder %s15, 0
    %p89 = por %p87, %p88
    %s90 = ssub.s32 %s18, %s27
    %p91 = scmp.eq.s32.totalorder %s90, 0
    %s93 = sadd.s32 %s92, 1
    %s94 = scalar_select %p91, %s92, %s93
    %p97 = pneg %p91
    %p98 = scmp.eq.s32.totalorder %s9, 1
    %p99 = por %p97, %p98
    %p100 = scmp.ne.s32.totalorder %s92, %s95
    %p101 = scmp.eq.s32.totalorder %s9, 0
    %p102 = por %p100, %p101
    %p103 = scmp.ne.s32.totalorder %s92, %s95
    %p104 = scmp.eq.s32.totalorder %s14, 1
    %p105 = por %p103, %p104
    %p106 = scmp.ne.s32.totalorder %s95, %s96
    %p107 = scmp.eq.s32.totalorder %s14, 0
    %p108 = por %p106, %p107
    %p109 = scmp.ne.s32.totalorder %s95, %s96
    %p110 = scmp.eq.s32.totalorder %s15, 1
    %p111 = por %p109, %p110
    %p113 = scmp.ne.s32.totalorder %s96, %s112
    %p114 = scmp.eq.s32.totalorder %s15, 0
    %p115 = por %p113, %p114
    %s116 = ssub.s32 %s16, %s35
    %s117 = ssub.s32 %s17, %s31
    %s118 = sor.u32 %s116, %s117
    %s119 = ssub.s32 %s18, %s27
    %s120 = sor.u32 %s118, %s119
    %p121 = scmp.eq.s32.totalorder %s120, 0
    %s123 = sadd.s32 %s122, 1
    %s124 = scalar_select %p121, %s122, %s123
    %p127 = pneg %p121
    %p128 = scmp.eq.s32.totalorder %s9, 1
    %p129 = por %p127, %p128
    %p130 = scmp.ne.s32.totalorder %s122, %s125
    %p131 = scmp.eq.s32.totalorder %s9, 0
    %p132 = por %p130, %p131
    %p133 = scmp.ne.s32.totalorder %s122, %s125
    %p134 = scmp.eq.s32.totalorder %s14, 1
    %p135 = por %p133, %p134
    %p136 = scmp.ne.s32.totalorder %s125, %s126
    %p137 = scmp.eq.s32.totalorder %s14, 0
    %p138 = por %p136, %p137
    %p139 = scmp.ne.s32.totalorder %s125, %s126
    %p140 = scmp.eq.s32.totalorder %s15, 1
    %p141 = por %p139, %p140
    %p143 = scmp.ne.s32.totalorder %s126, %s142
    %p144 = scmp.eq.s32.totalorder %s15, 0
    %p145 = por %p143, %p144
    %p146 = scmp.le.s32.totalorder 1, %s9
    %p147 = scmp.lt.s32.totalorder %s9, 3
    %p148 = pnand %p146, %p147
    %p149 = pneg %p148
    // Predicated region
    $region9: #{_lambda_.5} parent=5 // pred_check
      _
    $region10: #{_lambda_.5} parent=5 // pred_check_branch
      %151 = sbr.rel (%p148) target = $region12
    $region11: #{_lambda_.5} parent=5 // pred_region
      %s152 = ssub.s32 %s9, 1
      // Predicated region
      $region13: #{_lambda_.5} parent=11 // pred_check
        %p153 = pneg %p82
      $region14: #{_lambda_.5} parent=11 // pred_check_branch
        %155 = sbr.rel (%p153) target = $region16
      $region15: #{_lambda_.5} parent=11 // pred_region
        %p156 = scmp.lt.s32.totalorder %s21, 0
        %s157 = scalar_select %p156, %s21, 0
        %s158 = smul.addr %s157, 4
        %s159 = scalar_lea.vmem %s1, %s158
      $region16: #{_lambda_.5} parent=11 // pred_fallthru
        _
      // Predicated region
      $region17: #{_lambda_.5} parent=11 // pred_check
        %p160 = pneg %p108
      $region18: #{_lambda_.5} parent=11 // pred_check_branch
        %162 = sbr.rel (%p160) target = $region20
      $region19: #{_lambda_.5} parent=11 // pred_region
        %p163 = scmp.lt.s32.totalorder %s21, 0
        %s164 = scalar_select %p163, %s21, 0
        %s165 = scalar_lea.vmem %s2, %s164
      $region20: #{_lambda_.5} parent=11 // pred_fallthru
        _
    $region12: #{_lambda_.5} parent=5 // pred_fallthru
      _
    %p166 = scmp.lt.s32.totalorder %s9, 2
    // Predicated region
    $region21: #{_lambda_.5} parent=5 // pred_check
      %p167 = pneg %p166
    $region22: #{_lambda_.5} parent=5 // pred_check_branch
      %169 = sbr.rel (%p167) target = $region24
    $region23: #{_lambda_.5} parent=5 // pred_region
      // Predicated region
      $region25: #{_lambda_.5} parent=23 // pred_check
        %p170 = pneg %p50
      $region26: #{_lambda_.5} parent=23 // pred_check_branch
        %172 = sbr.rel (%p170) target = $region28
      $region27: #{_lambda_.5} parent=23 // pred_region
        %s173 = smul.u32 9, %s17
        %p174 = scmp.lt.s32.totalorder %s16, 1
        %s175 = scalar_select %p174, %s16, 1
        %p176 = scmp.lt.s32.totalorder %s173, 8
        %s177 = scalar_select %p176, %s173, 8
        %s178 = smul.addr %s177, 2
        %s179 = smul.addr %s175, 18
        %s180 = sadd.s32 %s178, %s179
        %s181 = smul.addr %s180, 4
        %s182 = scalar_lea.vmem %s0, %s181
        %s183 = smul.u32 9, %s17
      $region28: #{_lambda_.5} parent=23 // pred_fallthru
        _
    $region24: #{_lambda_.5} parent=5 // pred_fallthru
      _
    %p184 = scmp.le.s32.totalorder 1, %s9
    %p185 = scmp.lt.s32.totalorder %s9, 3
    %p186 = pnand %p184, %p185
    %p187 = pneg %p186
    // Predicated region
    $region29: #{_lambda_.5} parent=5 // pred_check
      _
    $region30: #{_lambda_.5} parent=5 // pred_check_branch
      %189 = sbr.rel (%p186) target = $region32
    $region31: #{_lambda_.5} parent=5 // pred_region
      %s190 = ssub.s32 %s9, 1
      %s191 = smul.u32 9, %s20
      %p192 = scmp.lt.s32.totalorder %s19, 1
      %s193 = scalar_select %p192, %s19, 1
      %p194 = scmp.lt.s32.totalorder %s191, 8
      %s195 = scalar_select %p194, %s191, 8
      %s196 = smul.addr %s195, 2
      %s197 = smul.addr %s193, 18
      %s198 = sadd.s32 %s196, %s197
      %s199 = smul.addr %s198, 4
      %s200 = scalar_lea.vmem %s0, %s199
      %p201 = pneg %p56
      %p202 = pneg %p53
      %p203 = scmp.lt.s32.totalorder %s21, 0
      %s204 = scalar_select %p203, %s21, 0
      %s205 = smul.addr %s204, 4
      %s206 = scalar_lea.vmem %s1, %s205
      %p207 = pneg %p82
      %p208 = pneg %p79
      %p209 = scmp.lt.s32.totalorder %s21, 0
      %s210 = scalar_select %p209, %s21, 0
      %s211 = scalar_lea.vmem %s2, %s210
      %p212 = pneg %p108
      %p213 = pneg %p105
      %p214 = pneg %p138
      %p215 = pneg %p135
      %s216 = smul.u32 9, %s20
      %p217 = scmp.lt.s32.totalorder %s19, 1
      %s218 = scalar_select %p217, %s19, 1
      %p219 = scmp.lt.s32.totalorder %s216, 8
      %s220 = scalar_select %p219, %s216, 8
      %p221 = scmp.lt.s32.totalorder %s21, 0
      %s222 = scalar_select %p221, %s21, 0
      %s223 = smul.addr %s220, 2
      %s224 = sadd.s32 %s222, %s223
      %s225 = smul.addr %s218, 18
      %s226 = sadd.s32 %s224, %s225
      %s227 = smul.addr %s226, 4
      %s228 = scalar_lea.vmem %s3, %s227
      %s229 = smul.u32 9, %s20
      %p230 = scmp.lt.s32.totalorder %s19, 1
      %s231 = scalar_select %p230, %s19, 1
      %p232 = scmp.lt.s32.totalorder %s229, 8
      %s233 = scalar_select %p232, %s229, 8
      %s234 = smul.addr %s233, 2
      %s235 = smul.addr %s231, 18
      %s236 = sadd.s32 %s234, %s235
      %s237 = smul.addr %s236, 4
      %s238 = scalar_lea.vmem %s0, %s237
      %s239 = smul.u32 9, %s20
      %p240 = scmp.lt.s32.totalorder %s21, 0
      %s241 = scalar_select %p240, %s21, 0
      %s242 = smul.addr %s241, 4
      %s243 = scalar_lea.vmem %s1, %s242
      %p244 = scmp.lt.s32.totalorder %s21, 0
      %s245 = scalar_select %p244, %s21, 0
      %s246 = scalar_lea.vmem %s2, %s245
      %s247 = smul.u32 9, %s20
      %p248 = scmp.lt.s32.totalorder %s19, 1
      %s249 = scalar_select %p248, %s19, 1
      %p250 = scmp.lt.s32.totalorder %s247, 8
      %s251 = scalar_select %p250, %s247, 8
      %p252 = scmp.lt.s32.totalorder %s21, 0
      %s253 = scalar_select %p252, %s21, 0
      %s254 = smul.addr %s251, 2
      %s255 = sadd.s32 %s253, %s254
      %s256 = smul.addr %s249, 18
      %s257 = sadd.s32 %s255, %s256
      %s258 = smul.addr %s257, 4
      %s259 = scalar_lea.vmem %s3, %s258
      %s260 = smul.u32 9, %s20
      %v262 = vld [vmem:[%s238] sm:$0xf]
      %v263 = vld [vmem:[%s238 + $0x4] sm:$0xf]
      %v264 = vld [vmem:[%s238 + $0x8] sm:$0xf]
      %v265 = vld [vmem:[%s238 + $0xc] sm:$0xf]
      %v266 = vld [vmem:[%s238 + $0x10] sm:$0xf]
      %v267 = vld [vmem:[%s238 + $0x14] sm:$0xf]
      %v268 = vld [vmem:[%s238 + $0x18] sm:$0xf]
      %v269 = vld [vmem:[%s238 + $0x1c] sm:$0xf]
      %v270 = vld [vmem:[%s238 + $0x20] sm:$0xf]
      %v271 = vld [vmem:[%s238 + $0x24] sm:$0xf]
      %v272 = vld [vmem:[%s238 + $0x28] sm:$0xf]
      %v273 = vld [vmem:[%s238 + $0x2c] sm:$0xf]
      %v274 = vld [vmem:[%s238 + $0x30] sm:$0xf]
      %v275 = vld [vmem:[%s238 + $0x34] sm:$0xf]
      %v276 = vld [vmem:[%s238 + $0x38] sm:$0xf]
      %v277 = vld [vmem:[%s238 + $0x3c] sm:$0xf]
      %v278 = vld [vmem:[%s238 + $0x40] sm:$0xf]
      %v279 = vld [vmem:[%s238 + $0x44] sm:$0xf]
      %v280 = vld [vmem:[%s243] sm:$0xf]
      %v281 = vld [vmem:[%s243 + $0x4] sm:$0xf]
      %v282 = vld [vmem:[%s243 + $0x8] sm:$0xf]
      %v283 = vld [vmem:[%s243 + $0xc] sm:$0xf]
      %v284 = vld [vmem:[%s243 + $0x10] sm:$0xf]
      %v285 = vld [vmem:[%s243 + $0x14] sm:$0xf]
      %v286 = vld [vmem:[%s246] sm:$0x1]
      %v288 = vlaneseq
      %v289 = vshrl.u32 %v288, 7
      %v290 = vsub.s32 0, %v289
      %v291 = vrot.slane %v286, %v290
      %v311 = vunpack.c.l.b16 %v262
      %v312 = vunpack.c.l.b16 %v263
      %v313 = vunpack.c.l.b16 %v264
      %v314 = vunpack.c.l.b16 %v265
      %v315 = vunpack.c.l.b16 %v266
      %v316 = vunpack.c.l.b16 %v267
      %v317 = vunpack.c.l.b16 %v268
      %v318 = vunpack.c.l.b16 %v269
      %v319 = vunpack.c.l.b16 %v270
      %v320 = vunpack.c.l.b16 %v271
      %v321 = vunpack.c.l.b16 %v272
      %v322 = vunpack.c.l.b16 %v273
      %v323 = vunpack.c.l.b16 %v274
      %v324 = vunpack.c.l.b16 %v275
      %v325 = vunpack.c.l.b16 %v276
      %v326 = vunpack.c.l.b16 %v277
      %v327 = vunpack.c.l.b16 %v278
      %v328 = vunpack.c.l.b16 %v279
      %v329 = vpack.c.b16 %v312, %v311
      %v330 = vpack.c.b16 %v314, %v313
      %v331 = vpack.c.b16 %v316, %v315
      %v332 = vpack.c.b16 %v318, %v317
      %v333 = vpack.c.b16 %v320, %v319
      %v334 = vpack.c.b16 %v322, %v321
      %v335 = vpack.c.b16 %v324, %v323
      %v336 = vpack.c.b16 %v326, %v325
      %v337 = vpack.c.b16 %v328, %v327
      %v344 = vunpack.c.l.b16 %v280
      %v345 = vunpack.c.l.b16 %v281
      %v346 = vunpack.c.l.b16 %v282
      %v347 = vunpack.c.l.b16 %v283
      %v348 = vunpack.c.l.b16 %v284
      %v349 = vunpack.c.l.b16 %v285
      %v350 = vpack.c.b16 %v345, %v344
      %v351 = vpack.c.b16 %v347, %v346
      %v352 = vpack.c.b16 %v349, %v348
      %vm356 = vcmask 392192
      %v358 = vsel %vm356, %v329, 0
      %v361 = vsel %vm356, %v330, 0
      %v364 = vsel %vm356, %v331, 0
      %v367 = vsel %vm356, %v332, 0
      %v370 = vsel %vm356, %v333, 0
      %v373 = vsel %vm356, %v334, 0
      %v376 = vsel %vm356, %v335, 0
      %v379 = vsel %vm356, %v336, 0
      %v382 = vsel %vm356, %v337, 0
      %384 = vmatprep.subr.bf16.mxu0 0
      %385 = vmatpush1.bf16.msra.mxu0 %v350
      %386 = vmatprep.subr.bf16.mxu0 0
      %387 = vmatpush1.bf16.msra.mxu0 %v351
      %388 = vmatprep.subr.bf16.mxu0 0
      %389 = vmatpush1.bf16.msra.mxu0 %v352
      %390 = vmatprep.subr.bf16.mxu0 0
      %391 = vmatpush1.bf16.msra.mxu0 0
      %392 = vmatprep.subr.bf16.mxu0 0
      %393 = vmatpush1.bf16.msra.mxu0 0
      %394 = vmatprep.subr.bf16.mxu0 0
      %395 = vmatpush1.bf16.msra.mxu0 0
      %396 = vmatprep.subr.bf16.mxu0 0
      %397 = vmatpush1.bf16.msra.mxu0 0
      %398 = vmatprep.subr.bf16.mxu0 0
      %399 = vmatpush1.bf16.msra.mxu0 0
      %400 = vmatprep.subr.bf16.mxu0 0
      %401 = vmatpush1.bf16.msra.mxu0 0
      %402 = vmatprep.subr.bf16.mxu0 0
      %403 = vmatpush1.bf16.msra.mxu0 0
      %404 = vmatprep.subr.bf16.mxu0 0
      %405 = vmatpush1.bf16.msra.mxu0 0
      %406 = vmatprep.subr.bf16.mxu0 0
      %407 = vmatpush1.bf16.msra.mxu0 0
      %408 = vmatprep.subr.bf16.mxu0 0
      %409 = vmatpush1.bf16.msra.mxu0 0
      %410 = vmatprep.subr.bf16.mxu0 0
      %411 = vmatpush1.bf16.msra.mxu0 0
      %412 = vmatprep.subr.bf16.mxu0 0
      %413 = vmatpush1.bf16.msra.mxu0 0
      %414 = vmatprep.subr.bf16.mxu0 0
      %415 = vmatpush1.bf16.msra.mxu0 0
      %416 = vmatprep.mubr.bf16.mxu0 0
      %417 = vmatmul.mubr.bf16.gmra.mrb[0].mxu0 %v358
      %v418 = vpop.f32.mrb[0].mxu0
      %v419 = vadd.f32 %v291, %v418
      %v420 = vpop.f32.mrb[0].mxu0
      %v421 = vpop.f32.mrb[0].mxu0
      %v422 = vadd.f32 %v291, %v421
      %v423 = vpop.f32.mrb[0].mxu0
      %424 = vmatprep.mubr.bf16.mxu0 0
      %425 = vmatmul.mubr.bf16.gmra.mrb[0].mxu0 %v361
      %v426 = vpop.f32.mrb[0].mxu0
      %v427 = vadd.f32 %v291, %v426
      %v428 = vpop.f32.mrb[0].mxu0
      %v429 = vpop.f32.mrb[0].mxu0
      %v430 = vadd.f32 %v291, %v429
      %v431 = vpop.f32.mrb[0].mxu0
      %432 = vmatprep.mubr.bf16.mxu0 0
      %433 = vmatmul.mubr.bf16.gmra.mrb[0].mxu0 %v364
      %v434 = vpop.f32.mrb[0].mxu0
      %v435 = vadd.f32 %v291, %v434
      %v436 = vpop.f32.mrb[0].mxu0
      %v437 = vpop.f32.mrb[0].mxu0
      %v438 = vadd.f32 %v291, %v437
      %v439 = vpop.f32.mrb[0].mxu0
      %440 = vmatprep.mubr.bf16.mxu0 0
      %441 = vmatmul.mubr.bf16.gmra.mrb[0].mxu0 %v367
      %v442 = vpop.f32.mrb[0].mxu0
      %v443 = vadd.f32 %v291, %v442
      %v444 = vpop.f32.mrb[0].mxu0
      %v445 = vpop.f32.mrb[0].mxu0
      %v446 = vadd.f32 %v291, %v445
      %v447 = vpop.f32.mrb[0].mxu0
      %448 = vmatprep.mubr.bf16.mxu0 0
      %449 = vmatmul.mubr.bf16.gmra.mrb[0].mxu0 %v370
      %v450 = vpop.f32.mrb[0].mxu0
      %v451 = vadd.f32 %v291, %v450
      %v452 = vpop.f32.mrb[0].mxu0
      %v453 = vpop.f32.mrb[0].mxu0
      %v454 = vadd.f32 %v291, %v453
      %v455 = vpop.f32.mrb[0].mxu0
      %456 = vmatprep.mubr.bf16.mxu0 0
      %457 = vmatmul.mubr.bf16.gmra.mrb[0].mxu0 %v373
      %v458 = vpop.f32.mrb[0].mxu0
      %v459 = vadd.f32 %v291, %v458
      %v460 = vpop.f32.mrb[0].mxu0
      %v461 = vpop.f32.mrb[0].mxu0
      %v462 = vadd.f32 %v291, %v461
      %v463 = vpop.f32.mrb[0].mxu0
      %464 = vmatprep.mubr.bf16.mxu0 0
      %465 = vmatmul.mubr.bf16.gmra.mrb[0].mxu0 %v376
      %v466 = vpop.f32.mrb[0].mxu0
      %v467 = vadd.f32 %v291, %v466
      %v468 = vpop.f32.mrb[0].mxu0
      %v469 = vpop.f32.mrb[0].mxu0
      %v470 = vadd.f32 %v291, %v469
      %v471 = vpop.f32.mrb[0].mxu0
      %472 = vmatprep.mubr.bf16.mxu0 0
      %473 = vmatmul.mubr.bf16.gmra.mrb[0].mxu0 %v379
      %v474 = vpop.f32.mrb[0].mxu0
      %v475 = vadd.f32 %v291, %v474
      %v476 = vpop.f32.mrb[0].mxu0
      %v477 = vpop.f32.mrb[0].mxu0
      %v478 = vadd.f32 %v291, %v477
      %v479 = vpop.f32.mrb[0].mxu0
      %480 = vmatprep.mubr.bf16.mxu0 0
      %481 = vmatmul.mubr.bf16.gmra.mrb[0].mxu0 %v382
      %v482 = vpop.f32.mrb[0].mxu0
      %v483 = vadd.f32 %v291, %v482
      %v484 = vpop.f32.mrb[0].mxu0
      %v485 = vpop.f32.mrb[0].mxu0
      %v486 = vadd.f32 %v291, %v485
      %v487 = vpop.f32.mrb[0].mxu0
      %488 = vdwg.mxu0
      %vm489 = vcmp.gt.f32.partialorder %v419, 0.0
      %vm490 = vcmp.gt.f32.partialorder %v422, 0.0
      %vm491 = vcmp.gt.f32.partialorder %v427, 0.0
      %vm492 = vcmp.gt.f32.partialorder %v430, 0.0
      %vm493 = vcmp.gt.f32.partialorder %v435, 0.0
      %vm494 = vcmp.gt.f32.partialorder %v438, 0.0
      %vm495 = vcmp.gt.f32.partialorder %v443, 0.0
      %vm496 = vcmp.gt.f32.partialorder %v446, 0.0
      %vm497 = vcmp.gt.f32.partialorder %v451, 0.0
      %vm498 = vcmp.gt.f32.partialorder %v454, 0.0
      %vm499 = vcmp.gt.f32.partialorder %v459, 0.0
      %vm500 = vcmp.gt.f32.partialorder %v462, 0.0
      %vm501 = vcmp.gt.f32.partialorder %v467, 0.0
      %vm502 = vcmp.gt.f32.partialorder %v470, 0.0
      %vm503 = vcmp.gt.f32.partialorder %v475, 0.0
      %vm504 = vcmp.gt.f32.partialorder %v478, 0.0
      %vm505 = vcmp.gt.f32.partialorder %v483, 0.0
      %vm506 = vcmp.gt.f32.partialorder %v486, 0.0
      %v507 = vmul.f32 %v419, 0.2
      %v508 = vmul.f32 %v422, 0.2
      %v509 = vmul.f32 %v427, 0.2
      %v510 = vmul.f32 %v430, 0.2
      %v511 = vmul.f32 %v435, 0.2
      %v512 = vmul.f32 %v438, 0.2
      %v513 = vmul.f32 %v443, 0.2
      %v514 = vmul.f32 %v446, 0.2
      %v515 = vmul.f32 %v451, 0.2
      %v516 = vmul.f32 %v454, 0.2
      %v517 = vmul.f32 %v459, 0.2
      %v518 = vmul.f32 %v462, 0.2
      %v519 = vmul.f32 %v467, 0.2
      %v520 = vmul.f32 %v470, 0.2
      %v521 = vmul.f32 %v475, 0.2
      %v522 = vmul.f32 %v478, 0.2
      %v523 = vmul.f32 %v483, 0.2
      %v524 = vmul.f32 %v486, 0.2
      %v525 = vsel %vm489, %v419, %v507
      %v526 = vsel %vm490, %v422, %v508
      %v527 = vsel %vm491, %v427, %v509
      %v528 = vsel %vm492, %v430, %v510
      %v529 = vsel %vm493, %v435, %v511
      %v530 = vsel %vm494, %v438, %v512
      %v531 = vsel %vm495, %v443, %v513
      %v532 = vsel %vm496, %v446, %v514
      %v533 = vsel %vm497, %v451, %v515
      %v534 = vsel %vm498, %v454, %v516
      %v535 = vsel %vm499, %v459, %v517
      %v536 = vsel %vm500, %v462, %v518
      %v537 = vsel %vm501, %v467, %v519
      %v538 = vsel %vm502, %v470, %v520
      %v539 = vsel %vm503, %v475, %v521
      %v540 = vsel %vm504, %v478, %v522
      %v541 = vsel %vm505, %v483, %v523
      %v542 = vsel %vm506, %v486, %v524
      %v543 = vlaneseq
      %v544 = vshrl.u32 %v543, 7
      %v545 = vadd.s32 %v544, 8
      %vm546 = vcmp.lt.s32.totalorder %v544, 9
      %vm547 = vcmp.lt.s32.totalorder %v545, 9
      %v548 = vsel %vm546, 1, 0
      %v549 = vsel %vm547, 1, 0
      %vm550 = vcmp.eq.s32.totalorder %v548, 1
      %vm551 = vcmp.eq.s32.totalorder %v549, 1
      %v552 = vsel %vm550, %v525, 0.0
      %v553 = vsel %vm551, %v526, 0.0
      %v554 = vsel %vm550, %v527, 0.0
      %v555 = vsel %vm551, %v528, 0.0
      %v556 = vsel %vm550, %v529, 0.0
      %v557 = vsel %vm551, %v530, 0.0
      %v558 = vsel %vm550, %v531, 0.0
      %v559 = vsel %vm551, %v532, 0.0
      %v560 = vsel %vm550, %v533, 0.0
      %v561 = vsel %vm551, %v534, 0.0
      %v562 = vsel %vm550, %v535, 0.0
      %v563 = vsel %vm551, %v536, 0.0
      %v564 = vsel %vm550, %v537, 0.0
      %v565 = vsel %vm551, %v538, 0.0
      %v566 = vsel %vm550, %v539, 0.0
      %v567 = vsel %vm551, %v540, 0.0
      %v568 = vsel %vm550, %v541, 0.0
      %v569 = vsel %vm551, %v542, 0.0
      %v570 = vpack.c.bf16 %v553, %v552
      %v571 = vpack.c.bf16 %v555, %v554
      %v572 = vpack.c.bf16 %v557, %v556
      %v573 = vpack.c.bf16 %v559, %v558
      %v574 = vpack.c.bf16 %v561, %v560
      %v575 = vpack.c.bf16 %v563, %v562
      %v576 = vpack.c.bf16 %v565, %v564
      %v577 = vpack.c.bf16 %v567, %v566
      %v578 = vpack.c.bf16 %v569, %v568
      %v588 = vunpack.c.l.b16 %v570
      %v589 = vunpack.c.h.b16 %v570
      %v590 = vunpack.c.l.b16 %v571
      %v591 = vunpack.c.h.b16 %v571
      %v592 = vunpack.c.l.b16 %v572
      %v593 = vunpack.c.h.b16 %v572
      %v594 = vunpack.c.l.b16 %v573
      %v595 = vunpack.c.h.b16 %v573
      %v596 = vunpack.c.l.b16 %v574
      %v597 = vunpack.c.h.b16 %v574
      %v598 = vunpack.c.l.b16 %v575
      %v599 = vunpack.c.h.b16 %v575
      %v600 = vunpack.c.l.b16 %v576
      %v601 = vunpack.c.h.b16 %v576
      %v602 = vunpack.c.l.b16 %v577
      %v603 = vunpack.c.h.b16 %v577
      %v604 = vunpack.c.l.b16 %v578
      %v605 = vunpack.c.h.b16 %v578
      %v606 = vpack.c.b16 %v588, %v588
      %v607 = vpack.c.b16 %v589, %v589
      %v608 = vpack.c.b16 %v590, %v590
      %v609 = vpack.c.b16 %v591, %v591
      %v610 = vpack.c.b16 %v592, %v592
      %v611 = vpack.c.b16 %v593, %v593
      %v612 = vpack.c.b16 %v594, %v594
      %v613 = vpack.c.b16 %v595, %v595
      %v614 = vpack.c.b16 %v596, %v596
      %v615 = vpack.c.b16 %v597, %v597
      %v616 = vpack.c.b16 %v598, %v598
      %v617 = vpack.c.b16 %v599, %v599
      %v618 = vpack.c.b16 %v600, %v600
      %v619 = vpack.c.b16 %v601, %v601
      %v620 = vpack.c.b16 %v602, %v602
      %v621 = vpack.c.b16 %v603, %v603
      %v622 = vpack.c.b16 %v604, %v604
      %v623 = vpack.c.b16 %v605, %v605
      %642 = vst [vmem:[%s259] sm:$0xf] %v606
      %643 = vst [vmem:[%s259 + $0x4] sm:$0xf] %v607
      %644 = vst [vmem:[%s259 + $0x8] sm:$0xf] %v608
      %645 = vst [vmem:[%s259 + $0xc] sm:$0xf] %v609
      %646 = vst [vmem:[%s259 + $0x10] sm:$0xf] %v610
      %647 = vst [vmem:[%s259 + $0x14] sm:$0xf] %v611
      %648 = vst [vmem:[%s259 + $0x18] sm:$0xf] %v612
      %649 = vst [vmem:[%s259 + $0x1c] sm:$0xf] %v613
      %650 = vst [vmem:[%s259 + $0x20] sm:$0xf] %v614
      %651 = vst [vmem:[%s259 + $0x24] sm:$0xf] %v615
      %652 = vst [vmem:[%s259 + $0x28] sm:$0xf] %v616
      %653 = vst [vmem:[%s259 + $0x2c] sm:$0xf] %v617
      %654 = vst [vmem:[%s259 + $0x30] sm:$0xf] %v618
      %655 = vst [vmem:[%s259 + $0x34] sm:$0xf] %v619
      %656 = vst [vmem:[%s259 + $0x38] sm:$0xf] %v620
      %657 = vst [vmem:[%s259 + $0x3c] sm:$0xf] %v621
      %658 = vst [vmem:[%s259 + $0x40] sm:$0xf] %v622
      %659 = vst [vmem:[%s259 + $0x44] sm:$0xf] %v623
      %s660 = smul.u32 9, %s20
      %p661 = scmp.lt.s32.totalorder %s19, 1
      %s662 = scalar_select %p661, %s19, 1
      %p663 = scmp.lt.s32.totalorder %s660, 8
      %s664 = scalar_select %p663, %s660, 8
      %p665 = scmp.lt.s32.totalorder %s21, 0
      %s666 = scalar_select %p665, %s21, 0
      %s667 = smul.addr %s664, 2
      %s668 = sadd.s32 %s666, %s667
      %s669 = smul.addr %s662, 18
      %s670 = sadd.s32 %s668, %s669
      %s671 = smul.addr %s670, 4
      %s672 = scalar_lea.vmem %s3, %s671
      // Predicated region
      $region33: #{_lambda_.5} parent=31 // pred_check
        %p673 = pneg %p135
      $region34: #{_lambda_.5} parent=31 // pred_check_branch
        %675 = sbr.rel (%p673) target = $region36
      $region35: #{_lambda_.5} parent=31 // pred_region
        %s676 = smul.u32 9, %s20
      $region36: #{_lambda_.5} parent=31 // pred_fallthru
        _
    $region32: #{_lambda_.5} parent=5 // pred_fallthru
      _
    %p677 = scmp.le.s32.totalorder 2, %s9
    // Predicated region
    $region37: #{_lambda_.5} parent=5 // pred_check
      %p678 = pneg %p677
    $region38: #{_lambda_.5} parent=5 // pred_check_branch
      %680 = sbr.rel (%p678) target = $region40
    $region39: #{_lambda_.5} parent=5 // pred_region
      %s681 = ssub.s32 %s9, 2
      // Predicated region
      $region41: #{_lambda_.5} parent=39 // pred_check
        %p682 = pneg %p141
      $region42: #{_lambda_.5} parent=39 // pred_check_branch
        %684 = sbr.rel (%p682) target = $region44
      $region43: #{_lambda_.5} parent=39 // pred_region
        %s685 = smul.u32 9, %s23
        %p686 = scmp.lt.s32.totalorder %s22, 1
        %s687 = scalar_select %p686, %s22, 1
        %p688 = scmp.lt.s32.totalorder %s685, 8
        %s689 = scalar_select %p688, %s685, 8
        %p690 = scmp.lt.s32.totalorder %s24, 0
        %s691 = scalar_select %p690, %s24, 0
        %s692 = smul.addr %s689, 2
        %s693 = sadd.s32 %s691, %s692
        %s694 = smul.addr %s687, 18
        %s695 = sadd.s32 %s693, %s694
        %s696 = smul.addr %s695, 4
        %s697 = scalar_lea.vmem %s3, %s696
      $region44: #{_lambda_.5} parent=39 // pred_fallthru
        _
    $region40: #{_lambda_.5} parent=5 // pred_fallthru
      _
  $region6: #{_lambda_.5} parent=0 // loop_footer
    %s13 = sadd.s32 1, %s9
  $region7: #{_lambda_.5} parent=0 // loop_footer_branch
    %8 = sbr.rel target = $region3
  $region8: #{_lambda_.5} parent=0 // loop_exit
    _

// kernel: _lambda_.6
$region0: #{_lambda_.6}
  #allocation0 [shape = 'u32[]', space=smem, size = 0x4, offset = 0x4, fixed_abs, tag = 'smem constant byte address 0x4 - core index']
  #allocation1 [shape = 'u32[144,128]{1,0:T(1,128)}', space=vmem, size = 0x12000, scoped, tag = 'internal scratch']
  %s0 = inlined_call_operand.vmem [shape: bf16[2,6,9,512], index: 0, kind: input, shape index: {}]
  %s1 = inlined_call_operand.vmem [shape: bf16[2,2,512,128], index: 1, kind: input, shape index: {}]
  %s2 = inlined_call_operand.vmem [shape: f32[1,128], index: 2, kind: input, shape index: {}]
  %s3 = inlined_call_operand.vmem [shape: bf16[2,5,8,128], index: 3, kind: output, shape index: {}]
  %s4 = sld [smem:[#allocation0]]
  $region45: #{_lambda_.6} parent=0
    _
  %s6 = ssub.s32 1, %s4
  %s7 = scalar_select 0, %s6, %s4
  loop: start=0, step=1, limit=4
  $region2: #{_lambda_.6} parent=0 // loop_pre_header
    _
  $region3: #{_lambda_.6} parent=0 // loop_header
    %s9 = sphi 0, %s13
    %p10 = scmp.ge.s32.totalorder %s9, 4
    %s16 = sphi 0, %s35
    %s17 = sphi 0, %s31
    %s18 = sphi 0, %s27
    %s19 = sphi 0, %s16
    %s20 = sphi 0, %s17
    %s21 = sphi 0, %s18
    %s22 = sphi 0, %s19
    %s23 = sphi 0, %s20
    %s24 = sphi 0, %s21
    %s38 = sphi 0, %s40
    %s41 = sphi 0, %s38
    %s42 = sphi 0, %s41
    %s58 = sphi 0, %s42
    %s64 = sphi 0, %s66
    %s67 = sphi 0, %s64
    %s68 = sphi 0, %s67
    %s84 = sphi 0, %s68
    %s90 = sphi 0, %s92
    %s93 = sphi 0, %s90
    %s94 = sphi 0, %s93
    %s110 = sphi 0, %s94
    %s120 = sphi 0, %s122
    %s123 = sphi 0, %s120
    %s124 = sphi 0, %s123
    %s140 = sphi 0, %s124
  $region4: #{_lambda_.6} parent=0 // loop_header_branch
    %12 = sbr.rel (%p10) target = $region8
  $region5: #{_lambda_.6} parent=0 // loop_body
    %s14 = ssub.s32 %s9, 1
    %s15 = ssub.s32 %s9, 2
    %s25 = sadd.s32 1, %s18
    %p26 = scmp.ge.s32.totalorder %s25, 1
    %s27 = scalar_select %p26, 0, %s25
    %s28 = sadd.s32 1, %s17
    %s29 = scalar_select %p26, %s28, %s17
    %p30 = scmp.ge.s32.totalorder %s29, 1
    %s31 = scalar_select %p30, 0, %s29
    %s32 = sadd.s32 1, %s16
    %s33 = scalar_select %p30, %s32, %s16
    %p34 = scmp.ge.s32.totalorder %s33, 2
    %s35 = scalar_select %p34, 0, %s33
    %s36 = ssub.s32 %s16, %s35
    %p37 = scmp.eq.s32.totalorder %s36, 0
    %s39 = sadd.s32 %s38, 1
    %s40 = scalar_select %p37, %s38, %s39
    %p43 = pneg %p37
    %p44 = scmp.eq.s32.totalorder %s9, 1
    %p45 = por %p43, %p44
    %p46 = scmp.ne.s32.totalorder %s38, %s41
    %p47 = scmp.eq.s32.totalorder %s9, 0
    %p48 = por %p46, %p47
    %p49 = scmp.ne.s32.totalorder %s38, %s41
    %p50 = scmp.eq.s32.totalorder %s14, 1
    %p51 = por %p49, %p50
    %p52 = scmp.ne.s32.totalorder %s41, %s42
    %p53 = scmp.eq.s32.totalorder %s14, 0
    %p54 = por %p52, %p53
    %p55 = scmp.ne.s32.totalorder %s41, %s42
    %p56 = scmp.eq.s32.totalorder %s15, 1
    %p57 = por %p55, %p56
    %p59 = scmp.ne.s32.totalorder %s42, %s58
    %p60 = scmp.eq.s32.totalorder %s15, 0
    %p61 = por %p59, %p60
    %s62 = ssub.s32 %s18, %s27
    %p63 = scmp.eq.s32.totalorder %s62, 0
    %s65 = sadd.s32 %s64, 1
    %s66 = scalar_select %p63, %s64, %s65
    %p69 = pneg %p63
    %p70 = scmp.eq.s32.totalorder %s9, 1
    %p71 = por %p69, %p70
    %p72 = scmp.ne.s32.totalorder %s64, %s67
    %p73 = scmp.eq.s32.totalorder %s9, 0
    %p74 = por %p72, %p73
    %p75 = scmp.ne.s32.totalorder %s64, %s67
    %p76 = scmp.eq.s32.totalorder %s14, 1
    %p77 = por %p75, %p76
    %p78 = scmp.ne.s32.totalorder %s67, %s68
    %p79 = scmp.eq.s32.totalorder %s14, 0
    %p80 = por %p78, %p79
    %p81 = scmp.ne.s32.totalorder %s67, %s68
    %p82 = scmp.eq.s32.totalorder %s15, 1
    %p83 = por %p81, %p82
    %p85 = scmp.ne.s32.totalorder %s68, %s84
    %p86 = scmp.eq.s32.totalorder %s15, 0
    %p87 = por %p85, %p86
    %s88 = ssub.s32 %s18, %s27
    %p89 = scmp.eq.s32.totalorder %s88, 0
    %s91 = sadd.s32 %s90, 1
    %s92 = scalar_select %p89, %s90, %s91
    %p95 = pneg %p89
    %p96 = scmp.eq.s32.totalorder %s9, 1
    %p97 = por %p95, %p96
    %p98 = scmp.ne.s32.totalorder %s90, %s93
    %p99 = scmp.eq.s32.totalorder %s9, 0
    %p100 = por %p98, %p99
    %p101 = scmp.ne.s32.totalorder %s90, %s93
    %p102 = scmp.eq.s32.totalorder %s14, 1
    %p103 = por %p101, %p102
    %p104 = scmp.ne.s32.totalorder %s93, %s94
    %p105 = scmp.eq.s32.totalorder %s14, 0
    %p106 = por %p104, %p105
    %p107 = scmp.ne.s32.totalorder %s93, %s94
    %p108 = scmp.eq.s32.totalorder %s15, 1
    %p109 = por %p107, %p108
    %p111 = scmp.ne.s32.totalorder %s94, %s110
    %p112 = scmp.eq.s32.totalorder %s15, 0
    %p113 = por %p111, %p112
    %s114 = ssub.s32 %s16, %s35
    %s115 = ssub.s32 %s17, %s31
    %s116 = sor.u32 %s114, %s115
    %s117 = ssub.s32 %s18, %s27
    %s118 = sor.u32 %s116, %s117
    %p119 = scmp.eq.s32.totalorder %s118, 0
    %s121 = sadd.s32 %s120, 1
    %s122 = scalar_select %p119, %s120, %s121
    %p125 = pneg %p119
    %p126 = scmp.eq.s32.totalorder %s9, 1
    %p127 = por %p125, %p126
    %p128 = scmp.ne.s32.totalorder %s120, %s123
    %p129 = scmp.eq.s32.totalorder %s9, 0
    %p130 = por %p128, %p129
    %p131 = scmp.ne.s32.totalorder %s120, %s123
    %p132 = scmp.eq.s32.totalorder %s14, 1
    %p133 = por %p131, %p132
    %p134 = scmp.ne.s32.totalorder %s123, %s124
    %p135 = scmp.eq.s32.totalorder %s14, 0
    %p136 = por %p134, %p135
    %p137 = scmp.ne.s32.totalorder %s123, %s124
    %p138 = scmp.eq.s32.totalorder %s15, 1
    %p139 = por %p137, %p138
    %p141 = scmp.ne.s32.totalorder %s124, %s140
    %p142 = scmp.eq.s32.totalorder %s15, 0
    %p143 = por %p141, %p142
    %p144 = scmp.le.s32.totalorder 1, %s9
    %p145 = scmp.lt.s32.totalorder %s9, 3
    %p146 = pnand %p144, %p145
    %p147 = pneg %p146
    // Predicated region
    $region9: #{_lambda_.6} parent=5 // pred_check
      _
    $region10: #{_lambda_.6} parent=5 // pred_check_branch
      %149 = sbr.rel (%p146) target = $region12
    $region11: #{_lambda_.6} parent=5 // pred_region
      %s150 = ssub.s32 %s9, 1
      // Predicated region
      $region13: #{_lambda_.6} parent=11 // pred_check
        %p151 = pneg %p80
      $region14: #{_lambda_.6} parent=11 // pred_check_branch
        %153 = sbr.rel (%p151) target = $region16
      $region15: #{_lambda_.6} parent=11 // pred_region
        %p154 = scmp.lt.s32.totalorder %s21, 0
        %s155 = scalar_select %p154, %s21, 0
        %s156 = smul.addr %s155, 4
        %s157 = scalar_lea.vmem %s1, %s156
      $region16: #{_lambda_.6} parent=11 // pred_fallthru
        _
      // Predicated region
      $region17: #{_lambda_.6} parent=11 // pred_check
        %p158 = pneg %p106
      $region18: #{_lambda_.6} parent=11 // pred_check_branch
        %160 = sbr.rel (%p158) target = $region20
      $region19: #{_lambda_.6} parent=11 // pred_region
        %p161 = scmp.lt.s32.totalorder %s21, 0
        %s162 = scalar_select %p161, %s21, 0
        %s163 = scalar_lea.vmem %s2, %s162
      $region20: #{_lambda_.6} parent=11 // pred_fallthru
        _
    $region12: #{_lambda_.6} parent=5 // pred_fallthru
      _
    %p164 = scmp.lt.s32.totalorder %s9, 2
    // Predicated region
    $region21: #{_lambda_.6} parent=5 // pred_check
      %p165 = pneg %p164
    $region22: #{_lambda_.6} parent=5 // pred_check_branch
      %167 = sbr.rel (%p165) target = $region24
    $region23: #{_lambda_.6} parent=5 // pred_region
      // Predicated region
      $region25: #{_lambda_.6} parent=23 // pred_check
        %p168 = pneg %p48
      $region26: #{_lambda_.6} parent=23 // pred_check_branch
        %170 = sbr.rel (%p168) target = $region28
      $region27: #{_lambda_.6} parent=23 // pred_region
        %p171 = scmp.lt.s32.totalorder %s16, 1
        %s172 = scalar_select %p171, %s16, 1
        %s173 = smul.addr %s172, 48
        %s174 = smul.addr %s173, 4
        %s175 = scalar_lea.vmem %s0, %s174
      $region28: #{_lambda_.6} parent=23 // pred_fallthru
        _
    $region24: #{_lambda_.6} parent=5 // pred_fallthru
      _
    %p176 = scmp.le.s32.totalorder 1, %s9
    %p177 = scmp.lt.s32.totalorder %s9, 3
    %p178 = pnand %p176, %p177
    %p179 = pneg %p178
    // Predicated region
    $region29: #{_lambda_.6} parent=5 // pred_check
      _
    $region30: #{_lambda_.6} parent=5 // pred_check_branch
      %181 = sbr.rel (%p178) target = $region32
    $region31: #{_lambda_.6} parent=5 // pred_region
      %s182 = ssub.s32 %s9, 1
      %p183 = scmp.lt.s32.totalorder %s19, 1
      %s184 = scalar_select %p183, %s19, 1
      %s185 = smul.addr %s184, 48
      %s186 = smul.addr %s185, 4
      %s187 = scalar_lea.vmem %s0, %s186
      %p188 = pneg %p54
      %p189 = pneg %p51
      %p190 = scmp.lt.s32.totalorder %s21, 0
      %s191 = scalar_select %p190, %s21, 0
      %s192 = smul.addr %s191, 4
      %s193 = scalar_lea.vmem %s1, %s192
      %p194 = pneg %p80
      %p195 = pneg %p77
      %p196 = scmp.lt.s32.totalorder %s21, 0
      %s197 = scalar_select %p196, %s21, 0
      %s198 = scalar_lea.vmem %s2, %s197
      %p199 = pneg %p106
      %p200 = pneg %p103
      %p201 = pneg %p136
      %p202 = pneg %p133
      %s203 = smul.u32 5, %s20
      %p204 = scmp.lt.s32.totalorder %s19, 1
      %s205 = scalar_select %p204, %s19, 1
      %p206 = scmp.lt.s32.totalorder %s203, 4
      %s207 = scalar_select %p206, %s203, 4
      %p208 = scmp.lt.s32.totalorder %s21, 0
      %s209 = scalar_select %p208, %s21, 0
      %s210 = sadd.s32 %s209, %s207
      %s211 = smul.addr %s205, 5
      %s212 = sadd.s32 %s210, %s211
      %s213 = smul.addr %s212, 4
      %s214 = scalar_lea.vmem %s3, %s213
      %p215 = scmp.lt.s32.totalorder %s19, 1
      %s216 = scalar_select %p215, %s19, 1
      %s217 = smul.addr %s216, 48
      %s218 = smul.addr %s217, 4
      %s219 = scalar_lea.vmem %s0, %s218
      %p220 = scmp.lt.s32.totalorder %s21, 0
      %s221 = scalar_select %p220, %s21, 0
      %s222 = smul.addr %s221, 4
      %s223 = scalar_lea.vmem %s1, %s222
      %p224 = scmp.lt.s32.totalorder %s21, 0
      %s225 = scalar_select %p224, %s21, 0
      %s226 = scalar_lea.vmem %s2, %s225
      %s227 = smul.u32 5, %s20
      %p228 = scmp.lt.s32.totalorder %s19, 1
      %s229 = scalar_select %p228, %s19, 1
      %p230 = scmp.lt.s32.totalorder %s227, 4
      %s231 = scalar_select %p230, %s227, 4
      %p232 = scmp.lt.s32.totalorder %s21, 0
      %s233 = scalar_select %p232, %s21, 0
      %s234 = sadd.s32 %s233, %s231
      %s235 = smul.addr %s229, 5
      %s236 = sadd.s32 %s234, %s235
      %s237 = smul.addr %s236, 4
      %s238 = scalar_lea.vmem %s3, %s237
      %s239 = smul.u32 5, %s20
      %s241 = smul.u32 %s20, 5
      %s242 = smul.u32 %s241, 8
      %s243 = smul.addr %s242, 4
      %s244 = scalar_lea.vmem %s219, %s243
      %v245 = vld [vmem:[%s244] sm:$0xff]
      %v246 = vld [vmem:[%s244 + $0x8] sm:$0xff]
      %v247 = vld [vmem:[%s244 + $0x20] sm:$0xff]
      %v248 = vld [vmem:[%s244 + $0x28] sm:$0xff]
      %v249 = vld [vmem:[%s244 + $0x40] sm:$0xff]
      %v250 = vld [vmem:[%s244 + $0x48] sm:$0xff]
      %v251 = vld [vmem:[%s244 + $0x60] sm:$0xff]
      %v252 = vld [vmem:[%s244 + $0x68] sm:$0xff]
      %v253 = vld [vmem:[%s244 + $0x80] sm:$0xff]
      %v254 = vld [vmem:[%s244 + $0x88] sm:$0xff]
      %v255 = vld [vmem:[%s244 + $0xa0] sm:$0xff]
      %v256 = vld [vmem:[%s244 + $0xa8] sm:$0xff]
      %v257 = vld [vmem:[%s223] sm:$0xf]
      %v258 = vld [vmem:[%s223 + $0x4] sm:$0xf]
      %v259 = vld [vmem:[%s223 + $0x8] sm:$0xf]
      %v260 = vld [vmem:[%s223 + $0xc] sm:$0xf]
      %v261 = vld [vmem:[%s223 + $0x10] sm:$0xf]
      %v262 = vld [vmem:[%s223 + $0x14] sm:$0xf]
      %v263 = vld [vmem:[%s223 + $0x18] sm:$0xf]
      %v264 = vld [vmem:[%s223 + $0x1c] sm:$0xf]
      %v265 = vld [vmem:[%s223 + $0x20] sm:$0xf]
      %v266 = vld [vmem:[%s223 + $0x24] sm:$0xf]
      %v267 = vld [vmem:[%s223 + $0x28] sm:$0xf]
      %v268 = vld [vmem:[%s223 + $0x2c] sm:$0xf]
      %v269 = vld [vmem:[%s223 + $0x30] sm:$0xf]
      %v270 = vld [vmem:[%s223 + $0x34] sm:$0xf]
      %v271 = vld [vmem:[%s223 + $0x38] sm:$0xf]
      %v272 = vld [vmem:[%s223 + $0x3c] sm:$0xf]
      %v273 = vld [vmem:[%s223 + $0x40] sm:$0xf]
      %v274 = vld [vmem:[%s223 + $0x44] sm:$0xf]
      %v275 = vld [vmem:[%s223 + $0x48] sm:$0xf]
      %v276 = vld [vmem:[%s223 + $0x4c] sm:$0xf]
      %v277 = vld [vmem:[%s223 + $0x50] sm:$0xf]
      %v278 = vld [vmem:[%s223 + $0x54] sm:$0xf]
      %v279 = vld [vmem:[%s223 + $0x58] sm:$0xf]
      %v280 = vld [vmem:[%s223 + $0x5c] sm:$0xf]
      %v281 = vld [vmem:[%s223 + $0x60] sm:$0xf]
      %v282 = vld [vmem:[%s223 + $0x64] sm:$0xf]
      %v283 = vld [vmem:[%s223 + $0x68] sm:$0xf]
      %v284 = vld [vmem:[%s223 + $0x6c] sm:$0xf]
      %v285 = vld [vmem:[%s223 + $0x70] sm:$0xf]
      %v286 = vld [vmem:[%s223 + $0x74] sm:$0xf]
      %v287 = vld [vmem:[%s223 + $0x78] sm:$0xf]
      %v288 = vld [vmem:[%s223 + $0x7c] sm:$0xf]
      %v289 = vld [vmem:[%s223 + $0x80] sm:$0xf]
      %v290 = vld [vmem:[%s223 + $0x84] sm:$0xf]
      %v291 = vld [vmem:[%s223 + $0x88] sm:$0xf]
      %v292 = vld [vmem:[%s223 + $0x8c] sm:$0xf]
      %v293 = vld [vmem:[%s223 + $0x90] sm:$0xf]
      %v294 = vld [vmem:[%s223 + $0x94] sm:$0xf]
      %v295 = vld [vmem:[%s223 + $0x98] sm:$0xf]
      %v296 = vld [vmem:[%s223 + $0x9c] sm:$0xf]
      %v297 = vld [vmem:[%s223 + $0xa0] sm:$0xf]
      %v298 = vld [vmem:[%s223 + $0xa4] sm:$0xf]
      %v299 = vld [vmem:[%s223 + $0xa8] sm:$0xf]
      %v300 = vld [vmem:[%s223 + $0xac] sm:$0xf]
      %v301 = vld [vmem:[%s223 + $0xb0] sm:$0xf]
      %v302 = vld [vmem:[%s223 + $0xb4] sm:$0xf]
      %v303 = vld [vmem:[%s223 + $0xb8] sm:$0xf]
      %v304 = vld [vmem:[%s223 + $0xbc] sm:$0xf]
      %v305 = vld [vmem:[%s223 + $0xc0] sm:$0xf]
      %v306 = vld [vmem:[%s223 + $0xc4] sm:$0xf]
      %v307 = vld [vmem:[%s223 + $0xc8] sm:$0xf]
      %v308 = vld [vmem:[%s223 + $0xcc] sm:$0xf]
      %v309 = vld [vmem:[%s223 + $0xd0] sm:$0xf]
      %v310 = vld [vmem:[%s223 + $0xd4] sm:$0xf]
      %v311 = vld [vmem:[%s223 + $0xd8] sm:$0xf]
      %v312 = vld [vmem:[%s223 + $0xdc] sm:$0xf]
      %v313 = vld [vmem:[%s223 + $0xe0] sm:$0xf]
      %v314 = vld [vmem:[%s223 + $0xe4] sm:$0xf]
      %v315 = vld [vmem:[%s223 + $0xe8] sm:$0xf]
      %v316 = vld [vmem:[%s223 + $0xec] sm:$0xf]
      %v317 = vld [vmem:[%s223 + $0xf0] sm:$0xf]
      %v318 = vld [vmem:[%s223 + $0xf4] sm:$0xf]
      %v319 = vld [vmem:[%s223 + $0xf8] sm:$0xf]
      %v320 = vld [vmem:[%s223 + $0xfc] sm:$0xf]
      %s321 = scalar_lea.vmem %s223, 512
      %v322 = vld [vmem:[%s321] sm:$0xf]
      %v323 = vld [vmem:[%s321 + $0x4] sm:$0xf]
      %v324 = vld [vmem:[%s321 + $0x8] sm:$0xf]
      %v325 = vld [vmem:[%s321 + $0xc] sm:$0xf]
      %v326 = vld [vmem:[%s321 + $0x10] sm:$0xf]
      %v327 = vld [vmem:[%s321 + $0x14] sm:$0xf]
      %v328 = vld [vmem:[%s321 + $0x18] sm:$0xf]
      %v329 = vld [vmem:[%s321 + $0x1c] sm:$0xf]
      %v330 = vld [vmem:[%s321 + $0x20] sm:$0xf]
      %v331 = vld [vmem:[%s321 + $0x24] sm:$0xf]
      %v332 = vld [vmem:[%s321 + $0x28] sm:$0xf]
      %v333 = vld [vmem:[%s321 + $0x2c] sm:$0xf]
      %v334 = vld [vmem:[%s321 + $0x30] sm:$0xf]
      %v335 = vld [vmem:[%s321 + $0x34] sm:$0xf]
      %v336 = vld [vmem:[%s321 + $0x38] sm:$0xf]
      %v337 = vld [vmem:[%s321 + $0x3c] sm:$0xf]
      %v338 = vld [vmem:[%s321 + $0x40] sm:$0xf]
      %v339 = vld [vmem:[%s321 + $0x44] sm:$0xf]
      %v340 = vld [vmem:[%s321 + $0x48] sm:$0xf]
      %v341 = vld [vmem:[%s321 + $0x4c] sm:$0xf]
      %v342 = vld [vmem:[%s321 + $0x50] sm:$0xf]
      %v343 = vld [vmem:[%s321 + $0x54] sm:$0xf]
      %v344 = vld [vmem:[%s321 + $0x58] sm:$0xf]
      %v345 = vld [vmem:[%s321 + $0x5c] sm:$0xf]
      %v346 = vld [vmem:[%s321 + $0x60] sm:$0xf]
      %v347 = vld [vmem:[%s321 + $0x64] sm:$0xf]
      %v348 = vld [vmem:[%s321 + $0x68] sm:$0xf]
      %v349 = vld [vmem:[%s321 + $0x6c] sm:$0xf]
      %v350 = vld [vmem:[%s321 + $0x70] sm:$0xf]
      %v351 = vld [vmem:[%s321 + $0x74] sm:$0xf]
      %v352 = vld [vmem:[%s321 + $0x78] sm:$0xf]
      %v353 = vld [vmem:[%s321 + $0x7c] sm:$0xf]
      %v354 = vld [vmem:[%s321 + $0x80] sm:$0xf]
      %v355 = vld [vmem:[%s321 + $0x84] sm:$0xf]
      %v356 = vld [vmem:[%s321 + $0x88] sm:$0xf]
      %v357 = vld [vmem:[%s321 + $0x8c] sm:$0xf]
      %v358 = vld [vmem:[%s321 + $0x90] sm:$0xf]
      %v359 = vld [vmem:[%s321 + $0x94] sm:$0xf]
      %v360 = vld [vmem:[%s321 + $0x98] sm:$0xf]
      %v361 = vld [vmem:[%s321 + $0x9c] sm:$0xf]
      %v362 = vld [vmem:[%s321 + $0xa0] sm:$0xf]
      %v363 = vld [vmem:[%s321 + $0xa4] sm:$0xf]
      %v364 = vld [vmem:[%s321 + $0xa8] sm:$0xf]
      %v365 = vld [vmem:[%s321 + $0xac] sm:$0xf]
      %v366 = vld [vmem:[%s321 + $0xb0] sm:$0xf]
      %v367 = vld [vmem:[%s321 + $0xb4] sm:$0xf]
      %v368 = vld [vmem:[%s321 + $0xb8] sm:$0xf]
      %v369 = vld [vmem:[%s321 + $0xbc] sm:$0xf]
      %v370 = vld [vmem:[%s321 + $0xc0] sm:$0xf]
      %v371 = vld [vmem:[%s321 + $0xc4] sm:$0xf]
      %v372 = vld [vmem:[%s321 + $0xc8] sm:$0xf]
      %v373 = vld [vmem:[%s321 + $0xcc] sm:$0xf]
      %v374 = vld [vmem:[%s321 + $0xd0] sm:$0xf]
      %v375 = vld [vmem:[%s321 + $0xd4] sm:$0xf]
      %v376 = vld [vmem:[%s321 + $0xd8] sm:$0xf]
      %v377 = vld [vmem:[%s321 + $0xdc] sm:$0xf]
      %v378 = vld [vmem:[%s321 + $0xe0] sm:$0xf]
      %v379 = vld [vmem:[%s321 + $0xe4] sm:$0xf]
      %v380 = vld [vmem:[%s321 + $0xe8] sm:$0xf]
      %v381 = vld [vmem:[%s321 + $0xec] sm:$0xf]
      %v382 = vld [vmem:[%s321 + $0xf0] sm:$0xf]
      %v383 = vld [vmem:[%s321 + $0xf4] sm:$0xf]
      %v384 = vld [vmem:[%s321 + $0xf8] sm:$0xf]
      %v385 = vld [vmem:[%s321 + $0xfc] sm:$0xf]
      %v396 = vunpack.c.l.b16 %v247
      %v397 = vunpack.c.h.b16 %v247
      %v398 = vunpack.c.l.b16 %v248
      %v399 = vunpack.c.h.b16 %v248
      %v400 = vunpack.c.l.b16 %v249
      %v401 = vunpack.c.h.b16 %v249
      %v402 = vunpack.c.l.b16 %v250
      %v403 = vunpack.c.h.b16 %v250
      %v404 = vunpack.c.l.b16 %v251
      %v405 = vunpack.c.h.b16 %v251
      %v406 = vunpack.c.l.b16 %v252
      %v407 = vunpack.c.h.b16 %v252
      %v408 = vunpack.c.l.b16 %v253
      %v409 = vunpack.c.h.b16 %v253
      %v410 = vunpack.c.l.b16 %v254
      %v411 = vunpack.c.h.b16 %v254
      %v412 = vunpack.c.l.b16 %v255
      %v413 = vunpack.c.h.b16 %v255
      %v414 = vunpack.c.l.b16 %v256
      %v415 = vunpack.c.h.b16 %v256
      %v416 = vpack.c.b16 %v400, %v396
      %v417 = vpack.c.b16 %v401, %v397
      %v418 = vpack.c.b16 %v402, %v398
      %v419 = vpack.c.b16 %v403, %v399
      %v420 = vpack.c.b16 %v408, %v404
      %v421 = vpack.c.b16 %v409, %v405
      %v422 = vpack.c.b16 %v410, %v406
      %v423 = vpack.c.b16 %v411, %v407
      %v424 = vpack.c.b16 %v412, %v412
      %v425 = vpack.c.b16 %v413, %v413
      %v426 = vpack.c.b16 %v414, %v414
      %v427 = vpack.c.b16 %v415, %v415
      %v504 = vunpack.c.l.b16 %v322
      %v505 = vunpack.c.l.b16 %v323
      %v506 = vunpack.c.l.b16 %v324
      %v507 = vunpack.c.l.b16 %v325
      %v508 = vunpack.c.l.b16 %v326
      %v509 = vunpack.c.l.b16 %v327
      %v510 = vunpack.c.l.b16 %v328
      %v511 = vunpack.c.l.b16 %v329
      %v512 = vunpack.c.l.b16 %v330
      %v513 = vunpack.c.l.b16 %v331
      %v514 = vunpack.c.l.b16 %v332
      %v515 = vunpack.c.l.b16 %v333
      %v516 = vunpack.c.l.b16 %v334
      %v517 = vunpack.c.l.b16 %v335
      %v518 = vunpack.c.l.b16 %v336
      %v519 = vunpack.c.l.b16 %v337
      %v520 = vunpack.c.l.b16 %v338
      %v521 = vunpack.c.l.b16 %v339
      %v522 = vunpack.c.l.b16 %v340
      %v523 = vunpack.c.l.b16 %v341
      %v524 = vunpack.c.l.b16 %v342
      %v525 = vunpack.c.l.b16 %v343
      %v526 = vunpack.c.l.b16 %v344
      %v527 = vunpack.c.l.b16 %v345
      %v528 = vunpack.c.l.b16 %v346
      %v529 = vunpack.c.l.b16 %v347
      %v530 = vunpack.c.l.b16 %v348
      %v531 = vunpack.c.l.b16 %v349
      %v532 = vunpack.c.l.b16 %v350
      %v533 = vunpack.c.l.b16 %v351
      %v534 = vunpack.c.l.b16 %v352
      %v535 = vunpack.c.l.b16 %v353
      %v536 = vunpack.c.l.b16 %v354
      %v537 = vunpack.c.l.b16 %v355
      %v538 = vunpack.c.l.b16 %v356
      %v539 = vunpack.c.l.b16 %v357
      %v540 = vunpack.c.l.b16 %v358
      %v541 = vunpack.c.l.b16 %v359
      %v542 = vunpack.c.l.b16 %v360
      %v543 = vunpack.c.l.b16 %v361
      %v544 = vunpack.c.l.b16 %v362
      %v545 = vunpack.c.l.b16 %v363
      %v546 = vunpack.c.l.b16 %v364
      %v547 = vunpack.c.l.b16 %v365
      %v548 = vunpack.c.l.b16 %v366
      %v549 = vunpack.c.l.b16 %v367
      %v550 = vunpack.c.l.b16 %v368
      %v551 = vunpack.c.l.b16 %v369
      %v552 = vunpack.c.l.b16 %v370
      %v553 = vunpack.c.l.b16 %v371
      %v554 = vunpack.c.l.b16 %v372
      %v555 = vunpack.c.l.b16 %v373
      %v556 = vunpack.c.l.b16 %v374
      %v557 = vunpack.c.l.b16 %v375
      %v558 = vunpack.c.l.b16 %v376
      %v559 = vunpack.c.l.b16 %v377
      %v560 = vunpack.c.l.b16 %v378
      %v561 = vunpack.c.l.b16 %v379
      %v562 = vunpack.c.l.b16 %v380
      %v563 = vunpack.c.l.b16 %v381
      %v564 = vunpack.c.l.b16 %v382
      %v565 = vunpack.c.l.b16 %v383
      %v566 = vunpack.c.l.b16 %v384
      %v567 = vunpack.c.l.b16 %v385
      %v568 = vpack.c.b16 %v505, %v504
      %v569 = vpack.c.b16 %v507, %v506
      %v570 = vpack.c.b16 %v509, %v508
      %v571 = vpack.c.b16 %v511, %v510
      %v572 = vpack.c.b16 %v513, %v512
      %v573 = vpack.c.b16 %v515, %v514
      %v574 = vpack.c.b16 %v517, %v516
      %v575 = vpack.c.b16 %v519, %v518
      %v576 = vpack.c.b16 %v521, %v520
      %v577 = vpack.c.b16 %v523, %v522
      %v578 = vpack.c.b16 %v525, %v524
      %v579 = vpack.c.b16 %v527, %v526
      %v580 = vpack.c.b16 %v529, %v528
      %v581 = vpack.c.b16 %v531, %v530
      %v582 = vpack.c.b16 %v533, %v532
      %v583 = vpack.c.b16 %v535, %v534
      %v584 = vpack.c.b16 %v537, %v536
      %v585 = vpack.c.b16 %v539, %v538
      %v586 = vpack.c.b16 %v541, %v540
      %v587 = vpack.c.b16 %v543, %v542
      %v588 = vpack.c.b16 %v545, %v544
      %v589 = vpack.c.b16 %v547, %v546
      %v590 = vpack.c.b16 %v549, %v548
      %v591 = vpack.c.b16 %v551, %v550
      %v592 = vpack.c.b16 %v553, %v552
      %v593 = vpack.c.b16 %v555, %v554
      %v594 = vpack.c.b16 %v557, %v556
      %v595 = vpack.c.b16 %v559, %v558
      %v596 = vpack.c.b16 %v561, %v560
      %v597 = vpack.c.b16 %v563, %v562
      %v598 = vpack.c.b16 %v565, %v564
      %v599 = vpack.c.b16 %v567, %v566
      %632 = vmatprep.subr.bf16.mxu0 0
      %633 = vmatpush1.bf16.msra.mxu0 %v568
      %634 = vmatprep.subr.bf16.mxu0 0
      %635 = vmatpush1.bf16.msra.mxu0 %v569
      %636 = vmatprep.subr.bf16.mxu0 0
      %637 = vmatpush1.bf16.msra.mxu0 %v570
      %638 = vmatprep.subr.bf16.mxu0 0
      %639 = vmatpush1.bf16.msra.mxu0 %v571
      %640 = vmatprep.subr.bf16.mxu0 0
      %641 = vmatpush1.bf16.msra.mxu0 %v572
      %642 = vmatprep.subr.bf16.mxu0 0
      %643 = vmatpush1.bf16.msra.mxu0 %v573
      %644 = vmatprep.subr.bf16.mxu0 0
      %645 = vmatpush1.bf16.msra.mxu0 %v574
      %646 = vmatprep.subr.bf16.mxu0 0
      %647 = vmatpush1.bf16.msra.mxu0 %v575
      %648 = vmatprep.subr.bf16.mxu0 0
      %649 = vmatpush1.bf16.msra.mxu0 %v576
      %650 = vmatprep.subr.bf16.mxu0 0
      %651 = vmatpush1.bf16.msra.mxu0 %v577
      %652 = vmatprep.subr.bf16.mxu0 0
      %653 = vmatpush1.bf16.msra.mxu0 %v578
      %654 = vmatprep.subr.bf16.mxu0 0
      %655 = vmatpush1.bf16.msra.mxu0 %v579
      %656 = vmatprep.subr.bf16.mxu0 0
      %657 = vmatpush1.bf16.msra.mxu0 %v580
      %658 = vmatprep.subr.bf16.mxu0 0
      %659 = vmatpush1.bf16.msra.mxu0 %v581
      %660 = vmatprep.subr.bf16.mxu0 0
      %661 = vmatpush1.bf16.msra.mxu0 %v582
      %662 = vmatprep.subr.bf16.mxu0 0
      %663 = vmatpush1.bf16.msra.mxu0 %v583
      %664 = vmatprep.mubr.bf16.mxu0 %v417
      %665 = vmatmul.mubr.bf16.gmra.mrb[0].mxu0 %v416
      %v666 = vpop.f32.mrb[0].mxu0
      %v667 = vadd.f32 0.0, %v666
      %v668 = vpop.f32.mrb[0].mxu0
      %v669 = vpop.f32.mrb[0].mxu0
      %v670 = vadd.f32 0.0, %v669
      %v671 = vpop.f32.mrb[0].mxu0
      %672 = vmatprep.mubr.bf16.mxu0 %v421
      %673 = vmatmul.mubr.bf16.gmra.mrb[0].mxu0 %v420
      %v674 = vpop.f32.mrb[0].mxu0
      %v675 = vadd.f32 0.0, %v674
      %v676 = vpop.f32.mrb[0].mxu0
      %v677 = vpop.f32.mrb[0].mxu0
      %v678 = vadd.f32 0.0, %v677
      %v679 = vpop.f32.mrb[0].mxu0
      %680 = vmatprep.mubr.bf16.mxu0 %v425
      %681 = vmatmul.mubr.bf16.gmra.mrb[0].mxu0 %v424
      %v682 = vpop.f32.mrb[0].mxu0
      %v683 = vadd.f32 0.0, %v682
      %v684 = vpop.f32.mrb[0].mxu0
      %v685 = vpop.f32.mrb[0].mxu0
      %v686 = vpop.f32.mrb[0].mxu0
      %687 = vdwg.mxu0
      %688 = vmatprep.subr.bf16.mxu0 0
      %689 = vmatpush1.bf16.msra.mxu0 %v584
      %690 = vmatprep.subr.bf16.mxu0 0
      %691 = vmatpush1.bf16.msra.mxu0 %v585
      %692 = vmatprep.subr.bf16.mxu0 0
      %693 = vmatpush1.bf16.msra.mxu0 %v586
      %694 = vmatprep.subr.bf16.mxu0 0
      %695 = vmatpush1.bf16.msra.mxu0 %v587
      %696 = vmatprep.subr.bf16.mxu0 0
      %697 = vmatpush1.bf16.msra.mxu0 %v588
      %698 = vmatprep.subr.bf16.mxu0 0
      %699 = vmatpush1.bf16.msra.mxu0 %v589
      %700 = vmatprep.subr.bf16.mxu0 0
      %701 = vmatpush1.bf16.msra.mxu0 %v590
      %702 = vmatprep.subr.bf16.mxu0 0
      %703 = vmatpush1.bf16.msra.mxu0 %v591
      %704 = vmatprep.subr.bf16.mxu0 0
      %705 = vmatpush1.bf16.msra.mxu0 %v592
      %706 = vmatprep.subr.bf16.mxu0 0
      %707 = vmatpush1.bf16.msra.mxu0 %v593
      %708 = vmatprep.subr.bf16.mxu0 0
      %709 = vmatpush1.bf16.msra.mxu0 %v594
      %710 = vmatprep.subr.bf16.mxu0 0
      %711 = vmatpush1.bf16.msra.mxu0 %v595
      %712 = vmatprep.subr.bf16.mxu0 0
      %713 = vmatpush1.bf16.msra.mxu0 %v596
      %714 = vmatprep.subr.bf16.mxu0 0
      %715 = vmatpush1.bf16.msra.mxu0 %v597
      %716 = vmatprep.subr.bf16.mxu0 0
      %717 = vmatpush1.bf16.msra.mxu0 %v598
      %718 = vmatprep.subr.bf16.mxu0 0
      %719 = vmatpush1.bf16.msra.mxu0 %v599
      %720 = vmatprep.mubr.bf16.mxu0 %v419
      %721 = vmatmul.mubr.bf16.gmra.mrb[0].mxu0 %v418
      %v722 = vpop.f32.mrb[0].mxu0
      %v723 = vadd.f32 %v667, %v722
      %v724 = vpop.f32.mrb[0].mxu0
      %v725 = vpop.f32.mrb[0].mxu0
      %v726 = vadd.f32 %v670, %v725
      %v727 = vpop.f32.mrb[0].mxu0
      %728 = vmatprep.mubr.bf16.mxu0 %v423
      %729 = vmatmul.mubr.bf16.gmra.mrb[0].mxu0 %v422
      %v730 = vpop.f32.mrb[0].mxu0
      %v731 = vadd.f32 %v675, %v730
      %v732 = vpop.f32.mrb[0].mxu0
      %v733 = vpop.f32.mrb[0].mxu0
      %v734 = vadd.f32 %v678, %v733
      %v735 = vpop.f32.mrb[0].mxu0
      %736 = vmatprep.mubr.bf16.mxu0 %v427
      %737 = vmatmul.mubr.bf16.gmra.mrb[0].mxu0 %v426
      %v738 = vpop.f32.mrb[0].mxu0
      %v739 = vadd.f32 %v683, %v738
      %v740 = vpop.f32.mrb[0].mxu0
      %v741 = vpop.f32.mrb[0].mxu0
      %v742 = vpop.f32.mrb[0].mxu0
      %743 = vdwg.mxu0
      %v746 = vunpack.c.l.b16 %v245
      %v747 = vunpack.c.h.b16 %v245
      %v748 = vunpack.c.l.b16 %v246
      %v749 = vunpack.c.h.b16 %v246
      %v750 = vpack.c.b16 %v396, %v746
      %v751 = vpack.c.b16 %v397, %v747
      %v752 = vpack.c.b16 %v398, %v748
      %v753 = vpack.c.b16 %v399, %v749
      %v754 = vpack.c.b16 %v404, %v400
      %v755 = vpack.c.b16 %v405, %v401
      %v756 = vpack.c.b16 %v406, %v402
      %v757 = vpack.c.b16 %v407, %v403
      %v758 = vpack.c.b16 %v408, %v408
      %v759 = vpack.c.b16 %v409, %v409
      %v760 = vpack.c.b16 %v410, %v410
      %v761 = vpack.c.b16 %v411, %v411
      %v838 = vunpack.c.l.b16 %v257
      %v839 = vunpack.c.l.b16 %v258
      %v840 = vunpack.c.l.b16 %v259
      %v841 = vunpack.c.l.b16 %v260
      %v842 = vunpack.c.l.b16 %v261
      %v843 = vunpack.c.l.b16 %v262
      %v844 = vunpack.c.l.b16 %v263
      %v845 = vunpack.c.l.b16 %v264
      %v846 = vunpack.c.l.b16 %v265
      %v847 = vunpack.c.l.b16 %v266
      %v848 = vunpack.c.l.b16 %v267
      %v849 = vunpack.c.l.b16 %v268
      %v850 = vunpack.c.l.b16 %v269
      %v851 = vunpack.c.l.b16 %v270
      %v852 = vunpack.c.l.b16 %v271
      %v853 = vunpack.c.l.b16 %v272
      %v854 = vunpack.c.l.b16 %v273
      %v855 = vunpack.c.l.b16 %v274
      %v856 = vunpack.c.l.b16 %v275
      %v857 = vunpack.c.l.b16 %v276
      %v858 = vunpack.c.l.b16 %v277
      %v859 = vunpack.c.l.b16 %v278
      %v860 = vunpack.c.l.b16 %v279
      %v861 = vunpack.c.l.b16 %v280
      %v862 = vunpack.c.l.b16 %v281
      %v863 = vunpack.c.l.b16 %v282
      %v864 = vunpack.c.l.b16 %v283
      %v865 = vunpack.c.l.b16 %v284
      %v866 = vunpack.c.l.b16 %v285
      %v867 = vunpack.c.l.b16 %v286
      %v868 = vunpack.c.l.b16 %v287
      %v869 = vunpack.c.l.b16 %v288
      %v870 = vunpack.c.l.b16 %v289
      %v871 = vunpack.c.l.b16 %v290
      %v872 = vunpack.c.l.b16 %v291
      %v873 = vunpack.c.l.b16 %v292
      %v874 = vunpack.c.l.b16 %v293
      %v875 = vunpack.c.l.b16 %v294
      %v876 = vunpack.c.l.b16 %v295
      %v877 = vunpack.c.l.b16 %v296
      %v878 = vunpack.c.l.b16 %v297
      %v879 = vunpack.c.l.b16 %v298
      %v880 = vunpack.c.l.b16 %v299
      %v881 = vunpack.c.l.b16 %v300
      %v882 = vunpack.c.l.b16 %v301
      %v883 = vunpack.c.l.b16 %v302
      %v884 = vunpack.c.l.b16 %v303
      %v885 = vunpack.c.l.b16 %v304
      %v886 = vunpack.c.l.b16 %v305
      %v887 = vunpack.c.l.b16 %v306
      %v888 = vunpack.c.l.b16 %v307
      %v889 = vunpack.c.l.b16 %v308
      %v890 = vunpack.c.l.b16 %v309
      %v891 = vunpack.c.l.b16 %v310
      %v892 = vunpack.c.l.b16 %v311
      %v893 = vunpack.c.l.b16 %v312
      %v894 = vunpack.c.l.b16 %v313
      %v895 = vunpack.c.l.b16 %v314
      %v896 = vunpack.c.l.b16 %v315
      %v897 = vunpack.c.l.b16 %v316
      %v898 = vunpack.c.l.b16 %v317
      %v899 = vunpack.c.l.b16 %v318
      %v900 = vunpack.c.l.b16 %v319
      %v901 = vunpack.c.l.b16 %v320
      %v902 = vpack.c.b16 %v839, %v838
      %v903 = vpack.c.b16 %v841, %v840
      %v904 = vpack.c.b16 %v843, %v842
      %v905 = vpack.c.b16 %v845, %v844
      %v906 = vpack.c.b16 %v847, %v846
      %v907 = vpack.c.b16 %v849, %v848
      %v908 = vpack.c.b16 %v851, %v850
      %v909 = vpack.c.b16 %v853, %v852
      %v910 = vpack.c.b16 %v855, %v854
      %v911 = vpack.c.b16 %v857, %v856
      %v912 = vpack.c.b16 %v859, %v858
      %v913 = vpack.c.b16 %v861, %v860
      %v914 = vpack.c.b16 %v863, %v862
      %v915 = vpack.c.b16 %v865, %v864
      %v916 = vpack.c.b16 %v867, %v866
      %v917 = vpack.c.b16 %v869, %v868
      %v918 = vpack.c.b16 %v871, %v870
      %v919 = vpack.c.b16 %v873, %v872
      %v920 = vpack.c.b16 %v875, %v874
      %v921 = vpack.c.b16 %v877, %v876
      %v922 = vpack.c.b16 %v879, %v878
      %v923 = vpack.c.b16 %v881, %v880
      %v924 = vpack.c.b16 %v883, %v882
      %v925 = vpack.c.b16 %v885, %v884
      %v926 = vpack.c.b16 %v887, %v886
      %v927 = vpack.c.b16 %v889, %v888
      %v928 = vpack.c.b16 %v891, %v890
      %v929 = vpack.c.b16 %v893, %v892
      %v930 = vpack.c.b16 %v895, %v894
      %v931 = vpack.c.b16 %v897, %v896
      %v932 = vpack.c.b16 %v899, %v898
      %v933 = vpack.c.b16 %v901, %v900
      %966 = vmatprep.subr.bf16.mxu0 0
      %967 = vmatpush1.bf16.msra.mxu0 %v902
      %968 = vmatprep.subr.bf16.mxu0 0
      %969 = vmatpush1.bf16.msra.mxu0 %v903
      %970 = vmatprep.subr.bf16.mxu0 0
      %971 = vmatpush1.bf16.msra.mxu0 %v904
      %972 = vmatprep.subr.bf16.mxu0 0
      %973 = vmatpush1.bf16.msra.mxu0 %v905
      %974 = vmatprep.subr.bf16.mxu0 0
      %975 = vmatpush1.bf16.msra.mxu0 %v906
      %976 = vmatprep.subr.bf16.mxu0 0
      %977 = vmatpush1.bf16.msra.mxu0 %v907
      %978 = vmatprep.subr.bf16.mxu0 0
      %979 = vmatpush1.bf16.msra.mxu0 %v908
      %980 = vmatprep.subr.bf16.mxu0 0
      %981 = vmatpush1.bf16.msra.mxu0 %v909
      %982 = vmatprep.subr.bf16.mxu0 0
      %983 = vmatpush1.bf16.msra.mxu0 %v910
      %984 = vmatprep.subr.bf16.mxu0 0
      %985 = vmatpush1.bf16.msra.mxu0 %v911
      %986 = vmatprep.subr.bf16.mxu0 0
      %987 = vmatpush1.bf16.msra.mxu0 %v912
      %988 = vmatprep.subr.bf16.mxu0 0
      %989 = vmatpush1.bf16.msra.mxu0 %v913
      %990 = vmatprep.subr.bf16.mxu0 0
      %991 = vmatpush1.bf16.msra.mxu0 %v914
      %992 = vmatprep.subr.bf16.mxu0 0
      %993 = vmatpush1.bf16.msra.mxu0 %v915
      %994 = vmatprep.subr.bf16.mxu0 0
      %995 = vmatpush1.bf16.msra.mxu0 %v916
      %996 = vmatprep.subr.bf16.mxu0 0
      %997 = vmatpush1.bf16.msra.mxu0 %v917
      %998 = vmatprep.mubr.bf16.mxu0 %v751
      %999 = vmatmul.mubr.bf16.gmra.mrb[0].mxu0 %v750
      %v1000 = vpop.f32.mrb[0].mxu0
      %v1001 = vadd.f32 %v723, %v1000
      %v1002 = vpop.f32.mrb[0].mxu0
      %v1003 = vpop.f32.mrb[0].mxu0
      %v1004 = vadd.f32 %v726, %v1003
      %v1005 = vpop.f32.mrb[0].mxu0
      %1006 = vmatprep.mubr.bf16.mxu0 %v755
      %1007 = vmatmul.mubr.bf16.gmra.mrb[0].mxu0 %v754
      %v1008 = vpop.f32.mrb[0].mxu0
      %v1009 = vadd.f32 %v731, %v1008
      %v1010 = vpop.f32.mrb[0].mxu0
      %v1011 = vpop.f32.mrb[0].mxu0
      %v1012 = vadd.f32 %v734, %v1011
      %v1013 = vpop.f32.mrb[0].mxu0
      %1014 = vmatprep.mubr.bf16.mxu0 %v759
      %1015 = vmatmul.mubr.bf16.gmra.mrb[0].mxu0 %v758
      %v1016 = vpop.f32.mrb[0].mxu0
      %v1017 = vadd.f32 %v739, %v1016
      %v1018 = vpop.f32.mrb[0].mxu0
      %v1019 = vpop.f32.mrb[0].mxu0
      %v1020 = vpop.f32.mrb[0].mxu0
      %1021 = vdwg.mxu0
      %1022 = vmatprep.subr.bf16.mxu0 0
      %1023 = vmatpush1.bf16.msra.mxu0 %v918
      %1024 = vmatprep.subr.bf16.mxu0 0
      %1025 = vmatpush1.bf16.msra.mxu0 %v919
      %1026 = vmatprep.subr.bf16.mxu0 0
      %1027 = vmatpush1.bf16.msra.mxu0 %v920
      %1028 = vmatprep.subr.bf16.mxu0 0
      %1029 = vmatpush1.bf16.msra.mxu0 %v921
      %1030 = vmatprep.subr.bf16.mxu0 0
      %1031 = vmatpush1.bf16.msra.mxu0 %v922
      %1032 = vmatprep.subr.bf16.mxu0 0
      %1033 = vmatpush1.bf16.msra.mxu0 %v923
      %1034 = vmatprep.subr.bf16.mxu0 0
      %1035 = vmatpush1.bf16.msra.mxu0 %v924
      %1036 = vmatprep.subr.bf16.mxu0 0
      %1037 = vmatpush1.bf16.msra.mxu0 %v925
      %1038 = vmatprep.subr.bf16.mxu0 0
      %1039 = vmatpush1.bf16.msra.mxu0 %v926
      %1040 = vmatprep.subr.bf16.mxu0 0
      %1041 = vmatpush1.bf16.msra.mxu0 %v927
      %1042 = vmatprep.subr.bf16.mxu0 0
      %1043 = vmatpush1.bf16.msra.mxu0 %v928
      %1044 = vmatprep.subr.bf16.mxu0 0
      %1045 = vmatpush1.bf16.msra.mxu0 %v929
      %1046 = vmatprep.subr.bf16.mxu0 0
      %1047 = vmatpush1.bf16.msra.mxu0 %v930
      %1048 = vmatprep.subr.bf16.mxu0 0
      %1049 = vmatpush1.bf16.msra.mxu0 %v931
      %1050 = vmatprep.subr.bf16.mxu0 0
      %1051 = vmatpush1.bf16.msra.mxu0 %v932
      %1052 = vmatprep.subr.bf16.mxu0 0
      %1053 = vmatpush1.bf16.msra.mxu0 %v933
      %1054 = vmatprep.mubr.bf16.mxu0 %v753
      %1055 = vmatmul.mubr.bf16.gmra.mrb[0].mxu0 %v752
      %v1056 = vpop.f32.mrb[0].mxu0
      %v1057 = vadd.f32 %v1001, %v1056
      %v1058 = vpop.f32.mrb[0].mxu0
      %v1059 = vpop.f32.mrb[0].mxu0
      %v1060 = vadd.f32 %v1004, %v1059
      %v1061 = vpop.f32.mrb[0].mxu0
      %1062 = vmatprep.mubr.bf16.mxu0 %v757
      %1063 = vmatmul.mubr.bf16.gmra.mrb[0].mxu0 %v756
      %v1064 = vpop.f32.mrb[0].mxu0
      %v1065 = vadd.f32 %v1009, %v1064
      %v1066 = vpop.f32.mrb[0].mxu0
      %v1067 = vpop.f32.mrb[0].mxu0
      %v1068 = vadd.f32 %v1012, %v1067
      %v1069 = vpop.f32.mrb[0].mxu0
      %1070 = vmatprep.mubr.bf16.mxu0 %v761
      %1071 = vmatmul.mubr.bf16.gmra.mrb[0].mxu0 %v760
      %v1072 = vpop.f32.mrb[0].mxu0
      %v1073 = vadd.f32 %v1017, %v1072
      %v1074 = vpop.f32.mrb[0].mxu0
      %v1075 = vpop.f32.mrb[0].mxu0
      %v1076 = vpop.f32.mrb[0].mxu0
      %1077 = vdwg.mxu0
      %v1078 = vld [vmem:[%s244] sm:$0xff]
      %v1079 = vld [vmem:[%s244 + $0x8] sm:$0xff]
      %v1080 = vld [vmem:[%s244 + $0x10] sm:$0x11]
      %v1081 = vld [vmem:[%s244 + $0x18] sm:$0x11]
      %v1082 = vld [vmem:[%s244 + $0x20] sm:$0xff]
      %v1083 = vld [vmem:[%s244 + $0x28] sm:$0xff]
      %v1084 = vld [vmem:[%s244 + $0x30] sm:$0x11]
      %v1085 = vld [vmem:[%s244 + $0x38] sm:$0x11]
      %v1086 = vld [vmem:[%s244 + $0x40] sm:$0xff]
      %v1087 = vld [vmem:[%s244 + $0x48] sm:$0xff]
      %v1088 = vld [vmem:[%s244 + $0x50] sm:$0x11]
      %v1089 = vld [vmem:[%s244 + $0x58] sm:$0x11]
      %v1090 = vld [vmem:[%s244 + $0x60] sm:$0xff]
      %v1091 = vld [vmem:[%s244 + $0x68] sm:$0xff]
      %v1092 = vld [vmem:[%s244 + $0x70] sm:$0x11]
      %v1093 = vld [vmem:[%s244 + $0x78] sm:$0x11]
      %v1094 = vld [vmem:[%s244 + $0x80] sm:$0xff]
      %v1095 = vld [vmem:[%s244 + $0x88] sm:$0xff]
      %v1096 = vld [vmem:[%s244 + $0x90] sm:$0x11]
      %v1097 = vld [vmem:[%s244 + $0x98] sm:$0x11]
      %v1098 = vld [vmem:[%s244 + $0xa0] sm:$0xff]
      %v1099 = vld [vmem:[%s244 + $0xa8] sm:$0xff]
      %v1100 = vld [vmem:[%s244 + $0xb0] sm:$0x11]
      %v1101 = vld [vmem:[%s244 + $0xb8] sm:$0x11]
      %vm1102 = vsmask.f32 3328
      %vm1103 = vsmask.f32 7440
      %vm1104 = vmor %vm1102, %vm1103
      %v1106 = vshrl.u32 %v1078, 16
      %v1108 = vrot.slane %v1106, 4
      %v1109 = vshll.u32 %v1078, 16
      %v1111 = vrot.slane %v1109, 5
      %v1112 = vor.u32 %v1108, %v1111
      %v1113 = vrot.slane %v1112, 4
      %v1115 = vshll.u32 %v1080, 16
      %v1117 = vrot.slane %v1115, 5
      %v1118 = vsel %vm1104, %v1113, %v1117
      %v1120 = vshrl.u32 %v1079, 16
      %v1122 = vrot.slane %v1120, 4
      %v1123 = vshll.u32 %v1079, 16
      %v1125 = vrot.slane %v1123, 5
      %v1126 = vor.u32 %v1122, %v1125
      %v1127 = vrot.slane %v1126, 4
      %v1129 = vshll.u32 %v1081, 16
      %v1131 = vrot.slane %v1129, 5
      %v1132 = vsel %vm1104, %v1127, %v1131
      %v1134 = vshrl.u32 %v1082, 16
      %v1136 = vrot.slane %v1134, 4
      %v1137 = vshll.u32 %v1082, 16
      %v1139 = vrot.slane %v1137, 5
      %v1140 = vor.u32 %v1136, %v1139
      %v1141 = vrot.slane %v1140, 4
      %v1143 = vshll.u32 %v1084, 16
      %v1145 = vrot.slane %v1143, 5
      %v1146 = vsel %vm1104, %v1141, %v1145
      %v1148 = vshrl.u32 %v1083, 16
      %v1150 = vrot.slane %v1148, 4
      %v1151 = vshll.u32 %v1083, 16
      %v1153 = vrot.slane %v1151, 5
      %v1154 = vor.u32 %v1150, %v1153
      %v1155 = vrot.slane %v1154, 4
      %v1157 = vshll.u32 %v1085, 16
      %v1159 = vrot.slane %v1157, 5
      %v1160 = vsel %vm1104, %v1155, %v1159
      %v1162 = vshrl.u32 %v1086, 16
      %v1164 = vrot.slane %v1162, 4
      %v1165 = vshll.u32 %v1086, 16
      %v1167 = vrot.slane %v1165, 5
      %v1168 = vor.u32 %v1164, %v1167
      %v1169 = vrot.slane %v1168, 4
      %v1171 = vshll.u32 %v1088, 16
      %v1173 = vrot.slane %v1171, 5
      %v1174 = vsel %vm1104, %v1169, %v1173
      %v1176 = vshrl.u32 %v1087, 16
      %v1178 = vrot.slane %v1176, 4
      %v1179 = vshll.u32 %v1087, 16
      %v1181 = vrot.slane %v1179, 5
      %v1182 = vor.u32 %v1178, %v1181
      %v1183 = vrot.slane %v1182, 4
      %v1185 = vshll.u32 %v1089, 16
      %v1187 = vrot.slane %v1185, 5
      %v1188 = vsel %vm1104, %v1183, %v1187
      %v1190 = vshrl.u32 %v1090, 16
      %v1192 = vrot.slane %v1190, 4
      %v1193 = vshll.u32 %v1090, 16
      %v1195 = vrot.slane %v1193, 5
      %v1196 = vor.u32 %v1192, %v1195
      %v1197 = vrot.slane %v1196, 4
      %v1199 = vshll.u32 %v1092, 16
      %v1201 = vrot.slane %v1199, 5
      %v1202 = vsel %vm1104, %v1197, %v1201
      %v1204 = vshrl.u32 %v1091, 16
      %v1206 = vrot.slane %v1204, 4
      %v1207 = vshll.u32 %v1091, 16
      %v1209 = vrot.slane %v1207, 5
      %v1210 = vor.u32 %v1206, %v1209
      %v1211 = vrot.slane %v1210, 4
      %v1213 = vshll.u32 %v1093, 16
      %v1215 = vrot.slane %v1213, 5
      %v1216 = vsel %vm1104, %v1211, %v1215
      %v1218 = vshrl.u32 %v1094, 16
      %v1220 = vrot.slane %v1218, 4
      %v1221 = vshll.u32 %v1094, 16
      %v1223 = vrot.slane %v1221, 5
      %v1224 = vor.u32 %v1220, %v1223
      %v1225 = vrot.slane %v1224, 4
      %v1227 = vshll.u32 %v1096, 16
      %v1229 = vrot.slane %v1227, 5
      %v1230 = vsel %vm1104, %v1225, %v1229
      %v1232 = vshrl.u32 %v1095, 16
      %v1234 = vrot.slane %v1232, 4
      %v1235 = vshll.u32 %v1095, 16
      %v1237 = vrot.slane %v1235, 5
      %v1238 = vor.u32 %v1234, %v1237
      %v1239 = vrot.slane %v1238, 4
      %v1241 = vshll.u32 %v1097, 16
      %v1243 = vrot.slane %v1241, 5
      %v1244 = vsel %vm1104, %v1239, %v1243
      %s1245 = scalar_lea.vmem %s223, 256
      %v1246 = vld [vmem:[%s1245] sm:$0xf]
      %v1247 = vld [vmem:[%s1245 + $0x4] sm:$0xf]
      %v1248 = vld [vmem:[%s1245 + $0x8] sm:$0xf]
      %v1249 = vld [vmem:[%s1245 + $0xc] sm:$0xf]
      %v1250 = vld [vmem:[%s1245 + $0x10] sm:$0xf]
      %v1251 = vld [vmem:[%s1245 + $0x14] sm:$0xf]
      %v1252 = vld [vmem:[%s1245 + $0x18] sm:$0xf]
      %v1253 = vld [vmem:[%s1245 + $0x1c] sm:$0xf]
      %v1254 = vld [vmem:[%s1245 + $0x20] sm:$0xf]
      %v1255 = vld [vmem:[%s1245 + $0x24] sm:$0xf]
      %v1256 = vld [vmem:[%s1245 + $0x28] sm:$0xf]
      %v1257 = vld [vmem:[%s1245 + $0x2c] sm:$0xf]
      %v1258 = vld [vmem:[%s1245 + $0x30] sm:$0xf]
      %v1259 = vld [vmem:[%s1245 + $0x34] sm:$0xf]
      %v1260 = vld [vmem:[%s1245 + $0x38] sm:$0xf]
      %v1261 = vld [vmem:[%s1245 + $0x3c] sm:$0xf]
      %v1262 = vld [vmem:[%s1245 + $0x40] sm:$0xf]
      %v1263 = vld [vmem:[%s1245 + $0x44] sm:$0xf]
      %v1264 = vld [vmem:[%s1245 + $0x48] sm:$0xf]
      %v1265 = vld [vmem:[%s1245 + $0x4c] sm:$0xf]
      %v1266 = vld [vmem:[%s1245 + $0x50] sm:$0xf]
      %v1267 = vld [vmem:[%s1245 + $0x54] sm:$0xf]
      %v1268 = vld [vmem:[%s1245 + $0x58] sm:$0xf]
      %v1269 = vld [vmem:[%s1245 + $0x5c] sm:$0xf]
      %v1270 = vld [vmem:[%s1245 + $0x60] sm:$0xf]
      %v1271 = vld [vmem:[%s1245 + $0x64] sm:$0xf]
      %v1272 = vld [vmem:[%s1245 + $0x68] sm:$0xf]
      %v1273 = vld [vmem:[%s1245 + $0x6c] sm:$0xf]
      %v1274 = vld [vmem:[%s1245 + $0x70] sm:$0xf]
      %v1275 = vld [vmem:[%s1245 + $0x74] sm:$0xf]
      %v1276 = vld [vmem:[%s1245 + $0x78] sm:$0xf]
      %v1277 = vld [vmem:[%s1245 + $0x7c] sm:$0xf]
      %v1278 = vld [vmem:[%s1245 + $0x80] sm:$0xf]
      %v1279 = vld [vmem:[%s1245 + $0x84] sm:$0xf]
      %v1280 = vld [vmem:[%s1245 + $0x88] sm:$0xf]
      %v1281 = vld [vmem:[%s1245 + $0x8c] sm:$0xf]
      %v1282 = vld [vmem:[%s1245 + $0x90] sm:$0xf]
      %v1283 = vld [vmem:[%s1245 + $0x94] sm:$0xf]
      %v1284 = vld [vmem:[%s1245 + $0x98] sm:$0xf]
      %v1285 = vld [vmem:[%s1245 + $0x9c] sm:$0xf]
      %v1286 = vld [vmem:[%s1245 + $0xa0] sm:$0xf]
      %v1287 = vld [vmem:[%s1245 + $0xa4] sm:$0xf]
      %v1288 = vld [vmem:[%s1245 + $0xa8] sm:$0xf]
      %v1289 = vld [vmem:[%s1245 + $0xac] sm:$0xf]
      %v1290 = vld [vmem:[%s1245 + $0xb0] sm:$0xf]
      %v1291 = vld [vmem:[%s1245 + $0xb4] sm:$0xf]
      %v1292 = vld [vmem:[%s1245 + $0xb8] sm:$0xf]
      %v1293 = vld [vmem:[%s1245 + $0xbc] sm:$0xf]
      %v1294 = vld [vmem:[%s1245 + $0xc0] sm:$0xf]
      %v1295 = vld [vmem:[%s1245 + $0xc4] sm:$0xf]
      %v1296 = vld [vmem:[%s1245 + $0xc8] sm:$0xf]
      %v1297 = vld [vmem:[%s1245 + $0xcc] sm:$0xf]
      %v1298 = vld [vmem:[%s1245 + $0xd0] sm:$0xf]
      %v1299 = vld [vmem:[%s1245 + $0xd4] sm:$0xf]
      %v1300 = vld [vmem:[%s1245 + $0xd8] sm:$0xf]
      %v1301 = vld [vmem:[%s1245 + $0xdc] sm:$0xf]
      %v1302 = vld [vmem:[%s1245 + $0xe0] sm:$0xf]
      %v1303 = vld [vmem:[%s1245 + $0xe4] sm:$0xf]
      %v1304 = vld [vmem:[%s1245 + $0xe8] sm:$0xf]
      %v1305 = vld [vmem:[%s1245 + $0xec] sm:$0xf]
      %v1306 = vld [vmem:[%s1245 + $0xf0] sm:$0xf]
      %v1307 = vld [vmem:[%s1245 + $0xf4] sm:$0xf]
      %v1308 = vld [vmem:[%s1245 + $0xf8] sm:$0xf]
      %v1309 = vld [vmem:[%s1245 + $0xfc] sm:$0xf]
      %v1310 = vunpack.c.l.b16 %v1118
      %v1311 = vunpack.c.h.b16 %v1118
      %v1312 = vunpack.c.l.b16 %v1132
      %v1313 = vunpack.c.h.b16 %v1132
      %v1314 = vunpack.c.l.b16 %v1146
      %v1315 = vunpack.c.h.b16 %v1146
      %v1316 = vunpack.c.l.b16 %v1160
      %v1317 = vunpack.c.h.b16 %v1160
      %v1318 = vunpack.c.l.b16 %v1174
      %v1319 = vunpack.c.h.b16 %v1174
      %v1320 = vunpack.c.l.b16 %v1188
      %v1321 = vunpack.c.h.b16 %v1188
      %v1322 = vunpack.c.l.b16 %v1202
      %v1323 = vunpack.c.h.b16 %v1202
      %v1324 = vunpack.c.l.b16 %v1216
      %v1325 = vunpack.c.h.b16 %v1216
      %v1326 = vunpack.c.l.b16 %v1230
      %v1327 = vunpack.c.h.b16 %v1230
      %v1328 = vunpack.c.l.b16 %v1244
      %v1329 = vunpack.c.h.b16 %v1244
      %v1330 = vpack.c.b16 %v1314, %v1310
      %v1331 = vpack.c.b16 %v1315, %v1311
      %v1332 = vpack.c.b16 %v1316, %v1312
      %v1333 = vpack.c.b16 %v1317, %v1313
      %v1334 = vpack.c.b16 %v1322, %v1318
      %v1335 = vpack.c.b16 %v1323, %v1319
      %v1336 = vpack.c.b16 %v1324, %v1320
      %v1337 = vpack.c.b16 %v1325, %v1321
      %v1338 = vpack.c.b16 %v1326, %v1326
      %v1339 = vpack.c.b16 %v1327, %v1327
      %v1340 = vpack.c.b16 %v1328, %v1328
      %v1341 = vpack.c.b16 %v1329, %v1329
      %v1418 = vunpack.c.l.b16 %v1246
      %v1419 = vunpack.c.l.b16 %v1247
      %v1420 = vunpack.c.l.b16 %v1248
      %v1421 = vunpack.c.l.b16 %v1249
      %v1422 = vunpack.c.l.b16 %v1250
      %v1423 = vunpack.c.l.b16 %v1251
      %v1424 = vunpack.c.l.b16 %v1252
      %v1425 = vunpack.c.l.b16 %v1253
      %v1426 = vunpack.c.l.b16 %v1254
      %v1427 = vunpack.c.l.b16 %v1255
      %v1428 = vunpack.c.l.b16 %v1256
      %v1429 = vunpack.c.l.b16 %v1257
      %v1430 = vunpack.c.l.b16 %v1258
      %v1431 = vunpack.c.l.b16 %v1259
      %v1432 = vunpack.c.l.b16 %v1260
      %v1433 = vunpack.c.l.b16 %v1261
      %v1434 = vunpack.c.l.b16 %v1262
      %v1435 = vunpack.c.l.b16 %v1263
      %v1436 = vunpack.c.l.b16 %v1264
      %v1437 = vunpack.c.l.b16 %v1265
      %v1438 = vunpack.c.l.b16 %v1266
      %v1439 = vunpack.c.l.b16 %v1267
      %v1440 = vunpack.c.l.b16 %v1268
      %v1441 = vunpack.c.l.b16 %v1269
      %v1442 = vunpack.c.l.b16 %v1270
      %v1443 = vunpack.c.l.b16 %v1271
      %v1444 = vunpack.c.l.b16 %v1272
      %v1445 = vunpack.c.l.b16 %v1273
      %v1446 = vunpack.c.l.b16 %v1274
      %v1447 = vunpack.c.l.b16 %v1275
      %v1448 = vunpack.c.l.b16 %v1276
      %v1449 = vunpack.c.l.b16 %v1277
      %v1450 = vunpack.c.l.b16 %v1278
      %v1451 = vunpack.c.l.b16 %v1279
      %v1452 = vunpack.c.l.b16 %v1280
      %v1453 = vunpack.c.l.b16 %v1281
      %v1454 = vunpack.c.l.b16 %v1282
      %v1455 = vunpack.c.l.b16 %v1283
      %v1456 = vunpack.c.l.b16 %v1284
      %v1457 = vunpack.c.l.b16 %v1285
      %v1458 = vunpack.c.l.b16 %v1286
      %v1459 = vunpack.c.l.b16 %v1287
      %v1460 = vunpack.c.l.b16 %v1288
      %v1461 = vunpack.c.l.b16 %v1289
      %v1462 = vunpack.c.l.b16 %v1290
      %v1463 = vunpack.c.l.b16 %v1291
      %v1464 = vunpack.c.l.b16 %v1292
      %v1465 = vunpack.c.l.b16 %v1293
      %v1466 = vunpack.c.l.b16 %v1294
      %v1467 = vunpack.c.l.b16 %v1295
      %v1468 = vunpack.c.l.b16 %v1296
      %v1469 = vunpack.c.l.b16 %v1297
      %v1470 = vunpack.c.l.b16 %v1298
      %v1471 = vunpack.c.l.b16 %v1299
      %v1472 = vunpack.c.l.b16 %v1300
      %v1473 = vunpack.c.l.b16 %v1301
      %v1474 = vunpack.c.l.b16 %v1302
      %v1475 = vunpack.c.l.b16 %v1303
      %v1476 = vunpack.c.l.b16 %v1304
      %v1477 = vunpack.c.l.b16 %v1305
      %v1478 = vunpack.c.l.b16 %v1306
      %v1479 = vunpack.c.l.b16 %v1307
      %v1480 = vunpack.c.l.b16 %v1308
      %v1481 = vunpack.c.l.b16 %v1309
      %v1482 = vpack.c.b16 %v1419, %v1418
      %v1483 = vpack.c.b16 %v1421, %v1420
      %v1484 = vpack.c.b16 %v1423, %v1422
      %v1485 = vpack.c.b16 %v1425, %v1424
      %v1486 = vpack.c.b16 %v1427, %v1426
      %v1487 = vpack.c.b16 %v1429, %v1428
      %v1488 = vpack.c.b16 %v1431, %v1430
      %v1489 = vpack.c.b16 %v1433, %v1432
      %v1490 = vpack.c.b16 %v1435, %v1434
      %v1491 = vpack.c.b16 %v1437, %v1436
      %v1492 = vpack.c.b16 %v1439, %v1438
      %v1493 = vpack.c.b16 %v1441, %v1440
      %v1494 = vpack.c.b16 %v1443, %v1442
      %v1495 = vpack.c.b16 %v1445, %v1444
      %v1496 = vpack.c.b16 %v1447, %v1446
      %v1497 = vpack.c.b16 %v1449, %v1448
      %v1498 = vpack.c.b16 %v1451, %v1450
      %v1499 = vpack.c.b16 %v1453, %v1452
      %v1500 = vpack.c.b16 %v1455, %v1454
      %v1501 = vpack.c.b16 %v1457, %v1456
      %v1502 = vpack.c.b16 %v1459, %v1458
      %v1503 = vpack.c.b16 %v1461, %v1460
      %v1504 = vpack.c.b16 %v1463, %v1462
      %v1505 = vpack.c.b16 %v1465, %v1464
      %v1506 = vpack.c.b16 %v1467, %v1466
      %v1507 = vpack.c.b16 %v1469, %v1468
      %v1508 = vpack.c.b16 %v1471, %v1470
      %v1509 = vpack.c.b16 %v1473, %v1472
      %v1510 = vpack.c.b16 %v1475, %v1474
      %v1511 = vpack.c.b16 %v1477, %v1476
      %v1512 = vpack.c.b16 %v1479, %v1478
      %v1513 = vpack.c.b16 %v1481, %v1480
      %1546 = vmatprep.subr.bf16.mxu0 0
      %1547 = vmatpush1.bf16.msra.mxu0 %v1482
      %1548 = vmatprep.subr.bf16.mxu0 0
      %1549 = vmatpush1.bf16.msra.mxu0 %v1483
      %1550 = vmatprep.subr.bf16.mxu0 0
      %1551 = vmatpush1.bf16.msra.mxu0 %v1484
      %1552 = vmatprep.subr.bf16.mxu0 0
      %1553 = vmatpush1.bf16.msra.mxu0 %v1485
      %1554 = vmatprep.subr.bf16.mxu0 0
      %1555 = vmatpush1.bf16.msra.mxu0 %v1486
      %1556 = vmatprep.subr.bf16.mxu0 0
      %1557 = vmatpush1.bf16.msra.mxu0 %v1487
      %1558 = vmatprep.subr.bf16.mxu0 0
      %1559 = vmatpush1.bf16.msra.mxu0 %v1488
      %1560 = vmatprep.subr.bf16.mxu0 0
      %1561 = vmatpush1.bf16.msra.mxu0 %v1489
      %1562 = vmatprep.subr.bf16.mxu0 0
      %1563 = vmatpush1.bf16.msra.mxu0 %v1490
      %1564 = vmatprep.subr.bf16.mxu0 0
      %1565 = vmatpush1.bf16.msra.mxu0 %v1491
      %1566 = vmatprep.subr.bf16.mxu0 0
      %1567 = vmatpush1.bf16.msra.mxu0 %v1492
      %1568 = vmatprep.subr.bf16.mxu0 0
      %1569 = vmatpush1.bf16.msra.mxu0 %v1493
      %1570 = vmatprep.subr.bf16.mxu0 0
      %1571 = vmatpush1.bf16.msra.mxu0 %v1494
      %1572 = vmatprep.subr.bf16.mxu0 0
      %1573 = vmatpush1.bf16.msra.mxu0 %v1495
      %1574 = vmatprep.subr.bf16.mxu0 0
      %1575 = vmatpush1.bf16.msra.mxu0 %v1496
      %1576 = vmatprep.subr.bf16.mxu0 0
      %1577 = vmatpush1.bf16.msra.mxu0 %v1497
      %1578 = vmatprep.mubr.bf16.mxu0 %v1331
      %1579 = vmatmul.mubr.bf16.gmra.mrb[0].mxu0 %v1330
      %v1580 = vpop.f32.mrb[0].mxu0
      %v1581 = vadd.f32 0.0, %v1580
      %v1582 = vpop.f32.mrb[0].mxu0
      %v1583 = vpop.f32.mrb[0].mxu0
      %v1584 = vadd.f32 0.0, %v1583
      %v1585 = vpop.f32.mrb[0].mxu0
      %1586 = vmatprep.mubr.bf16.mxu0 %v1335
      %1587 = vmatmul.mubr.bf16.gmra.mrb[0].mxu0 %v1334
      %v1588 = vpop.f32.mrb[0].mxu0
      %v1589 = vadd.f32 0.0, %v1588
      %v1590 = vpop.f32.mrb[0].mxu0
      %v1591 = vpop.f32.mrb[0].mxu0
      %v1592 = vadd.f32 0.0, %v1591
      %v1593 = vpop.f32.mrb[0].mxu0
      %1594 = vmatprep.mubr.bf16.mxu0 %v1339
      %1595 = vmatmul.mubr.bf16.gmra.mrb[0].mxu0 %v1338
      %v1596 = vpop.f32.mrb[0].mxu0
      %v1597 = vadd.f32 0.0, %v1596
      %v1598 = vpop.f32.mrb[0].mxu0
      %v1599 = vpop.f32.mrb[0].mxu0
      %v1600 = vpop.f32.mrb[0].mxu0
      %1601 = vdwg.mxu0
      %1602 = vmatprep.subr.bf16.mxu0 0
      %1603 = vmatpush1.bf16.msra.mxu0 %v1498
      %1604 = vmatprep.subr.bf16.mxu0 0
      %1605 = vmatpush1.bf16.msra.mxu0 %v1499
      %1606 = vmatprep.subr.bf16.mxu0 0
      %1607 = vmatpush1.bf16.msra.mxu0 %v1500
      %1608 = vmatprep.subr.bf16.mxu0 0
      %1609 = vmatpush1.bf16.msra.mxu0 %v1501
      %1610 = vmatprep.subr.bf16.mxu0 0
      %1611 = vmatpush1.bf16.msra.mxu0 %v1502
      %1612 = vmatprep.subr.bf16.mxu0 0
      %1613 = vmatpush1.bf16.msra.mxu0 %v1503
      %1614 = vmatprep.subr.bf16.mxu0 0
      %1615 = vmatpush1.bf16.msra.mxu0 %v1504
      %1616 = vmatprep.subr.bf16.mxu0 0
      %1617 = vmatpush1.bf16.msra.mxu0 %v1505
      %1618 = vmatprep.subr.bf16.mxu0 0
      %1619 = vmatpush1.bf16.msra.mxu0 %v1506
      %1620 = vmatprep.subr.bf16.mxu0 0
      %1621 = vmatpush1.bf16.msra.mxu0 %v1507
      %1622 = vmatprep.subr.bf16.mxu0 0
      %1623 = vmatpush1.bf16.msra.mxu0 %v1508
      %1624 = vmatprep.subr.bf16.mxu0 0
      %1625 = vmatpush1.bf16.msra.mxu0 %v1509
      %1626 = vmatprep.subr.bf16.mxu0 0
      %1627 = vmatpush1.bf16.msra.mxu0 %v1510
      %1628 = vmatprep.subr.bf16.mxu0 0
      %1629 = vmatpush1.bf16.msra.mxu0 %v1511
      %1630 = vmatprep.subr.bf16.mxu0 0
      %1631 = vmatpush1.bf16.msra.mxu0 %v1512
      %1632 = vmatprep.subr.bf16.mxu0 0
      %1633 = vmatpush1.bf16.msra.mxu0 %v1513
      %1634 = vmatprep.mubr.bf16.mxu0 %v1333
      %1635 = vmatmul.mubr.bf16.gmra.mrb[0].mxu0 %v1332
      %v1636 = vpop.f32.mrb[0].mxu0
      %v1637 = vadd.f32 %v1581, %v1636
      %v1638 = vpop.f32.mrb[0].mxu0
      %v1639 = vpop.f32.mrb[0].mxu0
      %v1640 = vadd.f32 %v1584, %v1639
      %v1641 = vpop.f32.mrb[0].mxu0
      %1642 = vmatprep.mubr.bf16.mxu0 %v1337
      %1643 = vmatmul.mubr.bf16.gmra.mrb[0].mxu0 %v1336
      %v1644 = vpop.f32.mrb[0].mxu0
      %v1645 = vadd.f32 %v1589, %v1644
      %v1646 = vpop.f32.mrb[0].mxu0
      %v1647 = vpop.f32.mrb[0].mxu0
      %v1648 = vadd.f32 %v1592, %v1647
      %v1649 = vpop.f32.mrb[0].mxu0
      %1650 = vmatprep.mubr.bf16.mxu0 %v1341
      %1651 = vmatmul.mubr.bf16.gmra.mrb[0].mxu0 %v1340
      %v1652 = vpop.f32.mrb[0].mxu0
      %v1653 = vadd.f32 %v1597, %v1652
      %v1654 = vpop.f32.mrb[0].mxu0
      %v1655 = vpop.f32.mrb[0].mxu0
      %v1656 = vpop.f32.mrb[0].mxu0
      %1657 = vdwg.mxu0
      %v1658 = vadd.f32 %v1057, %v1637
      %v1659 = vadd.f32 %v1060, %v1640
      %v1660 = vadd.f32 %v1065, %v1645
      %v1661 = vadd.f32 %v1068, %v1648
      %v1662 = vadd.f32 %v1073, %v1653
      %v1664 = vshrl.u32 %v1098, 16
      %v1666 = vrot.slane %v1664, 4
      %v1667 = vshll.u32 %v1098, 16
      %v1669 = vrot.slane %v1667, 5
      %v1670 = vor.u32 %v1666, %v1669
      %v1671 = vrot.slane %v1670, 4
      %v1673 = vshll.u32 %v1100, 16
      %v1675 = vrot.slane %v1673, 5
      %v1676 = vsel %vm1104, %v1671, %v1675
      %v1678 = vshrl.u32 %v1099, 16
      %v1680 = vrot.slane %v1678, 4
      %v1681 = vshll.u32 %v1099, 16
      %v1683 = vrot.slane %v1681, 5
      %v1684 = vor.u32 %v1680, %v1683
      %v1685 = vrot.slane %v1684, 4
      %v1687 = vshll.u32 %v1101, 16
      %v1689 = vrot.slane %v1687, 5
      %v1690 = vsel %vm1104, %v1685, %v1689
      %s1691 = scalar_lea.vmem %s223, 768
      %v1692 = vld [vmem:[%s1691] sm:$0xf]
      %v1693 = vld [vmem:[%s1691 + $0x4] sm:$0xf]
      %v1694 = vld [vmem:[%s1691 + $0x8] sm:$0xf]
      %v1695 = vld [vmem:[%s1691 + $0xc] sm:$0xf]
      %v1696 = vld [vmem:[%s1691 + $0x10] sm:$0xf]
      %v1697 = vld [vmem:[%s1691 + $0x14] sm:$0xf]
      %v1698 = vld [vmem:[%s1691 + $0x18] sm:$0xf]
      %v1699 = vld [vmem:[%s1691 + $0x1c] sm:$0xf]
      %v1700 = vld [vmem:[%s1691 + $0x20] sm:$0xf]
      %v1701 = vld [vmem:[%s1691 + $0x24] sm:$0xf]
      %v1702 = vld [vmem:[%s1691 + $0x28] sm:$0xf]
      %v1703 = vld [vmem:[%s1691 + $0x2c] sm:$0xf]
      %v1704 = vld [vmem:[%s1691 + $0x30] sm:$0xf]
      %v1705 = vld [vmem:[%s1691 + $0x34] sm:$0xf]
      %v1706 = vld [vmem:[%s1691 + $0x38] sm:$0xf]
      %v1707 = vld [vmem:[%s1691 + $0x3c] sm:$0xf]
      %v1708 = vld [vmem:[%s1691 + $0x40] sm:$0xf]
      %v1709 = vld [vmem:[%s1691 + $0x44] sm:$0xf]
      %v1710 = vld [vmem:[%s1691 + $0x48] sm:$0xf]
      %v1711 = vld [vmem:[%s1691 + $0x4c] sm:$0xf]
      %v1712 = vld [vmem:[%s1691 + $0x50] sm:$0xf]
      %v1713 = vld [vmem:[%s1691 + $0x54] sm:$0xf]
      %v1714 = vld [vmem:[%s1691 + $0x58] sm:$0xf]
      %v1715 = vld [vmem:[%s1691 + $0x5c] sm:$0xf]
      %v1716 = vld [vmem:[%s1691 + $0x60] sm:$0xf]
      %v1717 = vld [vmem:[%s1691 + $0x64] sm:$0xf]
      %v1718 = vld [vmem:[%s1691 + $0x68] sm:$0xf]
      %v1719 = vld [vmem:[%s1691 + $0x6c] sm:$0xf]
      %v1720 = vld [vmem:[%s1691 + $0x70] sm:$0xf]
      %v1721 = vld [vmem:[%s1691 + $0x74] sm:$0xf]
      %v1722 = vld [vmem:[%s1691 + $0x78] sm:$0xf]
      %v1723 = vld [vmem:[%s1691 + $0x7c] sm:$0xf]
      %v1724 = vld [vmem:[%s1691 + $0x80] sm:$0xf]
      %v1725 = vld [vmem:[%s1691 + $0x84] sm:$0xf]
      %v1726 = vld [vmem:[%s1691 + $0x88] sm:$0xf]
      %v1727 = vld [vmem:[%s1691 + $0x8c] sm:$0xf]
      %v1728 = vld [vmem:[%s1691 + $0x90] sm:$0xf]
      %v1729 = vld [vmem:[%s1691 + $0x94] sm:$0xf]
      %v1730 = vld [vmem:[%s1691 + $0x98] sm:$0xf]
      %v1731 = vld [vmem:[%s1691 + $0x9c] sm:$0xf]
      %v1732 = vld [vmem:[%s1691 + $0xa0] sm:$0xf]
      %v1733 = vld [vmem:[%s1691 + $0xa4] sm:$0xf]
      %v1734 = vld [vmem:[%s1691 + $0xa8] sm:$0xf]
      %v1735 = vld [vmem:[%s1691 + $0xac] sm:$0xf]
      %v1736 = vld [vmem:[%s1691 + $0xb0] sm:$0xf]
      %v1737 = vld [vmem:[%s1691 + $0xb4] sm:$0xf]
      %v1738 = vld [vmem:[%s1691 + $0xb8] sm:$0xf]
      %v1739 = vld [vmem:[%s1691 + $0xbc] sm:$0xf]
      %v1740 = vld [vmem:[%s1691 + $0xc0] sm:$0xf]
      %v1741 = vld [vmem:[%s1691 + $0xc4] sm:$0xf]
      %v1742 = vld [vmem:[%s1691 + $0xc8] sm:$0xf]
      %v1743 = vld [vmem:[%s1691 + $0xcc] sm:$0xf]
      %v1744 = vld [vmem:[%s1691 + $0xd0] sm:$0xf]
      %v1745 = vld [vmem:[%s1691 + $0xd4] sm:$0xf]
      %v1746 = vld [vmem:[%s1691 + $0xd8] sm:$0xf]
      %v1747 = vld [vmem:[%s1691 + $0xdc] sm:$0xf]
      %v1748 = vld [vmem:[%s1691 + $0xe0] sm:$0xf]
      %v1749 = vld [vmem:[%s1691 + $0xe4] sm:$0xf]
      %v1750 = vld [vmem:[%s1691 + $0xe8] sm:$0xf]
      %v1751 = vld [vmem:[%s1691 + $0xec] sm:$0xf]
      %v1752 = vld [vmem:[%s1691 + $0xf0] sm:$0xf]
      %v1753 = vld [vmem:[%s1691 + $0xf4] sm:$0xf]
      %v1754 = vld [vmem:[%s1691 + $0xf8] sm:$0xf]
      %v1755 = vld [vmem:[%s1691 + $0xfc] sm:$0xf]
      %v1756 = vunpack.c.l.b16 %v1676
      %v1757 = vunpack.c.h.b16 %v1676
      %v1758 = vunpack.c.l.b16 %v1690
      %v1759 = vunpack.c.h.b16 %v1690
      %v1760 = vpack.c.b16 %v1318, %v1314
      %v1761 = vpack.c.b16 %v1319, %v1315
      %v1762 = vpack.c.b16 %v1320, %v1316
      %v1763 = vpack.c.b16 %v1321, %v1317
      %v1764 = vpack.c.b16 %v1326, %v1322
      %v1765 = vpack.c.b16 %v1327, %v1323
      %v1766 = vpack.c.b16 %v1328, %v1324
      %v1767 = vpack.c.b16 %v1329, %v1325
      %v1768 = vpack.c.b16 %v1756, %v1756
      %v1769 = vpack.c.b16 %v1757, %v1757
      %v1770 = vpack.c.b16 %v1758, %v1758
      %v1771 = vpack.c.b16 %v1759, %v1759
      %v1848 = vunpack.c.l.b16 %v1692
      %v1849 = vunpack.c.l.b16 %v1693
      %v1850 = vunpack.c.l.b16 %v1694
      %v1851 = vunpack.c.l.b16 %v1695
      %v1852 = vunpack.c.l.b16 %v1696
      %v1853 = vunpack.c.l.b16 %v1697
      %v1854 = vunpack.c.l.b16 %v1698
      %v1855 = vunpack.c.l.b16 %v1699
      %v1856 = vunpack.c.l.b16 %v1700
      %v1857 = vunpack.c.l.b16 %v1701
      %v1858 = vunpack.c.l.b16 %v1702
      %v1859 = vunpack.c.l.b16 %v1703
      %v1860 = vunpack.c.l.b16 %v1704
      %v1861 = vunpack.c.l.b16 %v1705
      %v1862 = vunpack.c.l.b16 %v1706
      %v1863 = vunpack.c.l.b16 %v1707
      %v1864 = vunpack.c.l.b16 %v1708
      %v1865 = vunpack.c.l.b16 %v1709
      %v1866 = vunpack.c.l.b16 %v1710
      %v1867 = vunpack.c.l.b16 %v1711
      %v1868 = vunpack.c.l.b16 %v1712
      %v1869 = vunpack.c.l.b16 %v1713
      %v1870 = vunpack.c.l.b16 %v1714
      %v1871 = vunpack.c.l.b16 %v1715
      %v1872 = vunpack.c.l.b16 %v1716
      %v1873 = vunpack.c.l.b16 %v1717
      %v1874 = vunpack.c.l.b16 %v1718
      %v1875 = vunpack.c.l.b16 %v1719
      %v1876 = vunpack.c.l.b16 %v1720
      %v1877 = vunpack.c.l.b16 %v1721
      %v1878 = vunpack.c.l.b16 %v1722
      %v1879 = vunpack.c.l.b16 %v1723
      %v1880 = vunpack.c.l.b16 %v1724
      %v1881 = vunpack.c.l.b16 %v1725
      %v1882 = vunpack.c.l.b16 %v1726
      %v1883 = vunpack.c.l.b16 %v1727
      %v1884 = vunpack.c.l.b16 %v1728
      %v1885 = vunpack.c.l.b16 %v1729
      %v1886 = vunpack.c.l.b16 %v1730
      %v1887 = vunpack.c.l.b16 %v1731
      %v1888 = vunpack.c.l.b16 %v1732
      %v1889 = vunpack.c.l.b16 %v1733
      %v1890 = vunpack.c.l.b16 %v1734
      %v1891 = vunpack.c.l.b16 %v1735
      %v1892 = vunpack.c.l.b16 %v1736
      %v1893 = vunpack.c.l.b16 %v1737
      %v1894 = vunpack.c.l.b16 %v1738
      %v1895 = vunpack.c.l.b16 %v1739
      %v1896 = vunpack.c.l.b16 %v1740
      %v1897 = vunpack.c.l.b16 %v1741
      %v1898 = vunpack.c.l.b16 %v1742
      %v1899 = vunpack.c.l.b16 %v1743
      %v1900 = vunpack.c.l.b16 %v1744
      %v1901 = vunpack.c.l.b16 %v1745
      %v1902 = vunpack.c.l.b16 %v1746
      %v1903 = vunpack.c.l.b16 %v1747
      %v1904 = vunpack.c.l.b16 %v1748
      %v1905 = vunpack.c.l.b16 %v1749
      %v1906 = vunpack.c.l.b16 %v1750
      %v1907 = vunpack.c.l.b16 %v1751
      %v1908 = vunpack.c.l.b16 %v1752
      %v1909 = vunpack.c.l.b16 %v1753
      %v1910 = vunpack.c.l.b16 %v1754
      %v1911 = vunpack.c.l.b16 %v1755
      %v1912 = vpack.c.b16 %v1849, %v1848
      %v1913 = vpack.c.b16 %v1851, %v1850
      %v1914 = vpack.c.b16 %v1853, %v1852
      %v1915 = vpack.c.b16 %v1855, %v1854
      %v1916 = vpack.c.b16 %v1857, %v1856
      %v1917 = vpack.c.b16 %v1859, %v1858
      %v1918 = vpack.c.b16 %v1861, %v1860
      %v1919 = vpack.c.b16 %v1863, %v1862
      %v1920 = vpack.c.b16 %v1865, %v1864
      %v1921 = vpack.c.b16 %v1867, %v1866
      %v1922 = vpack.c.b16 %v1869, %v1868
      %v1923 = vpack.c.b16 %v1871, %v1870
      %v1924 = vpack.c.b16 %v1873, %v1872
      %v1925 = vpack.c.b16 %v1875, %v1874
      %v1926 = vpack.c.b16 %v1877, %v1876
      %v1927 = vpack.c.b16 %v1879, %v1878
      %v1928 = vpack.c.b16 %v1881, %v1880
      %v1929 = vpack.c.b16 %v1883, %v1882
      %v1930 = vpack.c.b16 %v1885, %v1884
      %v1931 = vpack.c.b16 %v1887, %v1886
      %v1932 = vpack.c.b16 %v1889, %v1888
      %v1933 = vpack.c.b16 %v1891, %v1890
      %v1934 = vpack.c.b16 %v1893, %v1892
      %v1935 = vpack.c.b16 %v1895, %v1894
      %v1936 = vpack.c.b16 %v1897, %v1896
      %v1937 = vpack.c.b16 %v1899, %v1898
      %v1938 = vpack.c.b16 %v1901, %v1900
      %v1939 = vpack.c.b16 %v1903, %v1902
      %v1940 = vpack.c.b16 %v1905, %v1904
      %v1941 = vpack.c.b16 %v1907, %v1906
      %v1942 = vpack.c.b16 %v1909, %v1908
      %v1943 = vpack.c.b16 %v1911, %v1910
      %1976 = vmatprep.subr.bf16.mxu0 0
      %1977 = vmatpush1.bf16.msra.mxu0 %v1912
      %1978 = vmatprep.subr.bf16.mxu0 0
      %1979 = vmatpush1.bf16.msra.mxu0 %v1913
      %1980 = vmatprep.subr.bf16.mxu0 0
      %1981 = vmatpush1.bf16.msra.mxu0 %v1914
      %1982 = vmatprep.subr.bf16.mxu0 0
      %1983 = vmatpush1.bf16.msra.mxu0 %v1915
      %1984 = vmatprep.subr.bf16.mxu0 0
      %1985 = vmatpush1.bf16.msra.mxu0 %v1916
      %1986 = vmatprep.subr.bf16.mxu0 0
      %1987 = vmatpush1.bf16.msra.mxu0 %v1917
      %1988 = vmatprep.subr.bf16.mxu0 0
      %1989 = vmatpush1.bf16.msra.mxu0 %v1918
      %1990 = vmatprep.subr.bf16.mxu0 0
      %1991 = vmatpush1.bf16.msra.mxu0 %v1919
      %1992 = vmatprep.subr.bf16.mxu0 0
      %1993 = vmatpush1.bf16.msra.mxu0 %v1920
      %1994 = vmatprep.subr.bf16.mxu0 0
      %1995 = vmatpush1.bf16.msra.mxu0 %v1921
      %1996 = vmatprep.subr.bf16.mxu0 0
      %1997 = vmatpush1.bf16.msra.mxu0 %v1922
      %1998 = vmatprep.subr.bf16.mxu0 0
      %1999 = vmatpush1.bf16.msra.mxu0 %v1923
      %2000 = vmatprep.subr.bf16.mxu0 0
      %2001 = vmatpush1.bf16.msra.mxu0 %v1924
      %2002 = vmatprep.subr.bf16.mxu0 0
      %2003 = vmatpush1.bf16.msra.mxu0 %v1925
      %2004 = vmatprep.subr.bf16.mxu0 0
      %2005 = vmatpush1.bf16.msra.mxu0 %v1926
      %2006 = vmatprep.subr.bf16.mxu0 0
      %2007 = vmatpush1.bf16.msra.mxu0 %v1927
      %2008 = vmatprep.mubr.bf16.mxu0 %v1761
      %2009 = vmatmul.mubr.bf16.gmra.mrb[0].mxu0 %v1760
      %v2010 = vpop.f32.mrb[0].mxu0
      %v2011 = vadd.f32 0.0, %v2010
      %v2012 = vpop.f32.mrb[0].mxu0
      %v2013 = vpop.f32.mrb[0].mxu0
      %v2014 = vadd.f32 0.0, %v2013
      %v2015 = vpop.f32.mrb[0].mxu0
      %2016 = vmatprep.mubr.bf16.mxu0 %v1765
      %2017 = vmatmul.mubr.bf16.gmra.mrb[0].mxu0 %v1764
      %v2018 = vpop.f32.mrb[0].mxu0
      %v2019 = vadd.f32 0.0, %v2018
      %v2020 = vpop.f32.mrb[0].mxu0
      %v2021 = vpop.f32.mrb[0].mxu0
      %v2022 = vadd.f32 0.0, %v2021
      %v2023 = vpop.f32.mrb[0].mxu0
      %2024 = vmatprep.mubr.bf16.mxu0 %v1769
      %2025 = vmatmul.mubr.bf16.gmra.mrb[0].mxu0 %v1768
      %v2026 = vpop.f32.mrb[0].mxu0
      %v2027 = vadd.f32 0.0, %v2026
      %v2028 = vpop.f32.mrb[0].mxu0
      %v2029 = vpop.f32.mrb[0].mxu0
      %v2030 = vpop.f32.mrb[0].mxu0
      %2031 = vdwg.mxu0
      %2032 = vmatprep.subr.bf16.mxu0 0
      %2033 = vmatpush1.bf16.msra.mxu0 %v1928
      %2034 = vmatprep.subr.bf16.mxu0 0
      %2035 = vmatpush1.bf16.msra.mxu0 %v1929
      %2036 = vmatprep.subr.bf16.mxu0 0
      %2037 = vmatpush1.bf16.msra.mxu0 %v1930
      %2038 = vmatprep.subr.bf16.mxu0 0
      %2039 = vmatpush1.bf16.msra.mxu0 %v1931
      %2040 = vmatprep.subr.bf16.mxu0 0
      %2041 = vmatpush1.bf16.msra.mxu0 %v1932
      %2042 = vmatprep.subr.bf16.mxu0 0
      %2043 = vmatpush1.bf16.msra.mxu0 %v1933
      %2044 = vmatprep.subr.bf16.mxu0 0
      %2045 = vmatpush1.bf16.msra.mxu0 %v1934
      %2046 = vmatprep.subr.bf16.mxu0 0
      %2047 = vmatpush1.bf16.msra.mxu0 %v1935
      %2048 = vmatprep.subr.bf16.mxu0 0
      %2049 = vmatpush1.bf16.msra.mxu0 %v1936
      %2050 = vmatprep.subr.bf16.mxu0 0
      %2051 = vmatpush1.bf16.msra.mxu0 %v1937
      %2052 = vmatprep.subr.bf16.mxu0 0
      %2053 = vmatpush1.bf16.msra.mxu0 %v1938
      %2054 = vmatprep.subr.bf16.mxu0 0
      %2055 = vmatpush1.bf16.msra.mxu0 %v1939
      %2056 = vmatprep.subr.bf16.mxu0 0
      %2057 = vmatpush1.bf16.msra.mxu0 %v1940
      %2058 = vmatprep.subr.bf16.mxu0 0
      %2059 = vmatpush1.bf16.msra.mxu0 %v1941
      %2060 = vmatprep.subr.bf16.mxu0 0
      %2061 = vmatpush1.bf16.msra.mxu0 %v1942
      %2062 = vmatprep.subr.bf16.mxu0 0
      %2063 = vmatpush1.bf16.msra.mxu0 %v1943
      %2064 = vmatprep.mubr.bf16.mxu0 %v1763
      %2065 = vmatmul.mubr.bf16.gmra.mrb[0].mxu0 %v1762
      %v2066 = vpop.f32.mrb[0].mxu0
      %v2067 = vadd.f32 %v2011, %v2066
      %v2068 = vpop.f32.mrb[0].mxu0
      %v2069 = vpop.f32.mrb[0].mxu0
      %v2070 = vadd.f32 %v2014, %v2069
      %v2071 = vpop.f32.mrb[0].mxu0
      %2072 = vmatprep.mubr.bf16.mxu0 %v1767
      %2073 = vmatmul.mubr.bf16.gmra.mrb[0].mxu0 %v1766
      %v2074 = vpop.f32.mrb[0].mxu0
      %v2075 = vadd.f32 %v2019, %v2074
      %v2076 = vpop.f32.mrb[0].mxu0
      %v2077 = vpop.f32.mrb[0].mxu0
      %v2078 = vadd.f32 %v2022, %v2077
      %v2079 = vpop.f32.mrb[0].mxu0
      %2080 = vmatprep.mubr.bf16.mxu0 %v1771
      %2081 = vmatmul.mubr.bf16.gmra.mrb[0].mxu0 %v1770
      %v2082 = vpop.f32.mrb[0].mxu0
      %v2083 = vadd.f32 %v2027, %v2082
      %v2084 = vpop.f32.mrb[0].mxu0
      %v2085 = vpop.f32.mrb[0].mxu0
      %v2086 = vpop.f32.mrb[0].mxu0
      %2087 = vdwg.mxu0
      %v2088 = vadd.f32 %v1658, %v2067
      %v2089 = vadd.f32 %v1659, %v2070
      %v2090 = vadd.f32 %v1660, %v2075
      %v2091 = vadd.f32 %v1661, %v2078
      %v2092 = vadd.f32 %v1662, %v2083
      %v2093 = vld [vmem:[%s226] sm:$0x1]
      %v2095 = vlaneseq
      %v2096 = vshrl.u32 %v2095, 7
      %v2097 = vsub.s32 0, %v2096
      %v2098 = vrot.slane %v2093, %v2097
      %v2100 = vadd.f32 %v2088, %v2098
      %v2101 = vadd.f32 %v2089, %v2098
      %v2102 = vadd.f32 %v2090, %v2098
      %v2103 = vadd.f32 %v2091, %v2098
      %v2104 = vadd.f32 %v2092, %v2098
      %vm2105 = vcmp.gt.f32.partialorder %v2100, 0.0
      %vm2106 = vcmp.gt.f32.partialorder %v2101, 0.0
      %vm2107 = vcmp.gt.f32.partialorder %v2102, 0.0
      %vm2108 = vcmp.gt.f32.partialorder %v2103, 0.0
      %vm2109 = vcmp.gt.f32.partialorder %v2104, 0.0
      %v2110 = vmul.f32 %v2100, 0.2
      %v2111 = vmul.f32 %v2101, 0.2
      %v2112 = vmul.f32 %v2102, 0.2
      %v2113 = vmul.f32 %v2103, 0.2
      %v2114 = vmul.f32 %v2104, 0.2
      %v2115 = vsel %vm2105, %v2100, %v2110
      %v2116 = vsel %vm2106, %v2101, %v2111
      %v2117 = vsel %vm2107, %v2102, %v2112
      %v2118 = vsel %vm2108, %v2103, %v2113
      %v2119 = vsel %vm2109, %v2104, %v2114
      %v2120 = vlaneseq
      %v2121 = vshrl.u32 %v2120, 7
      %vm2122 = vcmp.lt.s32.totalorder %v2121, 5
      %v2123 = vsel %vm2122, 1, 0
      %vm2124 = vcmp.eq.s32.totalorder %v2123, 1
      %v2125 = vsel %vm2124, %v2115, 0.0
      %v2126 = vsel %vm2124, %v2116, 0.0
      %v2127 = vsel %vm2124, %v2117, 0.0
      %v2128 = vsel %vm2124, %v2118, 0.0
      %v2129 = vsel %vm2124, %v2119, 0.0
      %v2130 = vpack.c.bf16 %v2125, %v2125
      %v2131 = vpack.c.bf16 %v2126, %v2126
      %v2132 = vpack.c.bf16 %v2127, %v2127
      %v2133 = vpack.c.bf16 %v2128, %v2128
      %v2134 = vpack.c.bf16 %v2129, %v2129
      %2135 = vst [vmem:[%s238] sm:$0xf] %v2130
      %2136 = vst [vmem:[%s238 + $0x4] sm:$0xf] %v2131
      %2137 = vst [vmem:[%s238 + $0x8] sm:$0xf] %v2132
      %2138 = vst [vmem:[%s238 + $0xc] sm:$0xf] %v2133
      %2139 = vst [vmem:[%s238 + $0x10] sm:$0xf] %v2134
      %s2140 = smul.u32 5, %s20
      %p2141 = scmp.lt.s32.totalorder %s19, 1
      %s2142 = scalar_select %p2141, %s19, 1
      %p2143 = scmp.lt.s32.totalorder %s2140, 4
      %s2144 = scalar_select %p2143, %s2140, 4
      %p2145 = scmp.lt.s32.totalorder %s21, 0
      %s2146 = scalar_select %p2145, %s21, 0
      %s2147 = sadd.s32 %s2146, %s2144
      %s2148 = smul.addr %s2142, 5
      %s2149 = sadd.s32 %s2147, %s2148
      %s2150 = smul.addr %s2149, 4
      %s2151 = scalar_lea.vmem %s3, %s2150
      // Predicated region
      $region33: #{_lambda_.6} parent=31 // pred_check
        %p2152 = pneg %p133
      $region34: #{_lambda_.6} parent=31 // pred_check_branch
        %2154 = sbr.rel (%p2152) target = $region36
      $region35: #{_lambda_.6} parent=31 // pred_region
        %s2155 = smul.u32 5, %s20
      $region36: #{_lambda_.6} parent=31 // pred_fallthru
        _
    $region32: #{_lambda_.6} parent=5 // pred_fallthru
      _
    %p2156 = scmp.le.s32.totalorder 2, %s9
    // Predicated region
    $region37: #{_lambda_.6} parent=5 // pred_check
      %p2157 = pneg %p2156
    $region38: #{_lambda_.6} parent=5 // pred_check_branch
      %2159 = sbr.rel (%p2157) target = $region40
    $region39: #{_lambda_.6} parent=5 // pred_region
      %s2160 = ssub.s32 %s9, 2
      // Predicated region
      $region41: #{_lambda_.6} parent=39 // pred_check
        %p2161 = pneg %p139
      $region42: #{_lambda_.6} parent=39 // pred_check_branch
        %2163 = sbr.rel (%p2161) target = $region44
      $region43: #{_lambda_.6} parent=39 // pred_region
        %s2164 = smul.u32 5, %s23
        %p2165 = scmp.lt.s32.totalorder %s22, 1
        %s2166 = scalar_select %p2165, %s22, 1
        %p2167 = scmp.lt.s32.totalorder %s2164, 4
        %s2168 = scalar_select %p2167, %s2164, 4
        %p2169 = scmp.lt.s32.totalorder %s24, 0
        %s2170 = scalar_select %p2169, %s24, 0
        %s2171 = sadd.s32 %s2170, %s2168
        %s2172 = smul.addr %s2166, 5
        %s2173 = sadd.s32 %s2171, %s2172
        %s2174 = smul.addr %s2173, 4
        %s2175 = scalar_lea.vmem %s3, %s2174
      $region44: #{_lambda_.6} parent=39 // pred_fallthru
        _
    $region40: #{_lambda_.6} parent=5 // pred_fallthru
      _
  $region6: #{_lambda_.6} parent=0 // loop_footer
    %s13 = sadd.s32 1, %s9
  $region7: #{_lambda_.6} parent=0 // loop_footer_branch
    %8 = sbr.rel target = $region3
  $region8: #{_lambda_.6} parent=0 // loop_exit
    _

// kernel: _lambda_.7
$region0: #{_lambda_.7}
  #allocation0 [shape = 'u32[]', space=smem, size = 0x4, offset = 0x4, fixed_abs, tag = 'smem constant byte address 0x4 - core index']
  #allocation1 [shape = 'u32[144,128]{1,0:T(1,128)}', space=vmem, size = 0x12000, scoped, tag = 'internal scratch']
  %s0 = inlined_call_operand.vmem [shape: bf16[2,4,9,512], index: 0, kind: input, shape index: {}]
  %s1 = inlined_call_operand.vmem [shape: bf16[2,2,512,128], index: 1, kind: input, shape index: {}]
  %s2 = inlined_call_operand.vmem [shape: f32[1,128], index: 2, kind: input, shape index: {}]
  %s3 = inlined_call_operand.vmem [shape: bf16[2,3,8,128], index: 3, kind: output, shape index: {}]
  %s4 = sld [smem:[#allocation0]]
  $region45: #{_lambda_.7} parent=0
    _
  %s6 = ssub.s32 1, %s4
  %s7 = scalar_select 0, %s6, %s4
  loop: start=0, step=1, limit=4
  $region2: #{_lambda_.7} parent=0 // loop_pre_header
    _
  $region3: #{_lambda_.7} parent=0 // loop_header
    %s9 = sphi 0, %s13
    %p10 = scmp.ge.s32.totalorder %s9, 4
    %s16 = sphi 0, %s35
    %s17 = sphi 0, %s31
    %s18 = sphi 0, %s27
    %s19 = sphi 0, %s16
    %s20 = sphi 0, %s17
    %s21 = sphi 0, %s18
    %s22 = sphi 0, %s19
    %s23 = sphi 0, %s20
    %s24 = sphi 0, %s21
    %s38 = sphi 0, %s40
    %s41 = sphi 0, %s38
    %s42 = sphi 0, %s41
    %s58 = sphi 0, %s42
    %s64 = sphi 0, %s66
    %s67 = sphi 0, %s64
    %s68 = sphi 0, %s67
    %s84 = sphi 0, %s68
    %s90 = sphi 0, %s92
    %s93 = sphi 0, %s90
    %s94 = sphi 0, %s93
    %s110 = sphi 0, %s94
    %s120 = sphi 0, %s122
    %s123 = sphi 0, %s120
    %s124 = sphi 0, %s123
    %s140 = sphi 0, %s124
  $region4: #{_lambda_.7} parent=0 // loop_header_branch
    %12 = sbr.rel (%p10) target = $region8
  $region5: #{_lambda_.7} parent=0 // loop_body
    %s14 = ssub.s32 %s9, 1
    %s15 = ssub.s32 %s9, 2
    %s25 = sadd.s32 1, %s18
    %p26 = scmp.ge.s32.totalorder %s25, 1
    %s27 = scalar_select %p26, 0, %s25
    %s28 = sadd.s32 1, %s17
    %s29 = scalar_select %p26, %s28, %s17
    %p30 = scmp.ge.s32.totalorder %s29, 1
    %s31 = scalar_select %p30, 0, %s29
    %s32 = sadd.s32 1, %s16
    %s33 = scalar_select %p30, %s32, %s16
    %p34 = scmp.ge.s32.totalorder %s33, 2
    %s35 = scalar_select %p34, 0, %s33
    %s36 = ssub.s32 %s16, %s35
    %p37 = scmp.eq.s32.totalorder %s36, 0
    %s39 = sadd.s32 %s38, 1
    %s40 = scalar_select %p37, %s38, %s39
    %p43 = pneg %p37
    %p44 = scmp.eq.s32.totalorder %s9, 1
    %p45 = por %p43, %p44
    %p46 = scmp.ne.s32.totalorder %s38, %s41
    %p47 = scmp.eq.s32.totalorder %s9, 0
    %p48 = por %p46, %p47
    %p49 = scmp.ne.s32.totalorder %s38, %s41
    %p50 = scmp.eq.s32.totalorder %s14, 1
    %p51 = por %p49, %p50
    %p52 = scmp.ne.s32.totalorder %s41, %s42
    %p53 = scmp.eq.s32.totalorder %s14, 0
    %p54 = por %p52, %p53
    %p55 = scmp.ne.s32.totalorder %s41, %s42
    %p56 = scmp.eq.s32.totalorder %s15, 1
    %p57 = por %p55, %p56
    %p59 = scmp.ne.s32.totalorder %s42, %s58
    %p60 = scmp.eq.s32.totalorder %s15, 0
    %p61 = por %p59, %p60
    %s62 = ssub.s32 %s18, %s27
    %p63 = scmp.eq.s32.totalorder %s62, 0
    %s65 = sadd.s32 %s64, 1
    %s66 = scalar_select %p63, %s64, %s65
    %p69 = pneg %p63
    %p70 = scmp.eq.s32.totalorder %s9, 1
    %p71 = por %p69, %p70
    %p72 = scmp.ne.s32.totalorder %s64, %s67
    %p73 = scmp.eq.s32.totalorder %s9, 0
    %p74 = por %p72, %p73
    %p75 = scmp.ne.s32.totalorder %s64, %s67
    %p76 = scmp.eq.s32.totalorder %s14, 1
    %p77 = por %p75, %p76
    %p78 = scmp.ne.s32.totalorder %s67, %s68
    %p79 = scmp.eq.s32.totalorder %s14, 0
    %p80 = por %p78, %p79
    %p81 = scmp.ne.s32.totalorder %s67, %s68
    %p82 = scmp.eq.s32.totalorder %s15, 1
    %p83 = por %p81, %p82
    %p85 = scmp.ne.s32.totalorder %s68, %s84
    %p86 = scmp.eq.s32.totalorder %s15, 0
    %p87 = por %p85, %p86
    %s88 = ssub.s32 %s18, %s27
    %p89 = scmp.eq.s32.totalorder %s88, 0
    %s91 = sadd.s32 %s90, 1
    %s92 = scalar_select %p89, %s90, %s91
    %p95 = pneg %p89
    %p96 = scmp.eq.s32.totalorder %s9, 1
    %p97 = por %p95, %p96
    %p98 = scmp.ne.s32.totalorder %s90, %s93
    %p99 = scmp.eq.s32.totalorder %s9, 0
    %p100 = por %p98, %p99
    %p101 = scmp.ne.s32.totalorder %s90, %s93
    %p102 = scmp.eq.s32.totalorder %s14, 1
    %p103 = por %p101, %p102
    %p104 = scmp.ne.s32.totalorder %s93, %s94
    %p105 = scmp.eq.s32.totalorder %s14, 0
    %p106 = por %p104, %p105
    %p107 = scmp.ne.s32.totalorder %s93, %s94
    %p108 = scmp.eq.s32.totalorder %s15, 1
    %p109 = por %p107, %p108
    %p111 = scmp.ne.s32.totalorder %s94, %s110
    %p112 = scmp.eq.s32.totalorder %s15, 0
    %p113 = por %p111, %p112
    %s114 = ssub.s32 %s16, %s35
    %s115 = ssub.s32 %s17, %s31
    %s116 = sor.u32 %s114, %s115
    %s117 = ssub.s32 %s18, %s27
    %s118 = sor.u32 %s116, %s117
    %p119 = scmp.eq.s32.totalorder %s118, 0
    %s121 = sadd.s32 %s120, 1
    %s122 = scalar_select %p119, %s120, %s121
    %p125 = pneg %p119
    %p126 = scmp.eq.s32.totalorder %s9, 1
    %p127 = por %p125, %p126
    %p128 = scmp.ne.s32.totalorder %s120, %s123
    %p129 = scmp.eq.s32.totalorder %s9, 0
    %p130 = por %p128, %p129
    %p131 = scmp.ne.s32.totalorder %s120, %s123
    %p132 = scmp.eq.s32.totalorder %s14, 1
    %p133 = por %p131, %p132
    %p134 = scmp.ne.s32.totalorder %s123, %s124
    %p135 = scmp.eq.s32.totalorder %s14, 0
    %p136 = por %p134, %p135
    %p137 = scmp.ne.s32.totalorder %s123, %s124
    %p138 = scmp.eq.s32.totalorder %s15, 1
    %p139 = por %p137, %p138
    %p141 = scmp.ne.s32.totalorder %s124, %s140
    %p142 = scmp.eq.s32.totalorder %s15, 0
    %p143 = por %p141, %p142
    %p144 = scmp.le.s32.totalorder 1, %s9
    %p145 = scmp.lt.s32.totalorder %s9, 3
    %p146 = pnand %p144, %p145
    %p147 = pneg %p146
    // Predicated region
    $region9: #{_lambda_.7} parent=5 // pred_check
      _
    $region10: #{_lambda_.7} parent=5 // pred_check_branch
      %149 = sbr.rel (%p146) target = $region12
    $region11: #{_lambda_.7} parent=5 // pred_region
      %s150 = ssub.s32 %s9, 1
      // Predicated region
      $region13: #{_lambda_.7} parent=11 // pred_check
        %p151 = pneg %p80
      $region14: #{_lambda_.7} parent=11 // pred_check_branch
        %153 = sbr.rel (%p151) target = $region16
      $region15: #{_lambda_.7} parent=11 // pred_region
        %p154 = scmp.lt.s32.totalorder %s21, 0
        %s155 = scalar_select %p154, %s21, 0
        %s156 = smul.addr %s155, 4
        %s157 = scalar_lea.vmem %s1, %s156
      $region16: #{_lambda_.7} parent=11 // pred_fallthru
        _
      // Predicated region
      $region17: #{_lambda_.7} parent=11 // pred_check
        %p158 = pneg %p106
      $region18: #{_lambda_.7} parent=11 // pred_check_branch
        %160 = sbr.rel (%p158) target = $region20
      $region19: #{_lambda_.7} parent=11 // pred_region
        %p161 = scmp.lt.s32.totalorder %s21, 0
        %s162 = scalar_select %p161, %s21, 0
        %s163 = scalar_lea.vmem %s2, %s162
      $region20: #{_lambda_.7} parent=11 // pred_fallthru
        _
    $region12: #{_lambda_.7} parent=5 // pred_fallthru
      _
    %p164 = scmp.lt.s32.totalorder %s9, 2
    // Predicated region
    $region21: #{_lambda_.7} parent=5 // pred_check
      %p165 = pneg %p164
    $region22: #{_lambda_.7} parent=5 // pred_check_branch
      %167 = sbr.rel (%p165) target = $region24
    $region23: #{_lambda_.7} parent=5 // pred_region
      // Predicated region
      $region25: #{_lambda_.7} parent=23 // pred_check
        %p168 = pneg %p48
      $region26: #{_lambda_.7} parent=23 // pred_check_branch
        %170 = sbr.rel (%p168) target = $region28
      $region27: #{_lambda_.7} parent=23 // pred_region
        %p171 = scmp.lt.s32.totalorder %s16, 1
        %s172 = scalar_select %p171, %s16, 1
        %s173 = smul.addr %s172, 32
        %s174 = smul.addr %s173, 4
        %s175 = scalar_lea.vmem %s0, %s174
      $region28: #{_lambda_.7} parent=23 // pred_fallthru
        _
    $region24: #{_lambda_.7} parent=5 // pred_fallthru
      _
    %p176 = scmp.le.s32.totalorder 1, %s9
    %p177 = scmp.lt.s32.totalorder %s9, 3
    %p178 = pnand %p176, %p177
    %p179 = pneg %p178
    // Predicated region
    $region29: #{_lambda_.7} parent=5 // pred_check
      _
    $region30: #{_lambda_.7} parent=5 // pred_check_branch
      %181 = sbr.rel (%p178) target = $region32
    $region31: #{_lambda_.7} parent=5 // pred_region
      %s182 = ssub.s32 %s9, 1
      %p183 = scmp.lt.s32.totalorder %s19, 1
      %s184 = scalar_select %p183, %s19, 1
      %s185 = smul.addr %s184, 32
      %s186 = smul.addr %s185, 4
      %s187 = scalar_lea.vmem %s0, %s186
      %p188 = pneg %p54
      %p189 = pneg %p51
      %p190 = scmp.lt.s32.totalorder %s21, 0
      %s191 = scalar_select %p190, %s21, 0
      %s192 = smul.addr %s191, 4
      %s193 = scalar_lea.vmem %s1, %s192
      %p194 = pneg %p80
      %p195 = pneg %p77
      %p196 = scmp.lt.s32.totalorder %s21, 0
      %s197 = scalar_select %p196, %s21, 0
      %s198 = scalar_lea.vmem %s2, %s197
      %p199 = pneg %p106
      %p200 = pneg %p103
      %p201 = pneg %p136
      %p202 = pneg %p133
      %s203 = smul.u32 3, %s20
      %p204 = scmp.lt.s32.totalorder %s19, 1
      %s205 = scalar_select %p204, %s19, 1
      %p206 = scmp.lt.s32.totalorder %s203, 2
      %s207 = scalar_select %p206, %s203, 2
      %p208 = scmp.lt.s32.totalorder %s21, 0
      %s209 = scalar_select %p208, %s21, 0
      %s210 = sadd.s32 %s209, %s207
      %s211 = smul.addr %s205, 3
      %s212 = sadd.s32 %s210, %s211
      %s213 = smul.addr %s212, 4
      %s214 = scalar_lea.vmem %s3, %s213
      %p215 = scmp.lt.s32.totalorder %s19, 1
      %s216 = scalar_select %p215, %s19, 1
      %s217 = smul.addr %s216, 32
      %s218 = smul.addr %s217, 4
      %s219 = scalar_lea.vmem %s0, %s218
      %p220 = scmp.lt.s32.totalorder %s21, 0
      %s221 = scalar_select %p220, %s21, 0
      %s222 = smul.addr %s221, 4
      %s223 = scalar_lea.vmem %s1, %s222
      %p224 = scmp.lt.s32.totalorder %s21, 0
      %s225 = scalar_select %p224, %s21, 0
      %s226 = scalar_lea.vmem %s2, %s225
      %s227 = smul.u32 3, %s20
      %p228 = scmp.lt.s32.totalorder %s19, 1
      %s229 = scalar_select %p228, %s19, 1
      %p230 = scmp.lt.s32.totalorder %s227, 2
      %s231 = scalar_select %p230, %s227, 2
      %p232 = scmp.lt.s32.totalorder %s21, 0
      %s233 = scalar_select %p232, %s21, 0
      %s234 = sadd.s32 %s233, %s231
      %s235 = smul.addr %s229, 3
      %s236 = sadd.s32 %s234, %s235
      %s237 = smul.addr %s236, 4
      %s238 = scalar_lea.vmem %s3, %s237
      %s239 = smul.u32 3, %s20
      %s241 = smul.u32 %s20, 3
      %s242 = smul.u32 %s241, 8
      %s243 = smul.addr %s242, 4
      %s244 = scalar_lea.vmem %s219, %s243
      %v245 = vld [vmem:[%s244] sm:$0xff]
      %v246 = vld [vmem:[%s244 + $0x8] sm:$0xff]
      %v247 = vld [vmem:[%s244 + $0x20] sm:$0xff]
      %v248 = vld [vmem:[%s244 + $0x28] sm:$0xff]
      %v249 = vld [vmem:[%s244 + $0x40] sm:$0xff]
      %v250 = vld [vmem:[%s244 + $0x48] sm:$0xff]
      %v251 = vld [vmem:[%s244 + $0x60] sm:$0xff]
      %v252 = vld [vmem:[%s244 + $0x68] sm:$0xff]
      %v253 = vld [vmem:[%s223] sm:$0xf]
      %v254 = vld [vmem:[%s223 + $0x4] sm:$0xf]
      %v255 = vld [vmem:[%s223 + $0x8] sm:$0xf]
      %v256 = vld [vmem:[%s223 + $0xc] sm:$0xf]
      %v257 = vld [vmem:[%s223 + $0x10] sm:$0xf]
      %v258 = vld [vmem:[%s223 + $0x14] sm:$0xf]
      %v259 = vld [vmem:[%s223 + $0x18] sm:$0xf]
      %v260 = vld [vmem:[%s223 + $0x1c] sm:$0xf]
      %v261 = vld [vmem:[%s223 + $0x20] sm:$0xf]
      %v262 = vld [vmem:[%s223 + $0x24] sm:$0xf]
      %v263 = vld [vmem:[%s223 + $0x28] sm:$0xf]
      %v264 = vld [vmem:[%s223 + $0x2c] sm:$0xf]
      %v265 = vld [vmem:[%s223 + $0x30] sm:$0xf]
      %v266 = vld [vmem:[%s223 + $0x34] sm:$0xf]
      %v267 = vld [vmem:[%s223 + $0x38] sm:$0xf]
      %v268 = vld [vmem:[%s223 + $0x3c] sm:$0xf]
      %v269 = vld [vmem:[%s223 + $0x40] sm:$0xf]
      %v270 = vld [vmem:[%s223 + $0x44] sm:$0xf]
      %v271 = vld [vmem:[%s223 + $0x48] sm:$0xf]
      %v272 = vld [vmem:[%s223 + $0x4c] sm:$0xf]
      %v273 = vld [vmem:[%s223 + $0x50] sm:$0xf]
      %v274 = vld [vmem:[%s223 + $0x54] sm:$0xf]
      %v275 = vld [vmem:[%s223 + $0x58] sm:$0xf]
      %v276 = vld [vmem:[%s223 + $0x5c] sm:$0xf]
      %v277 = vld [vmem:[%s223 + $0x60] sm:$0xf]
      %v278 = vld [vmem:[%s223 + $0x64] sm:$0xf]
      %v279 = vld [vmem:[%s223 + $0x68] sm:$0xf]
      %v280 = vld [vmem:[%s223 + $0x6c] sm:$0xf]
      %v281 = vld [vmem:[%s223 + $0x70] sm:$0xf]
      %v282 = vld [vmem:[%s223 + $0x74] sm:$0xf]
      %v283 = vld [vmem:[%s223 + $0x78] sm:$0xf]
      %v284 = vld [vmem:[%s223 + $0x7c] sm:$0xf]
      %v285 = vld [vmem:[%s223 + $0x80] sm:$0xf]
      %v286 = vld [vmem:[%s223 + $0x84] sm:$0xf]
      %v287 = vld [vmem:[%s223 + $0x88] sm:$0xf]
      %v288 = vld [vmem:[%s223 + $0x8c] sm:$0xf]
      %v289 = vld [vmem:[%s223 + $0x90] sm:$0xf]
      %v290 = vld [vmem:[%s223 + $0x94] sm:$0xf]
      %v291 = vld [vmem:[%s223 + $0x98] sm:$0xf]
      %v292 = vld [vmem:[%s223 + $0x9c] sm:$0xf]
      %v293 = vld [vmem:[%s223 + $0xa0] sm:$0xf]
      %v294 = vld [vmem:[%s223 + $0xa4] sm:$0xf]
      %v295 = vld [vmem:[%s223 + $0xa8] sm:$0xf]
      %v296 = vld [vmem:[%s223 + $0xac] sm:$0xf]
      %v297 = vld [vmem:[%s223 + $0xb0] sm:$0xf]
      %v298 = vld [vmem:[%s223 + $0xb4] sm:$0xf]
      %v299 = vld [vmem:[%s223 + $0xb8] sm:$0xf]
      %v300 = vld [vmem:[%s223 + $0xbc] sm:$0xf]
      %v301 = vld [vmem:[%s223 + $0xc0] sm:$0xf]
      %v302 = vld [vmem:[%s223 + $0xc4] sm:$0xf]
      %v303 = vld [vmem:[%s223 + $0xc8] sm:$0xf]
      %v304 = vld [vmem:[%s223 + $0xcc] sm:$0xf]
      %v305 = vld [vmem:[%s223 + $0xd0] sm:$0xf]
      %v306 = vld [vmem:[%s223 + $0xd4] sm:$0xf]
      %v307 = vld [vmem:[%s223 + $0xd8] sm:$0xf]
      %v308 = vld [vmem:[%s223 + $0xdc] sm:$0xf]
      %v309 = vld [vmem:[%s223 + $0xe0] sm:$0xf]
      %v310 = vld [vmem:[%s223 + $0xe4] sm:$0xf]
      %v311 = vld [vmem:[%s223 + $0xe8] sm:$0xf]
      %v312 = vld [vmem:[%s223 + $0xec] sm:$0xf]
      %v313 = vld [vmem:[%s223 + $0xf0] sm:$0xf]
      %v314 = vld [vmem:[%s223 + $0xf4] sm:$0xf]
      %v315 = vld [vmem:[%s223 + $0xf8] sm:$0xf]
      %v316 = vld [vmem:[%s223 + $0xfc] sm:$0xf]
      %s317 = scalar_lea.vmem %s223, 512
      %v318 = vld [vmem:[%s317] sm:$0xf]
      %v319 = vld [vmem:[%s317 + $0x4] sm:$0xf]
      %v320 = vld [vmem:[%s317 + $0x8] sm:$0xf]
      %v321 = vld [vmem:[%s317 + $0xc] sm:$0xf]
      %v322 = vld [vmem:[%s317 + $0x10] sm:$0xf]
      %v323 = vld [vmem:[%s317 + $0x14] sm:$0xf]
      %v324 = vld [vmem:[%s317 + $0x18] sm:$0xf]
      %v325 = vld [vmem:[%s317 + $0x1c] sm:$0xf]
      %v326 = vld [vmem:[%s317 + $0x20] sm:$0xf]
      %v327 = vld [vmem:[%s317 + $0x24] sm:$0xf]
      %v328 = vld [vmem:[%s317 + $0x28] sm:$0xf]
      %v329 = vld [vmem:[%s317 + $0x2c] sm:$0xf]
      %v330 = vld [vmem:[%s317 + $0x30] sm:$0xf]
      %v331 = vld [vmem:[%s317 + $0x34] sm:$0xf]
      %v332 = vld [vmem:[%s317 + $0x38] sm:$0xf]
      %v333 = vld [vmem:[%s317 + $0x3c] sm:$0xf]
      %v334 = vld [vmem:[%s317 + $0x40] sm:$0xf]
      %v335 = vld [vmem:[%s317 + $0x44] sm:$0xf]
      %v336 = vld [vmem:[%s317 + $0x48] sm:$0xf]
      %v337 = vld [vmem:[%s317 + $0x4c] sm:$0xf]
      %v338 = vld [vmem:[%s317 + $0x50] sm:$0xf]
      %v339 = vld [vmem:[%s317 + $0x54] sm:$0xf]
      %v340 = vld [vmem:[%s317 + $0x58] sm:$0xf]
      %v341 = vld [vmem:[%s317 + $0x5c] sm:$0xf]
      %v342 = vld [vmem:[%s317 + $0x60] sm:$0xf]
      %v343 = vld [vmem:[%s317 + $0x64] sm:$0xf]
      %v344 = vld [vmem:[%s317 + $0x68] sm:$0xf]
      %v345 = vld [vmem:[%s317 + $0x6c] sm:$0xf]
      %v346 = vld [vmem:[%s317 + $0x70] sm:$0xf]
      %v347 = vld [vmem:[%s317 + $0x74] sm:$0xf]
      %v348 = vld [vmem:[%s317 + $0x78] sm:$0xf]
      %v349 = vld [vmem:[%s317 + $0x7c] sm:$0xf]
      %v350 = vld [vmem:[%s317 + $0x80] sm:$0xf]
      %v351 = vld [vmem:[%s317 + $0x84] sm:$0xf]
      %v352 = vld [vmem:[%s317 + $0x88] sm:$0xf]
      %v353 = vld [vmem:[%s317 + $0x8c] sm:$0xf]
      %v354 = vld [vmem:[%s317 + $0x90] sm:$0xf]
      %v355 = vld [vmem:[%s317 + $0x94] sm:$0xf]
      %v356 = vld [vmem:[%s317 + $0x98] sm:$0xf]
      %v357 = vld [vmem:[%s317 + $0x9c] sm:$0xf]
      %v358 = vld [vmem:[%s317 + $0xa0] sm:$0xf]
      %v359 = vld [vmem:[%s317 + $0xa4] sm:$0xf]
      %v360 = vld [vmem:[%s317 + $0xa8] sm:$0xf]
      %v361 = vld [vmem:[%s317 + $0xac] sm:$0xf]
      %v362 = vld [vmem:[%s317 + $0xb0] sm:$0xf]
      %v363 = vld [vmem:[%s317 + $0xb4] sm:$0xf]
      %v364 = vld [vmem:[%s317 + $0xb8] sm:$0xf]
      %v365 = vld [vmem:[%s317 + $0xbc] sm:$0xf]
      %v366 = vld [vmem:[%s317 + $0xc0] sm:$0xf]
      %v367 = vld [vmem:[%s317 + $0xc4] sm:$0xf]
      %v368 = vld [vmem:[%s317 + $0xc8] sm:$0xf]
      %v369 = vld [vmem:[%s317 + $0xcc] sm:$0xf]
      %v370 = vld [vmem:[%s317 + $0xd0] sm:$0xf]
      %v371 = vld [vmem:[%s317 + $0xd4] sm:$0xf]
      %v372 = vld [vmem:[%s317 + $0xd8] sm:$0xf]
      %v373 = vld [vmem:[%s317 + $0xdc] sm:$0xf]
      %v374 = vld [vmem:[%s317 + $0xe0] sm:$0xf]
      %v375 = vld [vmem:[%s317 + $0xe4] sm:$0xf]
      %v376 = vld [vmem:[%s317 + $0xe8] sm:$0xf]
      %v377 = vld [vmem:[%s317 + $0xec] sm:$0xf]
      %v378 = vld [vmem:[%s317 + $0xf0] sm:$0xf]
      %v379 = vld [vmem:[%s317 + $0xf4] sm:$0xf]
      %v380 = vld [vmem:[%s317 + $0xf8] sm:$0xf]
      %v381 = vld [vmem:[%s317 + $0xfc] sm:$0xf]
      %v388 = vunpack.c.l.b16 %v247
      %v389 = vunpack.c.h.b16 %v247
      %v390 = vunpack.c.l.b16 %v248
      %v391 = vunpack.c.h.b16 %v248
      %v392 = vunpack.c.l.b16 %v249
      %v393 = vunpack.c.h.b16 %v249
      %v394 = vunpack.c.l.b16 %v250
      %v395 = vunpack.c.h.b16 %v250
      %v396 = vunpack.c.l.b16 %v251
      %v397 = vunpack.c.h.b16 %v251
      %v398 = vunpack.c.l.b16 %v252
      %v399 = vunpack.c.h.b16 %v252
      %v400 = vpack.c.b16 %v392, %v388
      %v401 = vpack.c.b16 %v393, %v389
      %v402 = vpack.c.b16 %v394, %v390
      %v403 = vpack.c.b16 %v395, %v391
      %v404 = vpack.c.b16 %v396, %v396
      %v405 = vpack.c.b16 %v397, %v397
      %v406 = vpack.c.b16 %v398, %v398
      %v407 = vpack.c.b16 %v399, %v399
      %v480 = vunpack.c.l.b16 %v318
      %v481 = vunpack.c.l.b16 %v319
      %v482 = vunpack.c.l.b16 %v320
      %v483 = vunpack.c.l.b16 %v321
      %v484 = vunpack.c.l.b16 %v322
      %v485 = vunpack.c.l.b16 %v323
      %v486 = vunpack.c.l.b16 %v324
      %v487 = vunpack.c.l.b16 %v325
      %v488 = vunpack.c.l.b16 %v326
      %v489 = vunpack.c.l.b16 %v327
      %v490 = vunpack.c.l.b16 %v328
      %v491 = vunpack.c.l.b16 %v329
      %v492 = vunpack.c.l.b16 %v330
      %v493 = vunpack.c.l.b16 %v331
      %v494 = vunpack.c.l.b16 %v332
      %v495 = vunpack.c.l.b16 %v333
      %v496 = vunpack.c.l.b16 %v334
      %v497 = vunpack.c.l.b16 %v335
      %v498 = vunpack.c.l.b16 %v336
      %v499 = vunpack.c.l.b16 %v337
      %v500 = vunpack.c.l.b16 %v338
      %v501 = vunpack.c.l.b16 %v339
      %v502 = vunpack.c.l.b16 %v340
      %v503 = vunpack.c.l.b16 %v341
      %v504 = vunpack.c.l.b16 %v342
      %v505 = vunpack.c.l.b16 %v343
      %v506 = vunpack.c.l.b16 %v344
      %v507 = vunpack.c.l.b16 %v345
      %v508 = vunpack.c.l.b16 %v346
      %v509 = vunpack.c.l.b16 %v347
      %v510 = vunpack.c.l.b16 %v348
      %v511 = vunpack.c.l.b16 %v349
      %v512 = vunpack.c.l.b16 %v350
      %v513 = vunpack.c.l.b16 %v351
      %v514 = vunpack.c.l.b16 %v352
      %v515 = vunpack.c.l.b16 %v353
      %v516 = vunpack.c.l.b16 %v354
      %v517 = vunpack.c.l.b16 %v355
      %v518 = vunpack.c.l.b16 %v356
      %v519 = vunpack.c.l.b16 %v357
      %v520 = vunpack.c.l.b16 %v358
      %v521 = vunpack.c.l.b16 %v359
      %v522 = vunpack.c.l.b16 %v360
      %v523 = vunpack.c.l.b16 %v361
      %v524 = vunpack.c.l.b16 %v362
      %v525 = vunpack.c.l.b16 %v363
      %v526 = vunpack.c.l.b16 %v364
      %v527 = vunpack.c.l.b16 %v365
      %v528 = vunpack.c.l.b16 %v366
      %v529 = vunpack.c.l.b16 %v367
      %v530 = vunpack.c.l.b16 %v368
      %v531 = vunpack.c.l.b16 %v369
      %v532 = vunpack.c.l.b16 %v370
      %v533 = vunpack.c.l.b16 %v371
      %v534 = vunpack.c.l.b16 %v372
      %v535 = vunpack.c.l.b16 %v373
      %v536 = vunpack.c.l.b16 %v374
      %v537 = vunpack.c.l.b16 %v375
      %v538 = vunpack.c.l.b16 %v376
      %v539 = vunpack.c.l.b16 %v377
      %v540 = vunpack.c.l.b16 %v378
      %v541 = vunpack.c.l.b16 %v379
      %v542 = vunpack.c.l.b16 %v380
      %v543 = vunpack.c.l.b16 %v381
      %v544 = vpack.c.b16 %v481, %v480
      %v545 = vpack.c.b16 %v483, %v482
      %v546 = vpack.c.b16 %v485, %v484
      %v547 = vpack.c.b16 %v487, %v486
      %v548 = vpack.c.b16 %v489, %v488
      %v549 = vpack.c.b16 %v491, %v490
      %v550 = vpack.c.b16 %v493, %v492
      %v551 = vpack.c.b16 %v495, %v494
      %v552 = vpack.c.b16 %v497, %v496
      %v553 = vpack.c.b16 %v499, %v498
      %v554 = vpack.c.b16 %v501, %v500
      %v555 = vpack.c.b16 %v503, %v502
      %v556 = vpack.c.b16 %v505, %v504
      %v557 = vpack.c.b16 %v507, %v506
      %v558 = vpack.c.b16 %v509, %v508
      %v559 = vpack.c.b16 %v511, %v510
      %v560 = vpack.c.b16 %v513, %v512
      %v561 = vpack.c.b16 %v515, %v514
      %v562 = vpack.c.b16 %v517, %v516
      %v563 = vpack.c.b16 %v519, %v518
      %v564 = vpack.c.b16 %v521, %v520
      %v565 = vpack.c.b16 %v523, %v522
      %v566 = vpack.c.b16 %v525, %v524
      %v567 = vpack.c.b16 %v527, %v526
      %v568 = vpack.c.b16 %v529, %v528
      %v569 = vpack.c.b16 %v531, %v530
      %v570 = vpack.c.b16 %v533, %v532
      %v571 = vpack.c.b16 %v535, %v534
      %v572 = vpack.c.b16 %v537, %v536
      %v573 = vpack.c.b16 %v539, %v538
      %v574 = vpack.c.b16 %v541, %v540
      %v575 = vpack.c.b16 %v543, %v542
      %608 = vmatprep.subr.bf16.mxu0 0
      %609 = vmatpush1.bf16.msra.mxu0 %v544
      %610 = vmatprep.subr.bf16.mxu0 0
      %611 = vmatpush1.bf16.msra.mxu0 %v545
      %612 = vmatprep.subr.bf16.mxu0 0
      %613 = vmatpush1.bf16.msra.mxu0 %v546
      %614 = vmatprep.subr.bf16.mxu0 0
      %615 = vmatpush1.bf16.msra.mxu0 %v547
      %616 = vmatprep.subr.bf16.mxu0 0
      %617 = vmatpush1.bf16.msra.mxu0 %v548
      %618 = vmatprep.subr.bf16.mxu0 0
      %619 = vmatpush1.bf16.msra.mxu0 %v549
      %620 = vmatprep.subr.bf16.mxu0 0
      %621 = vmatpush1.bf16.msra.mxu0 %v550
      %622 = vmatprep.subr.bf16.mxu0 0
      %623 = vmatpush1.bf16.msra.mxu0 %v551
      %624 = vmatprep.subr.bf16.mxu0 0
      %625 = vmatpush1.bf16.msra.mxu0 %v552
      %626 = vmatprep.subr.bf16.mxu0 0
      %627 = vmatpush1.bf16.msra.mxu0 %v553
      %628 = vmatprep.subr.bf16.mxu0 0
      %629 = vmatpush1.bf16.msra.mxu0 %v554
      %630 = vmatprep.subr.bf16.mxu0 0
      %631 = vmatpush1.bf16.msra.mxu0 %v555
      %632 = vmatprep.subr.bf16.mxu0 0
      %633 = vmatpush1.bf16.msra.mxu0 %v556
      %634 = vmatprep.subr.bf16.mxu0 0
      %635 = vmatpush1.bf16.msra.mxu0 %v557
      %636 = vmatprep.subr.bf16.mxu0 0
      %637 = vmatpush1.bf16.msra.mxu0 %v558
      %638 = vmatprep.subr.bf16.mxu0 0
      %639 = vmatpush1.bf16.msra.mxu0 %v559
      %640 = vmatprep.mubr.bf16.mxu0 %v401
      %641 = vmatmul.mubr.bf16.gmra.mrb[0].mxu0 %v400
      %v642 = vpop.f32.mrb[0].mxu0
      %v643 = vadd.f32 0.0, %v642
      %v644 = vpop.f32.mrb[0].mxu0
      %v645 = vpop.f32.mrb[0].mxu0
      %v646 = vadd.f32 0.0, %v645
      %v647 = vpop.f32.mrb[0].mxu0
      %648 = vmatprep.mubr.bf16.mxu0 %v405
      %649 = vmatmul.mubr.bf16.gmra.mrb[0].mxu0 %v404
      %v650 = vpop.f32.mrb[0].mxu0
      %v651 = vadd.f32 0.0, %v650
      %v652 = vpop.f32.mrb[0].mxu0
      %v653 = vpop.f32.mrb[0].mxu0
      %v654 = vpop.f32.mrb[0].mxu0
      %655 = vdwg.mxu0
      %656 = vmatprep.subr.bf16.mxu0 0
      %657 = vmatpush1.bf16.msra.mxu0 %v560
      %658 = vmatprep.subr.bf16.mxu0 0
      %659 = vmatpush1.bf16.msra.mxu0 %v561
      %660 = vmatprep.subr.bf16.mxu0 0
      %661 = vmatpush1.bf16.msra.mxu0 %v562
      %662 = vmatprep.subr.bf16.mxu0 0
      %663 = vmatpush1.bf16.msra.mxu0 %v563
      %664 = vmatprep.subr.bf16.mxu0 0
      %665 = vmatpush1.bf16.msra.mxu0 %v564
      %666 = vmatprep.subr.bf16.mxu0 0
      %667 = vmatpush1.bf16.msra.mxu0 %v565
      %668 = vmatprep.subr.bf16.mxu0 0
      %669 = vmatpush1.bf16.msra.mxu0 %v566
      %670 = vmatprep.subr.bf16.mxu0 0
      %671 = vmatpush1.bf16.msra.mxu0 %v567
      %672 = vmatprep.subr.bf16.mxu0 0
      %673 = vmatpush1.bf16.msra.mxu0 %v568
      %674 = vmatprep.subr.bf16.mxu0 0
      %675 = vmatpush1.bf16.msra.mxu0 %v569
      %676 = vmatprep.subr.bf16.mxu0 0
      %677 = vmatpush1.bf16.msra.mxu0 %v570
      %678 = vmatprep.subr.bf16.mxu0 0
      %679 = vmatpush1.bf16.msra.mxu0 %v571
      %680 = vmatprep.subr.bf16.mxu0 0
      %681 = vmatpush1.bf16.msra.mxu0 %v572
      %682 = vmatprep.subr.bf16.mxu0 0
      %683 = vmatpush1.bf16.msra.mxu0 %v573
      %684 = vmatprep.subr.bf16.mxu0 0
      %685 = vmatpush1.bf16.msra.mxu0 %v574
      %686 = vmatprep.subr.bf16.mxu0 0
      %687 = vmatpush1.bf16.msra.mxu0 %v575
      %688 = vmatprep.mubr.bf16.mxu0 %v403
      %689 = vmatmul.mubr.bf16.gmra.mrb[0].mxu0 %v402
      %v690 = vpop.f32.mrb[0].mxu0
      %v691 = vadd.f32 %v643, %v690
      %v692 = vpop.f32.mrb[0].mxu0
      %v693 = vpop.f32.mrb[0].mxu0
      %v694 = vadd.f32 %v646, %v693
      %v695 = vpop.f32.mrb[0].mxu0
      %696 = vmatprep.mubr.bf16.mxu0 %v407
      %697 = vmatmul.mubr.bf16.gmra.mrb[0].mxu0 %v406
      %v698 = vpop.f32.mrb[0].mxu0
      %v699 = vadd.f32 %v651, %v698
      %v700 = vpop.f32.mrb[0].mxu0
      %v701 = vpop.f32.mrb[0].mxu0
      %v702 = vpop.f32.mrb[0].mxu0
      %703 = vdwg.mxu0
      %v706 = vunpack.c.l.b16 %v245
      %v707 = vunpack.c.h.b16 %v245
      %v708 = vunpack.c.l.b16 %v246
      %v709 = vunpack.c.h.b16 %v246
      %v710 = vpack.c.b16 %v388, %v706
      %v711 = vpack.c.b16 %v389, %v707
      %v712 = vpack.c.b16 %v390, %v708
      %v713 = vpack.c.b16 %v391, %v709
      %v714 = vpack.c.b16 %v392, %v392
      %v715 = vpack.c.b16 %v393, %v393
      %v716 = vpack.c.b16 %v394, %v394
      %v717 = vpack.c.b16 %v395, %v395
      %v790 = vunpack.c.l.b16 %v253
      %v791 = vunpack.c.l.b16 %v254
      %v792 = vunpack.c.l.b16 %v255
      %v793 = vunpack.c.l.b16 %v256
      %v794 = vunpack.c.l.b16 %v257
      %v795 = vunpack.c.l.b16 %v258
      %v796 = vunpack.c.l.b16 %v259
      %v797 = vunpack.c.l.b16 %v260
      %v798 = vunpack.c.l.b16 %v261
      %v799 = vunpack.c.l.b16 %v262
      %v800 = vunpack.c.l.b16 %v263
      %v801 = vunpack.c.l.b16 %v264
      %v802 = vunpack.c.l.b16 %v265
      %v803 = vunpack.c.l.b16 %v266
      %v804 = vunpack.c.l.b16 %v267
      %v805 = vunpack.c.l.b16 %v268
      %v806 = vunpack.c.l.b16 %v269
      %v807 = vunpack.c.l.b16 %v270
      %v808 = vunpack.c.l.b16 %v271
      %v809 = vunpack.c.l.b16 %v272
      %v810 = vunpack.c.l.b16 %v273
      %v811 = vunpack.c.l.b16 %v274
      %v812 = vunpack.c.l.b16 %v275
      %v813 = vunpack.c.l.b16 %v276
      %v814 = vunpack.c.l.b16 %v277
      %v815 = vunpack.c.l.b16 %v278
      %v816 = vunpack.c.l.b16 %v279
      %v817 = vunpack.c.l.b16 %v280
      %v818 = vunpack.c.l.b16 %v281
      %v819 = vunpack.c.l.b16 %v282
      %v820 = vunpack.c.l.b16 %v283
      %v821 = vunpack.c.l.b16 %v284
      %v822 = vunpack.c.l.b16 %v285
      %v823 = vunpack.c.l.b16 %v286
      %v824 = vunpack.c.l.b16 %v287
      %v825 = vunpack.c.l.b16 %v288
      %v826 = vunpack.c.l.b16 %v289
      %v827 = vunpack.c.l.b16 %v290
      %v828 = vunpack.c.l.b16 %v291
      %v829 = vunpack.c.l.b16 %v292
      %v830 = vunpack.c.l.b16 %v293
      %v831 = vunpack.c.l.b16 %v294
      %v832 = vunpack.c.l.b16 %v295
      %v833 = vunpack.c.l.b16 %v296
      %v834 = vunpack.c.l.b16 %v297
      %v835 = vunpack.c.l.b16 %v298
      %v836 = vunpack.c.l.b16 %v299
      %v837 = vunpack.c.l.b16 %v300
      %v838 = vunpack.c.l.b16 %v301
      %v839 = vunpack.c.l.b16 %v302
      %v840 = vunpack.c.l.b16 %v303
      %v841 = vunpack.c.l.b16 %v304
      %v842 = vunpack.c.l.b16 %v305
      %v843 = vunpack.c.l.b16 %v306
      %v844 = vunpack.c.l.b16 %v307
      %v845 = vunpack.c.l.b16 %v308
      %v846 = vunpack.c.l.b16 %v309
      %v847 = vunpack.c.l.b16 %v310
      %v848 = vunpack.c.l.b16 %v311
      %v849 = vunpack.c.l.b16 %v312
      %v850 = vunpack.c.l.b16 %v313
      %v851 = vunpack.c.l.b16 %v314
      %v852 = vunpack.c.l.b16 %v315
      %v853 = vunpack.c.l.b16 %v316
      %v854 = vpack.c.b16 %v791, %v790
      %v855 = vpack.c.b16 %v793, %v792
      %v856 = vpack.c.b16 %v795, %v794
      %v857 = vpack.c.b16 %v797, %v796
      %v858 = vpack.c.b16 %v799, %v798
      %v859 = vpack.c.b16 %v801, %v800
      %v860 = vpack.c.b16 %v803, %v802
      %v861 = vpack.c.b16 %v805, %v804
      %v862 = vpack.c.b16 %v807, %v806
      %v863 = vpack.c.b16 %v809, %v808
      %v864 = vpack.c.b16 %v811, %v810
      %v865 = vpack.c.b16 %v813, %v812
      %v866 = vpack.c.b16 %v815, %v814
      %v867 = vpack.c.b16 %v817, %v816
      %v868 = vpack.c.b16 %v819, %v818
      %v869 = vpack.c.b16 %v821, %v820
      %v870 = vpack.c.b16 %v823, %v822
      %v871 = vpack.c.b16 %v825, %v824
      %v872 = vpack.c.b16 %v827, %v826
      %v873 = vpack.c.b16 %v829, %v828
      %v874 = vpack.c.b16 %v831, %v830
      %v875 = vpack.c.b16 %v833, %v832
      %v876 = vpack.c.b16 %v835, %v834
      %v877 = vpack.c.b16 %v837, %v836
      %v878 = vpack.c.b16 %v839, %v838
      %v879 = vpack.c.b16 %v841, %v840
      %v880 = vpack.c.b16 %v843, %v842
      %v881 = vpack.c.b16 %v845, %v844
      %v882 = vpack.c.b16 %v847, %v846
      %v883 = vpack.c.b16 %v849, %v848
      %v884 = vpack.c.b16 %v851, %v850
      %v885 = vpack.c.b16 %v853, %v852
      %918 = vmatprep.subr.bf16.mxu0 0
      %919 = vmatpush1.bf16.msra.mxu0 %v854
      %920 = vmatprep.subr.bf16.mxu0 0
      %921 = vmatpush1.bf16.msra.mxu0 %v855
      %922 = vmatprep.subr.bf16.mxu0 0
      %923 = vmatpush1.bf16.msra.mxu0 %v856
      %924 = vmatprep.subr.bf16.mxu0 0
      %925 = vmatpush1.bf16.msra.mxu0 %v857
      %926 = vmatprep.subr.bf16.mxu0 0
      %927 = vmatpush1.bf16.msra.mxu0 %v858
      %928 = vmatprep.subr.bf16.mxu0 0
      %929 = vmatpush1.bf16.msra.mxu0 %v859
      %930 = vmatprep.subr.bf16.mxu0 0
      %931 = vmatpush1.bf16.msra.mxu0 %v860
      %932 = vmatprep.subr.bf16.mxu0 0
      %933 = vmatpush1.bf16.msra.mxu0 %v861
      %934 = vmatprep.subr.bf16.mxu0 0
      %935 = vmatpush1.bf16.msra.mxu0 %v862
      %936 = vmatprep.subr.bf16.mxu0 0
      %937 = vmatpush1.bf16.msra.mxu0 %v863
      %938 = vmatprep.subr.bf16.mxu0 0
      %939 = vmatpush1.bf16.msra.mxu0 %v864
      %940 = vmatprep.subr.bf16.mxu0 0
      %941 = vmatpush1.bf16.msra.mxu0 %v865
      %942 = vmatprep.subr.bf16.mxu0 0
      %943 = vmatpush1.bf16.msra.mxu0 %v866
      %944 = vmatprep.subr.bf16.mxu0 0
      %945 = vmatpush1.bf16.msra.mxu0 %v867
      %946 = vmatprep.subr.bf16.mxu0 0
      %947 = vmatpush1.bf16.msra.mxu0 %v868
      %948 = vmatprep.subr.bf16.mxu0 0
      %949 = vmatpush1.bf16.msra.mxu0 %v869
      %950 = vmatprep.mubr.bf16.mxu0 %v711
      %951 = vmatmul.mubr.bf16.gmra.mrb[0].mxu0 %v710
      %v952 = vpop.f32.mrb[0].mxu0
      %v953 = vadd.f32 %v691, %v952
      %v954 = vpop.f32.mrb[0].mxu0
      %v955 = vpop.f32.mrb[0].mxu0
      %v956 = vadd.f32 %v694, %v955
      %v957 = vpop.f32.mrb[0].mxu0
      %958 = vmatprep.mubr.bf16.mxu0 %v715
      %959 = vmatmul.mubr.bf16.gmra.mrb[0].mxu0 %v714
      %v960 = vpop.f32.mrb[0].mxu0
      %v961 = vadd.f32 %v699, %v960
      %v962 = vpop.f32.mrb[0].mxu0
      %v963 = vpop.f32.mrb[0].mxu0
      %v964 = vpop.f32.mrb[0].mxu0
      %965 = vdwg.mxu0
      %966 = vmatprep.subr.bf16.mxu0 0
      %967 = vmatpush1.bf16.msra.mxu0 %v870
      %968 = vmatprep.subr.bf16.mxu0 0
      %969 = vmatpush1.bf16.msra.mxu0 %v871
      %970 = vmatprep.subr.bf16.mxu0 0
      %971 = vmatpush1.bf16.msra.mxu0 %v872
      %972 = vmatprep.subr.bf16.mxu0 0
      %973 = vmatpush1.bf16.msra.mxu0 %v873
      %974 = vmatprep.subr.bf16.mxu0 0
      %975 = vmatpush1.bf16.msra.mxu0 %v874
      %976 = vmatprep.subr.bf16.mxu0 0
      %977 = vmatpush1.bf16.msra.mxu0 %v875
      %978 = vmatprep.subr.bf16.mxu0 0
      %979 = vmatpush1.bf16.msra.mxu0 %v876
      %980 = vmatprep.subr.bf16.mxu0 0
      %981 = vmatpush1.bf16.msra.mxu0 %v877
      %982 = vmatprep.subr.bf16.mxu0 0
      %983 = vmatpush1.bf16.msra.mxu0 %v878
      %984 = vmatprep.subr.bf16.mxu0 0
      %985 = vmatpush1.bf16.msra.mxu0 %v879
      %986 = vmatprep.subr.bf16.mxu0 0
      %987 = vmatpush1.bf16.msra.mxu0 %v880
      %988 = vmatprep.subr.bf16.mxu0 0
      %989 = vmatpush1.bf16.msra.mxu0 %v881
      %990 = vmatprep.subr.bf16.mxu0 0
      %991 = vmatpush1.bf16.msra.mxu0 %v882
      %992 = vmatprep.subr.bf16.mxu0 0
      %993 = vmatpush1.bf16.msra.mxu0 %v883
      %994 = vmatprep.subr.bf16.mxu0 0
      %995 = vmatpush1.bf16.msra.mxu0 %v884
      %996 = vmatprep.subr.bf16.mxu0 0
      %997 = vmatpush1.bf16.msra.mxu0 %v885
      %998 = vmatprep.mubr.bf16.mxu0 %v713
      %999 = vmatmul.mubr.bf16.gmra.mrb[0].mxu0 %v712
      %v1000 = vpop.f32.mrb[0].mxu0
      %v1001 = vadd.f32 %v953, %v1000
      %v1002 = vpop.f32.mrb[0].mxu0
      %v1003 = vpop.f32.mrb[0].mxu0
      %v1004 = vadd.f32 %v956, %v1003
      %v1005 = vpop.f32.mrb[0].mxu0
      %1006 = vmatprep.mubr.bf16.mxu0 %v717
      %1007 = vmatmul.mubr.bf16.gmra.mrb[0].mxu0 %v716
      %v1008 = vpop.f32.mrb[0].mxu0
      %v1009 = vadd.f32 %v961, %v1008
      %v1010 = vpop.f32.mrb[0].mxu0
      %v1011 = vpop.f32.mrb[0].mxu0
      %v1012 = vpop.f32.mrb[0].mxu0
      %1013 = vdwg.mxu0
      %v1014 = vld [vmem:[%s244] sm:$0xff]
      %v1015 = vld [vmem:[%s244 + $0x8] sm:$0xff]
      %v1016 = vld [vmem:[%s244 + $0x10] sm:$0x11]
      %v1017 = vld [vmem:[%s244 + $0x18] sm:$0x11]
      %v1018 = vld [vmem:[%s244 + $0x20] sm:$0xff]
      %v1019 = vld [vmem:[%s244 + $0x28] sm:$0xff]
      %v1020 = vld [vmem:[%s244 + $0x30] sm:$0x11]
      %v1021 = vld [vmem:[%s244 + $0x38] sm:$0x11]
      %v1022 = vld [vmem:[%s244 + $0x40] sm:$0xff]
      %v1023 = vld [vmem:[%s244 + $0x48] sm:$0xff]
      %v1024 = vld [vmem:[%s244 + $0x50] sm:$0x11]
      %v1025 = vld [vmem:[%s244 + $0x58] sm:$0x11]
      %v1026 = vld [vmem:[%s244 + $0x60] sm:$0xff]
      %v1027 = vld [vmem:[%s244 + $0x68] sm:$0xff]
      %v1028 = vld [vmem:[%s244 + $0x70] sm:$0x11]
      %v1029 = vld [vmem:[%s244 + $0x78] sm:$0x11]
      %vm1030 = vsmask.f32 3328
      %vm1031 = vsmask.f32 7440
      %vm1032 = vmor %vm1030, %vm1031
      %v1034 = vshrl.u32 %v1014, 16
      %v1036 = vrot.slane %v1034, 4
      %v1037 = vshll.u32 %v1014, 16
      %v1039 = vrot.slane %v1037, 5
      %v1040 = vor.u32 %v1036, %v1039
      %v1041 = vrot.slane %v1040, 4
      %v1043 = vshll.u32 %v1016, 16
      %v1045 = vrot.slane %v1043, 5
      %v1046 = vsel %vm1032, %v1041, %v1045
      %v1048 = vshrl.u32 %v1015, 16
      %v1050 = vrot.slane %v1048, 4
      %v1051 = vshll.u32 %v1015, 16
      %v1053 = vrot.slane %v1051, 5
      %v1054 = vor.u32 %v1050, %v1053
      %v1055 = vrot.slane %v1054, 4
      %v1057 = vshll.u32 %v1017, 16
      %v1059 = vrot.slane %v1057, 5
      %v1060 = vsel %vm1032, %v1055, %v1059
      %v1062 = vshrl.u32 %v1018, 16
      %v1064 = vrot.slane %v1062, 4
      %v1065 = vshll.u32 %v1018, 16
      %v1067 = vrot.slane %v1065, 5
      %v1068 = vor.u32 %v1064, %v1067
      %v1069 = vrot.slane %v1068, 4
      %v1071 = vshll.u32 %v1020, 16
      %v1073 = vrot.slane %v1071, 5
      %v1074 = vsel %vm1032, %v1069, %v1073
      %v1076 = vshrl.u32 %v1019, 16
      %v1078 = vrot.slane %v1076, 4
      %v1079 = vshll.u32 %v1019, 16
      %v1081 = vrot.slane %v1079, 5
      %v1082 = vor.u32 %v1078, %v1081
      %v1083 = vrot.slane %v1082, 4
      %v1085 = vshll.u32 %v1021, 16
      %v1087 = vrot.slane %v1085, 5
      %v1088 = vsel %vm1032, %v1083, %v1087
      %v1090 = vshrl.u32 %v1022, 16
      %v1092 = vrot.slane %v1090, 4
      %v1093 = vshll.u32 %v1022, 16
      %v1095 = vrot.slane %v1093, 5
      %v1096 = vor.u32 %v1092, %v1095
      %v1097 = vrot.slane %v1096, 4
      %v1099 = vshll.u32 %v1024, 16
      %v1101 = vrot.slane %v1099, 5
      %v1102 = vsel %vm1032, %v1097, %v1101
      %v1104 = vshrl.u32 %v1023, 16
      %v1106 = vrot.slane %v1104, 4
      %v1107 = vshll.u32 %v1023, 16
      %v1109 = vrot.slane %v1107, 5
      %v1110 = vor.u32 %v1106, %v1109
      %v1111 = vrot.slane %v1110, 4
      %v1113 = vshll.u32 %v1025, 16
      %v1115 = vrot.slane %v1113, 5
      %v1116 = vsel %vm1032, %v1111, %v1115
      %s1117 = scalar_lea.vmem %s223, 256
      %v1118 = vld [vmem:[%s1117] sm:$0xf]
      %v1119 = vld [vmem:[%s1117 + $0x4] sm:$0xf]
      %v1120 = vld [vmem:[%s1117 + $0x8] sm:$0xf]
      %v1121 = vld [vmem:[%s1117 + $0xc] sm:$0xf]
      %v1122 = vld [vmem:[%s1117 + $0x10] sm:$0xf]
      %v1123 = vld [vmem:[%s1117 + $0x14] sm:$0xf]
      %v1124 = vld [vmem:[%s1117 + $0x18] sm:$0xf]
      %v1125 = vld [vmem:[%s1117 + $0x1c] sm:$0xf]
      %v1126 = vld [vmem:[%s1117 + $0x20] sm:$0xf]
      %v1127 = vld [vmem:[%s1117 + $0x24] sm:$0xf]
      %v1128 = vld [vmem:[%s1117 + $0x28] sm:$0xf]
      %v1129 = vld [vmem:[%s1117 + $0x2c] sm:$0xf]
      %v1130 = vld [vmem:[%s1117 + $0x30] sm:$0xf]
      %v1131 = vld [vmem:[%s1117 + $0x34] sm:$0xf]
      %v1132 = vld [vmem:[%s1117 + $0x38] sm:$0xf]
      %v1133 = vld [vmem:[%s1117 + $0x3c] sm:$0xf]
      %v1134 = vld [vmem:[%s1117 + $0x40] sm:$0xf]
      %v1135 = vld [vmem:[%s1117 + $0x44] sm:$0xf]
      %v1136 = vld [vmem:[%s1117 + $0x48] sm:$0xf]
      %v1137 = vld [vmem:[%s1117 + $0x4c] sm:$0xf]
      %v1138 = vld [vmem:[%s1117 + $0x50] sm:$0xf]
      %v1139 = vld [vmem:[%s1117 + $0x54] sm:$0xf]
      %v1140 = vld [vmem:[%s1117 + $0x58] sm:$0xf]
      %v1141 = vld [vmem:[%s1117 + $0x5c] sm:$0xf]
      %v1142 = vld [vmem:[%s1117 + $0x60] sm:$0xf]
      %v1143 = vld [vmem:[%s1117 + $0x64] sm:$0xf]
      %v1144 = vld [vmem:[%s1117 + $0x68] sm:$0xf]
      %v1145 = vld [vmem:[%s1117 + $0x6c] sm:$0xf]
      %v1146 = vld [vmem:[%s1117 + $0x70] sm:$0xf]
      %v1147 = vld [vmem:[%s1117 + $0x74] sm:$0xf]
      %v1148 = vld [vmem:[%s1117 + $0x78] sm:$0xf]
      %v1149 = vld [vmem:[%s1117 + $0x7c] sm:$0xf]
      %v1150 = vld [vmem:[%s1117 + $0x80] sm:$0xf]
      %v1151 = vld [vmem:[%s1117 + $0x84] sm:$0xf]
      %v1152 = vld [vmem:[%s1117 + $0x88] sm:$0xf]
      %v1153 = vld [vmem:[%s1117 + $0x8c] sm:$0xf]
      %v1154 = vld [vmem:[%s1117 + $0x90] sm:$0xf]
      %v1155 = vld [vmem:[%s1117 + $0x94] sm:$0xf]
      %v1156 = vld [vmem:[%s1117 + $0x98] sm:$0xf]
      %v1157 = vld [vmem:[%s1117 + $0x9c] sm:$0xf]
      %v1158 = vld [vmem:[%s1117 + $0xa0] sm:$0xf]
      %v1159 = vld [vmem:[%s1117 + $0xa4] sm:$0xf]
      %v1160 = vld [vmem:[%s1117 + $0xa8] sm:$0xf]
      %v1161 = vld [vmem:[%s1117 + $0xac] sm:$0xf]
      %v1162 = vld [vmem:[%s1117 + $0xb0] sm:$0xf]
      %v1163 = vld [vmem:[%s1117 + $0xb4] sm:$0xf]
      %v1164 = vld [vmem:[%s1117 + $0xb8] sm:$0xf]
      %v1165 = vld [vmem:[%s1117 + $0xbc] sm:$0xf]
      %v1166 = vld [vmem:[%s1117 + $0xc0] sm:$0xf]
      %v1167 = vld [vmem:[%s1117 + $0xc4] sm:$0xf]
      %v1168 = vld [vmem:[%s1117 + $0xc8] sm:$0xf]
      %v1169 = vld [vmem:[%s1117 + $0xcc] sm:$0xf]
      %v1170 = vld [vmem:[%s1117 + $0xd0] sm:$0xf]
      %v1171 = vld [vmem:[%s1117 + $0xd4] sm:$0xf]
      %v1172 = vld [vmem:[%s1117 + $0xd8] sm:$0xf]
      %v1173 = vld [vmem:[%s1117 + $0xdc] sm:$0xf]
      %v1174 = vld [vmem:[%s1117 + $0xe0] sm:$0xf]
      %v1175 = vld [vmem:[%s1117 + $0xe4] sm:$0xf]
      %v1176 = vld [vmem:[%s1117 + $0xe8] sm:$0xf]
      %v1177 = vld [vmem:[%s1117 + $0xec] sm:$0xf]
      %v1178 = vld [vmem:[%s1117 + $0xf0] sm:$0xf]
      %v1179 = vld [vmem:[%s1117 + $0xf4] sm:$0xf]
      %v1180 = vld [vmem:[%s1117 + $0xf8] sm:$0xf]
      %v1181 = vld [vmem:[%s1117 + $0xfc] sm:$0xf]
      %v1182 = vunpack.c.l.b16 %v1046
      %v1183 = vunpack.c.h.b16 %v1046
      %v1184 = vunpack.c.l.b16 %v1060
      %v1185 = vunpack.c.h.b16 %v1060
      %v1186 = vunpack.c.l.b16 %v1074
      %v1187 = vunpack.c.h.b16 %v1074
      %v1188 = vunpack.c.l.b16 %v1088
      %v1189 = vunpack.c.h.b16 %v1088
      %v1190 = vunpack.c.l.b16 %v1102
      %v1191 = vunpack.c.h.b16 %v1102
      %v1192 = vunpack.c.l.b16 %v1116
      %v1193 = vunpack.c.h.b16 %v1116
      %v1194 = vpack.c.b16 %v1186, %v1182
      %v1195 = vpack.c.b16 %v1187, %v1183
      %v1196 = vpack.c.b16 %v1188, %v1184
      %v1197 = vpack.c.b16 %v1189, %v1185
      %v1198 = vpack.c.b16 %v1190, %v1190
      %v1199 = vpack.c.b16 %v1191, %v1191
      %v1200 = vpack.c.b16 %v1192, %v1192
      %v1201 = vpack.c.b16 %v1193, %v1193
      %v1274 = vunpack.c.l.b16 %v1118
      %v1275 = vunpack.c.l.b16 %v1119
      %v1276 = vunpack.c.l.b16 %v1120
      %v1277 = vunpack.c.l.b16 %v1121
      %v1278 = vunpack.c.l.b16 %v1122
      %v1279 = vunpack.c.l.b16 %v1123
      %v1280 = vunpack.c.l.b16 %v1124
      %v1281 = vunpack.c.l.b16 %v1125
      %v1282 = vunpack.c.l.b16 %v1126
      %v1283 = vunpack.c.l.b16 %v1127
      %v1284 = vunpack.c.l.b16 %v1128
      %v1285 = vunpack.c.l.b16 %v1129
      %v1286 = vunpack.c.l.b16 %v1130
      %v1287 = vunpack.c.l.b16 %v1131
      %v1288 = vunpack.c.l.b16 %v1132
      %v1289 = vunpack.c.l.b16 %v1133
      %v1290 = vunpack.c.l.b16 %v1134
      %v1291 = vunpack.c.l.b16 %v1135
      %v1292 = vunpack.c.l.b16 %v1136
      %v1293 = vunpack.c.l.b16 %v1137
      %v1294 = vunpack.c.l.b16 %v1138
      %v1295 = vunpack.c.l.b16 %v1139
      %v1296 = vunpack.c.l.b16 %v1140
      %v1297 = vunpack.c.l.b16 %v1141
      %v1298 = vunpack.c.l.b16 %v1142
      %v1299 = vunpack.c.l.b16 %v1143
      %v1300 = vunpack.c.l.b16 %v1144
      %v1301 = vunpack.c.l.b16 %v1145
      %v1302 = vunpack.c.l.b16 %v1146
      %v1303 = vunpack.c.l.b16 %v1147
      %v1304 = vunpack.c.l.b16 %v1148
      %v1305 = vunpack.c.l.b16 %v1149
      %v1306 = vunpack.c.l.b16 %v1150
      %v1307 = vunpack.c.l.b16 %v1151
      %v1308 = vunpack.c.l.b16 %v1152
      %v1309 = vunpack.c.l.b16 %v1153
      %v1310 = vunpack.c.l.b16 %v1154
      %v1311 = vunpack.c.l.b16 %v1155
      %v1312 = vunpack.c.l.b16 %v1156
      %v1313 = vunpack.c.l.b16 %v1157
      %v1314 = vunpack.c.l.b16 %v1158
      %v1315 = vunpack.c.l.b16 %v1159
      %v1316 = vunpack.c.l.b16 %v1160
      %v1317 = vunpack.c.l.b16 %v1161
      %v1318 = vunpack.c.l.b16 %v1162
      %v1319 = vunpack.c.l.b16 %v1163
      %v1320 = vunpack.c.l.b16 %v1164
      %v1321 = vunpack.c.l.b16 %v1165
      %v1322 = vunpack.c.l.b16 %v1166
      %v1323 = vunpack.c.l.b16 %v1167
      %v1324 = vunpack.c.l.b16 %v1168
      %v1325 = vunpack.c.l.b16 %v1169
      %v1326 = vunpack.c.l.b16 %v1170
      %v1327 = vunpack.c.l.b16 %v1171
      %v1328 = vunpack.c.l.b16 %v1172
      %v1329 = vunpack.c.l.b16 %v1173
      %v1330 = vunpack.c.l.b16 %v1174
      %v1331 = vunpack.c.l.b16 %v1175
      %v1332 = vunpack.c.l.b16 %v1176
      %v1333 = vunpack.c.l.b16 %v1177
      %v1334 = vunpack.c.l.b16 %v1178
      %v1335 = vunpack.c.l.b16 %v1179
      %v1336 = vunpack.c.l.b16 %v1180
      %v1337 = vunpack.c.l.b16 %v1181
      %v1338 = vpack.c.b16 %v1275, %v1274
      %v1339 = vpack.c.b16 %v1277, %v1276
      %v1340 = vpack.c.b16 %v1279, %v1278
      %v1341 = vpack.c.b16 %v1281, %v1280
      %v1342 = vpack.c.b16 %v1283, %v1282
      %v1343 = vpack.c.b16 %v1285, %v1284
      %v1344 = vpack.c.b16 %v1287, %v1286
      %v1345 = vpack.c.b16 %v1289, %v1288
      %v1346 = vpack.c.b16 %v1291, %v1290
      %v1347 = vpack.c.b16 %v1293, %v1292
      %v1348 = vpack.c.b16 %v1295, %v1294
      %v1349 = vpack.c.b16 %v1297, %v1296
      %v1350 = vpack.c.b16 %v1299, %v1298
      %v1351 = vpack.c.b16 %v1301, %v1300
      %v1352 = vpack.c.b16 %v1303, %v1302
      %v1353 = vpack.c.b16 %v1305, %v1304
      %v1354 = vpack.c.b16 %v1307, %v1306
      %v1355 = vpack.c.b16 %v1309, %v1308
      %v1356 = vpack.c.b16 %v1311, %v1310
      %v1357 = vpack.c.b16 %v1313, %v1312
      %v1358 = vpack.c.b16 %v1315, %v1314
      %v1359 = vpack.c.b16 %v1317, %v1316
      %v1360 = vpack.c.b16 %v1319, %v1318
      %v1361 = vpack.c.b16 %v1321, %v1320
      %v1362 = vpack.c.b16 %v1323, %v1322
      %v1363 = vpack.c.b16 %v1325, %v1324
      %v1364 = vpack.c.b16 %v1327, %v1326
      %v1365 = vpack.c.b16 %v1329, %v1328
      %v1366 = vpack.c.b16 %v1331, %v1330
      %v1367 = vpack.c.b16 %v1333, %v1332
      %v1368 = vpack.c.b16 %v1335, %v1334
      %v1369 = vpack.c.b16 %v1337, %v1336
      %1402 = vmatprep.subr.bf16.mxu0 0
      %1403 = vmatpush1.bf16.msra.mxu0 %v1338
      %1404 = vmatprep.subr.bf16.mxu0 0
      %1405 = vmatpush1.bf16.msra.mxu0 %v1339
      %1406 = vmatprep.subr.bf16.mxu0 0
      %1407 = vmatpush1.bf16.msra.mxu0 %v1340
      %1408 = vmatprep.subr.bf16.mxu0 0
      %1409 = vmatpush1.bf16.msra.mxu0 %v1341
      %1410 = vmatprep.subr.bf16.mxu0 0
      %1411 = vmatpush1.bf16.msra.mxu0 %v1342
      %1412 = vmatprep.subr.bf16.mxu0 0
      %1413 = vmatpush1.bf16.msra.mxu0 %v1343
      %1414 = vmatprep.subr.bf16.mxu0 0
      %1415 = vmatpush1.bf16.msra.mxu0 %v1344
      %1416 = vmatprep.subr.bf16.mxu0 0
      %1417 = vmatpush1.bf16.msra.mxu0 %v1345
      %1418 = vmatprep.subr.bf16.mxu0 0
      %1419 = vmatpush1.bf16.msra.mxu0 %v1346
      %1420 = vmatprep.subr.bf16.mxu0 0
      %1421 = vmatpush1.bf16.msra.mxu0 %v1347
      %1422 = vmatprep.subr.bf16.mxu0 0
      %1423 = vmatpush1.bf16.msra.mxu0 %v1348
      %1424 = vmatprep.subr.bf16.mxu0 0
      %1425 = vmatpush1.bf16.msra.mxu0 %v1349
      %1426 = vmatprep.subr.bf16.mxu0 0
      %1427 = vmatpush1.bf16.msra.mxu0 %v1350
      %1428 = vmatprep.subr.bf16.mxu0 0
      %1429 = vmatpush1.bf16.msra.mxu0 %v1351
      %1430 = vmatprep.subr.bf16.mxu0 0
      %1431 = vmatpush1.bf16.msra.mxu0 %v1352
      %1432 = vmatprep.subr.bf16.mxu0 0
      %1433 = vmatpush1.bf16.msra.mxu0 %v1353
      %1434 = vmatprep.mubr.bf16.mxu0 %v1195
      %1435 = vmatmul.mubr.bf16.gmra.mrb[0].mxu0 %v1194
      %v1436 = vpop.f32.mrb[0].mxu0
      %v1437 = vadd.f32 0.0, %v1436
      %v1438 = vpop.f32.mrb[0].mxu0
      %v1439 = vpop.f32.mrb[0].mxu0
      %v1440 = vadd.f32 0.0, %v1439
      %v1441 = vpop.f32.mrb[0].mxu0
      %1442 = vmatprep.mubr.bf16.mxu0 %v1199
      %1443 = vmatmul.mubr.bf16.gmra.mrb[0].mxu0 %v1198
      %v1444 = vpop.f32.mrb[0].mxu0
      %v1445 = vadd.f32 0.0, %v1444
      %v1446 = vpop.f32.mrb[0].mxu0
      %v1447 = vpop.f32.mrb[0].mxu0
      %v1448 = vpop.f32.mrb[0].mxu0
      %1449 = vdwg.mxu0
      %1450 = vmatprep.subr.bf16.mxu0 0
      %1451 = vmatpush1.bf16.msra.mxu0 %v1354
      %1452 = vmatprep.subr.bf16.mxu0 0
      %1453 = vmatpush1.bf16.msra.mxu0 %v1355
      %1454 = vmatprep.subr.bf16.mxu0 0
      %1455 = vmatpush1.bf16.msra.mxu0 %v1356
      %1456 = vmatprep.subr.bf16.mxu0 0
      %1457 = vmatpush1.bf16.msra.mxu0 %v1357
      %1458 = vmatprep.subr.bf16.mxu0 0
      %1459 = vmatpush1.bf16.msra.mxu0 %v1358
      %1460 = vmatprep.subr.bf16.mxu0 0
      %1461 = vmatpush1.bf16.msra.mxu0 %v1359
      %1462 = vmatprep.subr.bf16.mxu0 0
      %1463 = vmatpush1.bf16.msra.mxu0 %v1360
      %1464 = vmatprep.subr.bf16.mxu0 0
      %1465 = vmatpush1.bf16.msra.mxu0 %v1361
      %1466 = vmatprep.subr.bf16.mxu0 0
      %1467 = vmatpush1.bf16.msra.mxu0 %v1362
      %1468 = vmatprep.subr.bf16.mxu0 0
      %1469 = vmatpush1.bf16.msra.mxu0 %v1363
      %1470 = vmatprep.subr.bf16.mxu0 0
      %1471 = vmatpush1.bf16.msra.mxu0 %v1364
      %1472 = vmatprep.subr.bf16.mxu0 0
      %1473 = vmatpush1.bf16.msra.mxu0 %v1365
      %1474 = vmatprep.subr.bf16.mxu0 0
      %1475 = vmatpush1.bf16.msra.mxu0 %v1366
      %1476 = vmatprep.subr.bf16.mxu0 0
      %1477 = vmatpush1.bf16.msra.mxu0 %v1367
      %1478 = vmatprep.subr.bf16.mxu0 0
      %1479 = vmatpush1.bf16.msra.mxu0 %v1368
      %1480 = vmatprep.subr.bf16.mxu0 0
      %1481 = vmatpush1.bf16.msra.mxu0 %v1369
      %1482 = vmatprep.mubr.bf16.mxu0 %v1197
      %1483 = vmatmul.mubr.bf16.gmra.mrb[0].mxu0 %v1196
      %v1484 = vpop.f32.mrb[0].mxu0
      %v1485 = vadd.f32 %v1437, %v1484
      %v1486 = vpop.f32.mrb[0].mxu0
      %v1487 = vpop.f32.mrb[0].mxu0
      %v1488 = vadd.f32 %v1440, %v1487
      %v1489 = vpop.f32.mrb[0].mxu0
      %1490 = vmatprep.mubr.bf16.mxu0 %v1201
      %1491 = vmatmul.mubr.bf16.gmra.mrb[0].mxu0 %v1200
      %v1492 = vpop.f32.mrb[0].mxu0
      %v1493 = vadd.f32 %v1445, %v1492
      %v1494 = vpop.f32.mrb[0].mxu0
      %v1495 = vpop.f32.mrb[0].mxu0
      %v1496 = vpop.f32.mrb[0].mxu0
      %1497 = vdwg.mxu0
      %v1498 = vadd.f32 %v1001, %v1485
      %v1499 = vadd.f32 %v1004, %v1488
      %v1500 = vadd.f32 %v1009, %v1493
      %v1502 = vshrl.u32 %v1026, 16
      %v1504 = vrot.slane %v1502, 4
      %v1505 = vshll.u32 %v1026, 16
      %v1507 = vrot.slane %v1505, 5
      %v1508 = vor.u32 %v1504, %v1507
      %v1509 = vrot.slane %v1508, 4
      %v1511 = vshll.u32 %v1028, 16
      %v1513 = vrot.slane %v1511, 5
      %v1514 = vsel %vm1032, %v1509, %v1513
      %v1516 = vshrl.u32 %v1027, 16
      %v1518 = vrot.slane %v1516, 4
      %v1519 = vshll.u32 %v1027, 16
      %v1521 = vrot.slane %v1519, 5
      %v1522 = vor.u32 %v1518, %v1521
      %v1523 = vrot.slane %v1522, 4
      %v1525 = vshll.u32 %v1029, 16
      %v1527 = vrot.slane %v1525, 5
      %v1528 = vsel %vm1032, %v1523, %v1527
      %s1529 = scalar_lea.vmem %s223, 768
      %v1530 = vld [vmem:[%s1529] sm:$0xf]
      %v1531 = vld [vmem:[%s1529 + $0x4] sm:$0xf]
      %v1532 = vld [vmem:[%s1529 + $0x8] sm:$0xf]
      %v1533 = vld [vmem:[%s1529 + $0xc] sm:$0xf]
      %v1534 = vld [vmem:[%s1529 + $0x10] sm:$0xf]
      %v1535 = vld [vmem:[%s1529 + $0x14] sm:$0xf]
      %v1536 = vld [vmem:[%s1529 + $0x18] sm:$0xf]
      %v1537 = vld [vmem:[%s1529 + $0x1c] sm:$0xf]
      %v1538 = vld [vmem:[%s1529 + $0x20] sm:$0xf]
      %v1539 = vld [vmem:[%s1529 + $0x24] sm:$0xf]
      %v1540 = vld [vmem:[%s1529 + $0x28] sm:$0xf]
      %v1541 = vld [vmem:[%s1529 + $0x2c] sm:$0xf]
      %v1542 = vld [vmem:[%s1529 + $0x30] sm:$0xf]
      %v1543 = vld [vmem:[%s1529 + $0x34] sm:$0xf]
      %v1544 = vld [vmem:[%s1529 + $0x38] sm:$0xf]
      %v1545 = vld [vmem:[%s1529 + $0x3c] sm:$0xf]
      %v1546 = vld [vmem:[%s1529 + $0x40] sm:$0xf]
      %v1547 = vld [vmem:[%s1529 + $0x44] sm:$0xf]
      %v1548 = vld [vmem:[%s1529 + $0x48] sm:$0xf]
      %v1549 = vld [vmem:[%s1529 + $0x4c] sm:$0xf]
      %v1550 = vld [vmem:[%s1529 + $0x50] sm:$0xf]
      %v1551 = vld [vmem:[%s1529 + $0x54] sm:$0xf]
      %v1552 = vld [vmem:[%s1529 + $0x58] sm:$0xf]
      %v1553 = vld [vmem:[%s1529 + $0x5c] sm:$0xf]
      %v1554 = vld [vmem:[%s1529 + $0x60] sm:$0xf]
      %v1555 = vld [vmem:[%s1529 + $0x64] sm:$0xf]
      %v1556 = vld [vmem:[%s1529 + $0x68] sm:$0xf]
      %v1557 = vld [vmem:[%s1529 + $0x6c] sm:$0xf]
      %v1558 = vld [vmem:[%s1529 + $0x70] sm:$0xf]
      %v1559 = vld [vmem:[%s1529 + $0x74] sm:$0xf]
      %v1560 = vld [vmem:[%s1529 + $0x78] sm:$0xf]
      %v1561 = vld [vmem:[%s1529 + $0x7c] sm:$0xf]
      %v1562 = vld [vmem:[%s1529 + $0x80] sm:$0xf]
      %v1563 = vld [vmem:[%s1529 + $0x84] sm:$0xf]
      %v1564 = vld [vmem:[%s1529 + $0x88] sm:$0xf]
      %v1565 = vld [vmem:[%s1529 + $0x8c] sm:$0xf]
      %v1566 = vld [vmem:[%s1529 + $0x90] sm:$0xf]
      %v1567 = vld [vmem:[%s1529 + $0x94] sm:$0xf]
      %v1568 = vld [vmem:[%s1529 + $0x98] sm:$0xf]
      %v1569 = vld [vmem:[%s1529 + $0x9c] sm:$0xf]
      %v1570 = vld [vmem:[%s1529 + $0xa0] sm:$0xf]
      %v1571 = vld [vmem:[%s1529 + $0xa4] sm:$0xf]
      %v1572 = vld [vmem:[%s1529 + $0xa8] sm:$0xf]
      %v1573 = vld [vmem:[%s1529 + $0xac] sm:$0xf]
      %v1574 = vld [vmem:[%s1529 + $0xb0] sm:$0xf]
      %v1575 = vld [vmem:[%s1529 + $0xb4] sm:$0xf]
      %v1576 = vld [vmem:[%s1529 + $0xb8] sm:$0xf]
      %v1577 = vld [vmem:[%s1529 + $0xbc] sm:$0xf]
      %v1578 = vld [vmem:[%s1529 + $0xc0] sm:$0xf]
      %v1579 = vld [vmem:[%s1529 + $0xc4] sm:$0xf]
      %v1580 = vld [vmem:[%s1529 + $0xc8] sm:$0xf]
      %v1581 = vld [vmem:[%s1529 + $0xcc] sm:$0xf]
      %v1582 = vld [vmem:[%s1529 + $0xd0] sm:$0xf]
      %v1583 = vld [vmem:[%s1529 + $0xd4] sm:$0xf]
      %v1584 = vld [vmem:[%s1529 + $0xd8] sm:$0xf]
      %v1585 = vld [vmem:[%s1529 + $0xdc] sm:$0xf]
      %v1586 = vld [vmem:[%s1529 + $0xe0] sm:$0xf]
      %v1587 = vld [vmem:[%s1529 + $0xe4] sm:$0xf]
      %v1588 = vld [vmem:[%s1529 + $0xe8] sm:$0xf]
      %v1589 = vld [vmem:[%s1529 + $0xec] sm:$0xf]
      %v1590 = vld [vmem:[%s1529 + $0xf0] sm:$0xf]
      %v1591 = vld [vmem:[%s1529 + $0xf4] sm:$0xf]
      %v1592 = vld [vmem:[%s1529 + $0xf8] sm:$0xf]
      %v1593 = vld [vmem:[%s1529 + $0xfc] sm:$0xf]
      %v1594 = vunpack.c.l.b16 %v1514
      %v1595 = vunpack.c.h.b16 %v1514
      %v1596 = vunpack.c.l.b16 %v1528
      %v1597 = vunpack.c.h.b16 %v1528
      %v1598 = vpack.c.b16 %v1190, %v1186
      %v1599 = vpack.c.b16 %v1191, %v1187
      %v1600 = vpack.c.b16 %v1192, %v1188
      %v1601 = vpack.c.b16 %v1193, %v1189
      %v1602 = vpack.c.b16 %v1594, %v1594
      %v1603 = vpack.c.b16 %v1595, %v1595
      %v1604 = vpack.c.b16 %v1596, %v1596
      %v1605 = vpack.c.b16 %v1597, %v1597
      %v1678 = vunpack.c.l.b16 %v1530
      %v1679 = vunpack.c.l.b16 %v1531
      %v1680 = vunpack.c.l.b16 %v1532
      %v1681 = vunpack.c.l.b16 %v1533
      %v1682 = vunpack.c.l.b16 %v1534
      %v1683 = vunpack.c.l.b16 %v1535
      %v1684 = vunpack.c.l.b16 %v1536
      %v1685 = vunpack.c.l.b16 %v1537
      %v1686 = vunpack.c.l.b16 %v1538
      %v1687 = vunpack.c.l.b16 %v1539
      %v1688 = vunpack.c.l.b16 %v1540
      %v1689 = vunpack.c.l.b16 %v1541
      %v1690 = vunpack.c.l.b16 %v1542
      %v1691 = vunpack.c.l.b16 %v1543
      %v1692 = vunpack.c.l.b16 %v1544
      %v1693 = vunpack.c.l.b16 %v1545
      %v1694 = vunpack.c.l.b16 %v1546
      %v1695 = vunpack.c.l.b16 %v1547
      %v1696 = vunpack.c.l.b16 %v1548
      %v1697 = vunpack.c.l.b16 %v1549
      %v1698 = vunpack.c.l.b16 %v1550
      %v1699 = vunpack.c.l.b16 %v1551
      %v1700 = vunpack.c.l.b16 %v1552
      %v1701 = vunpack.c.l.b16 %v1553
      %v1702 = vunpack.c.l.b16 %v1554
      %v1703 = vunpack.c.l.b16 %v1555
      %v1704 = vunpack.c.l.b16 %v1556
      %v1705 = vunpack.c.l.b16 %v1557
      %v1706 = vunpack.c.l.b16 %v1558
      %v1707 = vunpack.c.l.b16 %v1559
      %v1708 = vunpack.c.l.b16 %v1560
      %v1709 = vunpack.c.l.b16 %v1561
      %v1710 = vunpack.c.l.b16 %v1562
      %v1711 = vunpack.c.l.b16 %v1563
      %v1712 = vunpack.c.l.b16 %v1564
      %v1713 = vunpack.c.l.b16 %v1565
      %v1714 = vunpack.c.l.b16 %v1566
      %v1715 = vunpack.c.l.b16 %v1567
      %v1716 = vunpack.c.l.b16 %v1568
      %v1717 = vunpack.c.l.b16 %v1569
      %v1718 = vunpack.c.l.b16 %v1570
      %v1719 = vunpack.c.l.b16 %v1571
      %v1720 = vunpack.c.l.b16 %v1572
      %v1721 = vunpack.c.l.b16 %v1573
      %v1722 = vunpack.c.l.b16 %v1574
      %v1723 = vunpack.c.l.b16 %v1575
      %v1724 = vunpack.c.l.b16 %v1576
      %v1725 = vunpack.c.l.b16 %v1577
      %v1726 = vunpack.c.l.b16 %v1578
      %v1727 = vunpack.c.l.b16 %v1579
      %v1728 = vunpack.c.l.b16 %v1580
      %v1729 = vunpack.c.l.b16 %v1581
      %v1730 = vunpack.c.l.b16 %v1582
      %v1731 = vunpack.c.l.b16 %v1583
      %v1732 = vunpack.c.l.b16 %v1584
      %v1733 = vunpack.c.l.b16 %v1585
      %v1734 = vunpack.c.l.b16 %v1586
      %v1735 = vunpack.c.l.b16 %v1587
      %v1736 = vunpack.c.l.b16 %v1588
      %v1737 = vunpack.c.l.b16 %v1589
      %v1738 = vunpack.c.l.b16 %v1590
      %v1739 = vunpack.c.l.b16 %v1591
      %v1740 = vunpack.c.l.b16 %v1592
      %v1741 = vunpack.c.l.b16 %v1593
      %v1742 = vpack.c.b16 %v1679, %v1678
      %v1743 = vpack.c.b16 %v1681, %v1680
      %v1744 = vpack.c.b16 %v1683, %v1682
      %v1745 = vpack.c.b16 %v1685, %v1684
      %v1746 = vpack.c.b16 %v1687, %v1686
      %v1747 = vpack.c.b16 %v1689, %v1688
      %v1748 = vpack.c.b16 %v1691, %v1690
      %v1749 = vpack.c.b16 %v1693, %v1692
      %v1750 = vpack.c.b16 %v1695, %v1694
      %v1751 = vpack.c.b16 %v1697, %v1696
      %v1752 = vpack.c.b16 %v1699, %v1698
      %v1753 = vpack.c.b16 %v1701, %v1700
      %v1754 = vpack.c.b16 %v1703, %v1702
      %v1755 = vpack.c.b16 %v1705, %v1704
      %v1756 = vpack.c.b16 %v1707, %v1706
      %v1757 = vpack.c.b16 %v1709, %v1708
      %v1758 = vpack.c.b16 %v1711, %v1710
      %v1759 = vpack.c.b16 %v1713, %v1712
      %v1760 = vpack.c.b16 %v1715, %v1714
      %v1761 = vpack.c.b16 %v1717, %v1716
      %v1762 = vpack.c.b16 %v1719, %v1718
      %v1763 = vpack.c.b16 %v1721, %v1720
      %v1764 = vpack.c.b16 %v1723, %v1722
      %v1765 = vpack.c.b16 %v1725, %v1724
      %v1766 = vpack.c.b16 %v1727, %v1726
      %v1767 = vpack.c.b16 %v1729, %v1728
      %v1768 = vpack.c.b16 %v1731, %v1730
      %v1769 = vpack.c.b16 %v1733, %v1732
      %v1770 = vpack.c.b16 %v1735, %v1734
      %v1771 = vpack.c.b16 %v1737, %v1736
      %v1772 = vpack.c.b16 %v1739, %v1738
      %v1773 = vpack.c.b16 %v1741, %v1740
      %1806 = vmatprep.subr.bf16.mxu0 0
      %1807 = vmatpush1.bf16.msra.mxu0 %v1742
      %1808 = vmatprep.subr.bf16.mxu0 0
      %1809 = vmatpush1.bf16.msra.mxu0 %v1743
      %1810 = vmatprep.subr.bf16.mxu0 0
      %1811 = vmatpush1.bf16.msra.mxu0 %v1744
      %1812 = vmatprep.subr.bf16.mxu0 0
      %1813 = vmatpush1.bf16.msra.mxu0 %v1745
      %1814 = vmatprep.subr.bf16.mxu0 0
      %1815 = vmatpush1.bf16.msra.mxu0 %v1746
      %1816 = vmatprep.subr.bf16.mxu0 0
      %1817 = vmatpush1.bf16.msra.mxu0 %v1747
      %1818 = vmatprep.subr.bf16.mxu0 0
      %1819 = vmatpush1.bf16.msra.mxu0 %v1748
      %1820 = vmatprep.subr.bf16.mxu0 0
      %1821 = vmatpush1.bf16.msra.mxu0 %v1749
      %1822 = vmatprep.subr.bf16.mxu0 0
      %1823 = vmatpush1.bf16.msra.mxu0 %v1750
      %1824 = vmatprep.subr.bf16.mxu0 0
      %1825 = vmatpush1.bf16.msra.mxu0 %v1751
      %1826 = vmatprep.subr.bf16.mxu0 0
      %1827 = vmatpush1.bf16.msra.mxu0 %v1752
      %1828 = vmatprep.subr.bf16.mxu0 0
      %1829 = vmatpush1.bf16.msra.mxu0 %v1753
      %1830 = vmatprep.subr.bf16.mxu0 0
      %1831 = vmatpush1.bf16.msra.mxu0 %v1754
      %1832 = vmatprep.subr.bf16.mxu0 0
      %1833 = vmatpush1.bf16.msra.mxu0 %v1755
      %1834 = vmatprep.subr.bf16.mxu0 0
      %1835 = vmatpush1.bf16.msra.mxu0 %v1756
      %1836 = vmatprep.subr.bf16.mxu0 0
      %1837 = vmatpush1.bf16.msra.mxu0 %v1757
      %1838 = vmatprep.mubr.bf16.mxu0 %v1599
      %1839 = vmatmul.mubr.bf16.gmra.mrb[0].mxu0 %v1598
      %v1840 = vpop.f32.mrb[0].mxu0
      %v1841 = vadd.f32 0.0, %v1840
      %v1842 = vpop.f32.mrb[0].mxu0
      %v1843 = vpop.f32.mrb[0].mxu0
      %v1844 = vadd.f32 0.0, %v1843
      %v1845 = vpop.f32.mrb[0].mxu0
      %1846 = vmatprep.mubr.bf16.mxu0 %v1603
      %1847 = vmatmul.mubr.bf16.gmra.mrb[0].mxu0 %v1602
      %v1848 = vpop.f32.mrb[0].mxu0
      %v1849 = vadd.f32 0.0, %v1848
      %v1850 = vpop.f32.mrb[0].mxu0
      %v1851 = vpop.f32.mrb[0].mxu0
      %v1852 = vpop.f32.mrb[0].mxu0
      %1853 = vdwg.mxu0
      %1854 = vmatprep.subr.bf16.mxu0 0
      %1855 = vmatpush1.bf16.msra.mxu0 %v1758
      %1856 = vmatprep.subr.bf16.mxu0 0
      %1857 = vmatpush1.bf16.msra.mxu0 %v1759
      %1858 = vmatprep.subr.bf16.mxu0 0
      %1859 = vmatpush1.bf16.msra.mxu0 %v1760
      %1860 = vmatprep.subr.bf16.mxu0 0
      %1861 = vmatpush1.bf16.msra.mxu0 %v1761
      %1862 = vmatprep.subr.bf16.mxu0 0
      %1863 = vmatpush1.bf16.msra.mxu0 %v1762
      %1864 = vmatprep.subr.bf16.mxu0 0
      %1865 = vmatpush1.bf16.msra.mxu0 %v1763
      %1866 = vmatprep.subr.bf16.mxu0 0
      %1867 = vmatpush1.bf16.msra.mxu0 %v1764
      %1868 = vmatprep.subr.bf16.mxu0 0
      %1869 = vmatpush1.bf16.msra.mxu0 %v1765
      %1870 = vmatprep.subr.bf16.mxu0 0
      %1871 = vmatpush1.bf16.msra.mxu0 %v1766
      %1872 = vmatprep.subr.bf16.mxu0 0
      %1873 = vmatpush1.bf16.msra.mxu0 %v1767
      %1874 = vmatprep.subr.bf16.mxu0 0
      %1875 = vmatpush1.bf16.msra.mxu0 %v1768
      %1876 = vmatprep.subr.bf16.mxu0 0
      %1877 = vmatpush1.bf16.msra.mxu0 %v1769
      %1878 = vmatprep.subr.bf16.mxu0 0
      %1879 = vmatpush1.bf16.msra.mxu0 %v1770
      %1880 = vmatprep.subr.bf16.mxu0 0
      %1881 = vmatpush1.bf16.msra.mxu0 %v1771
      %1882 = vmatprep.subr.bf16.mxu0 0
      %1883 = vmatpush1.bf16.msra.mxu0 %v1772
      %1884 = vmatprep.subr.bf16.mxu0 0
      %1885 = vmatpush1.bf16.msra.mxu0 %v1773
      %1886 = vmatprep.mubr.bf16.mxu0 %v1601
      %1887 = vmatmul.mubr.bf16.gmra.mrb[0].mxu0 %v1600
      %v1888 = vpop.f32.mrb[0].mxu0
      %v1889 = vadd.f32 %v1841, %v1888
      %v1890 = vpop.f32.mrb[0].mxu0
      %v1891 = vpop.f32.mrb[0].mxu0
      %v1892 = vadd.f32 %v1844, %v1891
      %v1893 = vpop.f32.mrb[0].mxu0
      %1894 = vmatprep.mubr.bf16.mxu0 %v1605
      %1895 = vmatmul.mubr.bf16.gmra.mrb[0].mxu0 %v1604
      %v1896 = vpop.f32.mrb[0].mxu0
      %v1897 = vadd.f32 %v1849, %v1896
      %v1898 = vpop.f32.mrb[0].mxu0
      %v1899 = vpop.f32.mrb[0].mxu0
      %v1900 = vpop.f32.mrb[0].mxu0
      %1901 = vdwg.mxu0
      %v1902 = vadd.f32 %v1498, %v1889
      %v1903 = vadd.f32 %v1499, %v1892
      %v1904 = vadd.f32 %v1500, %v1897
      %v1905 = vld [vmem:[%s226] sm:$0x1]
      %v1907 = vlaneseq
      %v1908 = vshrl.u32 %v1907, 7
      %v1909 = vsub.s32 0, %v1908
      %v1910 = vrot.slane %v1905, %v1909
      %v1912 = vadd.f32 %v1902, %v1910
      %v1913 = vadd.f32 %v1903, %v1910
      %v1914 = vadd.f32 %v1904, %v1910
      %vm1915 = vcmp.gt.f32.partialorder %v1912, 0.0
      %vm1916 = vcmp.gt.f32.partialorder %v1913, 0.0
      %vm1917 = vcmp.gt.f32.partialorder %v1914, 0.0
      %v1918 = vmul.f32 %v1912, 0.2
      %v1919 = vmul.f32 %v1913, 0.2
      %v1920 = vmul.f32 %v1914, 0.2
      %v1921 = vsel %vm1915, %v1912, %v1918
      %v1922 = vsel %vm1916, %v1913, %v1919
      %v1923 = vsel %vm1917, %v1914, %v1920
      %v1924 = vlaneseq
      %v1925 = vshrl.u32 %v1924, 7
      %vm1926 = vcmp.lt.s32.totalorder %v1925, 3
      %v1927 = vsel %vm1926, 1, 0
      %vm1928 = vcmp.eq.s32.totalorder %v1927, 1
      %v1929 = vsel %vm1928, %v1921, 0.0
      %v1930 = vsel %vm1928, %v1922, 0.0
      %v1931 = vsel %vm1928, %v1923, 0.0
      %v1932 = vpack.c.bf16 %v1929, %v1929
      %v1933 = vpack.c.bf16 %v1930, %v1930
      %v1934 = vpack.c.bf16 %v1931, %v1931
      %1935 = vst [vmem:[%s238] sm:$0xf] %v1932
      %1936 = vst [vmem:[%s238 + $0x4] sm:$0xf] %v1933
      %1937 = vst [vmem:[%s238 + $0x8] sm:$0xf] %v1934
      %s1938 = smul.u32 3, %s20
      %p1939 = scmp.lt.s32.totalorder %s19, 1
      %s1940 = scalar_select %p1939, %s19, 1
      %p1941 = scmp.lt.s32.totalorder %s1938, 2
      %s1942 = scalar_select %p1941, %s1938, 2
      %p1943 = scmp.lt.s32.totalorder %s21, 0
      %s1944 = scalar_select %p1943, %s21, 0
      %s1945 = sadd.s32 %s1944, %s1942
      %s1946 = smul.addr %s1940, 3
      %s1947 = sadd.s32 %s1945, %s1946
      %s1948 = smul.addr %s1947, 4
      %s1949 = scalar_lea.vmem %s3, %s1948
      // Predicated region
      $region33: #{_lambda_.7} parent=31 // pred_check
        %p1950 = pneg %p133
      $region34: #{_lambda_.7} parent=31 // pred_check_branch
        %1952 = sbr.rel (%p1950) target = $region36
      $region35: #{_lambda_.7} parent=31 // pred_region
        %s1953 = smul.u32 3, %s20
      $region36: #{_lambda_.7} parent=31 // pred_fallthru
        _
    $region32: #{_lambda_.7} parent=5 // pred_fallthru
      _
    %p1954 = scmp.le.s32.totalorder 2, %s9
    // Predicated region
    $region37: #{_lambda_.7} parent=5 // pred_check
      %p1955 = pneg %p1954
    $region38: #{_lambda_.7} parent=5 // pred_check_branch
      %1957 = sbr.rel (%p1955) target = $region40
    $region39: #{_lambda_.7} parent=5 // pred_region
      %s1958 = ssub.s32 %s9, 2
      // Predicated region
      $region41: #{_lambda_.7} parent=39 // pred_check
        %p1959 = pneg %p139
      $region42: #{_lambda_.7} parent=39 // pred_check_branch
        %1961 = sbr.rel (%p1959) target = $region44
      $region43: #{_lambda_.7} parent=39 // pred_region
        %s1962 = smul.u32 3, %s23
        %p1963 = scmp.lt.s32.totalorder %s22, 1
        %s1964 = scalar_select %p1963, %s22, 1
        %p1965 = scmp.lt.s32.totalorder %s1962, 2
        %s1966 = scalar_select %p1965, %s1962, 2
        %p1967 = scmp.lt.s32.totalorder %s24, 0
        %s1968 = scalar_select %p1967, %s24, 0
        %s1969 = sadd.s32 %s1968, %s1966
        %s1970 = smul.addr %s1964, 3
        %s1971 = sadd.s32 %s1969, %s1970
        %s1972 = smul.addr %s1971, 4
        %s1973 = scalar_lea.vmem %s3, %s1972
      $region44: #{_lambda_.7} parent=39 // pred_fallthru
        _
    $region40: #{_lambda_.7} parent=5 // pred_fallthru
      _
  $region6: #{_lambda_.7} parent=0 // loop_footer
    %s13 = sadd.s32 1, %s9
  $region7: #{_lambda_.7} parent=0 // loop_footer_branch
    %8 = sbr.rel target = $region3
  $region8: #{_lambda_.7} parent=0 // loop_exit
    _

// kernel: _lambda_.8
$region0: #{_lambda_.8}
  #allocation0 [shape = 'u32[]', space=smem, size = 0x4, offset = 0x4, fixed_abs, tag = 'smem constant byte address 0x4 - core index']
  #allocation1 [shape = 'u32[144,128]{1,0:T(1,128)}', space=vmem, size = 0x12000, scoped, tag = 'internal scratch']
  %s0 = inlined_call_operand.vmem [shape: bf16[2,7,11,128], index: 0, kind: input, shape index: {}]
  %s1 = inlined_call_operand.vmem [shape: bf16[4,4,128,128], index: 1, kind: input, shape index: {}]
  %s2 = inlined_call_operand.vmem [shape: f32[1,128], index: 2, kind: input, shape index: {}]
  %s3 = inlined_call_operand.vmem [shape: bf16[2,4,8,128], index: 3, kind: output, shape index: {}]
  %s4 = sld [smem:[#allocation0]]
  $region45: #{_lambda_.8} parent=0
    _
  %s6 = ssub.s32 1, %s4
  %s7 = scalar_select 0, %s6, %s4
  loop: start=0, step=1, limit=4
  $region2: #{_lambda_.8} parent=0 // loop_pre_header
    _
  $region3: #{_lambda_.8} parent=0 // loop_header
    %s9 = sphi 0, %s13
    %p10 = scmp.ge.s32.totalorder %s9, 4
    %s16 = sphi 0, %s35
    %s17 = sphi 0, %s31
    %s18 = sphi 0, %s27
    %s19 = sphi 0, %s16
    %s20 = sphi 0, %s17
    %s21 = sphi 0, %s18
    %s22 = sphi 0, %s19
    %s23 = sphi 0, %s20
    %s24 = sphi 0, %s21
    %s38 = sphi 0, %s40
    %s41 = sphi 0, %s38
    %s42 = sphi 0, %s41
    %s58 = sphi 0, %s42
    %s64 = sphi 0, %s66
    %s67 = sphi 0, %s64
    %s68 = sphi 0, %s67
    %s84 = sphi 0, %s68
    %s90 = sphi 0, %s92
    %s93 = sphi 0, %s90
    %s94 = sphi 0, %s93
    %s110 = sphi 0, %s94
    %s120 = sphi 0, %s122
    %s123 = sphi 0, %s120
    %s124 = sphi 0, %s123
    %s140 = sphi 0, %s124
  $region4: #{_lambda_.8} parent=0 // loop_header_branch
    %12 = sbr.rel (%p10) target = $region8
  $region5: #{_lambda_.8} parent=0 // loop_body
    %s14 = ssub.s32 %s9, 1
    %s15 = ssub.s32 %s9, 2
    %s25 = sadd.s32 1, %s18
    %p26 = scmp.ge.s32.totalorder %s25, 1
    %s27 = scalar_select %p26, 0, %s25
    %s28 = sadd.s32 1, %s17
    %s29 = scalar_select %p26, %s28, %s17
    %p30 = scmp.ge.s32.totalorder %s29, 1
    %s31 = scalar_select %p30, 0, %s29
    %s32 = sadd.s32 1, %s16
    %s33 = scalar_select %p30, %s32, %s16
    %p34 = scmp.ge.s32.totalorder %s33, 2
    %s35 = scalar_select %p34, 0, %s33
    %s36 = ssub.s32 %s16, %s35
    %p37 = scmp.eq.s32.totalorder %s36, 0
    %s39 = sadd.s32 %s38, 1
    %s40 = scalar_select %p37, %s38, %s39
    %p43 = pneg %p37
    %p44 = scmp.eq.s32.totalorder %s9, 1
    %p45 = por %p43, %p44
    %p46 = scmp.ne.s32.totalorder %s38, %s41
    %p47 = scmp.eq.s32.totalorder %s9, 0
    %p48 = por %p46, %p47
    %p49 = scmp.ne.s32.totalorder %s38, %s41
    %p50 = scmp.eq.s32.totalorder %s14, 1
    %p51 = por %p49, %p50
    %p52 = scmp.ne.s32.totalorder %s41, %s42
    %p53 = scmp.eq.s32.totalorder %s14, 0
    %p54 = por %p52, %p53
    %p55 = scmp.ne.s32.totalorder %s41, %s42
    %p56 = scmp.eq.s32.totalorder %s15, 1
    %p57 = por %p55, %p56
    %p59 = scmp.ne.s32.totalorder %s42, %s58
    %p60 = scmp.eq.s32.totalorder %s15, 0
    %p61 = por %p59, %p60
    %s62 = ssub.s32 %s18, %s27
    %p63 = scmp.eq.s32.totalorder %s62, 0
    %s65 = sadd.s32 %s64, 1
    %s66 = scalar_select %p63, %s64, %s65
    %p69 = pneg %p63
    %p70 = scmp.eq.s32.totalorder %s9, 1
    %p71 = por %p69, %p70
    %p72 = scmp.ne.s32.totalorder %s64, %s67
    %p73 = scmp.eq.s32.totalorder %s9, 0
    %p74 = por %p72, %p73
    %p75 = scmp.ne.s32.totalorder %s64, %s67
    %p76 = scmp.eq.s32.totalorder %s14, 1
    %p77 = por %p75, %p76
    %p78 = scmp.ne.s32.totalorder %s67, %s68
    %p79 = scmp.eq.s32.totalorder %s14, 0
    %p80 = por %p78, %p79
    %p81 = scmp.ne.s32.totalorder %s67, %s68
    %p82 = scmp.eq.s32.totalorder %s15, 1
    %p83 = por %p81, %p82
    %p85 = scmp.ne.s32.totalorder %s68, %s84
    %p86 = scmp.eq.s32.totalorder %s15, 0
    %p87 = por %p85, %p86
    %s88 = ssub.s32 %s18, %s27
    %p89 = scmp.eq.s32.totalorder %s88, 0
    %s91 = sadd.s32 %s90, 1
    %s92 = scalar_select %p89, %s90, %s91
    %p95 = pneg %p89
    %p96 = scmp.eq.s32.totalorder %s9, 1
    %p97 = por %p95, %p96
    %p98 = scmp.ne.s32.totalorder %s90, %s93
    %p99 = scmp.eq.s32.totalorder %s9, 0
    %p100 = por %p98, %p99
    %p101 = scmp.ne.s32.totalorder %s90, %s93
    %p102 = scmp.eq.s32.totalorder %s14, 1
    %p103 = por %p101, %p102
    %p104 = scmp.ne.s32.totalorder %s93, %s94
    %p105 = scmp.eq.s32.totalorder %s14, 0
    %p106 = por %p104, %p105
    %p107 = scmp.ne.s32.totalorder %s93, %s94
    %p108 = scmp.eq.s32.totalorder %s15, 1
    %p109 = por %p107, %p108
    %p111 = scmp.ne.s32.totalorder %s94, %s110
    %p112 = scmp.eq.s32.totalorder %s15, 0
    %p113 = por %p111, %p112
    %s114 = ssub.s32 %s16, %s35
    %s115 = ssub.s32 %s17, %s31
    %s116 = sor.u32 %s114, %s115
    %s117 = ssub.s32 %s18, %s27
    %s118 = sor.u32 %s116, %s117
    %p119 = scmp.eq.s32.totalorder %s118, 0
    %s121 = sadd.s32 %s120, 1
    %s122 = scalar_select %p119, %s120, %s121
    %p125 = pneg %p119
    %p126 = scmp.eq.s32.totalorder %s9, 1
    %p127 = por %p125, %p126
    %p128 = scmp.ne.s32.totalorder %s120, %s123
    %p129 = scmp.eq.s32.totalorder %s9, 0
    %p130 = por %p128, %p129
    %p131 = scmp.ne.s32.totalorder %s120, %s123
    %p132 = scmp.eq.s32.totalorder %s14, 1
    %p133 = por %p131, %p132
    %p134 = scmp.ne.s32.totalorder %s123, %s124
    %p135 = scmp.eq.s32.totalorder %s14, 0
    %p136 = por %p134, %p135
    %p137 = scmp.ne.s32.totalorder %s123, %s124
    %p138 = scmp.eq.s32.totalorder %s15, 1
    %p139 = por %p137, %p138
    %p141 = scmp.ne.s32.totalorder %s124, %s140
    %p142 = scmp.eq.s32.totalorder %s15, 0
    %p143 = por %p141, %p142
    %p144 = scmp.le.s32.totalorder 1, %s9
    %p145 = scmp.lt.s32.totalorder %s9, 3
    %p146 = pnand %p144, %p145
    %p147 = pneg %p146
    // Predicated region
    $region9: #{_lambda_.8} parent=5 // pred_check
      _
    $region10: #{_lambda_.8} parent=5 // pred_check_branch
      %149 = sbr.rel (%p146) target = $region12
    $region11: #{_lambda_.8} parent=5 // pred_region
      %s150 = ssub.s32 %s9, 1
      // Predicated region
      $region13: #{_lambda_.8} parent=11 // pred_check
        %p151 = pneg %p80
      $region14: #{_lambda_.8} parent=11 // pred_check_branch
        %153 = sbr.rel (%p151) target = $region16
      $region15: #{_lambda_.8} parent=11 // pred_region
        %p154 = scmp.lt.s32.totalorder %s21, 0
        %s155 = scalar_select %p154, %s21, 0
        %s156 = smul.addr %s155, 4
        %s157 = scalar_lea.vmem %s1, %s156
      $region16: #{_lambda_.8} parent=11 // pred_fallthru
        _
      // Predicated region
      $region17: #{_lambda_.8} parent=11 // pred_check
        %p158 = pneg %p106
      $region18: #{_lambda_.8} parent=11 // pred_check_branch
        %160 = sbr.rel (%p158) target = $region20
      $region19: #{_lambda_.8} parent=11 // pred_region
        %p161 = scmp.lt.s32.totalorder %s21, 0
        %s162 = scalar_select %p161, %s21, 0
        %s163 = scalar_lea.vmem %s2, %s162
      $region20: #{_lambda_.8} parent=11 // pred_fallthru
        _
    $region12: #{_lambda_.8} parent=5 // pred_fallthru
      _
    %p164 = scmp.lt.s32.totalorder %s9, 2
    // Predicated region
    $region21: #{_lambda_.8} parent=5 // pred_check
      %p165 = pneg %p164
    $region22: #{_lambda_.8} parent=5 // pred_check_branch
      %167 = sbr.rel (%p165) target = $region24
    $region23: #{_lambda_.8} parent=5 // pred_region
      // Predicated region
      $region25: #{_lambda_.8} parent=23 // pred_check
        %p168 = pneg %p48
      $region26: #{_lambda_.8} parent=23 // pred_check_branch
        %170 = sbr.rel (%p168) target = $region28
      $region27: #{_lambda_.8} parent=23 // pred_region
        %p171 = scmp.lt.s32.totalorder %s16, 1
        %s172 = scalar_select %p171, %s16, 1
        %s173 = smul.addr %s172, 14
        %s174 = smul.addr %s173, 4
        %s175 = scalar_lea.vmem %s0, %s174
      $region28: #{_lambda_.8} parent=23 // pred_fallthru
        _
    $region24: #{_lambda_.8} parent=5 // pred_fallthru
      _
    %p176 = scmp.le.s32.totalorder 1, %s9
    %p177 = scmp.lt.s32.totalorder %s9, 3
    %p178 = pnand %p176, %p177
    %p179 = pneg %p178
    // Predicated region
    $region29: #{_lambda_.8} parent=5 // pred_check
      _
    $region30: #{_lambda_.8} parent=5 // pred_check_branch
      %181 = sbr.rel (%p178) target = $region32
    $region31: #{_lambda_.8} parent=5 // pred_region
      %s182 = ssub.s32 %s9, 1
      %p183 = scmp.lt.s32.totalorder %s19, 1
      %s184 = scalar_select %p183, %s19, 1
      %s185 = smul.addr %s184, 14
      %s186 = smul.addr %s185, 4
      %s187 = scalar_lea.vmem %s0, %s186
      %p188 = pneg %p54
      %p189 = pneg %p51
      %p190 = scmp.lt.s32.totalorder %s21, 0
      %s191 = scalar_select %p190, %s21, 0
      %s192 = smul.addr %s191, 4
      %s193 = scalar_lea.vmem %s1, %s192
      %p194 = pneg %p80
      %p195 = pneg %p77
      %p196 = scmp.lt.s32.totalorder %s21, 0
      %s197 = scalar_select %p196, %s21, 0
      %s198 = scalar_lea.vmem %s2, %s197
      %p199 = pneg %p106
      %p200 = pneg %p103
      %p201 = pneg %p136
      %p202 = pneg %p133
      %s203 = smul.u32 4, %s20
      %p204 = scmp.lt.s32.totalorder %s19, 1
      %s205 = scalar_select %p204, %s19, 1
      %p206 = scmp.lt.s32.totalorder %s203, 3
      %s207 = scalar_select %p206, %s203, 3
      %p208 = scmp.lt.s32.totalorder %s21, 0
      %s209 = scalar_select %p208, %s21, 0
      %s210 = sadd.s32 %s209, %s207
      %s211 = smul.addr %s205, 4
      %s212 = sadd.s32 %s210, %s211
      %s213 = smul.addr %s212, 4
      %s214 = scalar_lea.vmem %s3, %s213
      %p215 = scmp.lt.s32.totalorder %s19, 1
      %s216 = scalar_select %p215, %s19, 1
      %s217 = smul.addr %s216, 14
      %s218 = smul.addr %s217, 4
      %s219 = scalar_lea.vmem %s0, %s218
      %p220 = scmp.lt.s32.totalorder %s21, 0
      %s221 = scalar_select %p220, %s21, 0
      %s222 = smul.addr %s221, 4
      %s223 = scalar_lea.vmem %s1, %s222
      %p224 = scmp.lt.s32.totalorder %s21, 0
      %s225 = scalar_select %p224, %s21, 0
      %s226 = scalar_lea.vmem %s2, %s225
      %s227 = smul.u32 4, %s20
      %p228 = scmp.lt.s32.totalorder %s19, 1
      %s229 = scalar_select %p228, %s19, 1
      %p230 = scmp.lt.s32.totalorder %s227, 3
      %s231 = scalar_select %p230, %s227, 3
      %p232 = scmp.lt.s32.totalorder %s21, 0
      %s233 = scalar_select %p232, %s21, 0
      %s234 = sadd.s32 %s233, %s231
      %s235 = smul.addr %s229, 4
      %s236 = sadd.s32 %s234, %s235
      %s237 = smul.addr %s236, 4
      %s238 = scalar_lea.vmem %s3, %s237
      %s239 = smul.u32 4, %s20
      %s241 = smul.u32 %s20, 4
      %s242 = smul.u32 %s241, 2
      %s243 = smul.addr %s242, 4
      %s244 = scalar_lea.vmem %s219, %s243
      %v245 = vld [vmem:[%s244] sm:$0xf]
      %v246 = vld [vmem:[%s244 + $0x8] sm:$0xf]
      %v247 = vld [vmem:[%s244 + $0x10] sm:$0xf]
      %v248 = vld [vmem:[%s244 + $0x18] sm:$0xf]
      %v249 = vld [vmem:[%s244 + $0x20] sm:$0xf]
      %v250 = vld [vmem:[%s244 + $0x28] sm:$0xf]
      %v251 = vld [vmem:[%s244 + $0x30] sm:$0xf]
      %v252 = vld [vmem:[%s223] sm:$0xf]
      %v253 = vld [vmem:[%s223 + $0x4] sm:$0xf]
      %v254 = vld [vmem:[%s223 + $0x8] sm:$0xf]
      %v255 = vld [vmem:[%s223 + $0xc] sm:$0xf]
      %v256 = vld [vmem:[%s223 + $0x10] sm:$0xf]
      %v257 = vld [vmem:[%s223 + $0x14] sm:$0xf]
      %v258 = vld [vmem:[%s223 + $0x18] sm:$0xf]
      %v259 = vld [vmem:[%s223 + $0x1c] sm:$0xf]
      %v260 = vld [vmem:[%s223 + $0x20] sm:$0xf]
      %v261 = vld [vmem:[%s223 + $0x24] sm:$0xf]
      %v262 = vld [vmem:[%s223 + $0x28] sm:$0xf]
      %v263 = vld [vmem:[%s223 + $0x2c] sm:$0xf]
      %v264 = vld [vmem:[%s223 + $0x30] sm:$0xf]
      %v265 = vld [vmem:[%s223 + $0x34] sm:$0xf]
      %v266 = vld [vmem:[%s223 + $0x38] sm:$0xf]
      %v267 = vld [vmem:[%s223 + $0x3c] sm:$0xf]
      %s268 = scalar_lea.vmem %s223, 256
      %v269 = vld [vmem:[%s268] sm:$0xf]
      %v270 = vld [vmem:[%s268 + $0x4] sm:$0xf]
      %v271 = vld [vmem:[%s268 + $0x8] sm:$0xf]
      %v272 = vld [vmem:[%s268 + $0xc] sm:$0xf]
      %v273 = vld [vmem:[%s268 + $0x10] sm:$0xf]
      %v274 = vld [vmem:[%s268 + $0x14] sm:$0xf]
      %v275 = vld [vmem:[%s268 + $0x18] sm:$0xf]
      %v276 = vld [vmem:[%s268 + $0x1c] sm:$0xf]
      %v277 = vld [vmem:[%s268 + $0x20] sm:$0xf]
      %v278 = vld [vmem:[%s268 + $0x24] sm:$0xf]
      %v279 = vld [vmem:[%s268 + $0x28] sm:$0xf]
      %v280 = vld [vmem:[%s268 + $0x2c] sm:$0xf]
      %v281 = vld [vmem:[%s268 + $0x30] sm:$0xf]
      %v282 = vld [vmem:[%s268 + $0x34] sm:$0xf]
      %v283 = vld [vmem:[%s268 + $0x38] sm:$0xf]
      %v284 = vld [vmem:[%s268 + $0x3c] sm:$0xf]
      %v289 = vunpack.c.l.b16 %v246
      %v290 = vunpack.c.l.b16 %v247
      %v291 = vunpack.c.l.b16 %v248
      %v292 = vunpack.c.l.b16 %v249
      %v293 = vpack.c.b16 %v290, %v289
      %v294 = vpack.c.b16 %v292, %v291
      %v313 = vunpack.c.l.b16 %v269
      %v314 = vunpack.c.l.b16 %v270
      %v315 = vunpack.c.l.b16 %v271
      %v316 = vunpack.c.l.b16 %v272
      %v317 = vunpack.c.l.b16 %v273
      %v318 = vunpack.c.l.b16 %v274
      %v319 = vunpack.c.l.b16 %v275
      %v320 = vunpack.c.l.b16 %v276
      %v321 = vunpack.c.l.b16 %v277
      %v322 = vunpack.c.l.b16 %v278
      %v323 = vunpack.c.l.b16 %v279
      %v324 = vunpack.c.l.b16 %v280
      %v325 = vunpack.c.l.b16 %v281
      %v326 = vunpack.c.l.b16 %v282
      %v327 = vunpack.c.l.b16 %v283
      %v328 = vunpack.c.l.b16 %v284
      %v329 = vpack.c.b16 %v314, %v313
      %v330 = vpack.c.b16 %v316, %v315
      %v331 = vpack.c.b16 %v318, %v317
      %v332 = vpack.c.b16 %v320, %v319
      %v333 = vpack.c.b16 %v322, %v321
      %v334 = vpack.c.b16 %v324, %v323
      %v335 = vpack.c.b16 %v326, %v325
      %v336 = vpack.c.b16 %v328, %v327
      %345 = vmatprep.subr.bf16.mxu0 0
      %346 = vmatpush1.bf16.msra.mxu0 %v329
      %347 = vmatprep.subr.bf16.mxu0 0
      %348 = vmatpush1.bf16.msra.mxu0 %v330
      %349 = vmatprep.subr.bf16.mxu0 0
      %350 = vmatpush1.bf16.msra.mxu0 %v331
      %351 = vmatprep.subr.bf16.mxu0 0
      %352 = vmatpush1.bf16.msra.mxu0 %v332
      %353 = vmatprep.subr.bf16.mxu0 0
      %354 = vmatpush1.bf16.msra.mxu0 %v333
      %355 = vmatprep.subr.bf16.mxu0 0
      %356 = vmatpush1.bf16.msra.mxu0 %v334
      %357 = vmatprep.subr.bf16.mxu0 0
      %358 = vmatpush1.bf16.msra.mxu0 %v335
      %359 = vmatprep.subr.bf16.mxu0 0
      %360 = vmatpush1.bf16.msra.mxu0 %v336
      %361 = vmatprep.subr.bf16.mxu0 0
      %362 = vmatpush1.bf16.msra.mxu0 0
      %363 = vmatprep.subr.bf16.mxu0 0
      %364 = vmatpush1.bf16.msra.mxu0 0
      %365 = vmatprep.subr.bf16.mxu0 0
      %366 = vmatpush1.bf16.msra.mxu0 0
      %367 = vmatprep.subr.bf16.mxu0 0
      %368 = vmatpush1.bf16.msra.mxu0 0
      %369 = vmatprep.subr.bf16.mxu0 0
      %370 = vmatpush1.bf16.msra.mxu0 0
      %371 = vmatprep.subr.bf16.mxu0 0
      %372 = vmatpush1.bf16.msra.mxu0 0
      %373 = vmatprep.subr.bf16.mxu0 0
      %374 = vmatpush1.bf16.msra.mxu0 0
      %375 = vmatprep.subr.bf16.mxu0 0
      %376 = vmatpush1.bf16.msra.mxu0 0
      %377 = vmatprep.mubr.bf16.mxu0 0
      %378 = vmatmul.mubr.bf16.gmra.mrb[0].mxu0 %v293
      %v379 = vpop.f32.mrb[0].mxu0
      %v380 = vadd.f32 0.0, %v379
      %v381 = vpop.f32.mrb[0].mxu0
      %v382 = vpop.f32.mrb[0].mxu0
      %v383 = vadd.f32 0.0, %v382
      %v384 = vpop.f32.mrb[0].mxu0
      %385 = vmatprep.mubr.bf16.mxu0 0
      %386 = vmatmul.mubr.bf16.gmra.mrb[0].mxu0 %v294
      %v387 = vpop.f32.mrb[0].mxu0
      %v388 = vadd.f32 0.0, %v387
      %v389 = vpop.f32.mrb[0].mxu0
      %v390 = vpop.f32.mrb[0].mxu0
      %v391 = vadd.f32 0.0, %v390
      %v392 = vpop.f32.mrb[0].mxu0
      %393 = vdwg.mxu0
      %v395 = vunpack.c.l.b16 %v245
      %v396 = vpack.c.b16 %v289, %v395
      %v397 = vpack.c.b16 %v291, %v290
      %v416 = vunpack.c.l.b16 %v252
      %v417 = vunpack.c.l.b16 %v253
      %v418 = vunpack.c.l.b16 %v254
      %v419 = vunpack.c.l.b16 %v255
      %v420 = vunpack.c.l.b16 %v256
      %v421 = vunpack.c.l.b16 %v257
      %v422 = vunpack.c.l.b16 %v258
      %v423 = vunpack.c.l.b16 %v259
      %v424 = vunpack.c.l.b16 %v260
      %v425 = vunpack.c.l.b16 %v261
      %v426 = vunpack.c.l.b16 %v262
      %v427 = vunpack.c.l.b16 %v263
      %v428 = vunpack.c.l.b16 %v264
      %v429 = vunpack.c.l.b16 %v265
      %v430 = vunpack.c.l.b16 %v266
      %v431 = vunpack.c.l.b16 %v267
      %v432 = vpack.c.b16 %v417, %v416
      %v433 = vpack.c.b16 %v419, %v418
      %v434 = vpack.c.b16 %v421, %v420
      %v435 = vpack.c.b16 %v423, %v422
      %v436 = vpack.c.b16 %v425, %v424
      %v437 = vpack.c.b16 %v427, %v426
      %v438 = vpack.c.b16 %v429, %v428
      %v439 = vpack.c.b16 %v431, %v430
      %448 = vmatprep.subr.bf16.mxu0 0
      %449 = vmatpush1.bf16.msra.mxu0 %v432
      %450 = vmatprep.subr.bf16.mxu0 0
      %451 = vmatpush1.bf16.msra.mxu0 %v433
      %452 = vmatprep.subr.bf16.mxu0 0
      %453 = vmatpush1.bf16.msra.mxu0 %v434
      %454 = vmatprep.subr.bf16.mxu0 0
      %455 = vmatpush1.bf16.msra.mxu0 %v435
      %456 = vmatprep.subr.bf16.mxu0 0
      %457 = vmatpush1.bf16.msra.mxu0 %v436
      %458 = vmatprep.subr.bf16.mxu0 0
      %459 = vmatpush1.bf16.msra.mxu0 %v437
      %460 = vmatprep.subr.bf16.mxu0 0
      %461 = vmatpush1.bf16.msra.mxu0 %v438
      %462 = vmatprep.subr.bf16.mxu0 0
      %463 = vmatpush1.bf16.msra.mxu0 %v439
      %464 = vmatprep.subr.bf16.mxu0 0
      %465 = vmatpush1.bf16.msra.mxu0 0
      %466 = vmatprep.subr.bf16.mxu0 0
      %467 = vmatpush1.bf16.msra.mxu0 0
      %468 = vmatprep.subr.bf16.mxu0 0
      %469 = vmatpush1.bf16.msra.mxu0 0
      %470 = vmatprep.subr.bf16.mxu0 0
      %471 = vmatpush1.bf16.msra.mxu0 0
      %472 = vmatprep.subr.bf16.mxu0 0
      %473 = vmatpush1.bf16.msra.mxu0 0
      %474 = vmatprep.subr.bf16.mxu0 0
      %475 = vmatpush1.bf16.msra.mxu0 0
      %476 = vmatprep.subr.bf16.mxu0 0
      %477 = vmatpush1.bf16.msra.mxu0 0
      %478 = vmatprep.subr.bf16.mxu0 0
      %479 = vmatpush1.bf16.msra.mxu0 0
      %480 = vmatprep.mubr.bf16.mxu0 0
      %481 = vmatmul.mubr.bf16.gmra.mrb[0].mxu0 %v396
      %v482 = vpop.f32.mrb[0].mxu0
      %v483 = vadd.f32 %v380, %v482
      %v484 = vpop.f32.mrb[0].mxu0
      %v485 = vpop.f32.mrb[0].mxu0
      %v486 = vadd.f32 %v383, %v485
      %v487 = vpop.f32.mrb[0].mxu0
      %488 = vmatprep.mubr.bf16.mxu0 0
      %489 = vmatmul.mubr.bf16.gmra.mrb[0].mxu0 %v397
      %v490 = vpop.f32.mrb[0].mxu0
      %v491 = vadd.f32 %v388, %v490
      %v492 = vpop.f32.mrb[0].mxu0
      %v493 = vpop.f32.mrb[0].mxu0
      %v494 = vadd.f32 %v391, %v493
      %v495 = vpop.f32.mrb[0].mxu0
      %496 = vdwg.mxu0
      %s497 = scalar_lea.vmem %s223, 512
      %v498 = vld [vmem:[%s497] sm:$0xf]
      %v499 = vld [vmem:[%s497 + $0x4] sm:$0xf]
      %v500 = vld [vmem:[%s497 + $0x8] sm:$0xf]
      %v501 = vld [vmem:[%s497 + $0xc] sm:$0xf]
      %v502 = vld [vmem:[%s497 + $0x10] sm:$0xf]
      %v503 = vld [vmem:[%s497 + $0x14] sm:$0xf]
      %v504 = vld [vmem:[%s497 + $0x18] sm:$0xf]
      %v505 = vld [vmem:[%s497 + $0x1c] sm:$0xf]
      %v506 = vld [vmem:[%s497 + $0x20] sm:$0xf]
      %v507 = vld [vmem:[%s497 + $0x24] sm:$0xf]
      %v508 = vld [vmem:[%s497 + $0x28] sm:$0xf]
      %v509 = vld [vmem:[%s497 + $0x2c] sm:$0xf]
      %v510 = vld [vmem:[%s497 + $0x30] sm:$0xf]
      %v511 = vld [vmem:[%s497 + $0x34] sm:$0xf]
      %v512 = vld [vmem:[%s497 + $0x38] sm:$0xf]
      %v513 = vld [vmem:[%s497 + $0x3c] sm:$0xf]
      %v515 = vunpack.c.l.b16 %v250
      %v516 = vpack.c.b16 %v515, %v292
      %v534 = vunpack.c.l.b16 %v498
      %v535 = vunpack.c.l.b16 %v499
      %v536 = vunpack.c.l.b16 %v500
      %v537 = vunpack.c.l.b16 %v501
      %v538 = vunpack.c.l.b16 %v502
      %v539 = vunpack.c.l.b16 %v503
      %v540 = vunpack.c.l.b16 %v504
      %v541 = vunpack.c.l.b16 %v505
      %v542 = vunpack.c.l.b16 %v506
      %v543 = vunpack.c.l.b16 %v507
      %v544 = vunpack.c.l.b16 %v508
      %v545 = vunpack.c.l.b16 %v509
      %v546 = vunpack.c.l.b16 %v510
      %v547 = vunpack.c.l.b16 %v511
      %v548 = vunpack.c.l.b16 %v512
      %v549 = vunpack.c.l.b16 %v513
      %v550 = vpack.c.b16 %v535, %v534
      %v551 = vpack.c.b16 %v537, %v536
      %v552 = vpack.c.b16 %v539, %v538
      %v553 = vpack.c.b16 %v541, %v540
      %v554 = vpack.c.b16 %v543, %v542
      %v555 = vpack.c.b16 %v545, %v544
      %v556 = vpack.c.b16 %v547, %v546
      %v557 = vpack.c.b16 %v549, %v548
      %566 = vmatprep.subr.bf16.mxu0 0
      %567 = vmatpush1.bf16.msra.mxu0 %v550
      %568 = vmatprep.subr.bf16.mxu0 0
      %569 = vmatpush1.bf16.msra.mxu0 %v551
      %570 = vmatprep.subr.bf16.mxu0 0
      %571 = vmatpush1.bf16.msra.mxu0 %v552
      %572 = vmatprep.subr.bf16.mxu0 0
      %573 = vmatpush1.bf16.msra.mxu0 %v553
      %574 = vmatprep.subr.bf16.mxu0 0
      %575 = vmatpush1.bf16.msra.mxu0 %v554
      %576 = vmatprep.subr.bf16.mxu0 0
      %577 = vmatpush1.bf16.msra.mxu0 %v555
      %578 = vmatprep.subr.bf16.mxu0 0
      %579 = vmatpush1.bf16.msra.mxu0 %v556
      %580 = vmatprep.subr.bf16.mxu0 0
      %581 = vmatpush1.bf16.msra.mxu0 %v557
      %582 = vmatprep.subr.bf16.mxu0 0
      %583 = vmatpush1.bf16.msra.mxu0 0
      %584 = vmatprep.subr.bf16.mxu0 0
      %585 = vmatpush1.bf16.msra.mxu0 0
      %586 = vmatprep.subr.bf16.mxu0 0
      %587 = vmatpush1.bf16.msra.mxu0 0
      %588 = vmatprep.subr.bf16.mxu0 0
      %589 = vmatpush1.bf16.msra.mxu0 0
      %590 = vmatprep.subr.bf16.mxu0 0
      %591 = vmatpush1.bf16.msra.mxu0 0
      %592 = vmatprep.subr.bf16.mxu0 0
      %593 = vmatpush1.bf16.msra.mxu0 0
      %594 = vmatprep.subr.bf16.mxu0 0
      %595 = vmatpush1.bf16.msra.mxu0 0
      %596 = vmatprep.subr.bf16.mxu0 0
      %597 = vmatpush1.bf16.msra.mxu0 0
      %598 = vmatprep.mubr.bf16.mxu0 0
      %599 = vmatmul.mubr.bf16.gmra.mrb[0].mxu0 %v397
      %v600 = vpop.f32.mrb[0].mxu0
      %v601 = vadd.f32 0.0, %v600
      %v602 = vpop.f32.mrb[0].mxu0
      %v603 = vpop.f32.mrb[0].mxu0
      %v604 = vadd.f32 0.0, %v603
      %v605 = vpop.f32.mrb[0].mxu0
      %606 = vmatprep.mubr.bf16.mxu0 0
      %607 = vmatmul.mubr.bf16.gmra.mrb[0].mxu0 %v516
      %v608 = vpop.f32.mrb[0].mxu0
      %v609 = vadd.f32 0.0, %v608
      %v610 = vpop.f32.mrb[0].mxu0
      %v611 = vpop.f32.mrb[0].mxu0
      %v612 = vadd.f32 0.0, %v611
      %v613 = vpop.f32.mrb[0].mxu0
      %614 = vdwg.mxu0
      %v615 = vadd.f32 %v483, %v601
      %v616 = vadd.f32 %v486, %v604
      %v617 = vadd.f32 %v491, %v609
      %v618 = vadd.f32 %v494, %v612
      %s619 = scalar_lea.vmem %s223, 768
      %v620 = vld [vmem:[%s619] sm:$0xf]
      %v621 = vld [vmem:[%s619 + $0x4] sm:$0xf]
      %v622 = vld [vmem:[%s619 + $0x8] sm:$0xf]
      %v623 = vld [vmem:[%s619 + $0xc] sm:$0xf]
      %v624 = vld [vmem:[%s619 + $0x10] sm:$0xf]
      %v625 = vld [vmem:[%s619 + $0x14] sm:$0xf]
      %v626 = vld [vmem:[%s619 + $0x18] sm:$0xf]
      %v627 = vld [vmem:[%s619 + $0x1c] sm:$0xf]
      %v628 = vld [vmem:[%s619 + $0x20] sm:$0xf]
      %v629 = vld [vmem:[%s619 + $0x24] sm:$0xf]
      %v630 = vld [vmem:[%s619 + $0x28] sm:$0xf]
      %v631 = vld [vmem:[%s619 + $0x2c] sm:$0xf]
      %v632 = vld [vmem:[%s619 + $0x30] sm:$0xf]
      %v633 = vld [vmem:[%s619 + $0x34] sm:$0xf]
      %v634 = vld [vmem:[%s619 + $0x38] sm:$0xf]
      %v635 = vld [vmem:[%s619 + $0x3c] sm:$0xf]
      %v637 = vunpack.c.l.b16 %v251
      %v638 = vpack.c.b16 %v637, %v515
      %v656 = vunpack.c.l.b16 %v620
      %v657 = vunpack.c.l.b16 %v621
      %v658 = vunpack.c.l.b16 %v622
      %v659 = vunpack.c.l.b16 %v623
      %v660 = vunpack.c.l.b16 %v624
      %v661 = vunpack.c.l.b16 %v625
      %v662 = vunpack.c.l.b16 %v626
      %v663 = vunpack.c.l.b16 %v627
      %v664 = vunpack.c.l.b16 %v628
      %v665 = vunpack.c.l.b16 %v629
      %v666 = vunpack.c.l.b16 %v630
      %v667 = vunpack.c.l.b16 %v631
      %v668 = vunpack.c.l.b16 %v632
      %v669 = vunpack.c.l.b16 %v633
      %v670 = vunpack.c.l.b16 %v634
      %v671 = vunpack.c.l.b16 %v635
      %v672 = vpack.c.b16 %v657, %v656
      %v673 = vpack.c.b16 %v659, %v658
      %v674 = vpack.c.b16 %v661, %v660
      %v675 = vpack.c.b16 %v663, %v662
      %v676 = vpack.c.b16 %v665, %v664
      %v677 = vpack.c.b16 %v667, %v666
      %v678 = vpack.c.b16 %v669, %v668
      %v679 = vpack.c.b16 %v671, %v670
      %688 = vmatprep.subr.bf16.mxu0 0
      %689 = vmatpush1.bf16.msra.mxu0 %v672
      %690 = vmatprep.subr.bf16.mxu0 0
      %691 = vmatpush1.bf16.msra.mxu0 %v673
      %692 = vmatprep.subr.bf16.mxu0 0
      %693 = vmatpush1.bf16.msra.mxu0 %v674
      %694 = vmatprep.subr.bf16.mxu0 0
      %695 = vmatpush1.bf16.msra.mxu0 %v675
      %696 = vmatprep.subr.bf16.mxu0 0
      %697 = vmatpush1.bf16.msra.mxu0 %v676
      %698 = vmatprep.subr.bf16.mxu0 0
      %699 = vmatpush1.bf16.msra.mxu0 %v677
      %700 = vmatprep.subr.bf16.mxu0 0
      %701 = vmatpush1.bf16.msra.mxu0 %v678
      %702 = vmatprep.subr.bf16.mxu0 0
      %703 = vmatpush1.bf16.msra.mxu0 %v679
      %704 = vmatprep.subr.bf16.mxu0 0
      %705 = vmatpush1.bf16.msra.mxu0 0
      %706 = vmatprep.subr.bf16.mxu0 0
      %707 = vmatpush1.bf16.msra.mxu0 0
      %708 = vmatprep.subr.bf16.mxu0 0
      %709 = vmatpush1.bf16.msra.mxu0 0
      %710 = vmatprep.subr.bf16.mxu0 0
      %711 = vmatpush1.bf16.msra.mxu0 0
      %712 = vmatprep.subr.bf16.mxu0 0
      %713 = vmatpush1.bf16.msra.mxu0 0
      %714 = vmatprep.subr.bf16.mxu0 0
      %715 = vmatpush1.bf16.msra.mxu0 0
      %716 = vmatprep.subr.bf16.mxu0 0
      %717 = vmatpush1.bf16.msra.mxu0 0
      %718 = vmatprep.subr.bf16.mxu0 0
      %719 = vmatpush1.bf16.msra.mxu0 0
      %720 = vmatprep.mubr.bf16.mxu0 0
      %721 = vmatmul.mubr.bf16.gmra.mrb[0].mxu0 %v294
      %v722 = vpop.f32.mrb[0].mxu0
      %v723 = vadd.f32 0.0, %v722
      %v724 = vpop.f32.mrb[0].mxu0
      %v725 = vpop.f32.mrb[0].mxu0
      %v726 = vadd.f32 0.0, %v725
      %v727 = vpop.f32.mrb[0].mxu0
      %728 = vmatprep.mubr.bf16.mxu0 0
      %729 = vmatmul.mubr.bf16.gmra.mrb[0].mxu0 %v638
      %v730 = vpop.f32.mrb[0].mxu0
      %v731 = vadd.f32 0.0, %v730
      %v732 = vpop.f32.mrb[0].mxu0
      %v733 = vpop.f32.mrb[0].mxu0
      %v734 = vadd.f32 0.0, %v733
      %v735 = vpop.f32.mrb[0].mxu0
      %736 = vdwg.mxu0
      %v737 = vadd.f32 %v615, %v723
      %v738 = vadd.f32 %v616, %v726
      %v739 = vadd.f32 %v617, %v731
      %v740 = vadd.f32 %v618, %v734
      %v741 = vld [vmem:[%s244] sm:$0xf]
      %v742 = vld [vmem:[%s244 + $0x4] sm:$0x1]
      %v743 = vld [vmem:[%s244 + $0x8] sm:$0xf]
      %v744 = vld [vmem:[%s244 + $0xc] sm:$0x1]
      %v745 = vld [vmem:[%s244 + $0x10] sm:$0xf]
      %v746 = vld [vmem:[%s244 + $0x14] sm:$0x1]
      %v747 = vld [vmem:[%s244 + $0x18] sm:$0xf]
      %v748 = vld [vmem:[%s244 + $0x1c] sm:$0x1]
      %v749 = vld [vmem:[%s244 + $0x20] sm:$0xf]
      %v750 = vld [vmem:[%s244 + $0x24] sm:$0x1]
      %v751 = vld [vmem:[%s244 + $0x28] sm:$0xf]
      %v752 = vld [vmem:[%s244 + $0x2c] sm:$0x1]
      %v753 = vld [vmem:[%s244 + $0x30] sm:$0xf]
      %v754 = vld [vmem:[%s244 + $0x34] sm:$0x1]
      %vm755 = vsmask.f32 3328
      %vm756 = vsmask.f32 7440
      %vm757 = vmor %vm755, %vm756
      %v759 = vshrl.u32 %v741, 16
      %v761 = vrot.slane %v759, 4
      %v762 = vshll.u32 %v741, 16
      %v764 = vrot.slane %v762, 5
      %v765 = vor.u32 %v761, %v764
      %v766 = vrot.slane %v765, 4
      %v768 = vshll.u32 %v742, 16
      %v770 = vrot.slane %v768, 5
      %v771 = vsel %vm757, %v766, %v770
      %v773 = vshrl.u32 %v743, 16
      %v775 = vrot.slane %v773, 4
      %v776 = vshll.u32 %v743, 16
      %v778 = vrot.slane %v776, 5
      %v779 = vor.u32 %v775, %v778
      %v780 = vrot.slane %v779, 4
      %v782 = vshll.u32 %v744, 16
      %v784 = vrot.slane %v782, 5
      %v785 = vsel %vm757, %v780, %v784
      %v787 = vshrl.u32 %v745, 16
      %v789 = vrot.slane %v787, 4
      %v790 = vshll.u32 %v745, 16
      %v792 = vrot.slane %v790, 5
      %v793 = vor.u32 %v789, %v792
      %v794 = vrot.slane %v793, 4
      %v796 = vshll.u32 %v746, 16
      %v798 = vrot.slane %v796, 5
      %v799 = vsel %vm757, %v794, %v798
      %v801 = vshrl.u32 %v747, 16
      %v803 = vrot.slane %v801, 4
      %v804 = vshll.u32 %v747, 16
      %v806 = vrot.slane %v804, 5
      %v807 = vor.u32 %v803, %v806
      %v808 = vrot.slane %v807, 4
      %v810 = vshll.u32 %v748, 16
      %v812 = vrot.slane %v810, 5
      %v813 = vsel %vm757, %v808, %v812
      %s814 = scalar_lea.vmem %s223, 64
      %v815 = vld [vmem:[%s814] sm:$0xf]
      %v816 = vld [vmem:[%s814 + $0x4] sm:$0xf]
      %v817 = vld [vmem:[%s814 + $0x8] sm:$0xf]
      %v818 = vld [vmem:[%s814 + $0xc] sm:$0xf]
      %v819 = vld [vmem:[%s814 + $0x10] sm:$0xf]
      %v820 = vld [vmem:[%s814 + $0x14] sm:$0xf]
      %v821 = vld [vmem:[%s814 + $0x18] sm:$0xf]
      %v822 = vld [vmem:[%s814 + $0x1c] sm:$0xf]
      %v823 = vld [vmem:[%s814 + $0x20] sm:$0xf]
      %v824 = vld [vmem:[%s814 + $0x24] sm:$0xf]
      %v825 = vld [vmem:[%s814 + $0x28] sm:$0xf]
      %v826 = vld [vmem:[%s814 + $0x2c] sm:$0xf]
      %v827 = vld [vmem:[%s814 + $0x30] sm:$0xf]
      %v828 = vld [vmem:[%s814 + $0x34] sm:$0xf]
      %v829 = vld [vmem:[%s814 + $0x38] sm:$0xf]
      %v830 = vld [vmem:[%s814 + $0x3c] sm:$0xf]
      %v831 = vunpack.c.l.b16 %v771
      %v832 = vunpack.c.l.b16 %v785
      %v833 = vunpack.c.l.b16 %v799
      %v834 = vunpack.c.l.b16 %v813
      %v835 = vpack.c.b16 %v832, %v831
      %v836 = vpack.c.b16 %v834, %v833
      %v855 = vunpack.c.l.b16 %v815
      %v856 = vunpack.c.l.b16 %v816
      %v857 = vunpack.c.l.b16 %v817
      %v858 = vunpack.c.l.b16 %v818
      %v859 = vunpack.c.l.b16 %v819
      %v860 = vunpack.c.l.b16 %v820
      %v861 = vunpack.c.l.b16 %v821
      %v862 = vunpack.c.l.b16 %v822
      %v863 = vunpack.c.l.b16 %v823
      %v864 = vunpack.c.l.b16 %v824
      %v865 = vunpack.c.l.b16 %v825
      %v866 = vunpack.c.l.b16 %v826
      %v867 = vunpack.c.l.b16 %v827
      %v868 = vunpack.c.l.b16 %v828
      %v869 = vunpack.c.l.b16 %v829
      %v870 = vunpack.c.l.b16 %v830
      %v871 = vpack.c.b16 %v856, %v855
      %v872 = vpack.c.b16 %v858, %v857
      %v873 = vpack.c.b16 %v860, %v859
      %v874 = vpack.c.b16 %v862, %v861
      %v875 = vpack.c.b16 %v864, %v863
      %v876 = vpack.c.b16 %v866, %v865
      %v877 = vpack.c.b16 %v868, %v867
      %v878 = vpack.c.b16 %v870, %v869
      %887 = vmatprep.subr.bf16.mxu0 0
      %888 = vmatpush1.bf16.msra.mxu0 %v871
      %889 = vmatprep.subr.bf16.mxu0 0
      %890 = vmatpush1.bf16.msra.mxu0 %v872
      %891 = vmatprep.subr.bf16.mxu0 0
      %892 = vmatpush1.bf16.msra.mxu0 %v873
      %893 = vmatprep.subr.bf16.mxu0 0
      %894 = vmatpush1.bf16.msra.mxu0 %v874
      %895 = vmatprep.subr.bf16.mxu0 0
      %896 = vmatpush1.bf16.msra.mxu0 %v875
      %897 = vmatprep.subr.bf16.mxu0 0
      %898 = vmatpush1.bf16.msra.mxu0 %v876
      %899 = vmatprep.subr.bf16.mxu0 0
      %900 = vmatpush1.bf16.msra.mxu0 %v877
      %901 = vmatprep.subr.bf16.mxu0 0
      %902 = vmatpush1.bf16.msra.mxu0 %v878
      %903 = vmatprep.subr.bf16.mxu0 0
      %904 = vmatpush1.bf16.msra.mxu0 0
      %905 = vmatprep.subr.bf16.mxu0 0
      %906 = vmatpush1.bf16.msra.mxu0 0
      %907 = vmatprep.subr.bf16.mxu0 0
      %908 = vmatpush1.bf16.msra.mxu0 0
      %909 = vmatprep.subr.bf16.mxu0 0
      %910 = vmatpush1.bf16.msra.mxu0 0
      %911 = vmatprep.subr.bf16.mxu0 0
      %912 = vmatpush1.bf16.msra.mxu0 0
      %913 = vmatprep.subr.bf16.mxu0 0
      %914 = vmatpush1.bf16.msra.mxu0 0
      %915 = vmatprep.subr.bf16.mxu0 0
      %916 = vmatpush1.bf16.msra.mxu0 0
      %917 = vmatprep.subr.bf16.mxu0 0
      %918 = vmatpush1.bf16.msra.mxu0 0
      %919 = vmatprep.mubr.bf16.mxu0 0
      %920 = vmatmul.mubr.bf16.gmra.mrb[0].mxu0 %v835
      %v921 = vpop.f32.mrb[0].mxu0
      %v922 = vadd.f32 0.0, %v921
      %v923 = vpop.f32.mrb[0].mxu0
      %v924 = vpop.f32.mrb[0].mxu0
      %v925 = vadd.f32 0.0, %v924
      %v926 = vpop.f32.mrb[0].mxu0
      %927 = vmatprep.mubr.bf16.mxu0 0
      %928 = vmatmul.mubr.bf16.gmra.mrb[0].mxu0 %v836
      %v929 = vpop.f32.mrb[0].mxu0
      %v930 = vadd.f32 0.0, %v929
      %v931 = vpop.f32.mrb[0].mxu0
      %v932 = vpop.f32.mrb[0].mxu0
      %v933 = vadd.f32 0.0, %v932
      %v934 = vpop.f32.mrb[0].mxu0
      %935 = vdwg.mxu0
      %v936 = vadd.f32 %v737, %v922
      %v937 = vadd.f32 %v738, %v925
      %v938 = vadd.f32 %v739, %v930
      %v939 = vadd.f32 %v740, %v933
      %v941 = vshrl.u32 %v749, 16
      %v943 = vrot.slane %v941, 4
      %v944 = vshll.u32 %v749, 16
      %v946 = vrot.slane %v944, 5
      %v947 = vor.u32 %v943, %v946
      %v948 = vrot.slane %v947, 4
      %v950 = vshll.u32 %v750, 16
      %v952 = vrot.slane %v950, 5
      %v953 = vsel %vm757, %v948, %v952
      %s954 = scalar_lea.vmem %s223, 320
      %v955 = vld [vmem:[%s954] sm:$0xf]
      %v956 = vld [vmem:[%s954 + $0x4] sm:$0xf]
      %v957 = vld [vmem:[%s954 + $0x8] sm:$0xf]
      %v958 = vld [vmem:[%s954 + $0xc] sm:$0xf]
      %v959 = vld [vmem:[%s954 + $0x10] sm:$0xf]
      %v960 = vld [vmem:[%s954 + $0x14] sm:$0xf]
      %v961 = vld [vmem:[%s954 + $0x18] sm:$0xf]
      %v962 = vld [vmem:[%s954 + $0x1c] sm:$0xf]
      %v963 = vld [vmem:[%s954 + $0x20] sm:$0xf]
      %v964 = vld [vmem:[%s954 + $0x24] sm:$0xf]
      %v965 = vld [vmem:[%s954 + $0x28] sm:$0xf]
      %v966 = vld [vmem:[%s954 + $0x2c] sm:$0xf]
      %v967 = vld [vmem:[%s954 + $0x30] sm:$0xf]
      %v968 = vld [vmem:[%s954 + $0x34] sm:$0xf]
      %v969 = vld [vmem:[%s954 + $0x38] sm:$0xf]
      %v970 = vld [vmem:[%s954 + $0x3c] sm:$0xf]
      %v971 = vunpack.c.l.b16 %v953
      %v972 = vpack.c.b16 %v833, %v832
      %v973 = vpack.c.b16 %v971, %v834
      %v992 = vunpack.c.l.b16 %v955
      %v993 = vunpack.c.l.b16 %v956
      %v994 = vunpack.c.l.b16 %v957
      %v995 = vunpack.c.l.b16 %v958
      %v996 = vunpack.c.l.b16 %v959
      %v997 = vunpack.c.l.b16 %v960
      %v998 = vunpack.c.l.b16 %v961
      %v999 = vunpack.c.l.b16 %v962
      %v1000 = vunpack.c.l.b16 %v963
      %v1001 = vunpack.c.l.b16 %v964
      %v1002 = vunpack.c.l.b16 %v965
      %v1003 = vunpack.c.l.b16 %v966
      %v1004 = vunpack.c.l.b16 %v967
      %v1005 = vunpack.c.l.b16 %v968
      %v1006 = vunpack.c.l.b16 %v969
      %v1007 = vunpack.c.l.b16 %v970
      %v1008 = vpack.c.b16 %v993, %v992
      %v1009 = vpack.c.b16 %v995, %v994
      %v1010 = vpack.c.b16 %v997, %v996
      %v1011 = vpack.c.b16 %v999, %v998
      %v1012 = vpack.c.b16 %v1001, %v1000
      %v1013 = vpack.c.b16 %v1003, %v1002
      %v1014 = vpack.c.b16 %v1005, %v1004
      %v1015 = vpack.c.b16 %v1007, %v1006
      %1024 = vmatprep.subr.bf16.mxu0 0
      %1025 = vmatpush1.bf16.msra.mxu0 %v1008
      %1026 = vmatprep.subr.bf16.mxu0 0
      %1027 = vmatpush1.bf16.msra.mxu0 %v1009
      %1028 = vmatprep.subr.bf16.mxu0 0
      %1029 = vmatpush1.bf16.msra.mxu0 %v1010
      %1030 = vmatprep.subr.bf16.mxu0 0
      %1031 = vmatpush1.bf16.msra.mxu0 %v1011
      %1032 = vmatprep.subr.bf16.mxu0 0
      %1033 = vmatpush1.bf16.msra.mxu0 %v1012
      %1034 = vmatprep.subr.bf16.mxu0 0
      %1035 = vmatpush1.bf16.msra.mxu0 %v1013
      %1036 = vmatprep.subr.bf16.mxu0 0
      %1037 = vmatpush1.bf16.msra.mxu0 %v1014
      %1038 = vmatprep.subr.bf16.mxu0 0
      %1039 = vmatpush1.bf16.msra.mxu0 %v1015
      %1040 = vmatprep.subr.bf16.mxu0 0
      %1041 = vmatpush1.bf16.msra.mxu0 0
      %1042 = vmatprep.subr.bf16.mxu0 0
      %1043 = vmatpush1.bf16.msra.mxu0 0
      %1044 = vmatprep.subr.bf16.mxu0 0
      %1045 = vmatpush1.bf16.msra.mxu0 0
      %1046 = vmatprep.subr.bf16.mxu0 0
      %1047 = vmatpush1.bf16.msra.mxu0 0
      %1048 = vmatprep.subr.bf16.mxu0 0
      %1049 = vmatpush1.bf16.msra.mxu0 0
      %1050 = vmatprep.subr.bf16.mxu0 0
      %1051 = vmatpush1.bf16.msra.mxu0 0
      %1052 = vmatprep.subr.bf16.mxu0 0
      %1053 = vmatpush1.bf16.msra.mxu0 0
      %1054 = vmatprep.subr.bf16.mxu0 0
      %1055 = vmatpush1.bf16.msra.mxu0 0
      %1056 = vmatprep.mubr.bf16.mxu0 0
      %1057 = vmatmul.mubr.bf16.gmra.mrb[0].mxu0 %v972
      %v1058 = vpop.f32.mrb[0].mxu0
      %v1059 = vadd.f32 0.0, %v1058
      %v1060 = vpop.f32.mrb[0].mxu0
      %v1061 = vpop.f32.mrb[0].mxu0
      %v1062 = vadd.f32 0.0, %v1061
      %v1063 = vpop.f32.mrb[0].mxu0
      %1064 = vmatprep.mubr.bf16.mxu0 0
      %1065 = vmatmul.mubr.bf16.gmra.mrb[0].mxu0 %v973
      %v1066 = vpop.f32.mrb[0].mxu0
      %v1067 = vadd.f32 0.0, %v1066
      %v1068 = vpop.f32.mrb[0].mxu0
      %v1069 = vpop.f32.mrb[0].mxu0
      %v1070 = vadd.f32 0.0, %v1069
      %v1071 = vpop.f32.mrb[0].mxu0
      %1072 = vdwg.mxu0
      %v1073 = vadd.f32 %v936, %v1059
      %v1074 = vadd.f32 %v937, %v1062
      %v1075 = vadd.f32 %v938, %v1067
      %v1076 = vadd.f32 %v939, %v1070
      %v1078 = vshrl.u32 %v751, 16
      %v1080 = vrot.slane %v1078, 4
      %v1081 = vshll.u32 %v751, 16
      %v1083 = vrot.slane %v1081, 5
      %v1084 = vor.u32 %v1080, %v1083
      %v1085 = vrot.slane %v1084, 4
      %v1087 = vshll.u32 %v752, 16
      %v1089 = vrot.slane %v1087, 5
      %v1090 = vsel %vm757, %v1085, %v1089
      %s1091 = scalar_lea.vmem %s223, 576
      %v1092 = vld [vmem:[%s1091] sm:$0xf]
      %v1093 = vld [vmem:[%s1091 + $0x4] sm:$0xf]
      %v1094 = vld [vmem:[%s1091 + $0x8] sm:$0xf]
      %v1095 = vld [vmem:[%s1091 + $0xc] sm:$0xf]
      %v1096 = vld [vmem:[%s1091 + $0x10] sm:$0xf]
      %v1097 = vld [vmem:[%s1091 + $0x14] sm:$0xf]
      %v1098 = vld [vmem:[%s1091 + $0x18] sm:$0xf]
      %v1099 = vld [vmem:[%s1091 + $0x1c] sm:$0xf]
      %v1100 = vld [vmem:[%s1091 + $0x20] sm:$0xf]
      %v1101 = vld [vmem:[%s1091 + $0x24] sm:$0xf]
      %v1102 = vld [vmem:[%s1091 + $0x28] sm:$0xf]
      %v1103 = vld [vmem:[%s1091 + $0x2c] sm:$0xf]
      %v1104 = vld [vmem:[%s1091 + $0x30] sm:$0xf]
      %v1105 = vld [vmem:[%s1091 + $0x34] sm:$0xf]
      %v1106 = vld [vmem:[%s1091 + $0x38] sm:$0xf]
      %v1107 = vld [vmem:[%s1091 + $0x3c] sm:$0xf]
      %v1108 = vunpack.c.l.b16 %v1090
      %v1109 = vpack.c.b16 %v1108, %v971
      %v1127 = vunpack.c.l.b16 %v1092
      %v1128 = vunpack.c.l.b16 %v1093
      %v1129 = vunpack.c.l.b16 %v1094
      %v1130 = vunpack.c.l.b16 %v1095
      %v1131 = vunpack.c.l.b16 %v1096
      %v1132 = vunpack.c.l.b16 %v1097
      %v1133 = vunpack.c.l.b16 %v1098
      %v1134 = vunpack.c.l.b16 %v1099
      %v1135 = vunpack.c.l.b16 %v1100
      %v1136 = vunpack.c.l.b16 %v1101
      %v1137 = vunpack.c.l.b16 %v1102
      %v1138 = vunpack.c.l.b16 %v1103
      %v1139 = vunpack.c.l.b16 %v1104
      %v1140 = vunpack.c.l.b16 %v1105
      %v1141 = vunpack.c.l.b16 %v1106
      %v1142 = vunpack.c.l.b16 %v1107
      %v1143 = vpack.c.b16 %v1128, %v1127
      %v1144 = vpack.c.b16 %v1130, %v1129
      %v1145 = vpack.c.b16 %v1132, %v1131
      %v1146 = vpack.c.b16 %v1134, %v1133
      %v1147 = vpack.c.b16 %v1136, %v1135
      %v1148 = vpack.c.b16 %v1138, %v1137
      %v1149 = vpack.c.b16 %v1140, %v1139
      %v1150 = vpack.c.b16 %v1142, %v1141
      %1159 = vmatprep.subr.bf16.mxu0 0
      %1160 = vmatpush1.bf16.msra.mxu0 %v1143
      %1161 = vmatprep.subr.bf16.mxu0 0
      %1162 = vmatpush1.bf16.msra.mxu0 %v1144
      %1163 = vmatprep.subr.bf16.mxu0 0
      %1164 = vmatpush1.bf16.msra.mxu0 %v1145
      %1165 = vmatprep.subr.bf16.mxu0 0
      %1166 = vmatpush1.bf16.msra.mxu0 %v1146
      %1167 = vmatprep.subr.bf16.mxu0 0
      %1168 = vmatpush1.bf16.msra.mxu0 %v1147
      %1169 = vmatprep.subr.bf16.mxu0 0
      %1170 = vmatpush1.bf16.msra.mxu0 %v1148
      %1171 = vmatprep.subr.bf16.mxu0 0
      %1172 = vmatpush1.bf16.msra.mxu0 %v1149
      %1173 = vmatprep.subr.bf16.mxu0 0
      %1174 = vmatpush1.bf16.msra.mxu0 %v1150
      %1175 = vmatprep.subr.bf16.mxu0 0
      %1176 = vmatpush1.bf16.msra.mxu0 0
      %1177 = vmatprep.subr.bf16.mxu0 0
      %1178 = vmatpush1.bf16.msra.mxu0 0
      %1179 = vmatprep.subr.bf16.mxu0 0
      %1180 = vmatpush1.bf16.msra.mxu0 0
      %1181 = vmatprep.subr.bf16.mxu0 0
      %1182 = vmatpush1.bf16.msra.mxu0 0
      %1183 = vmatprep.subr.bf16.mxu0 0
      %1184 = vmatpush1.bf16.msra.mxu0 0
      %1185 = vmatprep.subr.bf16.mxu0 0
      %1186 = vmatpush1.bf16.msra.mxu0 0
      %1187 = vmatprep.subr.bf16.mxu0 0
      %1188 = vmatpush1.bf16.msra.mxu0 0
      %1189 = vmatprep.subr.bf16.mxu0 0
      %1190 = vmatpush1.bf16.msra.mxu0 0
      %1191 = vmatprep.mubr.bf16.mxu0 0
      %1192 = vmatmul.mubr.bf16.gmra.mrb[0].mxu0 %v836
      %v1193 = vpop.f32.mrb[0].mxu0
      %v1194 = vadd.f32 0.0, %v1193
      %v1195 = vpop.f32.mrb[0].mxu0
      %v1196 = vpop.f32.mrb[0].mxu0
      %v1197 = vadd.f32 0.0, %v1196
      %v1198 = vpop.f32.mrb[0].mxu0
      %1199 = vmatprep.mubr.bf16.mxu0 0
      %1200 = vmatmul.mubr.bf16.gmra.mrb[0].mxu0 %v1109
      %v1201 = vpop.f32.mrb[0].mxu0
      %v1202 = vadd.f32 0.0, %v1201
      %v1203 = vpop.f32.mrb[0].mxu0
      %v1204 = vpop.f32.mrb[0].mxu0
      %v1205 = vadd.f32 0.0, %v1204
      %v1206 = vpop.f32.mrb[0].mxu0
      %1207 = vdwg.mxu0
      %v1208 = vadd.f32 %v1073, %v1194
      %v1209 = vadd.f32 %v1074, %v1197
      %v1210 = vadd.f32 %v1075, %v1202
      %v1211 = vadd.f32 %v1076, %v1205
      %v1213 = vshrl.u32 %v753, 16
      %v1215 = vrot.slane %v1213, 4
      %v1216 = vshll.u32 %v753, 16
      %v1218 = vrot.slane %v1216, 5
      %v1219 = vor.u32 %v1215, %v1218
      %v1220 = vrot.slane %v1219, 4
      %v1222 = vshll.u32 %v754, 16
      %v1224 = vrot.slane %v1222, 5
      %v1225 = vsel %vm757, %v1220, %v1224
      %s1226 = scalar_lea.vmem %s223, 832
      %v1227 = vld [vmem:[%s1226] sm:$0xf]
      %v1228 = vld [vmem:[%s1226 + $0x4] sm:$0xf]
      %v1229 = vld [vmem:[%s1226 + $0x8] sm:$0xf]
      %v1230 = vld [vmem:[%s1226 + $0xc] sm:$0xf]
      %v1231 = vld [vmem:[%s1226 + $0x10] sm:$0xf]
      %v1232 = vld [vmem:[%s1226 + $0x14] sm:$0xf]
      %v1233 = vld [vmem:[%s1226 + $0x18] sm:$0xf]
      %v1234 = vld [vmem:[%s1226 + $0x1c] sm:$0xf]
      %v1235 = vld [vmem:[%s1226 + $0x20] sm:$0xf]
      %v1236 = vld [vmem:[%s1226 + $0x24] sm:$0xf]
      %v1237 = vld [vmem:[%s1226 + $0x28] sm:$0xf]
      %v1238 = vld [vmem:[%s1226 + $0x2c] sm:$0xf]
      %v1239 = vld [vmem:[%s1226 + $0x30] sm:$0xf]
      %v1240 = vld [vmem:[%s1226 + $0x34] sm:$0xf]
      %v1241 = vld [vmem:[%s1226 + $0x38] sm:$0xf]
      %v1242 = vld [vmem:[%s1226 + $0x3c] sm:$0xf]
      %v1243 = vunpack.c.l.b16 %v1225
      %v1244 = vpack.c.b16 %v1243, %v1108
      %v1262 = vunpack.c.l.b16 %v1227
      %v1263 = vunpack.c.l.b16 %v1228
      %v1264 = vunpack.c.l.b16 %v1229
      %v1265 = vunpack.c.l.b16 %v1230
      %v1266 = vunpack.c.l.b16 %v1231
      %v1267 = vunpack.c.l.b16 %v1232
      %v1268 = vunpack.c.l.b16 %v1233
      %v1269 = vunpack.c.l.b16 %v1234
      %v1270 = vunpack.c.l.b16 %v1235
      %v1271 = vunpack.c.l.b16 %v1236
      %v1272 = vunpack.c.l.b16 %v1237
      %v1273 = vunpack.c.l.b16 %v1238
      %v1274 = vunpack.c.l.b16 %v1239
      %v1275 = vunpack.c.l.b16 %v1240
      %v1276 = vunpack.c.l.b16 %v1241
      %v1277 = vunpack.c.l.b16 %v1242
      %v1278 = vpack.c.b16 %v1263, %v1262
      %v1279 = vpack.c.b16 %v1265, %v1264
      %v1280 = vpack.c.b16 %v1267, %v1266
      %v1281 = vpack.c.b16 %v1269, %v1268
      %v1282 = vpack.c.b16 %v1271, %v1270
      %v1283 = vpack.c.b16 %v1273, %v1272
      %v1284 = vpack.c.b16 %v1275, %v1274
      %v1285 = vpack.c.b16 %v1277, %v1276
      %1294 = vmatprep.subr.bf16.mxu0 0
      %1295 = vmatpush1.bf16.msra.mxu0 %v1278
      %1296 = vmatprep.subr.bf16.mxu0 0
      %1297 = vmatpush1.bf16.msra.mxu0 %v1279
      %1298 = vmatprep.subr.bf16.mxu0 0
      %1299 = vmatpush1.bf16.msra.mxu0 %v1280
      %1300 = vmatprep.subr.bf16.mxu0 0
      %1301 = vmatpush1.bf16.msra.mxu0 %v1281
      %1302 = vmatprep.subr.bf16.mxu0 0
      %1303 = vmatpush1.bf16.msra.mxu0 %v1282
      %1304 = vmatprep.subr.bf16.mxu0 0
      %1305 = vmatpush1.bf16.msra.mxu0 %v1283
      %1306 = vmatprep.subr.bf16.mxu0 0
      %1307 = vmatpush1.bf16.msra.mxu0 %v1284
      %1308 = vmatprep.subr.bf16.mxu0 0
      %1309 = vmatpush1.bf16.msra.mxu0 %v1285
      %1310 = vmatprep.subr.bf16.mxu0 0
      %1311 = vmatpush1.bf16.msra.mxu0 0
      %1312 = vmatprep.subr.bf16.mxu0 0
      %1313 = vmatpush1.bf16.msra.mxu0 0
      %1314 = vmatprep.subr.bf16.mxu0 0
      %1315 = vmatpush1.bf16.msra.mxu0 0
      %1316 = vmatprep.subr.bf16.mxu0 0
      %1317 = vmatpush1.bf16.msra.mxu0 0
      %1318 = vmatprep.subr.bf16.mxu0 0
      %1319 = vmatpush1.bf16.msra.mxu0 0
      %1320 = vmatprep.subr.bf16.mxu0 0
      %1321 = vmatpush1.bf16.msra.mxu0 0
      %1322 = vmatprep.subr.bf16.mxu0 0
      %1323 = vmatpush1.bf16.msra.mxu0 0
      %1324 = vmatprep.subr.bf16.mxu0 0
      %1325 = vmatpush1.bf16.msra.mxu0 0
      %1326 = vmatprep.mubr.bf16.mxu0 0
      %1327 = vmatmul.mubr.bf16.gmra.mrb[0].mxu0 %v973
      %v1328 = vpop.f32.mrb[0].mxu0
      %v1329 = vadd.f32 0.0, %v1328
      %v1330 = vpop.f32.mrb[0].mxu0
      %v1331 = vpop.f32.mrb[0].mxu0
      %v1332 = vadd.f32 0.0, %v1331
      %v1333 = vpop.f32.mrb[0].mxu0
      %1334 = vmatprep.mubr.bf16.mxu0 0
      %1335 = vmatmul.mubr.bf16.gmra.mrb[0].mxu0 %v1244
      %v1336 = vpop.f32.mrb[0].mxu0
      %v1337 = vadd.f32 0.0, %v1336
      %v1338 = vpop.f32.mrb[0].mxu0
      %v1339 = vpop.f32.mrb[0].mxu0
      %v1340 = vadd.f32 0.0, %v1339
      %v1341 = vpop.f32.mrb[0].mxu0
      %1342 = vdwg.mxu0
      %v1343 = vadd.f32 %v1208, %v1329
      %v1344 = vadd.f32 %v1209, %v1332
      %v1345 = vadd.f32 %v1210, %v1337
      %v1346 = vadd.f32 %v1211, %v1340
      %v1347 = vld [vmem:[%s244] sm:$0xe]
      %v1348 = vld [vmem:[%s244 + $0x8] sm:$0xe]
      %v1349 = vld [vmem:[%s244 + $0x10] sm:$0xe]
      %v1350 = vld [vmem:[%s244 + $0x18] sm:$0xe]
      %v1351 = vld [vmem:[%s244 + $0x20] sm:$0xe]
      %v1352 = vld [vmem:[%s244 + $0x28] sm:$0xe]
      %v1353 = vld [vmem:[%s244 + $0x30] sm:$0xe]
      %vm1362 = vcmask 1042432
      %vm1363 = vcmask 1046532
      %vm1364 = vmor %vm1362, %vm1363
      %v1365 = vrot.slane %v1347, 5
      %v1366 = vrot.slane %v1365, 4
      %v1367 = vrot.slane %v742, 5
      %v1368 = vsel %vm1364, %v1366, %v1367
      %v1369 = vrot.slane %v1348, 5
      %v1370 = vrot.slane %v1369, 4
      %v1371 = vrot.slane %v744, 5
      %v1372 = vsel %vm1364, %v1370, %v1371
      %v1373 = vrot.slane %v1349, 5
      %v1374 = vrot.slane %v1373, 4
      %v1375 = vrot.slane %v746, 5
      %v1376 = vsel %vm1364, %v1374, %v1375
      %v1377 = vrot.slane %v1350, 5
      %v1378 = vrot.slane %v1377, 4
      %v1379 = vrot.slane %v748, 5
      %v1380 = vsel %vm1364, %v1378, %v1379
      %s1381 = scalar_lea.vmem %s223, 128
      %v1382 = vld [vmem:[%s1381] sm:$0xf]
      %v1383 = vld [vmem:[%s1381 + $0x4] sm:$0xf]
      %v1384 = vld [vmem:[%s1381 + $0x8] sm:$0xf]
      %v1385 = vld [vmem:[%s1381 + $0xc] sm:$0xf]
      %v1386 = vld [vmem:[%s1381 + $0x10] sm:$0xf]
      %v1387 = vld [vmem:[%s1381 + $0x14] sm:$0xf]
      %v1388 = vld [vmem:[%s1381 + $0x18] sm:$0xf]
      %v1389 = vld [vmem:[%s1381 + $0x1c] sm:$0xf]
      %v1390 = vld [vmem:[%s1381 + $0x20] sm:$0xf]
      %v1391 = vld [vmem:[%s1381 + $0x24] sm:$0xf]
      %v1392 = vld [vmem:[%s1381 + $0x28] sm:$0xf]
      %v1393 = vld [vmem:[%s1381 + $0x2c] sm:$0xf]
      %v1394 = vld [vmem:[%s1381 + $0x30] sm:$0xf]
      %v1395 = vld [vmem:[%s1381 + $0x34] sm:$0xf]
      %v1396 = vld [vmem:[%s1381 + $0x38] sm:$0xf]
      %v1397 = vld [vmem:[%s1381 + $0x3c] sm:$0xf]
      %v1398 = vunpack.c.l.b16 %v1368
      %v1399 = vunpack.c.l.b16 %v1372
      %v1400 = vunpack.c.l.b16 %v1376
      %v1401 = vunpack.c.l.b16 %v1380
      %v1402 = vpack.c.b16 %v1399, %v1398
      %v1403 = vpack.c.b16 %v1401, %v1400
      %v1422 = vunpack.c.l.b16 %v1382
      %v1423 = vunpack.c.l.b16 %v1383
      %v1424 = vunpack.c.l.b16 %v1384
      %v1425 = vunpack.c.l.b16 %v1385
      %v1426 = vunpack.c.l.b16 %v1386
      %v1427 = vunpack.c.l.b16 %v1387
      %v1428 = vunpack.c.l.b16 %v1388
      %v1429 = vunpack.c.l.b16 %v1389
      %v1430 = vunpack.c.l.b16 %v1390
      %v1431 = vunpack.c.l.b16 %v1391
      %v1432 = vunpack.c.l.b16 %v1392
      %v1433 = vunpack.c.l.b16 %v1393
      %v1434 = vunpack.c.l.b16 %v1394
      %v1435 = vunpack.c.l.b16 %v1395
      %v1436 = vunpack.c.l.b16 %v1396
      %v1437 = vunpack.c.l.b16 %v1397
      %v1438 = vpack.c.b16 %v1423, %v1422
      %v1439 = vpack.c.b16 %v1425, %v1424
      %v1440 = vpack.c.b16 %v1427, %v1426
      %v1441 = vpack.c.b16 %v1429, %v1428
      %v1442 = vpack.c.b16 %v1431, %v1430
      %v1443 = vpack.c.b16 %v1433, %v1432
      %v1444 = vpack.c.b16 %v1435, %v1434
      %v1445 = vpack.c.b16 %v1437, %v1436
      %1454 = vmatprep.subr.bf16.mxu0 0
      %1455 = vmatpush1.bf16.msra.mxu0 %v1438
      %1456 = vmatprep.subr.bf16.mxu0 0
      %1457 = vmatpush1.bf16.msra.mxu0 %v1439
      %1458 = vmatprep.subr.bf16.mxu0 0
      %1459 = vmatpush1.bf16.msra.mxu0 %v1440
      %1460 = vmatprep.subr.bf16.mxu0 0
      %1461 = vmatpush1.bf16.msra.mxu0 %v1441
      %1462 = vmatprep.subr.bf16.mxu0 0
      %1463 = vmatpush1.bf16.msra.mxu0 %v1442
      %1464 = vmatprep.subr.bf16.mxu0 0
      %1465 = vmatpush1.bf16.msra.mxu0 %v1443
      %1466 = vmatprep.subr.bf16.mxu0 0
      %1467 = vmatpush1.bf16.msra.mxu0 %v1444
      %1468 = vmatprep.subr.bf16.mxu0 0
      %1469 = vmatpush1.bf16.msra.mxu0 %v1445
      %1470 = vmatprep.subr.bf16.mxu0 0
      %1471 = vmatpush1.bf16.msra.mxu0 0
      %1472 = vmatprep.subr.bf16.mxu0 0
      %1473 = vmatpush1.bf16.msra.mxu0 0
      %1474 = vmatprep.subr.bf16.mxu0 0
      %1475 = vmatpush1.bf16.msra.mxu0 0
      %1476 = vmatprep.subr.bf16.mxu0 0
      %1477 = vmatpush1.bf16.msra.mxu0 0
      %1478 = vmatprep.subr.bf16.mxu0 0
      %1479 = vmatpush1.bf16.msra.mxu0 0
      %1480 = vmatprep.subr.bf16.mxu0 0
      %1481 = vmatpush1.bf16.msra.mxu0 0
      %1482 = vmatprep.subr.bf16.mxu0 0
      %1483 = vmatpush1.bf16.msra.mxu0 0
      %1484 = vmatprep.subr.bf16.mxu0 0
      %1485 = vmatpush1.bf16.msra.mxu0 0
      %1486 = vmatprep.mubr.bf16.mxu0 0
      %1487 = vmatmul.mubr.bf16.gmra.mrb[0].mxu0 %v1402
      %v1488 = vpop.f32.mrb[0].mxu0
      %v1489 = vadd.f32 0.0, %v1488
      %v1490 = vpop.f32.mrb[0].mxu0
      %v1491 = vpop.f32.mrb[0].mxu0
      %v1492 = vadd.f32 0.0, %v1491
      %v1493 = vpop.f32.mrb[0].mxu0
      %1494 = vmatprep.mubr.bf16.mxu0 0
      %1495 = vmatmul.mubr.bf16.gmra.mrb[0].mxu0 %v1403
      %v1496 = vpop.f32.mrb[0].mxu0
      %v1497 = vadd.f32 0.0, %v1496
      %v1498 = vpop.f32.mrb[0].mxu0
      %v1499 = vpop.f32.mrb[0].mxu0
      %v1500 = vadd.f32 0.0, %v1499
      %v1501 = vpop.f32.mrb[0].mxu0
      %1502 = vdwg.mxu0
      %v1503 = vadd.f32 %v1343, %v1489
      %v1504 = vadd.f32 %v1344, %v1492
      %v1505 = vadd.f32 %v1345, %v1497
      %v1506 = vadd.f32 %v1346, %v1500
      %v1509 = vrot.slane %v1351, 5
      %v1510 = vrot.slane %v1509, 4
      %v1511 = vrot.slane %v750, 5
      %v1512 = vsel %vm1364, %v1510, %v1511
      %s1513 = scalar_lea.vmem %s223, 384
      %v1514 = vld [vmem:[%s1513] sm:$0xf]
      %v1515 = vld [vmem:[%s1513 + $0x4] sm:$0xf]
      %v1516 = vld [vmem:[%s1513 + $0x8] sm:$0xf]
      %v1517 = vld [vmem:[%s1513 + $0xc] sm:$0xf]
      %v1518 = vld [vmem:[%s1513 + $0x10] sm:$0xf]
      %v1519 = vld [vmem:[%s1513 + $0x14] sm:$0xf]
      %v1520 = vld [vmem:[%s1513 + $0x18] sm:$0xf]
      %v1521 = vld [vmem:[%s1513 + $0x1c] sm:$0xf]
      %v1522 = vld [vmem:[%s1513 + $0x20] sm:$0xf]
      %v1523 = vld [vmem:[%s1513 + $0x24] sm:$0xf]
      %v1524 = vld [vmem:[%s1513 + $0x28] sm:$0xf]
      %v1525 = vld [vmem:[%s1513 + $0x2c] sm:$0xf]
      %v1526 = vld [vmem:[%s1513 + $0x30] sm:$0xf]
      %v1527 = vld [vmem:[%s1513 + $0x34] sm:$0xf]
      %v1528 = vld [vmem:[%s1513 + $0x38] sm:$0xf]
      %v1529 = vld [vmem:[%s1513 + $0x3c] sm:$0xf]
      %v1530 = vunpack.c.l.b16 %v1512
      %v1531 = vpack.c.b16 %v1400, %v1399
      %v1532 = vpack.c.b16 %v1530, %v1401
      %v1551 = vunpack.c.l.b16 %v1514
      %v1552 = vunpack.c.l.b16 %v1515
      %v1553 = vunpack.c.l.b16 %v1516
      %v1554 = vunpack.c.l.b16 %v1517
      %v1555 = vunpack.c.l.b16 %v1518
      %v1556 = vunpack.c.l.b16 %v1519
      %v1557 = vunpack.c.l.b16 %v1520
      %v1558 = vunpack.c.l.b16 %v1521
      %v1559 = vunpack.c.l.b16 %v1522
      %v1560 = vunpack.c.l.b16 %v1523
      %v1561 = vunpack.c.l.b16 %v1524
      %v1562 = vunpack.c.l.b16 %v1525
      %v1563 = vunpack.c.l.b16 %v1526
      %v1564 = vunpack.c.l.b16 %v1527
      %v1565 = vunpack.c.l.b16 %v1528
      %v1566 = vunpack.c.l.b16 %v1529
      %v1567 = vpack.c.b16 %v1552, %v1551
      %v1568 = vpack.c.b16 %v1554, %v1553
      %v1569 = vpack.c.b16 %v1556, %v1555
      %v1570 = vpack.c.b16 %v1558, %v1557
      %v1571 = vpack.c.b16 %v1560, %v1559
      %v1572 = vpack.c.b16 %v1562, %v1561
      %v1573 = vpack.c.b16 %v1564, %v1563
      %v1574 = vpack.c.b16 %v1566, %v1565
      %1583 = vmatprep.subr.bf16.mxu0 0
      %1584 = vmatpush1.bf16.msra.mxu0 %v1567
      %1585 = vmatprep.subr.bf16.mxu0 0
      %1586 = vmatpush1.bf16.msra.mxu0 %v1568
      %1587 = vmatprep.subr.bf16.mxu0 0
      %1588 = vmatpush1.bf16.msra.mxu0 %v1569
      %1589 = vmatprep.subr.bf16.mxu0 0
      %1590 = vmatpush1.bf16.msra.mxu0 %v1570
      %1591 = vmatprep.subr.bf16.mxu0 0
      %1592 = vmatpush1.bf16.msra.mxu0 %v1571
      %1593 = vmatprep.subr.bf16.mxu0 0
      %1594 = vmatpush1.bf16.msra.mxu0 %v1572
      %1595 = vmatprep.subr.bf16.mxu0 0
      %1596 = vmatpush1.bf16.msra.mxu0 %v1573
      %1597 = vmatprep.subr.bf16.mxu0 0
      %1598 = vmatpush1.bf16.msra.mxu0 %v1574
      %1599 = vmatprep.subr.bf16.mxu0 0
      %1600 = vmatpush1.bf16.msra.mxu0 0
      %1601 = vmatprep.subr.bf16.mxu0 0
      %1602 = vmatpush1.bf16.msra.mxu0 0
      %1603 = vmatprep.subr.bf16.mxu0 0
      %1604 = vmatpush1.bf16.msra.mxu0 0
      %1605 = vmatprep.subr.bf16.mxu0 0
      %1606 = vmatpush1.bf16.msra.mxu0 0
      %1607 = vmatprep.subr.bf16.mxu0 0
      %1608 = vmatpush1.bf16.msra.mxu0 0
      %1609 = vmatprep.subr.bf16.mxu0 0
      %1610 = vmatpush1.bf16.msra.mxu0 0
      %1611 = vmatprep.subr.bf16.mxu0 0
      %1612 = vmatpush1.bf16.msra.mxu0 0
      %1613 = vmatprep.subr.bf16.mxu0 0
      %1614 = vmatpush1.bf16.msra.mxu0 0
      %1615 = vmatprep.mubr.bf16.mxu0 0
      %1616 = vmatmul.mubr.bf16.gmra.mrb[0].mxu0 %v1531
      %v1617 = vpop.f32.mrb[0].mxu0
      %v1618 = vadd.f32 0.0, %v1617
      %v1619 = vpop.f32.mrb[0].mxu0
      %v1620 = vpop.f32.mrb[0].mxu0
      %v1621 = vadd.f32 0.0, %v1620
      %v1622 = vpop.f32.mrb[0].mxu0
      %1623 = vmatprep.mubr.bf16.mxu0 0
      %1624 = vmatmul.mubr.bf16.gmra.mrb[0].mxu0 %v1532
      %v1625 = vpop.f32.mrb[0].mxu0
      %v1626 = vadd.f32 0.0, %v1625
      %v1627 = vpop.f32.mrb[0].mxu0
      %v1628 = vpop.f32.mrb[0].mxu0
      %v1629 = vadd.f32 0.0, %v1628
      %v1630 = vpop.f32.mrb[0].mxu0
      %1631 = vdwg.mxu0
      %v1632 = vadd.f32 %v1503, %v1618
      %v1633 = vadd.f32 %v1504, %v1621
      %v1634 = vadd.f32 %v1505, %v1626
      %v1635 = vadd.f32 %v1506, %v1629
      %v1638 = vrot.slane %v1352, 5
      %v1639 = vrot.slane %v1638, 4
      %v1640 = vrot.slane %v752, 5
      %v1641 = vsel %vm1364, %v1639, %v1640
      %s1642 = scalar_lea.vmem %s223, 640
      %v1643 = vld [vmem:[%s1642] sm:$0xf]
      %v1644 = vld [vmem:[%s1642 + $0x4] sm:$0xf]
      %v1645 = vld [vmem:[%s1642 + $0x8] sm:$0xf]
      %v1646 = vld [vmem:[%s1642 + $0xc] sm:$0xf]
      %v1647 = vld [vmem:[%s1642 + $0x10] sm:$0xf]
      %v1648 = vld [vmem:[%s1642 + $0x14] sm:$0xf]
      %v1649 = vld [vmem:[%s1642 + $0x18] sm:$0xf]
      %v1650 = vld [vmem:[%s1642 + $0x1c] sm:$0xf]
      %v1651 = vld [vmem:[%s1642 + $0x20] sm:$0xf]
      %v1652 = vld [vmem:[%s1642 + $0x24] sm:$0xf]
      %v1653 = vld [vmem:[%s1642 + $0x28] sm:$0xf]
      %v1654 = vld [vmem:[%s1642 + $0x2c] sm:$0xf]
      %v1655 = vld [vmem:[%s1642 + $0x30] sm:$0xf]
      %v1656 = vld [vmem:[%s1642 + $0x34] sm:$0xf]
      %v1657 = vld [vmem:[%s1642 + $0x38] sm:$0xf]
      %v1658 = vld [vmem:[%s1642 + $0x3c] sm:$0xf]
      %v1659 = vunpack.c.l.b16 %v1641
      %v1660 = vpack.c.b16 %v1659, %v1530
      %v1678 = vunpack.c.l.b16 %v1643
      %v1679 = vunpack.c.l.b16 %v1644
      %v1680 = vunpack.c.l.b16 %v1645
      %v1681 = vunpack.c.l.b16 %v1646
      %v1682 = vunpack.c.l.b16 %v1647
      %v1683 = vunpack.c.l.b16 %v1648
      %v1684 = vunpack.c.l.b16 %v1649
      %v1685 = vunpack.c.l.b16 %v1650
      %v1686 = vunpack.c.l.b16 %v1651
      %v1687 = vunpack.c.l.b16 %v1652
      %v1688 = vunpack.c.l.b16 %v1653
      %v1689 = vunpack.c.l.b16 %v1654
      %v1690 = vunpack.c.l.b16 %v1655
      %v1691 = vunpack.c.l.b16 %v1656
      %v1692 = vunpack.c.l.b16 %v1657
      %v1693 = vunpack.c.l.b16 %v1658
      %v1694 = vpack.c.b16 %v1679, %v1678
      %v1695 = vpack.c.b16 %v1681, %v1680
      %v1696 = vpack.c.b16 %v1683, %v1682
      %v1697 = vpack.c.b16 %v1685, %v1684
      %v1698 = vpack.c.b16 %v1687, %v1686
      %v1699 = vpack.c.b16 %v1689, %v1688
      %v1700 = vpack.c.b16 %v1691, %v1690
      %v1701 = vpack.c.b16 %v1693, %v1692
      %1710 = vmatprep.subr.bf16.mxu0 0
      %1711 = vmatpush1.bf16.msra.mxu0 %v1694
      %1712 = vmatprep.subr.bf16.mxu0 0
      %1713 = vmatpush1.bf16.msra.mxu0 %v1695
      %1714 = vmatprep.subr.bf16.mxu0 0
      %1715 = vmatpush1.bf16.msra.mxu0 %v1696
      %1716 = vmatprep.subr.bf16.mxu0 0
      %1717 = vmatpush1.bf16.msra.mxu0 %v1697
      %1718 = vmatprep.subr.bf16.mxu0 0
      %1719 = vmatpush1.bf16.msra.mxu0 %v1698
      %1720 = vmatprep.subr.bf16.mxu0 0
      %1721 = vmatpush1.bf16.msra.mxu0 %v1699
      %1722 = vmatprep.subr.bf16.mxu0 0
      %1723 = vmatpush1.bf16.msra.mxu0 %v1700
      %1724 = vmatprep.subr.bf16.mxu0 0
      %1725 = vmatpush1.bf16.msra.mxu0 %v1701
      %1726 = vmatprep.subr.bf16.mxu0 0
      %1727 = vmatpush1.bf16.msra.mxu0 0
      %1728 = vmatprep.subr.bf16.mxu0 0
      %1729 = vmatpush1.bf16.msra.mxu0 0
      %1730 = vmatprep.subr.bf16.mxu0 0
      %1731 = vmatpush1.bf16.msra.mxu0 0
      %1732 = vmatprep.subr.bf16.mxu0 0
      %1733 = vmatpush1.bf16.msra.mxu0 0
      %1734 = vmatprep.subr.bf16.mxu0 0
      %1735 = vmatpush1.bf16.msra.mxu0 0
      %1736 = vmatprep.subr.bf16.mxu0 0
      %1737 = vmatpush1.bf16.msra.mxu0 0
      %1738 = vmatprep.subr.bf16.mxu0 0
      %1739 = vmatpush1.bf16.msra.mxu0 0
      %1740 = vmatprep.subr.bf16.mxu0 0
      %1741 = vmatpush1.bf16.msra.mxu0 0
      %1742 = vmatprep.mubr.bf16.mxu0 0
      %1743 = vmatmul.mubr.bf16.gmra.mrb[0].mxu0 %v1403
      %v1744 = vpop.f32.mrb[0].mxu0
      %v1745 = vadd.f32 0.0, %v1744
      %v1746 = vpop.f32.mrb[0].mxu0
      %v1747 = vpop.f32.mrb[0].mxu0
      %v1748 = vadd.f32 0.0, %v1747
      %v1749 = vpop.f32.mrb[0].mxu0
      %1750 = vmatprep.mubr.bf16.mxu0 0
      %1751 = vmatmul.mubr.bf16.gmra.mrb[0].mxu0 %v1660
      %v1752 = vpop.f32.mrb[0].mxu0
      %v1753 = vadd.f32 0.0, %v1752
      %v1754 = vpop.f32.mrb[0].mxu0
      %v1755 = vpop.f32.mrb[0].mxu0
      %v1756 = vadd.f32 0.0, %v1755
      %v1757 = vpop.f32.mrb[0].mxu0
      %1758 = vdwg.mxu0
      %v1759 = vadd.f32 %v1632, %v1745
      %v1760 = vadd.f32 %v1633, %v1748
      %v1761 = vadd.f32 %v1634, %v1753
      %v1762 = vadd.f32 %v1635, %v1756
      %v1765 = vrot.slane %v1353, 5
      %v1766 = vrot.slane %v1765, 4
      %v1767 = vrot.slane %v754, 5
      %v1768 = vsel %vm1364, %v1766, %v1767
      %s1769 = scalar_lea.vmem %s223, 896
      %v1770 = vld [vmem:[%s1769] sm:$0xf]
      %v1771 = vld [vmem:[%s1769 + $0x4] sm:$0xf]
      %v1772 = vld [vmem:[%s1769 + $0x8] sm:$0xf]
      %v1773 = vld [vmem:[%s1769 + $0xc] sm:$0xf]
      %v1774 = vld [vmem:[%s1769 + $0x10] sm:$0xf]
      %v1775 = vld [vmem:[%s1769 + $0x14] sm:$0xf]
      %v1776 = vld [vmem:[%s1769 + $0x18] sm:$0xf]
      %v1777 = vld [vmem:[%s1769 + $0x1c] sm:$0xf]
      %v1778 = vld [vmem:[%s1769 + $0x20] sm:$0xf]
      %v1779 = vld [vmem:[%s1769 + $0x24] sm:$0xf]
      %v1780 = vld [vmem:[%s1769 + $0x28] sm:$0xf]
      %v1781 = vld [vmem:[%s1769 + $0x2c] sm:$0xf]
      %v1782 = vld [vmem:[%s1769 + $0x30] sm:$0xf]
      %v1783 = vld [vmem:[%s1769 + $0x34] sm:$0xf]
      %v1784 = vld [vmem:[%s1769 + $0x38] sm:$0xf]
      %v1785 = vld [vmem:[%s1769 + $0x3c] sm:$0xf]
      %v1786 = vunpack.c.l.b16 %v1768
      %v1787 = vpack.c.b16 %v1786, %v1659
      %v1805 = vunpack.c.l.b16 %v1770
      %v1806 = vunpack.c.l.b16 %v1771
      %v1807 = vunpack.c.l.b16 %v1772
      %v1808 = vunpack.c.l.b16 %v1773
      %v1809 = vunpack.c.l.b16 %v1774
      %v1810 = vunpack.c.l.b16 %v1775
      %v1811 = vunpack.c.l.b16 %v1776
      %v1812 = vunpack.c.l.b16 %v1777
      %v1813 = vunpack.c.l.b16 %v1778
      %v1814 = vunpack.c.l.b16 %v1779
      %v1815 = vunpack.c.l.b16 %v1780
      %v1816 = vunpack.c.l.b16 %v1781
      %v1817 = vunpack.c.l.b16 %v1782
      %v1818 = vunpack.c.l.b16 %v1783
      %v1819 = vunpack.c.l.b16 %v1784
      %v1820 = vunpack.c.l.b16 %v1785
      %v1821 = vpack.c.b16 %v1806, %v1805
      %v1822 = vpack.c.b16 %v1808, %v1807
      %v1823 = vpack.c.b16 %v1810, %v1809
      %v1824 = vpack.c.b16 %v1812, %v1811
      %v1825 = vpack.c.b16 %v1814, %v1813
      %v1826 = vpack.c.b16 %v1816, %v1815
      %v1827 = vpack.c.b16 %v1818, %v1817
      %v1828 = vpack.c.b16 %v1820, %v1819
      %1837 = vmatprep.subr.bf16.mxu0 0
      %1838 = vmatpush1.bf16.msra.mxu0 %v1821
      %1839 = vmatprep.subr.bf16.mxu0 0
      %1840 = vmatpush1.bf16.msra.mxu0 %v1822
      %1841 = vmatprep.subr.bf16.mxu0 0
      %1842 = vmatpush1.bf16.msra.mxu0 %v1823
      %1843 = vmatprep.subr.bf16.mxu0 0
      %1844 = vmatpush1.bf16.msra.mxu0 %v1824
      %1845 = vmatprep.subr.bf16.mxu0 0
      %1846 = vmatpush1.bf16.msra.mxu0 %v1825
      %1847 = vmatprep.subr.bf16.mxu0 0
      %1848 = vmatpush1.bf16.msra.mxu0 %v1826
      %1849 = vmatprep.subr.bf16.mxu0 0
      %1850 = vmatpush1.bf16.msra.mxu0 %v1827
      %1851 = vmatprep.subr.bf16.mxu0 0
      %1852 = vmatpush1.bf16.msra.mxu0 %v1828
      %1853 = vmatprep.subr.bf16.mxu0 0
      %1854 = vmatpush1.bf16.msra.mxu0 0
      %1855 = vmatprep.subr.bf16.mxu0 0
      %1856 = vmatpush1.bf16.msra.mxu0 0
      %1857 = vmatprep.subr.bf16.mxu0 0
      %1858 = vmatpush1.bf16.msra.mxu0 0
      %1859 = vmatprep.subr.bf16.mxu0 0
      %1860 = vmatpush1.bf16.msra.mxu0 0
      %1861 = vmatprep.subr.bf16.mxu0 0
      %1862 = vmatpush1.bf16.msra.mxu0 0
      %1863 = vmatprep.subr.bf16.mxu0 0
      %1864 = vmatpush1.bf16.msra.mxu0 0
      %1865 = vmatprep.subr.bf16.mxu0 0
      %1866 = vmatpush1.bf16.msra.mxu0 0
      %1867 = vmatprep.subr.bf16.mxu0 0
      %1868 = vmatpush1.bf16.msra.mxu0 0
      %1869 = vmatprep.mubr.bf16.mxu0 0
      %1870 = vmatmul.mubr.bf16.gmra.mrb[0].mxu0 %v1532
      %v1871 = vpop.f32.mrb[0].mxu0
      %v1872 = vadd.f32 0.0, %v1871
      %v1873 = vpop.f32.mrb[0].mxu0
      %v1874 = vpop.f32.mrb[0].mxu0
      %v1875 = vadd.f32 0.0, %v1874
      %v1876 = vpop.f32.mrb[0].mxu0
      %1877 = vmatprep.mubr.bf16.mxu0 0
      %1878 = vmatmul.mubr.bf16.gmra.mrb[0].mxu0 %v1787
      %v1879 = vpop.f32.mrb[0].mxu0
      %v1880 = vadd.f32 0.0, %v1879
      %v1881 = vpop.f32.mrb[0].mxu0
      %v1882 = vpop.f32.mrb[0].mxu0
      %v1883 = vadd.f32 0.0, %v1882
      %v1884 = vpop.f32.mrb[0].mxu0
      %1885 = vdwg.mxu0
      %v1886 = vadd.f32 %v1759, %v1872
      %v1887 = vadd.f32 %v1760, %v1875
      %v1888 = vadd.f32 %v1761, %v1880
      %v1889 = vadd.f32 %v1762, %v1883
      %v1890 = vld [vmem:[%s244 + $0x4] sm:$0x3]
      %v1891 = vld [vmem:[%s244 + $0xc] sm:$0x3]
      %v1892 = vld [vmem:[%s244 + $0x14] sm:$0x3]
      %v1893 = vld [vmem:[%s244 + $0x1c] sm:$0x3]
      %v1894 = vld [vmem:[%s244 + $0x24] sm:$0x3]
      %v1895 = vld [vmem:[%s244 + $0x2c] sm:$0x3]
      %v1896 = vld [vmem:[%s244 + $0x34] sm:$0x3]
      %vm1897 = vsmask.f32 2304
      %vm1898 = vsmask.f32 6416
      %vm1899 = vmor %vm1897, %vm1898
      %v1901 = vshrl.u32 %v1347, 16
      %v1903 = vrot.slane %v1901, 5
      %v1904 = vshll.u32 %v1347, 16
      %v1906 = vrot.slane %v1904, 6
      %v1907 = vor.u32 %v1903, %v1906
      %v1908 = vrot.slane %v1907, 4
      %v1910 = vshrl.u32 %v1890, 16
      %v1912 = vrot.slane %v1910, 5
      %v1913 = vshll.u32 %v1890, 16
      %v1915 = vrot.slane %v1913, 6
      %v1916 = vor.u32 %v1912, %v1915
      %v1917 = vsel %vm1899, %v1908, %v1916
      %v1919 = vshrl.u32 %v1348, 16
      %v1921 = vrot.slane %v1919, 5
      %v1922 = vshll.u32 %v1348, 16
      %v1924 = vrot.slane %v1922, 6
      %v1925 = vor.u32 %v1921, %v1924
      %v1926 = vrot.slane %v1925, 4
      %v1928 = vshrl.u32 %v1891, 16
      %v1930 = vrot.slane %v1928, 5
      %v1931 = vshll.u32 %v1891, 16
      %v1933 = vrot.slane %v1931, 6
      %v1934 = vor.u32 %v1930, %v1933
      %v1935 = vsel %vm1899, %v1926, %v1934
      %v1937 = vshrl.u32 %v1349, 16
      %v1939 = vrot.slane %v1937, 5
      %v1940 = vshll.u32 %v1349, 16
      %v1942 = vrot.slane %v1940, 6
      %v1943 = vor.u32 %v1939, %v1942
      %v1944 = vrot.slane %v1943, 4
      %v1946 = vshrl.u32 %v1892, 16
      %v1948 = vrot.slane %v1946, 5
      %v1949 = vshll.u32 %v1892, 16
      %v1951 = vrot.slane %v1949, 6
      %v1952 = vor.u32 %v1948, %v1951
      %v1953 = vsel %vm1899, %v1944, %v1952
      %v1955 = vshrl.u32 %v1350, 16
      %v1957 = vrot.slane %v1955, 5
      %v1958 = vshll.u32 %v1350, 16
      %v1960 = vrot.slane %v1958, 6
      %v1961 = vor.u32 %v1957, %v1960
      %v1962 = vrot.slane %v1961, 4
      %v1964 = vshrl.u32 %v1893, 16
      %v1966 = vrot.slane %v1964, 5
      %v1967 = vshll.u32 %v1893, 16
      %v1969 = vrot.slane %v1967, 6
      %v1970 = vor.u32 %v1966, %v1969
      %v1971 = vsel %vm1899, %v1962, %v1970
      %s1972 = scalar_lea.vmem %s223, 192
      %v1973 = vld [vmem:[%s1972] sm:$0xf]
      %v1974 = vld [vmem:[%s1972 + $0x4] sm:$0xf]
      %v1975 = vld [vmem:[%s1972 + $0x8] sm:$0xf]
      %v1976 = vld [vmem:[%s1972 + $0xc] sm:$0xf]
      %v1977 = vld [vmem:[%s1972 + $0x10] sm:$0xf]
      %v1978 = vld [vmem:[%s1972 + $0x14] sm:$0xf]
      %v1979 = vld [vmem:[%s1972 + $0x18] sm:$0xf]
      %v1980 = vld [vmem:[%s1972 + $0x1c] sm:$0xf]
      %v1981 = vld [vmem:[%s1972 + $0x20] sm:$0xf]
      %v1982 = vld [vmem:[%s1972 + $0x24] sm:$0xf]
      %v1983 = vld [vmem:[%s1972 + $0x28] sm:$0xf]
      %v1984 = vld [vmem:[%s1972 + $0x2c] sm:$0xf]
      %v1985 = vld [vmem:[%s1972 + $0x30] sm:$0xf]
      %v1986 = vld [vmem:[%s1972 + $0x34] sm:$0xf]
      %v1987 = vld [vmem:[%s1972 + $0x38] sm:$0xf]
      %v1988 = vld [vmem:[%s1972 + $0x3c] sm:$0xf]
      %v1989 = vunpack.c.l.b16 %v1917
      %v1990 = vunpack.c.l.b16 %v1935
      %v1991 = vunpack.c.l.b16 %v1953
      %v1992 = vunpack.c.l.b16 %v1971
      %v1993 = vpack.c.b16 %v1990, %v1989
      %v1994 = vpack.c.b16 %v1992, %v1991
      %v2013 = vunpack.c.l.b16 %v1973
      %v2014 = vunpack.c.l.b16 %v1974
      %v2015 = vunpack.c.l.b16 %v1975
      %v2016 = vunpack.c.l.b16 %v1976
      %v2017 = vunpack.c.l.b16 %v1977
      %v2018 = vunpack.c.l.b16 %v1978
      %v2019 = vunpack.c.l.b16 %v1979
      %v2020 = vunpack.c.l.b16 %v1980
      %v2021 = vunpack.c.l.b16 %v1981
      %v2022 = vunpack.c.l.b16 %v1982
      %v2023 = vunpack.c.l.b16 %v1983
      %v2024 = vunpack.c.l.b16 %v1984
      %v2025 = vunpack.c.l.b16 %v1985
      %v2026 = vunpack.c.l.b16 %v1986
      %v2027 = vunpack.c.l.b16 %v1987
      %v2028 = vunpack.c.l.b16 %v1988
      %v2029 = vpack.c.b16 %v2014, %v2013
      %v2030 = vpack.c.b16 %v2016, %v2015
      %v2031 = vpack.c.b16 %v2018, %v2017
      %v2032 = vpack.c.b16 %v2020, %v2019
      %v2033 = vpack.c.b16 %v2022, %v2021
      %v2034 = vpack.c.b16 %v2024, %v2023
      %v2035 = vpack.c.b16 %v2026, %v2025
      %v2036 = vpack.c.b16 %v2028, %v2027
      %2045 = vmatprep.subr.bf16.mxu0 0
      %2046 = vmatpush1.bf16.msra.mxu0 %v2029
      %2047 = vmatprep.subr.bf16.mxu0 0
      %2048 = vmatpush1.bf16.msra.mxu0 %v2030
      %2049 = vmatprep.subr.bf16.mxu0 0
      %2050 = vmatpush1.bf16.msra.mxu0 %v2031
      %2051 = vmatprep.subr.bf16.mxu0 0
      %2052 = vmatpush1.bf16.msra.mxu0 %v2032
      %2053 = vmatprep.subr.bf16.mxu0 0
      %2054 = vmatpush1.bf16.msra.mxu0 %v2033
      %2055 = vmatprep.subr.bf16.mxu0 0
      %2056 = vmatpush1.bf16.msra.mxu0 %v2034
      %2057 = vmatprep.subr.bf16.mxu0 0
      %2058 = vmatpush1.bf16.msra.mxu0 %v2035
      %2059 = vmatprep.subr.bf16.mxu0 0
      %2060 = vmatpush1.bf16.msra.mxu0 %v2036
      %2061 = vmatprep.subr.bf16.mxu0 0
      %2062 = vmatpush1.bf16.msra.mxu0 0
      %2063 = vmatprep.subr.bf16.mxu0 0
      %2064 = vmatpush1.bf16.msra.mxu0 0
      %2065 = vmatprep.subr.bf16.mxu0 0
      %2066 = vmatpush1.bf16.msra.mxu0 0
      %2067 = vmatprep.subr.bf16.mxu0 0
      %2068 = vmatpush1.bf16.msra.mxu0 0
      %2069 = vmatprep.subr.bf16.mxu0 0
      %2070 = vmatpush1.bf16.msra.mxu0 0
      %2071 = vmatprep.subr.bf16.mxu0 0
      %2072 = vmatpush1.bf16.msra.mxu0 0
      %2073 = vmatprep.subr.bf16.mxu0 0
      %2074 = vmatpush1.bf16.msra.mxu0 0
      %2075 = vmatprep.subr.bf16.mxu0 0
      %2076 = vmatpush1.bf16.msra.mxu0 0
      %2077 = vmatprep.mubr.bf16.mxu0 0
      %2078 = vmatmul.mubr.bf16.gmra.mrb[0].mxu0 %v1993
      %v2079 = vpop.f32.mrb[0].mxu0
      %v2080 = vadd.f32 0.0, %v2079
      %v2081 = vpop.f32.mrb[0].mxu0
      %v2082 = vpop.f32.mrb[0].mxu0
      %v2083 = vadd.f32 0.0, %v2082
      %v2084 = vpop.f32.mrb[0].mxu0
      %2085 = vmatprep.mubr.bf16.mxu0 0
      %2086 = vmatmul.mubr.bf16.gmra.mrb[0].mxu0 %v1994
      %v2087 = vpop.f32.mrb[0].mxu0
      %v2088 = vadd.f32 0.0, %v2087
      %v2089 = vpop.f32.mrb[0].mxu0
      %v2090 = vpop.f32.mrb[0].mxu0
      %v2091 = vadd.f32 0.0, %v2090
      %v2092 = vpop.f32.mrb[0].mxu0
      %2093 = vdwg.mxu0
      %v2094 = vadd.f32 %v1886, %v2080
      %v2095 = vadd.f32 %v1887, %v2083
      %v2096 = vadd.f32 %v1888, %v2088
      %v2097 = vadd.f32 %v1889, %v2091
      %v2099 = vshrl.u32 %v1351, 16
      %v2101 = vrot.slane %v2099, 5
      %v2102 = vshll.u32 %v1351, 16
      %v2104 = vrot.slane %v2102, 6
      %v2105 = vor.u32 %v2101, %v2104
      %v2106 = vrot.slane %v2105, 4
      %v2108 = vshrl.u32 %v1894, 16
      %v2110 = vrot.slane %v2108, 5
      %v2111 = vshll.u32 %v1894, 16
      %v2113 = vrot.slane %v2111, 6
      %v2114 = vor.u32 %v2110, %v2113
      %v2115 = vsel %vm1899, %v2106, %v2114
      %s2116 = scalar_lea.vmem %s223, 448
      %v2117 = vld [vmem:[%s2116] sm:$0xf]
      %v2118 = vld [vmem:[%s2116 + $0x4] sm:$0xf]
      %v2119 = vld [vmem:[%s2116 + $0x8] sm:$0xf]
      %v2120 = vld [vmem:[%s2116 + $0xc] sm:$0xf]
      %v2121 = vld [vmem:[%s2116 + $0x10] sm:$0xf]
      %v2122 = vld [vmem:[%s2116 + $0x14] sm:$0xf]
      %v2123 = vld [vmem:[%s2116 + $0x18] sm:$0xf]
      %v2124 = vld [vmem:[%s2116 + $0x1c] sm:$0xf]
      %v2125 = vld [vmem:[%s2116 + $0x20] sm:$0xf]
      %v2126 = vld [vmem:[%s2116 + $0x24] sm:$0xf]
      %v2127 = vld [vmem:[%s2116 + $0x28] sm:$0xf]
      %v2128 = vld [vmem:[%s2116 + $0x2c] sm:$0xf]
      %v2129 = vld [vmem:[%s2116 + $0x30] sm:$0xf]
      %v2130 = vld [vmem:[%s2116 + $0x34] sm:$0xf]
      %v2131 = vld [vmem:[%s2116 + $0x38] sm:$0xf]
      %v2132 = vld [vmem:[%s2116 + $0x3c] sm:$0xf]
      %v2133 = vunpack.c.l.b16 %v2115
      %v2134 = vpack.c.b16 %v1991, %v1990
      %v2135 = vpack.c.b16 %v2133, %v1992
      %v2154 = vunpack.c.l.b16 %v2117
      %v2155 = vunpack.c.l.b16 %v2118
      %v2156 = vunpack.c.l.b16 %v2119
      %v2157 = vunpack.c.l.b16 %v2120
      %v2158 = vunpack.c.l.b16 %v2121
      %v2159 = vunpack.c.l.b16 %v2122
      %v2160 = vunpack.c.l.b16 %v2123
      %v2161 = vunpack.c.l.b16 %v2124
      %v2162 = vunpack.c.l.b16 %v2125
      %v2163 = vunpack.c.l.b16 %v2126
      %v2164 = vunpack.c.l.b16 %v2127
      %v2165 = vunpack.c.l.b16 %v2128
      %v2166 = vunpack.c.l.b16 %v2129
      %v2167 = vunpack.c.l.b16 %v2130
      %v2168 = vunpack.c.l.b16 %v2131
      %v2169 = vunpack.c.l.b16 %v2132
      %v2170 = vpack.c.b16 %v2155, %v2154
      %v2171 = vpack.c.b16 %v2157, %v2156
      %v2172 = vpack.c.b16 %v2159, %v2158
      %v2173 = vpack.c.b16 %v2161, %v2160
      %v2174 = vpack.c.b16 %v2163, %v2162
      %v2175 = vpack.c.b16 %v2165, %v2164
      %v2176 = vpack.c.b16 %v2167, %v2166
      %v2177 = vpack.c.b16 %v2169, %v2168
      %2186 = vmatprep.subr.bf16.mxu0 0
      %2187 = vmatpush1.bf16.msra.mxu0 %v2170
      %2188 = vmatprep.subr.bf16.mxu0 0
      %2189 = vmatpush1.bf16.msra.mxu0 %v2171
      %2190 = vmatprep.subr.bf16.mxu0 0
      %2191 = vmatpush1.bf16.msra.mxu0 %v2172
      %2192 = vmatprep.subr.bf16.mxu0 0
      %2193 = vmatpush1.bf16.msra.mxu0 %v2173
      %2194 = vmatprep.subr.bf16.mxu0 0
      %2195 = vmatpush1.bf16.msra.mxu0 %v2174
      %2196 = vmatprep.subr.bf16.mxu0 0
      %2197 = vmatpush1.bf16.msra.mxu0 %v2175
      %2198 = vmatprep.subr.bf16.mxu0 0
      %2199 = vmatpush1.bf16.msra.mxu0 %v2176
      %2200 = vmatprep.subr.bf16.mxu0 0
      %2201 = vmatpush1.bf16.msra.mxu0 %v2177
      %2202 = vmatprep.subr.bf16.mxu0 0
      %2203 = vmatpush1.bf16.msra.mxu0 0
      %2204 = vmatprep.subr.bf16.mxu0 0
      %2205 = vmatpush1.bf16.msra.mxu0 0
      %2206 = vmatprep.subr.bf16.mxu0 0
      %2207 = vmatpush1.bf16.msra.mxu0 0
      %2208 = vmatprep.subr.bf16.mxu0 0
      %2209 = vmatpush1.bf16.msra.mxu0 0
      %2210 = vmatprep.subr.bf16.mxu0 0
      %2211 = vmatpush1.bf16.msra.mxu0 0
      %2212 = vmatprep.subr.bf16.mxu0 0
      %2213 = vmatpush1.bf16.msra.mxu0 0
      %2214 = vmatprep.subr.bf16.mxu0 0
      %2215 = vmatpush1.bf16.msra.mxu0 0
      %2216 = vmatprep.subr.bf16.mxu0 0
      %2217 = vmatpush1.bf16.msra.mxu0 0
      %2218 = vmatprep.mubr.bf16.mxu0 0
      %2219 = vmatmul.mubr.bf16.gmra.mrb[0].mxu0 %v2134
      %v2220 = vpop.f32.mrb[0].mxu0
      %v2221 = vadd.f32 0.0, %v2220
      %v2222 = vpop.f32.mrb[0].mxu0
      %v2223 = vpop.f32.mrb[0].mxu0
      %v2224 = vadd.f32 0.0, %v2223
      %v2225 = vpop.f32.mrb[0].mxu0
      %2226 = vmatprep.mubr.bf16.mxu0 0
      %2227 = vmatmul.mubr.bf16.gmra.mrb[0].mxu0 %v2135
      %v2228 = vpop.f32.mrb[0].mxu0
      %v2229 = vadd.f32 0.0, %v2228
      %v2230 = vpop.f32.mrb[0].mxu0
      %v2231 = vpop.f32.mrb[0].mxu0
      %v2232 = vadd.f32 0.0, %v2231
      %v2233 = vpop.f32.mrb[0].mxu0
      %2234 = vdwg.mxu0
      %v2235 = vadd.f32 %v2094, %v2221
      %v2236 = vadd.f32 %v2095, %v2224
      %v2237 = vadd.f32 %v2096, %v2229
      %v2238 = vadd.f32 %v2097, %v2232
      %v2240 = vshrl.u32 %v1352, 16
      %v2242 = vrot.slane %v2240, 5
      %v2243 = vshll.u32 %v1352, 16
      %v2245 = vrot.slane %v2243, 6
      %v2246 = vor.u32 %v2242, %v2245
      %v2247 = vrot.slane %v2246, 4
      %v2249 = vshrl.u32 %v1895, 16
      %v2251 = vrot.slane %v2249, 5
      %v2252 = vshll.u32 %v1895, 16
      %v2254 = vrot.slane %v2252, 6
      %v2255 = vor.u32 %v2251, %v2254
      %v2256 = vsel %vm1899, %v2247, %v2255
      %s2257 = scalar_lea.vmem %s223, 704
      %v2258 = vld [vmem:[%s2257] sm:$0xf]
      %v2259 = vld [vmem:[%s2257 + $0x4] sm:$0xf]
      %v2260 = vld [vmem:[%s2257 + $0x8] sm:$0xf]
      %v2261 = vld [vmem:[%s2257 + $0xc] sm:$0xf]
      %v2262 = vld [vmem:[%s2257 + $0x10] sm:$0xf]
      %v2263 = vld [vmem:[%s2257 + $0x14] sm:$0xf]
      %v2264 = vld [vmem:[%s2257 + $0x18] sm:$0xf]
      %v2265 = vld [vmem:[%s2257 + $0x1c] sm:$0xf]
      %v2266 = vld [vmem:[%s2257 + $0x20] sm:$0xf]
      %v2267 = vld [vmem:[%s2257 + $0x24] sm:$0xf]
      %v2268 = vld [vmem:[%s2257 + $0x28] sm:$0xf]
      %v2269 = vld [vmem:[%s2257 + $0x2c] sm:$0xf]
      %v2270 = vld [vmem:[%s2257 + $0x30] sm:$0xf]
      %v2271 = vld [vmem:[%s2257 + $0x34] sm:$0xf]
      %v2272 = vld [vmem:[%s2257 + $0x38] sm:$0xf]
      %v2273 = vld [vmem:[%s2257 + $0x3c] sm:$0xf]
      %v2274 = vunpack.c.l.b16 %v2256
      %v2275 = vpack.c.b16 %v2274, %v2133
      %v2293 = vunpack.c.l.b16 %v2258
      %v2294 = vunpack.c.l.b16 %v2259
      %v2295 = vunpack.c.l.b16 %v2260
      %v2296 = vunpack.c.l.b16 %v2261
      %v2297 = vunpack.c.l.b16 %v2262
      %v2298 = vunpack.c.l.b16 %v2263
      %v2299 = vunpack.c.l.b16 %v2264
      %v2300 = vunpack.c.l.b16 %v2265
      %v2301 = vunpack.c.l.b16 %v2266
      %v2302 = vunpack.c.l.b16 %v2267
      %v2303 = vunpack.c.l.b16 %v2268
      %v2304 = vunpack.c.l.b16 %v2269
      %v2305 = vunpack.c.l.b16 %v2270
      %v2306 = vunpack.c.l.b16 %v2271
      %v2307 = vunpack.c.l.b16 %v2272
      %v2308 = vunpack.c.l.b16 %v2273
      %v2309 = vpack.c.b16 %v2294, %v2293
      %v2310 = vpack.c.b16 %v2296, %v2295
      %v2311 = vpack.c.b16 %v2298, %v2297
      %v2312 = vpack.c.b16 %v2300, %v2299
      %v2313 = vpack.c.b16 %v2302, %v2301
      %v2314 = vpack.c.b16 %v2304, %v2303
      %v2315 = vpack.c.b16 %v2306, %v2305
      %v2316 = vpack.c.b16 %v2308, %v2307
      %2325 = vmatprep.subr.bf16.mxu0 0
      %2326 = vmatpush1.bf16.msra.mxu0 %v2309
      %2327 = vmatprep.subr.bf16.mxu0 0
      %2328 = vmatpush1.bf16.msra.mxu0 %v2310
      %2329 = vmatprep.subr.bf16.mxu0 0
      %2330 = vmatpush1.bf16.msra.mxu0 %v2311
      %2331 = vmatprep.subr.bf16.mxu0 0
      %2332 = vmatpush1.bf16.msra.mxu0 %v2312
      %2333 = vmatprep.subr.bf16.mxu0 0
      %2334 = vmatpush1.bf16.msra.mxu0 %v2313
      %2335 = vmatprep.subr.bf16.mxu0 0
      %2336 = vmatpush1.bf16.msra.mxu0 %v2314
      %2337 = vmatprep.subr.bf16.mxu0 0
      %2338 = vmatpush1.bf16.msra.mxu0 %v2315
      %2339 = vmatprep.subr.bf16.mxu0 0
      %2340 = vmatpush1.bf16.msra.mxu0 %v2316
      %2341 = vmatprep.subr.bf16.mxu0 0
      %2342 = vmatpush1.bf16.msra.mxu0 0
      %2343 = vmatprep.subr.bf16.mxu0 0
      %2344 = vmatpush1.bf16.msra.mxu0 0
      %2345 = vmatprep.subr.bf16.mxu0 0
      %2346 = vmatpush1.bf16.msra.mxu0 0
      %2347 = vmatprep.subr.bf16.mxu0 0
      %2348 = vmatpush1.bf16.msra.mxu0 0
      %2349 = vmatprep.subr.bf16.mxu0 0
      %2350 = vmatpush1.bf16.msra.mxu0 0
      %2351 = vmatprep.subr.bf16.mxu0 0
      %2352 = vmatpush1.bf16.msra.mxu0 0
      %2353 = vmatprep.subr.bf16.mxu0 0
      %2354 = vmatpush1.bf16.msra.mxu0 0
      %2355 = vmatprep.subr.bf16.mxu0 0
      %2356 = vmatpush1.bf16.msra.mxu0 0
      %2357 = vmatprep.mubr.bf16.mxu0 0
      %2358 = vmatmul.mubr.bf16.gmra.mrb[0].mxu0 %v1994
      %v2359 = vpop.f32.mrb[0].mxu0
      %v2360 = vadd.f32 0.0, %v2359
      %v2361 = vpop.f32.mrb[0].mxu0
      %v2362 = vpop.f32.mrb[0].mxu0
      %v2363 = vadd.f32 0.0, %v2362
      %v2364 = vpop.f32.mrb[0].mxu0
      %2365 = vmatprep.mubr.bf16.mxu0 0
      %2366 = vmatmul.mubr.bf16.gmra.mrb[0].mxu0 %v2275
      %v2367 = vpop.f32.mrb[0].mxu0
      %v2368 = vadd.f32 0.0, %v2367
      %v2369 = vpop.f32.mrb[0].mxu0
      %v2370 = vpop.f32.mrb[0].mxu0
      %v2371 = vadd.f32 0.0, %v2370
      %v2372 = vpop.f32.mrb[0].mxu0
      %2373 = vdwg.mxu0
      %v2374 = vadd.f32 %v2235, %v2360
      %v2375 = vadd.f32 %v2236, %v2363
      %v2376 = vadd.f32 %v2237, %v2368
      %v2377 = vadd.f32 %v2238, %v2371
      %v2379 = vshrl.u32 %v1353, 16
      %v2381 = vrot.slane %v2379, 5
      %v2382 = vshll.u32 %v1353, 16
      %v2384 = vrot.slane %v2382, 6
      %v2385 = vor.u32 %v2381, %v2384
      %v2386 = vrot.slane %v2385, 4
      %v2388 = vshrl.u32 %v1896, 16
      %v2390 = vrot.slane %v2388, 5
      %v2391 = vshll.u32 %v1896, 16
      %v2393 = vrot.slane %v2391, 6
      %v2394 = vor.u32 %v2390, %v2393
      %v2395 = vsel %vm1899, %v2386, %v2394
      %s2396 = scalar_lea.vmem %s223, 960
      %v2397 = vld [vmem:[%s2396] sm:$0xf]
      %v2398 = vld [vmem:[%s2396 + $0x4] sm:$0xf]
      %v2399 = vld [vmem:[%s2396 + $0x8] sm:$0xf]
      %v2400 = vld [vmem:[%s2396 + $0xc] sm:$0xf]
      %v2401 = vld [vmem:[%s2396 + $0x10] sm:$0xf]
      %v2402 = vld [vmem:[%s2396 + $0x14] sm:$0xf]
      %v2403 = vld [vmem:[%s2396 + $0x18] sm:$0xf]
      %v2404 = vld [vmem:[%s2396 + $0x1c] sm:$0xf]
      %v2405 = vld [vmem:[%s2396 + $0x20] sm:$0xf]
      %v2406 = vld [vmem:[%s2396 + $0x24] sm:$0xf]
      %v2407 = vld [vmem:[%s2396 + $0x28] sm:$0xf]
      %v2408 = vld [vmem:[%s2396 + $0x2c] sm:$0xf]
      %v2409 = vld [vmem:[%s2396 + $0x30] sm:$0xf]
      %v2410 = vld [vmem:[%s2396 + $0x34] sm:$0xf]
      %v2411 = vld [vmem:[%s2396 + $0x38] sm:$0xf]
      %v2412 = vld [vmem:[%s2396 + $0x3c] sm:$0xf]
      %v2413 = vunpack.c.l.b16 %v2395
      %v2414 = vpack.c.b16 %v2413, %v2274
      %v2432 = vunpack.c.l.b16 %v2397
      %v2433 = vunpack.c.l.b16 %v2398
      %v2434 = vunpack.c.l.b16 %v2399
      %v2435 = vunpack.c.l.b16 %v2400
      %v2436 = vunpack.c.l.b16 %v2401
      %v2437 = vunpack.c.l.b16 %v2402
      %v2438 = vunpack.c.l.b16 %v2403
      %v2439 = vunpack.c.l.b16 %v2404
      %v2440 = vunpack.c.l.b16 %v2405
      %v2441 = vunpack.c.l.b16 %v2406
      %v2442 = vunpack.c.l.b16 %v2407
      %v2443 = vunpack.c.l.b16 %v2408
      %v2444 = vunpack.c.l.b16 %v2409
      %v2445 = vunpack.c.l.b16 %v2410
      %v2446 = vunpack.c.l.b16 %v2411
      %v2447 = vunpack.c.l.b16 %v2412
      %v2448 = vpack.c.b16 %v2433, %v2432
      %v2449 = vpack.c.b16 %v2435, %v2434
      %v2450 = vpack.c.b16 %v2437, %v2436
      %v2451 = vpack.c.b16 %v2439, %v2438
      %v2452 = vpack.c.b16 %v2441, %v2440
      %v2453 = vpack.c.b16 %v2443, %v2442
      %v2454 = vpack.c.b16 %v2445, %v2444
      %v2455 = vpack.c.b16 %v2447, %v2446
      %2464 = vmatprep.subr.bf16.mxu0 0
      %2465 = vmatpush1.bf16.msra.mxu0 %v2448
      %2466 = vmatprep.subr.bf16.mxu0 0
      %2467 = vmatpush1.bf16.msra.mxu0 %v2449
      %2468 = vmatprep.subr.bf16.mxu0 0
      %2469 = vmatpush1.bf16.msra.mxu0 %v2450
      %2470 = vmatprep.subr.bf16.mxu0 0
      %2471 = vmatpush1.bf16.msra.mxu0 %v2451
      %2472 = vmatprep.subr.bf16.mxu0 0
      %2473 = vmatpush1.bf16.msra.mxu0 %v2452
      %2474 = vmatprep.subr.bf16.mxu0 0
      %2475 = vmatpush1.bf16.msra.mxu0 %v2453
      %2476 = vmatprep.subr.bf16.mxu0 0
      %2477 = vmatpush1.bf16.msra.mxu0 %v2454
      %2478 = vmatprep.subr.bf16.mxu0 0
      %2479 = vmatpush1.bf16.msra.mxu0 %v2455
      %2480 = vmatprep.subr.bf16.mxu0 0
      %2481 = vmatpush1.bf16.msra.mxu0 0
      %2482 = vmatprep.subr.bf16.mxu0 0
      %2483 = vmatpush1.bf16.msra.mxu0 0
      %2484 = vmatprep.subr.bf16.mxu0 0
      %2485 = vmatpush1.bf16.msra.mxu0 0
      %2486 = vmatprep.subr.bf16.mxu0 0
      %2487 = vmatpush1.bf16.msra.mxu0 0
      %2488 = vmatprep.subr.bf16.mxu0 0
      %2489 = vmatpush1.bf16.msra.mxu0 0
      %2490 = vmatprep.subr.bf16.mxu0 0
      %2491 = vmatpush1.bf16.msra.mxu0 0
      %2492 = vmatprep.subr.bf16.mxu0 0
      %2493 = vmatpush1.bf16.msra.mxu0 0
      %2494 = vmatprep.subr.bf16.mxu0 0
      %2495 = vmatpush1.bf16.msra.mxu0 0
      %2496 = vmatprep.mubr.bf16.mxu0 0
      %2497 = vmatmul.mubr.bf16.gmra.mrb[0].mxu0 %v2135
      %v2498 = vpop.f32.mrb[0].mxu0
      %v2499 = vadd.f32 0.0, %v2498
      %v2500 = vpop.f32.mrb[0].mxu0
      %v2501 = vpop.f32.mrb[0].mxu0
      %v2502 = vadd.f32 0.0, %v2501
      %v2503 = vpop.f32.mrb[0].mxu0
      %2504 = vmatprep.mubr.bf16.mxu0 0
      %2505 = vmatmul.mubr.bf16.gmra.mrb[0].mxu0 %v2414
      %v2506 = vpop.f32.mrb[0].mxu0
      %v2507 = vadd.f32 0.0, %v2506
      %v2508 = vpop.f32.mrb[0].mxu0
      %v2509 = vpop.f32.mrb[0].mxu0
      %v2510 = vadd.f32 0.0, %v2509
      %v2511 = vpop.f32.mrb[0].mxu0
      %2512 = vdwg.mxu0
      %v2513 = vadd.f32 %v2374, %v2499
      %v2514 = vadd.f32 %v2375, %v2502
      %v2515 = vadd.f32 %v2376, %v2507
      %v2516 = vadd.f32 %v2377, %v2510
      %v2517 = vld [vmem:[%s226] sm:$0x1]
      %v2519 = vlaneseq
      %v2520 = vshrl.u32 %v2519, 7
      %v2521 = vsub.s32 0, %v2520
      %v2522 = vrot.slane %v2517, %v2521
      %v2524 = vadd.f32 %v2513, %v2522
      %v2525 = vadd.f32 %v2514, %v2522
      %v2526 = vadd.f32 %v2515, %v2522
      %v2527 = vadd.f32 %v2516, %v2522
      %vm2528 = vcmp.gt.f32.partialorder %v2524, 0.0
      %vm2529 = vcmp.gt.f32.partialorder %v2525, 0.0
      %vm2530 = vcmp.gt.f32.partialorder %v2526, 0.0
      %vm2531 = vcmp.gt.f32.partialorder %v2527, 0.0
      %v2532 = vmul.f32 %v2524, 0.2
      %v2533 = vmul.f32 %v2525, 0.2
      %v2534 = vmul.f32 %v2526, 0.2
      %v2535 = vmul.f32 %v2527, 0.2
      %v2536 = vsel %vm2528, %v2524, %v2532
      %v2537 = vsel %vm2529, %v2525, %v2533
      %v2538 = vsel %vm2530, %v2526, %v2534
      %v2539 = vsel %vm2531, %v2527, %v2535
      %v2540 = vlaneseq
      %v2541 = vshrl.u32 %v2540, 7
      %vm2542 = vcmp.lt.s32.totalorder %v2541, 4
      %v2543 = vsel %vm2542, 1, 0
      %vm2544 = vcmp.eq.s32.totalorder %v2543, 1
      %v2545 = vsel %vm2544, %v2536, 0.0
      %v2546 = vsel %vm2544, %v2537, 0.0
      %v2547 = vsel %vm2544, %v2538, 0.0
      %v2548 = vsel %vm2544, %v2539, 0.0
      %v2549 = vpack.c.bf16 %v2545, %v2545
      %v2550 = vpack.c.bf16 %v2546, %v2546
      %v2551 = vpack.c.bf16 %v2547, %v2547
      %v2552 = vpack.c.bf16 %v2548, %v2548
      %2553 = vst [vmem:[%s238] sm:$0xf] %v2549
      %2554 = vst [vmem:[%s238 + $0x4] sm:$0xf] %v2550
      %2555 = vst [vmem:[%s238 + $0x8] sm:$0xf] %v2551
      %2556 = vst [vmem:[%s238 + $0xc] sm:$0xf] %v2552
      %s2557 = smul.u32 4, %s20
      %p2558 = scmp.lt.s32.totalorder %s19, 1
      %s2559 = scalar_select %p2558, %s19, 1
      %p2560 = scmp.lt.s32.totalorder %s2557, 3
      %s2561 = scalar_select %p2560, %s2557, 3
      %p2562 = scmp.lt.s32.totalorder %s21, 0
      %s2563 = scalar_select %p2562, %s21, 0
      %s2564 = sadd.s32 %s2563, %s2561
      %s2565 = smul.addr %s2559, 4
      %s2566 = sadd.s32 %s2564, %s2565
      %s2567 = smul.addr %s2566, 4
      %s2568 = scalar_lea.vmem %s3, %s2567
      // Predicated region
      $region33: #{_lambda_.8} parent=31 // pred_check
        %p2569 = pneg %p133
      $region34: #{_lambda_.8} parent=31 // pred_check_branch
        %2571 = sbr.rel (%p2569) target = $region36
      $region35: #{_lambda_.8} parent=31 // pred_region
        %s2572 = smul.u32 4, %s20
      $region36: #{_lambda_.8} parent=31 // pred_fallthru
        _
    $region32: #{_lambda_.8} parent=5 // pred_fallthru
      _
    %p2573 = scmp.le.s32.totalorder 2, %s9
    // Predicated region
    $region37: #{_lambda_.8} parent=5 // pred_check
      %p2574 = pneg %p2573
    $region38: #{_lambda_.8} parent=5 // pred_check_branch
      %2576 = sbr.rel (%p2574) target = $region40
    $region39: #{_lambda_.8} parent=5 // pred_region
      %s2577 = ssub.s32 %s9, 2
      // Predicated region
      $region41: #{_lambda_.8} parent=39 // pred_check
        %p2578 = pneg %p139
      $region42: #{_lambda_.8} parent=39 // pred_check_branch
        %2580 = sbr.rel (%p2578) target = $region44
      $region43: #{_lambda_.8} parent=39 // pred_region
        %s2581 = smul.u32 4, %s23
        %p2582 = scmp.lt.s32.totalorder %s22, 1
        %s2583 = scalar_select %p2582, %s22, 1
        %p2584 = scmp.lt.s32.totalorder %s2581, 3
        %s2585 = scalar_select %p2584, %s2581, 3
        %p2586 = scmp.lt.s32.totalorder %s24, 0
        %s2587 = scalar_select %p2586, %s24, 0
        %s2588 = sadd.s32 %s2587, %s2585
        %s2589 = smul.addr %s2583, 4
        %s2590 = sadd.s32 %s2588, %s2589
        %s2591 = smul.addr %s2590, 4
        %s2592 = scalar_lea.vmem %s3, %s2591
      $region44: #{_lambda_.8} parent=39 // pred_fallthru
        _
    $region40: #{_lambda_.8} parent=5 // pred_fallthru
      _
  $region6: #{_lambda_.8} parent=0 // loop_footer
    %s13 = sadd.s32 1, %s9
  $region7: #{_lambda_.8} parent=0 // loop_footer_branch
    %8 = sbr.rel target = $region3
  $region8: #{_lambda_.8} parent=0 // loop_exit
    _

// kernel: _lambda_.9
$region0: #{_lambda_.9}
  #allocation0 [shape = 'u32[]', space=smem, size = 0x4, offset = 0x4, fixed_abs, tag = 'smem constant byte address 0x4 - core index']
  #allocation1 [shape = 'u32[144,128]{1,0:T(1,128)}', space=vmem, size = 0x12000, scoped, tag = 'internal scratch']
  %s0 = inlined_call_operand.vmem [shape: bf16[2,8,11,128], index: 0, kind: input, shape index: {}]
  %s1 = inlined_call_operand.vmem [shape: bf16[4,4,128,128], index: 1, kind: input, shape index: {}]
  %s2 = inlined_call_operand.vmem [shape: f32[1,128], index: 2, kind: input, shape index: {}]
  %s3 = inlined_call_operand.vmem [shape: bf16[2,5,8,128], index: 3, kind: output, shape index: {}]
  %s4 = sld [smem:[#allocation0]]
  $region45: #{_lambda_.9} parent=0
    _
  %s6 = ssub.s32 1, %s4
  %s7 = scalar_select 0, %s6, %s4
  loop: start=0, step=1, limit=4
  $region2: #{_lambda_.9} parent=0 // loop_pre_header
    _
  $region3: #{_lambda_.9} parent=0 // loop_header
    %s9 = sphi 0, %s13
    %p10 = scmp.ge.s32.totalorder %s9, 4
    %s16 = sphi 0, %s35
    %s17 = sphi 0, %s31
    %s18 = sphi 0, %s27
    %s19 = sphi 0, %s16
    %s20 = sphi 0, %s17
    %s21 = sphi 0, %s18
    %s22 = sphi 0, %s19
    %s23 = sphi 0, %s20
    %s24 = sphi 0, %s21
    %s38 = sphi 0, %s40
    %s41 = sphi 0, %s38
    %s42 = sphi 0, %s41
    %s58 = sphi 0, %s42
    %s64 = sphi 0, %s66
    %s67 = sphi 0, %s64
    %s68 = sphi 0, %s67
    %s84 = sphi 0, %s68
    %s90 = sphi 0, %s92
    %s93 = sphi 0, %s90
    %s94 = sphi 0, %s93
    %s110 = sphi 0, %s94
    %s120 = sphi 0, %s122
    %s123 = sphi 0, %s120
    %s124 = sphi 0, %s123
    %s140 = sphi 0, %s124
  $region4: #{_lambda_.9} parent=0 // loop_header_branch
    %12 = sbr.rel (%p10) target = $region8
  $region5: #{_lambda_.9} parent=0 // loop_body
    %s14 = ssub.s32 %s9, 1
    %s15 = ssub.s32 %s9, 2
    %s25 = sadd.s32 1, %s18
    %p26 = scmp.ge.s32.totalorder %s25, 1
    %s27 = scalar_select %p26, 0, %s25
    %s28 = sadd.s32 1, %s17
    %s29 = scalar_select %p26, %s28, %s17
    %p30 = scmp.ge.s32.totalorder %s29, 1
    %s31 = scalar_select %p30, 0, %s29
    %s32 = sadd.s32 1, %s16
    %s33 = scalar_select %p30, %s32, %s16
    %p34 = scmp.ge.s32.totalorder %s33, 2
    %s35 = scalar_select %p34, 0, %s33
    %s36 = ssub.s32 %s16, %s35
    %p37 = scmp.eq.s32.totalorder %s36, 0
    %s39 = sadd.s32 %s38, 1
    %s40 = scalar_select %p37, %s38, %s39
    %p43 = pneg %p37
    %p44 = scmp.eq.s32.totalorder %s9, 1
    %p45 = por %p43, %p44
    %p46 = scmp.ne.s32.totalorder %s38, %s41
    %p47 = scmp.eq.s32.totalorder %s9, 0
    %p48 = por %p46, %p47
    %p49 = scmp.ne.s32.totalorder %s38, %s41
    %p50 = scmp.eq.s32.totalorder %s14, 1
    %p51 = por %p49, %p50
    %p52 = scmp.ne.s32.totalorder %s41, %s42
    %p53 = scmp.eq.s32.totalorder %s14, 0
    %p54 = por %p52, %p53
    %p55 = scmp.ne.s32.totalorder %s41, %s42
    %p56 = scmp.eq.s32.totalorder %s15, 1
    %p57 = por %p55, %p56
    %p59 = scmp.ne.s32.totalorder %s42, %s58
    %p60 = scmp.eq.s32.totalorder %s15, 0
    %p61 = por %p59, %p60
    %s62 = ssub.s32 %s18, %s27
    %p63 = scmp.eq.s32.totalorder %s62, 0
    %s65 = sadd.s32 %s64, 1
    %s66 = scalar_select %p63, %s64, %s65
    %p69 = pneg %p63
    %p70 = scmp.eq.s32.totalorder %s9, 1
    %p71 = por %p69, %p70
    %p72 = scmp.ne.s32.totalorder %s64, %s67
    %p73 = scmp.eq.s32.totalorder %s9, 0
    %p74 = por %p72, %p73
    %p75 = scmp.ne.s32.totalorder %s64, %s67
    %p76 = scmp.eq.s32.totalorder %s14, 1
    %p77 = por %p75, %p76
    %p78 = scmp.ne.s32.totalorder %s67, %s68
    %p79 = scmp.eq.s32.totalorder %s14, 0
    %p80 = por %p78, %p79
    %p81 = scmp.ne.s32.totalorder %s67, %s68
    %p82 = scmp.eq.s32.totalorder %s15, 1
    %p83 = por %p81, %p82
    %p85 = scmp.ne.s32.totalorder %s68, %s84
    %p86 = scmp.eq.s32.totalorder %s15, 0
    %p87 = por %p85, %p86
    %s88 = ssub.s32 %s18, %s27
    %p89 = scmp.eq.s32.totalorder %s88, 0
    %s91 = sadd.s32 %s90, 1
    %s92 = scalar_select %p89, %s90, %s91
    %p95 = pneg %p89
    %p96 = scmp.eq.s32.totalorder %s9, 1
    %p97 = por %p95, %p96
    %p98 = scmp.ne.s32.totalorder %s90, %s93
    %p99 = scmp.eq.s32.totalorder %s9, 0
    %p100 = por %p98, %p99
    %p101 = scmp.ne.s32.totalorder %s90, %s93
    %p102 = scmp.eq.s32.totalorder %s14, 1
    %p103 = por %p101, %p102
    %p104 = scmp.ne.s32.totalorder %s93, %s94
    %p105 = scmp.eq.s32.totalorder %s14, 0
    %p106 = por %p104, %p105
    %p107 = scmp.ne.s32.totalorder %s93, %s94
    %p108 = scmp.eq.s32.totalorder %s15, 1
    %p109 = por %p107, %p108
    %p111 = scmp.ne.s32.totalorder %s94, %s110
    %p112 = scmp.eq.s32.totalorder %s15, 0
    %p113 = por %p111, %p112
    %s114 = ssub.s32 %s16, %s35
    %s115 = ssub.s32 %s17, %s31
    %s116 = sor.u32 %s114, %s115
    %s117 = ssub.s32 %s18, %s27
    %s118 = sor.u32 %s116, %s117
    %p119 = scmp.eq.s32.totalorder %s118, 0
    %s121 = sadd.s32 %s120, 1
    %s122 = scalar_select %p119, %s120, %s121
    %p125 = pneg %p119
    %p126 = scmp.eq.s32.totalorder %s9, 1
    %p127 = por %p125, %p126
    %p128 = scmp.ne.s32.totalorder %s120, %s123
    %p129 = scmp.eq.s32.totalorder %s9, 0
    %p130 = por %p128, %p129
    %p131 = scmp.ne.s32.totalorder %s120, %s123
    %p132 = scmp.eq.s32.totalorder %s14, 1
    %p133 = por %p131, %p132
    %p134 = scmp.ne.s32.totalorder %s123, %s124
    %p135 = scmp.eq.s32.totalorder %s14, 0
    %p136 = por %p134, %p135
    %p137 = scmp.ne.s32.totalorder %s123, %s124
    %p138 = scmp.eq.s32.totalorder %s15, 1
    %p139 = por %p137, %p138
    %p141 = scmp.ne.s32.totalorder %s124, %s140
    %p142 = scmp.eq.s32.totalorder %s15, 0
    %p143 = por %p141, %p142
    %p144 = scmp.le.s32.totalorder 1, %s9
    %p145 = scmp.lt.s32.totalorder %s9, 3
    %p146 = pnand %p144, %p145
    %p147 = pneg %p146
    // Predicated region
    $region9: #{_lambda_.9} parent=5 // pred_check
      _
    $region10: #{_lambda_.9} parent=5 // pred_check_branch
      %149 = sbr.rel (%p146) target = $region12
    $region11: #{_lambda_.9} parent=5 // pred_region
      %s150 = ssub.s32 %s9, 1
      // Predicated region
      $region13: #{_lambda_.9} parent=11 // pred_check
        %p151 = pneg %p80
      $region14: #{_lambda_.9} parent=11 // pred_check_branch
        %153 = sbr.rel (%p151) target = $region16
      $region15: #{_lambda_.9} parent=11 // pred_region
        %p154 = scmp.lt.s32.totalorder %s21, 0
        %s155 = scalar_select %p154, %s21, 0
        %s156 = smul.addr %s155, 4
        %s157 = scalar_lea.vmem %s1, %s156
      $region16: #{_lambda_.9} parent=11 // pred_fallthru
        _
      // Predicated region
      $region17: #{_lambda_.9} parent=11 // pred_check
        %p158 = pneg %p106
      $region18: #{_lambda_.9} parent=11 // pred_check_branch
        %160 = sbr.rel (%p158) target = $region20
      $region19: #{_lambda_.9} parent=11 // pred_region
        %p161 = scmp.lt.s32.totalorder %s21, 0
        %s162 = scalar_select %p161, %s21, 0
        %s163 = scalar_lea.vmem %s2, %s162
      $region20: #{_lambda_.9} parent=11 // pred_fallthru
        _
    $region12: #{_lambda_.9} parent=5 // pred_fallthru
      _
    %p164 = scmp.lt.s32.totalorder %s9, 2
    // Predicated region
    $region21: #{_lambda_.9} parent=5 // pred_check
      %p165 = pneg %p164
    $region22: #{_lambda_.9} parent=5 // pred_check_branch
      %167 = sbr.rel (%p165) target = $region24
    $region23: #{_lambda_.9} parent=5 // pred_region
      // Predicated region
      $region25: #{_lambda_.9} parent=23 // pred_check
        %p168 = pneg %p48
      $region26: #{_lambda_.9} parent=23 // pred_check_branch
        %170 = sbr.rel (%p168) target = $region28
      $region27: #{_lambda_.9} parent=23 // pred_region
        %p171 = scmp.lt.s32.totalorder %s16, 1
        %s172 = scalar_select %p171, %s16, 1
        %s173 = smul.addr %s172, 16
        %s174 = smul.addr %s173, 4
        %s175 = scalar_lea.vmem %s0, %s174
      $region28: #{_lambda_.9} parent=23 // pred_fallthru
        _
    $region24: #{_lambda_.9} parent=5 // pred_fallthru
      _
    %p176 = scmp.le.s32.totalorder 1, %s9
    %p177 = scmp.lt.s32.totalorder %s9, 3
    %p178 = pnand %p176, %p177
    %p179 = pneg %p178
    // Predicated region
    $region29: #{_lambda_.9} parent=5 // pred_check
      _
    $region30: #{_lambda_.9} parent=5 // pred_check_branch
      %181 = sbr.rel (%p178) target = $region32
    $region31: #{_lambda_.9} parent=5 // pred_region
      %s182 = ssub.s32 %s9, 1
      %p183 = scmp.lt.s32.totalorder %s19, 1
      %s184 = scalar_select %p183, %s19, 1
      %s185 = smul.addr %s184, 16
      %s186 = smul.addr %s185, 4
      %s187 = scalar_lea.vmem %s0, %s186
      %p188 = pneg %p54
      %p189 = pneg %p51
      %p190 = scmp.lt.s32.totalorder %s21, 0
      %s191 = scalar_select %p190, %s21, 0
      %s192 = smul.addr %s191, 4
      %s193 = scalar_lea.vmem %s1, %s192
      %p194 = pneg %p80
      %p195 = pneg %p77
      %p196 = scmp.lt.s32.totalorder %s21, 0
      %s197 = scalar_select %p196, %s21, 0
      %s198 = scalar_lea.vmem %s2, %s197
      %p199 = pneg %p106
      %p200 = pneg %p103
      %p201 = pneg %p136
      %p202 = pneg %p133
      %s203 = smul.u32 5, %s20
      %p204 = scmp.lt.s32.totalorder %s19, 1
      %s205 = scalar_select %p204, %s19, 1
      %p206 = scmp.lt.s32.totalorder %s203, 4
      %s207 = scalar_select %p206, %s203, 4
      %p208 = scmp.lt.s32.totalorder %s21, 0
      %s209 = scalar_select %p208, %s21, 0
      %s210 = sadd.s32 %s209, %s207
      %s211 = smul.addr %s205, 5
      %s212 = sadd.s32 %s210, %s211
      %s213 = smul.addr %s212, 4
      %s214 = scalar_lea.vmem %s3, %s213
      %p215 = scmp.lt.s32.totalorder %s19, 1
      %s216 = scalar_select %p215, %s19, 1
      %s217 = smul.addr %s216, 16
      %s218 = smul.addr %s217, 4
      %s219 = scalar_lea.vmem %s0, %s218
      %p220 = scmp.lt.s32.totalorder %s21, 0
      %s221 = scalar_select %p220, %s21, 0
      %s222 = smul.addr %s221, 4
      %s223 = scalar_lea.vmem %s1, %s222
      %p224 = scmp.lt.s32.totalorder %s21, 0
      %s225 = scalar_select %p224, %s21, 0
      %s226 = scalar_lea.vmem %s2, %s225
      %s227 = smul.u32 5, %s20
      %p228 = scmp.lt.s32.totalorder %s19, 1
      %s229 = scalar_select %p228, %s19, 1
      %p230 = scmp.lt.s32.totalorder %s227, 4
      %s231 = scalar_select %p230, %s227, 4
      %p232 = scmp.lt.s32.totalorder %s21, 0
      %s233 = scalar_select %p232, %s21, 0
      %s234 = sadd.s32 %s233, %s231
      %s235 = smul.addr %s229, 5
      %s236 = sadd.s32 %s234, %s235
      %s237 = smul.addr %s236, 4
      %s238 = scalar_lea.vmem %s3, %s237
      %s239 = smul.u32 5, %s20
      %s241 = smul.u32 %s20, 5
      %s242 = smul.u32 %s241, 2
      %s243 = smul.addr %s242, 4
      %s244 = scalar_lea.vmem %s219, %s243
      %v245 = vld [vmem:[%s244] sm:$0xf]
      %v246 = vld [vmem:[%s244 + $0x8] sm:$0xf]
      %v247 = vld [vmem:[%s244 + $0x10] sm:$0xf]
      %v248 = vld [vmem:[%s244 + $0x18] sm:$0xf]
      %v249 = vld [vmem:[%s244 + $0x20] sm:$0xf]
      %v250 = vld [vmem:[%s244 + $0x28] sm:$0xf]
      %v251 = vld [vmem:[%s244 + $0x30] sm:$0xf]
      %v252 = vld [vmem:[%s244 + $0x38] sm:$0xf]
      %v253 = vld [vmem:[%s223] sm:$0xf]
      %v254 = vld [vmem:[%s223 + $0x4] sm:$0xf]
      %v255 = vld [vmem:[%s223 + $0x8] sm:$0xf]
      %v256 = vld [vmem:[%s223 + $0xc] sm:$0xf]
      %v257 = vld [vmem:[%s223 + $0x10] sm:$0xf]
      %v258 = vld [vmem:[%s223 + $0x14] sm:$0xf]
      %v259 = vld [vmem:[%s223 + $0x18] sm:$0xf]
      %v260 = vld [vmem:[%s223 + $0x1c] sm:$0xf]
      %v261 = vld [vmem:[%s223 + $0x20] sm:$0xf]
      %v262 = vld [vmem:[%s223 + $0x24] sm:$0xf]
      %v263 = vld [vmem:[%s223 + $0x28] sm:$0xf]
      %v264 = vld [vmem:[%s223 + $0x2c] sm:$0xf]
      %v265 = vld [vmem:[%s223 + $0x30] sm:$0xf]
      %v266 = vld [vmem:[%s223 + $0x34] sm:$0xf]
      %v267 = vld [vmem:[%s223 + $0x38] sm:$0xf]
      %v268 = vld [vmem:[%s223 + $0x3c] sm:$0xf]
      %s269 = scalar_lea.vmem %s223, 256
      %v270 = vld [vmem:[%s269] sm:$0xf]
      %v271 = vld [vmem:[%s269 + $0x4] sm:$0xf]
      %v272 = vld [vmem:[%s269 + $0x8] sm:$0xf]
      %v273 = vld [vmem:[%s269 + $0xc] sm:$0xf]
      %v274 = vld [vmem:[%s269 + $0x10] sm:$0xf]
      %v275 = vld [vmem:[%s269 + $0x14] sm:$0xf]
      %v276 = vld [vmem:[%s269 + $0x18] sm:$0xf]
      %v277 = vld [vmem:[%s269 + $0x1c] sm:$0xf]
      %v278 = vld [vmem:[%s269 + $0x20] sm:$0xf]
      %v279 = vld [vmem:[%s269 + $0x24] sm:$0xf]
      %v280 = vld [vmem:[%s269 + $0x28] sm:$0xf]
      %v281 = vld [vmem:[%s269 + $0x2c] sm:$0xf]
      %v282 = vld [vmem:[%s269 + $0x30] sm:$0xf]
      %v283 = vld [vmem:[%s269 + $0x34] sm:$0xf]
      %v284 = vld [vmem:[%s269 + $0x38] sm:$0xf]
      %v285 = vld [vmem:[%s269 + $0x3c] sm:$0xf]
      %v291 = vunpack.c.l.b16 %v246
      %v292 = vunpack.c.l.b16 %v247
      %v293 = vunpack.c.l.b16 %v248
      %v294 = vunpack.c.l.b16 %v249
      %v295 = vunpack.c.l.b16 %v250
      %v296 = vpack.c.b16 %v292, %v291
      %v297 = vpack.c.b16 %v294, %v293
      %v298 = vpack.c.b16 %v295, %v295
      %v318 = vunpack.c.l.b16 %v270
      %v319 = vunpack.c.l.b16 %v271
      %v320 = vunpack.c.l.b16 %v272
      %v321 = vunpack.c.l.b16 %v273
      %v322 = vunpack.c.l.b16 %v274
      %v323 = vunpack.c.l.b16 %v275
      %v324 = vunpack.c.l.b16 %v276
      %v325 = vunpack.c.l.b16 %v277
      %v326 = vunpack.c.l.b16 %v278
      %v327 = vunpack.c.l.b16 %v279
      %v328 = vunpack.c.l.b16 %v280
      %v329 = vunpack.c.l.b16 %v281
      %v330 = vunpack.c.l.b16 %v282
      %v331 = vunpack.c.l.b16 %v283
      %v332 = vunpack.c.l.b16 %v284
      %v333 = vunpack.c.l.b16 %v285
      %v334 = vpack.c.b16 %v319, %v318
      %v335 = vpack.c.b16 %v321, %v320
      %v336 = vpack.c.b16 %v323, %v322
      %v337 = vpack.c.b16 %v325, %v324
      %v338 = vpack.c.b16 %v327, %v326
      %v339 = vpack.c.b16 %v329, %v328
      %v340 = vpack.c.b16 %v331, %v330
      %v341 = vpack.c.b16 %v333, %v332
      %350 = vmatprep.subr.bf16.mxu0 0
      %351 = vmatpush1.bf16.msra.mxu0 %v334
      %352 = vmatprep.subr.bf16.mxu0 0
      %353 = vmatpush1.bf16.msra.mxu0 %v335
      %354 = vmatprep.subr.bf16.mxu0 0
      %355 = vmatpush1.bf16.msra.mxu0 %v336
      %356 = vmatprep.subr.bf16.mxu0 0
      %357 = vmatpush1.bf16.msra.mxu0 %v337
      %358 = vmatprep.subr.bf16.mxu0 0
      %359 = vmatpush1.bf16.msra.mxu0 %v338
      %360 = vmatprep.subr.bf16.mxu0 0
      %361 = vmatpush1.bf16.msra.mxu0 %v339
      %362 = vmatprep.subr.bf16.mxu0 0
      %363 = vmatpush1.bf16.msra.mxu0 %v340
      %364 = vmatprep.subr.bf16.mxu0 0
      %365 = vmatpush1.bf16.msra.mxu0 %v341
      %366 = vmatprep.subr.bf16.mxu0 0
      %367 = vmatpush1.bf16.msra.mxu0 0
      %368 = vmatprep.subr.bf16.mxu0 0
      %369 = vmatpush1.bf16.msra.mxu0 0
      %370 = vmatprep.subr.bf16.mxu0 0
      %371 = vmatpush1.bf16.msra.mxu0 0
      %372 = vmatprep.subr.bf16.mxu0 0
      %373 = vmatpush1.bf16.msra.mxu0 0
      %374 = vmatprep.subr.bf16.mxu0 0
      %375 = vmatpush1.bf16.msra.mxu0 0
      %376 = vmatprep.subr.bf16.mxu0 0
      %377 = vmatpush1.bf16.msra.mxu0 0
      %378 = vmatprep.subr.bf16.mxu0 0
      %379 = vmatpush1.bf16.msra.mxu0 0
      %380 = vmatprep.subr.bf16.mxu0 0
      %381 = vmatpush1.bf16.msra.mxu0 0
      %382 = vmatprep.mubr.bf16.mxu0 0
      %383 = vmatmul.mubr.bf16.gmra.mrb[0].mxu0 %v296
      %v384 = vpop.f32.mrb[0].mxu0
      %v385 = vadd.f32 0.0, %v384
      %v386 = vpop.f32.mrb[0].mxu0
      %v387 = vpop.f32.mrb[0].mxu0
      %v388 = vadd.f32 0.0, %v387
      %v389 = vpop.f32.mrb[0].mxu0
      %390 = vmatprep.mubr.bf16.mxu0 0
      %391 = vmatmul.mubr.bf16.gmra.mrb[0].mxu0 %v297
      %v392 = vpop.f32.mrb[0].mxu0
      %v393 = vadd.f32 0.0, %v392
      %v394 = vpop.f32.mrb[0].mxu0
      %v395 = vpop.f32.mrb[0].mxu0
      %v396 = vadd.f32 0.0, %v395
      %v397 = vpop.f32.mrb[0].mxu0
      %398 = vmatprep.mubr.bf16.mxu0 0
      %399 = vmatmul.mubr.bf16.gmra.mrb[0].mxu0 %v298
      %v400 = vpop.f32.mrb[0].mxu0
      %v401 = vadd.f32 0.0, %v400
      %v402 = vpop.f32.mrb[0].mxu0
      %v403 = vpop.f32.mrb[0].mxu0
      %v404 = vpop.f32.mrb[0].mxu0
      %405 = vdwg.mxu0
      %v407 = vunpack.c.l.b16 %v245
      %v408 = vpack.c.b16 %v291, %v407
      %v409 = vpack.c.b16 %v293, %v292
      %v410 = vpack.c.b16 %v294, %v294
      %v430 = vunpack.c.l.b16 %v253
      %v431 = vunpack.c.l.b16 %v254
      %v432 = vunpack.c.l.b16 %v255
      %v433 = vunpack.c.l.b16 %v256
      %v434 = vunpack.c.l.b16 %v257
      %v435 = vunpack.c.l.b16 %v258
      %v436 = vunpack.c.l.b16 %v259
      %v437 = vunpack.c.l.b16 %v260
      %v438 = vunpack.c.l.b16 %v261
      %v439 = vunpack.c.l.b16 %v262
      %v440 = vunpack.c.l.b16 %v263
      %v441 = vunpack.c.l.b16 %v264
      %v442 = vunpack.c.l.b16 %v265
      %v443 = vunpack.c.l.b16 %v266
      %v444 = vunpack.c.l.b16 %v267
      %v445 = vunpack.c.l.b16 %v268
      %v446 = vpack.c.b16 %v431, %v430
      %v447 = vpack.c.b16 %v433, %v432
      %v448 = vpack.c.b16 %v435, %v434
      %v449 = vpack.c.b16 %v437, %v436
      %v450 = vpack.c.b16 %v439, %v438
      %v451 = vpack.c.b16 %v441, %v440
      %v452 = vpack.c.b16 %v443, %v442
      %v453 = vpack.c.b16 %v445, %v444
      %462 = vmatprep.subr.bf16.mxu0 0
      %463 = vmatpush1.bf16.msra.mxu0 %v446
      %464 = vmatprep.subr.bf16.mxu0 0
      %465 = vmatpush1.bf16.msra.mxu0 %v447
      %466 = vmatprep.subr.bf16.mxu0 0
      %467 = vmatpush1.bf16.msra.mxu0 %v448
      %468 = vmatprep.subr.bf16.mxu0 0
      %469 = vmatpush1.bf16.msra.mxu0 %v449
      %470 = vmatprep.subr.bf16.mxu0 0
      %471 = vmatpush1.bf16.msra.mxu0 %v450
      %472 = vmatprep.subr.bf16.mxu0 0
      %473 = vmatpush1.bf16.msra.mxu0 %v451
      %474 = vmatprep.subr.bf16.mxu0 0
      %475 = vmatpush1.bf16.msra.mxu0 %v452
      %476 = vmatprep.subr.bf16.mxu0 0
      %477 = vmatpush1.bf16.msra.mxu0 %v453
      %478 = vmatprep.subr.bf16.mxu0 0
      %479 = vmatpush1.bf16.msra.mxu0 0
      %480 = vmatprep.subr.bf16.mxu0 0
      %481 = vmatpush1.bf16.msra.mxu0 0
      %482 = vmatprep.subr.bf16.mxu0 0
      %483 = vmatpush1.bf16.msra.mxu0 0
      %484 = vmatprep.subr.bf16.mxu0 0
      %485 = vmatpush1.bf16.msra.mxu0 0
      %486 = vmatprep.subr.bf16.mxu0 0
      %487 = vmatpush1.bf16.msra.mxu0 0
      %488 = vmatprep.subr.bf16.mxu0 0
      %489 = vmatpush1.bf16.msra.mxu0 0
      %490 = vmatprep.subr.bf16.mxu0 0
      %491 = vmatpush1.bf16.msra.mxu0 0
      %492 = vmatprep.subr.bf16.mxu0 0
      %493 = vmatpush1.bf16.msra.mxu0 0
      %494 = vmatprep.mubr.bf16.mxu0 0
      %495 = vmatmul.mubr.bf16.gmra.mrb[0].mxu0 %v408
      %v496 = vpop.f32.mrb[0].mxu0
      %v497 = vadd.f32 %v385, %v496
      %v498 = vpop.f32.mrb[0].mxu0
      %v499 = vpop.f32.mrb[0].mxu0
      %v500 = vadd.f32 %v388, %v499
      %v501 = vpop.f32.mrb[0].mxu0
      %502 = vmatprep.mubr.bf16.mxu0 0
      %503 = vmatmul.mubr.bf16.gmra.mrb[0].mxu0 %v409
      %v504 = vpop.f32.mrb[0].mxu0
      %v505 = vadd.f32 %v393, %v504
      %v506 = vpop.f32.mrb[0].mxu0
      %v507 = vpop.f32.mrb[0].mxu0
      %v508 = vadd.f32 %v396, %v507
      %v509 = vpop.f32.mrb[0].mxu0
      %510 = vmatprep.mubr.bf16.mxu0 0
      %511 = vmatmul.mubr.bf16.gmra.mrb[0].mxu0 %v410
      %v512 = vpop.f32.mrb[0].mxu0
      %v513 = vadd.f32 %v401, %v512
      %v514 = vpop.f32.mrb[0].mxu0
      %v515 = vpop.f32.mrb[0].mxu0
      %v516 = vpop.f32.mrb[0].mxu0
      %517 = vdwg.mxu0
      %s518 = scalar_lea.vmem %s223, 512
      %v519 = vld [vmem:[%s518] sm:$0xf]
      %v520 = vld [vmem:[%s518 + $0x4] sm:$0xf]
      %v521 = vld [vmem:[%s518 + $0x8] sm:$0xf]
      %v522 = vld [vmem:[%s518 + $0xc] sm:$0xf]
      %v523 = vld [vmem:[%s518 + $0x10] sm:$0xf]
      %v524 = vld [vmem:[%s518 + $0x14] sm:$0xf]
      %v525 = vld [vmem:[%s518 + $0x18] sm:$0xf]
      %v526 = vld [vmem:[%s518 + $0x1c] sm:$0xf]
      %v527 = vld [vmem:[%s518 + $0x20] sm:$0xf]
      %v528 = vld [vmem:[%s518 + $0x24] sm:$0xf]
      %v529 = vld [vmem:[%s518 + $0x28] sm:$0xf]
      %v530 = vld [vmem:[%s518 + $0x2c] sm:$0xf]
      %v531 = vld [vmem:[%s518 + $0x30] sm:$0xf]
      %v532 = vld [vmem:[%s518 + $0x34] sm:$0xf]
      %v533 = vld [vmem:[%s518 + $0x38] sm:$0xf]
      %v534 = vld [vmem:[%s518 + $0x3c] sm:$0xf]
      %v536 = vunpack.c.l.b16 %v251
      %v537 = vpack.c.b16 %v295, %v294
      %v538 = vpack.c.b16 %v536, %v536
      %v557 = vunpack.c.l.b16 %v519
      %v558 = vunpack.c.l.b16 %v520
      %v559 = vunpack.c.l.b16 %v521
      %v560 = vunpack.c.l.b16 %v522
      %v561 = vunpack.c.l.b16 %v523
      %v562 = vunpack.c.l.b16 %v524
      %v563 = vunpack.c.l.b16 %v525
      %v564 = vunpack.c.l.b16 %v526
      %v565 = vunpack.c.l.b16 %v527
      %v566 = vunpack.c.l.b16 %v528
      %v567 = vunpack.c.l.b16 %v529
      %v568 = vunpack.c.l.b16 %v530
      %v569 = vunpack.c.l.b16 %v531
      %v570 = vunpack.c.l.b16 %v532
      %v571 = vunpack.c.l.b16 %v533
      %v572 = vunpack.c.l.b16 %v534
      %v573 = vpack.c.b16 %v558, %v557
      %v574 = vpack.c.b16 %v560, %v559
      %v575 = vpack.c.b16 %v562, %v561
      %v576 = vpack.c.b16 %v564, %v563
      %v577 = vpack.c.b16 %v566, %v565
      %v578 = vpack.c.b16 %v568, %v567
      %v579 = vpack.c.b16 %v570, %v569
      %v580 = vpack.c.b16 %v572, %v571
      %589 = vmatprep.subr.bf16.mxu0 0
      %590 = vmatpush1.bf16.msra.mxu0 %v573
      %591 = vmatprep.subr.bf16.mxu0 0
      %592 = vmatpush1.bf16.msra.mxu0 %v574
      %593 = vmatprep.subr.bf16.mxu0 0
      %594 = vmatpush1.bf16.msra.mxu0 %v575
      %595 = vmatprep.subr.bf16.mxu0 0
      %596 = vmatpush1.bf16.msra.mxu0 %v576
      %597 = vmatprep.subr.bf16.mxu0 0
      %598 = vmatpush1.bf16.msra.mxu0 %v577
      %599 = vmatprep.subr.bf16.mxu0 0
      %600 = vmatpush1.bf16.msra.mxu0 %v578
      %601 = vmatprep.subr.bf16.mxu0 0
      %602 = vmatpush1.bf16.msra.mxu0 %v579
      %603 = vmatprep.subr.bf16.mxu0 0
      %604 = vmatpush1.bf16.msra.mxu0 %v580
      %605 = vmatprep.subr.bf16.mxu0 0
      %606 = vmatpush1.bf16.msra.mxu0 0
      %607 = vmatprep.subr.bf16.mxu0 0
      %608 = vmatpush1.bf16.msra.mxu0 0
      %609 = vmatprep.subr.bf16.mxu0 0
      %610 = vmatpush1.bf16.msra.mxu0 0
      %611 = vmatprep.subr.bf16.mxu0 0
      %612 = vmatpush1.bf16.msra.mxu0 0
      %613 = vmatprep.subr.bf16.mxu0 0
      %614 = vmatpush1.bf16.msra.mxu0 0
      %615 = vmatprep.subr.bf16.mxu0 0
      %616 = vmatpush1.bf16.msra.mxu0 0
      %617 = vmatprep.subr.bf16.mxu0 0
      %618 = vmatpush1.bf16.msra.mxu0 0
      %619 = vmatprep.subr.bf16.mxu0 0
      %620 = vmatpush1.bf16.msra.mxu0 0
      %621 = vmatprep.mubr.bf16.mxu0 0
      %622 = vmatmul.mubr.bf16.gmra.mrb[0].mxu0 %v409
      %v623 = vpop.f32.mrb[0].mxu0
      %v624 = vadd.f32 0.0, %v623
      %v625 = vpop.f32.mrb[0].mxu0
      %v626 = vpop.f32.mrb[0].mxu0
      %v627 = vadd.f32 0.0, %v626
      %v628 = vpop.f32.mrb[0].mxu0
      %629 = vmatprep.mubr.bf16.mxu0 0
      %630 = vmatmul.mubr.bf16.gmra.mrb[0].mxu0 %v537
      %v631 = vpop.f32.mrb[0].mxu0
      %v632 = vadd.f32 0.0, %v631
      %v633 = vpop.f32.mrb[0].mxu0
      %v634 = vpop.f32.mrb[0].mxu0
      %v635 = vadd.f32 0.0, %v634
      %v636 = vpop.f32.mrb[0].mxu0
      %637 = vmatprep.mubr.bf16.mxu0 0
      %638 = vmatmul.mubr.bf16.gmra.mrb[0].mxu0 %v538
      %v639 = vpop.f32.mrb[0].mxu0
      %v640 = vadd.f32 0.0, %v639
      %v641 = vpop.f32.mrb[0].mxu0
      %v642 = vpop.f32.mrb[0].mxu0
      %v643 = vpop.f32.mrb[0].mxu0
      %644 = vdwg.mxu0
      %v645 = vadd.f32 %v497, %v624
      %v646 = vadd.f32 %v500, %v627
      %v647 = vadd.f32 %v505, %v632
      %v648 = vadd.f32 %v508, %v635
      %v649 = vadd.f32 %v513, %v640
      %s650 = scalar_lea.vmem %s223, 768
      %v651 = vld [vmem:[%s650] sm:$0xf]
      %v652 = vld [vmem:[%s650 + $0x4] sm:$0xf]
      %v653 = vld [vmem:[%s650 + $0x8] sm:$0xf]
      %v654 = vld [vmem:[%s650 + $0xc] sm:$0xf]
      %v655 = vld [vmem:[%s650 + $0x10] sm:$0xf]
      %v656 = vld [vmem:[%s650 + $0x14] sm:$0xf]
      %v657 = vld [vmem:[%s650 + $0x18] sm:$0xf]
      %v658 = vld [vmem:[%s650 + $0x1c] sm:$0xf]
      %v659 = vld [vmem:[%s650 + $0x20] sm:$0xf]
      %v660 = vld [vmem:[%s650 + $0x24] sm:$0xf]
      %v661 = vld [vmem:[%s650 + $0x28] sm:$0xf]
      %v662 = vld [vmem:[%s650 + $0x2c] sm:$0xf]
      %v663 = vld [vmem:[%s650 + $0x30] sm:$0xf]
      %v664 = vld [vmem:[%s650 + $0x34] sm:$0xf]
      %v665 = vld [vmem:[%s650 + $0x38] sm:$0xf]
      %v666 = vld [vmem:[%s650 + $0x3c] sm:$0xf]
      %v668 = vunpack.c.l.b16 %v252
      %v669 = vpack.c.b16 %v536, %v295
      %v670 = vpack.c.b16 %v668, %v668
      %v689 = vunpack.c.l.b16 %v651
      %v690 = vunpack.c.l.b16 %v652
      %v691 = vunpack.c.l.b16 %v653
      %v692 = vunpack.c.l.b16 %v654
      %v693 = vunpack.c.l.b16 %v655
      %v694 = vunpack.c.l.b16 %v656
      %v695 = vunpack.c.l.b16 %v657
      %v696 = vunpack.c.l.b16 %v658
      %v697 = vunpack.c.l.b16 %v659
      %v698 = vunpack.c.l.b16 %v660
      %v699 = vunpack.c.l.b16 %v661
      %v700 = vunpack.c.l.b16 %v662
      %v701 = vunpack.c.l.b16 %v663
      %v702 = vunpack.c.l.b16 %v664
      %v703 = vunpack.c.l.b16 %v665
      %v704 = vunpack.c.l.b16 %v666
      %v705 = vpack.c.b16 %v690, %v689
      %v706 = vpack.c.b16 %v692, %v691
      %v707 = vpack.c.b16 %v694, %v693
      %v708 = vpack.c.b16 %v696, %v695
      %v709 = vpack.c.b16 %v698, %v697
      %v710 = vpack.c.b16 %v700, %v699
      %v711 = vpack.c.b16 %v702, %v701
      %v712 = vpack.c.b16 %v704, %v703
      %721 = vmatprep.subr.bf16.mxu0 0
      %722 = vmatpush1.bf16.msra.mxu0 %v705
      %723 = vmatprep.subr.bf16.mxu0 0
      %724 = vmatpush1.bf16.msra.mxu0 %v706
      %725 = vmatprep.subr.bf16.mxu0 0
      %726 = vmatpush1.bf16.msra.mxu0 %v707
      %727 = vmatprep.subr.bf16.mxu0 0
      %728 = vmatpush1.bf16.msra.mxu0 %v708
      %729 = vmatprep.subr.bf16.mxu0 0
      %730 = vmatpush1.bf16.msra.mxu0 %v709
      %731 = vmatprep.subr.bf16.mxu0 0
      %732 = vmatpush1.bf16.msra.mxu0 %v710
      %733 = vmatprep.subr.bf16.mxu0 0
      %734 = vmatpush1.bf16.msra.mxu0 %v711
      %735 = vmatprep.subr.bf16.mxu0 0
      %736 = vmatpush1.bf16.msra.mxu0 %v712
      %737 = vmatprep.subr.bf16.mxu0 0
      %738 = vmatpush1.bf16.msra.mxu0 0
      %739 = vmatprep.subr.bf16.mxu0 0
      %740 = vmatpush1.bf16.msra.mxu0 0
      %741 = vmatprep.subr.bf16.mxu0 0
      %742 = vmatpush1.bf16.msra.mxu0 0
      %743 = vmatprep.subr.bf16.mxu0 0
      %744 = vmatpush1.bf16.msra.mxu0 0
      %745 = vmatprep.subr.bf16.mxu0 0
      %746 = vmatpush1.bf16.msra.mxu0 0
      %747 = vmatprep.subr.bf16.mxu0 0
      %748 = vmatpush1.bf16.msra.mxu0 0
      %749 = vmatprep.subr.bf16.mxu0 0
      %750 = vmatpush1.bf16.msra.mxu0 0
      %751 = vmatprep.subr.bf16.mxu0 0
      %752 = vmatpush1.bf16.msra.mxu0 0
      %753 = vmatprep.mubr.bf16.mxu0 0
      %754 = vmatmul.mubr.bf16.gmra.mrb[0].mxu0 %v297
      %v755 = vpop.f32.mrb[0].mxu0
      %v756 = vadd.f32 0.0, %v755
      %v757 = vpop.f32.mrb[0].mxu0
      %v758 = vpop.f32.mrb[0].mxu0
      %v759 = vadd.f32 0.0, %v758
      %v760 = vpop.f32.mrb[0].mxu0
      %761 = vmatprep.mubr.bf16.mxu0 0
      %762 = vmatmul.mubr.bf16.gmra.mrb[0].mxu0 %v669
      %v763 = vpop.f32.mrb[0].mxu0
      %v764 = vadd.f32 0.0, %v763
      %v765 = vpop.f32.mrb[0].mxu0
      %v766 = vpop.f32.mrb[0].mxu0
      %v767 = vadd.f32 0.0, %v766
      %v768 = vpop.f32.mrb[0].mxu0
      %769 = vmatprep.mubr.bf16.mxu0 0
      %770 = vmatmul.mubr.bf16.gmra.mrb[0].mxu0 %v670
      %v771 = vpop.f32.mrb[0].mxu0
      %v772 = vadd.f32 0.0, %v771
      %v773 = vpop.f32.mrb[0].mxu0
      %v774 = vpop.f32.mrb[0].mxu0
      %v775 = vpop.f32.mrb[0].mxu0
      %776 = vdwg.mxu0
      %v777 = vadd.f32 %v645, %v756
      %v778 = vadd.f32 %v646, %v759
      %v779 = vadd.f32 %v647, %v764
      %v780 = vadd.f32 %v648, %v767
      %v781 = vadd.f32 %v649, %v772
      %v782 = vld [vmem:[%s244] sm:$0xf]
      %v783 = vld [vmem:[%s244 + $0x4] sm:$0x1]
      %v784 = vld [vmem:[%s244 + $0x8] sm:$0xf]
      %v785 = vld [vmem:[%s244 + $0xc] sm:$0x1]
      %v786 = vld [vmem:[%s244 + $0x10] sm:$0xf]
      %v787 = vld [vmem:[%s244 + $0x14] sm:$0x1]
      %v788 = vld [vmem:[%s244 + $0x18] sm:$0xf]
      %v789 = vld [vmem:[%s244 + $0x1c] sm:$0x1]
      %v790 = vld [vmem:[%s244 + $0x20] sm:$0xf]
      %v791 = vld [vmem:[%s244 + $0x24] sm:$0x1]
      %v792 = vld [vmem:[%s244 + $0x28] sm:$0xf]
      %v793 = vld [vmem:[%s244 + $0x2c] sm:$0x1]
      %v794 = vld [vmem:[%s244 + $0x30] sm:$0xf]
      %v795 = vld [vmem:[%s244 + $0x34] sm:$0x1]
      %v796 = vld [vmem:[%s244 + $0x38] sm:$0xf]
      %v797 = vld [vmem:[%s244 + $0x3c] sm:$0x1]
      %vm798 = vsmask.f32 3328
      %vm799 = vsmask.f32 7440
      %vm800 = vmor %vm798, %vm799
      %v802 = vshrl.u32 %v782, 16
      %v804 = vrot.slane %v802, 4
      %v805 = vshll.u32 %v782, 16
      %v807 = vrot.slane %v805, 5
      %v808 = vor.u32 %v804, %v807
      %v809 = vrot.slane %v808, 4
      %v811 = vshll.u32 %v783, 16
      %v813 = vrot.slane %v811, 5
      %v814 = vsel %vm800, %v809, %v813
      %v816 = vshrl.u32 %v784, 16
      %v818 = vrot.slane %v816, 4
      %v819 = vshll.u32 %v784, 16
      %v821 = vrot.slane %v819, 5
      %v822 = vor.u32 %v818, %v821
      %v823 = vrot.slane %v822, 4
      %v825 = vshll.u32 %v785, 16
      %v827 = vrot.slane %v825, 5
      %v828 = vsel %vm800, %v823, %v827
      %v830 = vshrl.u32 %v786, 16
      %v832 = vrot.slane %v830, 4
      %v833 = vshll.u32 %v786, 16
      %v835 = vrot.slane %v833, 5
      %v836 = vor.u32 %v832, %v835
      %v837 = vrot.slane %v836, 4
      %v839 = vshll.u32 %v787, 16
      %v841 = vrot.slane %v839, 5
      %v842 = vsel %vm800, %v837, %v841
      %v844 = vshrl.u32 %v788, 16
      %v846 = vrot.slane %v844, 4
      %v847 = vshll.u32 %v788, 16
      %v849 = vrot.slane %v847, 5
      %v850 = vor.u32 %v846, %v849
      %v851 = vrot.slane %v850, 4
      %v853 = vshll.u32 %v789, 16
      %v855 = vrot.slane %v853, 5
      %v856 = vsel %vm800, %v851, %v855
      %v858 = vshrl.u32 %v790, 16
      %v860 = vrot.slane %v858, 4
      %v861 = vshll.u32 %v790, 16
      %v863 = vrot.slane %v861, 5
      %v864 = vor.u32 %v860, %v863
      %v865 = vrot.slane %v864, 4
      %v867 = vshll.u32 %v791, 16
      %v869 = vrot.slane %v867, 5
      %v870 = vsel %vm800, %v865, %v869
      %s871 = scalar_lea.vmem %s223, 64
      %v872 = vld [vmem:[%s871] sm:$0xf]
      %v873 = vld [vmem:[%s871 + $0x4] sm:$0xf]
      %v874 = vld [vmem:[%s871 + $0x8] sm:$0xf]
      %v875 = vld [vmem:[%s871 + $0xc] sm:$0xf]
      %v876 = vld [vmem:[%s871 + $0x10] sm:$0xf]
      %v877 = vld [vmem:[%s871 + $0x14] sm:$0xf]
      %v878 = vld [vmem:[%s871 + $0x18] sm:$0xf]
      %v879 = vld [vmem:[%s871 + $0x1c] sm:$0xf]
      %v880 = vld [vmem:[%s871 + $0x20] sm:$0xf]
      %v881 = vld [vmem:[%s871 + $0x24] sm:$0xf]
      %v882 = vld [vmem:[%s871 + $0x28] sm:$0xf]
      %v883 = vld [vmem:[%s871 + $0x2c] sm:$0xf]
      %v884 = vld [vmem:[%s871 + $0x30] sm:$0xf]
      %v885 = vld [vmem:[%s871 + $0x34] sm:$0xf]
      %v886 = vld [vmem:[%s871 + $0x38] sm:$0xf]
      %v887 = vld [vmem:[%s871 + $0x3c] sm:$0xf]
      %v888 = vunpack.c.l.b16 %v814
      %v889 = vunpack.c.l.b16 %v828
      %v890 = vunpack.c.l.b16 %v842
      %v891 = vunpack.c.l.b16 %v856
      %v892 = vunpack.c.l.b16 %v870
      %v893 = vpack.c.b16 %v889, %v888
      %v894 = vpack.c.b16 %v891, %v890
      %v895 = vpack.c.b16 %v892, %v892
      %v915 = vunpack.c.l.b16 %v872
      %v916 = vunpack.c.l.b16 %v873
      %v917 = vunpack.c.l.b16 %v874
      %v918 = vunpack.c.l.b16 %v875
      %v919 = vunpack.c.l.b16 %v876
      %v920 = vunpack.c.l.b16 %v877
      %v921 = vunpack.c.l.b16 %v878
      %v922 = vunpack.c.l.b16 %v879
      %v923 = vunpack.c.l.b16 %v880
      %v924 = vunpack.c.l.b16 %v881
      %v925 = vunpack.c.l.b16 %v882
      %v926 = vunpack.c.l.b16 %v883
      %v927 = vunpack.c.l.b16 %v884
      %v928 = vunpack.c.l.b16 %v885
      %v929 = vunpack.c.l.b16 %v886
      %v930 = vunpack.c.l.b16 %v887
      %v931 = vpack.c.b16 %v916, %v915
      %v932 = vpack.c.b16 %v918, %v917
      %v933 = vpack.c.b16 %v920, %v919
      %v934 = vpack.c.b16 %v922, %v921
      %v935 = vpack.c.b16 %v924, %v923
      %v936 = vpack.c.b16 %v926, %v925
      %v937 = vpack.c.b16 %v928, %v927
      %v938 = vpack.c.b16 %v930, %v929
      %947 = vmatprep.subr.bf16.mxu0 0
      %948 = vmatpush1.bf16.msra.mxu0 %v931
      %949 = vmatprep.subr.bf16.mxu0 0
      %950 = vmatpush1.bf16.msra.mxu0 %v932
      %951 = vmatprep.subr.bf16.mxu0 0
      %952 = vmatpush1.bf16.msra.mxu0 %v933
      %953 = vmatprep.subr.bf16.mxu0 0
      %954 = vmatpush1.bf16.msra.mxu0 %v934
      %955 = vmatprep.subr.bf16.mxu0 0
      %956 = vmatpush1.bf16.msra.mxu0 %v935
      %957 = vmatprep.subr.bf16.mxu0 0
      %958 = vmatpush1.bf16.msra.mxu0 %v936
      %959 = vmatprep.subr.bf16.mxu0 0
      %960 = vmatpush1.bf16.msra.mxu0 %v937
      %961 = vmatprep.subr.bf16.mxu0 0
      %962 = vmatpush1.bf16.msra.mxu0 %v938
      %963 = vmatprep.subr.bf16.mxu0 0
      %964 = vmatpush1.bf16.msra.mxu0 0
      %965 = vmatprep.subr.bf16.mxu0 0
      %966 = vmatpush1.bf16.msra.mxu0 0
      %967 = vmatprep.subr.bf16.mxu0 0
      %968 = vmatpush1.bf16.msra.mxu0 0
      %969 = vmatprep.subr.bf16.mxu0 0
      %970 = vmatpush1.bf16.msra.mxu0 0
      %971 = vmatprep.subr.bf16.mxu0 0
      %972 = vmatpush1.bf16.msra.mxu0 0
      %973 = vmatprep.subr.bf16.mxu0 0
      %974 = vmatpush1.bf16.msra.mxu0 0
      %975 = vmatprep.subr.bf16.mxu0 0
      %976 = vmatpush1.bf16.msra.mxu0 0
      %977 = vmatprep.subr.bf16.mxu0 0
      %978 = vmatpush1.bf16.msra.mxu0 0
      %979 = vmatprep.mubr.bf16.mxu0 0
      %980 = vmatmul.mubr.bf16.gmra.mrb[0].mxu0 %v893
      %v981 = vpop.f32.mrb[0].mxu0
      %v982 = vadd.f32 0.0, %v981
      %v983 = vpop.f32.mrb[0].mxu0
      %v984 = vpop.f32.mrb[0].mxu0
      %v985 = vadd.f32 0.0, %v984
      %v986 = vpop.f32.mrb[0].mxu0
      %987 = vmatprep.mubr.bf16.mxu0 0
      %988 = vmatmul.mubr.bf16.gmra.mrb[0].mxu0 %v894
      %v989 = vpop.f32.mrb[0].mxu0
      %v990 = vadd.f32 0.0, %v989
      %v991 = vpop.f32.mrb[0].mxu0
      %v992 = vpop.f32.mrb[0].mxu0
      %v993 = vadd.f32 0.0, %v992
      %v994 = vpop.f32.mrb[0].mxu0
      %995 = vmatprep.mubr.bf16.mxu0 0
      %996 = vmatmul.mubr.bf16.gmra.mrb[0].mxu0 %v895
      %v997 = vpop.f32.mrb[0].mxu0
      %v998 = vadd.f32 0.0, %v997
      %v999 = vpop.f32.mrb[0].mxu0
      %v1000 = vpop.f32.mrb[0].mxu0
      %v1001 = vpop.f32.mrb[0].mxu0
      %1002 = vdwg.mxu0
      %v1003 = vadd.f32 %v777, %v982
      %v1004 = vadd.f32 %v778, %v985
      %v1005 = vadd.f32 %v779, %v990
      %v1006 = vadd.f32 %v780, %v993
      %v1007 = vadd.f32 %v781, %v998
      %v1009 = vshrl.u32 %v792, 16
      %v1011 = vrot.slane %v1009, 4
      %v1012 = vshll.u32 %v792, 16
      %v1014 = vrot.slane %v1012, 5
      %v1015 = vor.u32 %v1011, %v1014
      %v1016 = vrot.slane %v1015, 4
      %v1018 = vshll.u32 %v793, 16
      %v1020 = vrot.slane %v1018, 5
      %v1021 = vsel %vm800, %v1016, %v1020
      %s1022 = scalar_lea.vmem %s223, 320
      %v1023 = vld [vmem:[%s1022] sm:$0xf]
      %v1024 = vld [vmem:[%s1022 + $0x4] sm:$0xf]
      %v1025 = vld [vmem:[%s1022 + $0x8] sm:$0xf]
      %v1026 = vld [vmem:[%s1022 + $0xc] sm:$0xf]
      %v1027 = vld [vmem:[%s1022 + $0x10] sm:$0xf]
      %v1028 = vld [vmem:[%s1022 + $0x14] sm:$0xf]
      %v1029 = vld [vmem:[%s1022 + $0x18] sm:$0xf]
      %v1030 = vld [vmem:[%s1022 + $0x1c] sm:$0xf]
      %v1031 = vld [vmem:[%s1022 + $0x20] sm:$0xf]
      %v1032 = vld [vmem:[%s1022 + $0x24] sm:$0xf]
      %v1033 = vld [vmem:[%s1022 + $0x28] sm:$0xf]
      %v1034 = vld [vmem:[%s1022 + $0x2c] sm:$0xf]
      %v1035 = vld [vmem:[%s1022 + $0x30] sm:$0xf]
      %v1036 = vld [vmem:[%s1022 + $0x34] sm:$0xf]
      %v1037 = vld [vmem:[%s1022 + $0x38] sm:$0xf]
      %v1038 = vld [vmem:[%s1022 + $0x3c] sm:$0xf]
      %v1039 = vunpack.c.l.b16 %v1021
      %v1040 = vpack.c.b16 %v890, %v889
      %v1041 = vpack.c.b16 %v892, %v891
      %v1042 = vpack.c.b16 %v1039, %v1039
      %v1062 = vunpack.c.l.b16 %v1023
      %v1063 = vunpack.c.l.b16 %v1024
      %v1064 = vunpack.c.l.b16 %v1025
      %v1065 = vunpack.c.l.b16 %v1026
      %v1066 = vunpack.c.l.b16 %v1027
      %v1067 = vunpack.c.l.b16 %v1028
      %v1068 = vunpack.c.l.b16 %v1029
      %v1069 = vunpack.c.l.b16 %v1030
      %v1070 = vunpack.c.l.b16 %v1031
      %v1071 = vunpack.c.l.b16 %v1032
      %v1072 = vunpack.c.l.b16 %v1033
      %v1073 = vunpack.c.l.b16 %v1034
      %v1074 = vunpack.c.l.b16 %v1035
      %v1075 = vunpack.c.l.b16 %v1036
      %v1076 = vunpack.c.l.b16 %v1037
      %v1077 = vunpack.c.l.b16 %v1038
      %v1078 = vpack.c.b16 %v1063, %v1062
      %v1079 = vpack.c.b16 %v1065, %v1064
      %v1080 = vpack.c.b16 %v1067, %v1066
      %v1081 = vpack.c.b16 %v1069, %v1068
      %v1082 = vpack.c.b16 %v1071, %v1070
      %v1083 = vpack.c.b16 %v1073, %v1072
      %v1084 = vpack.c.b16 %v1075, %v1074
      %v1085 = vpack.c.b16 %v1077, %v1076
      %1094 = vmatprep.subr.bf16.mxu0 0
      %1095 = vmatpush1.bf16.msra.mxu0 %v1078
      %1096 = vmatprep.subr.bf16.mxu0 0
      %1097 = vmatpush1.bf16.msra.mxu0 %v1079
      %1098 = vmatprep.subr.bf16.mxu0 0
      %1099 = vmatpush1.bf16.msra.mxu0 %v1080
      %1100 = vmatprep.subr.bf16.mxu0 0
      %1101 = vmatpush1.bf16.msra.mxu0 %v1081
      %1102 = vmatprep.subr.bf16.mxu0 0
      %1103 = vmatpush1.bf16.msra.mxu0 %v1082
      %1104 = vmatprep.subr.bf16.mxu0 0
      %1105 = vmatpush1.bf16.msra.mxu0 %v1083
      %1106 = vmatprep.subr.bf16.mxu0 0
      %1107 = vmatpush1.bf16.msra.mxu0 %v1084
      %1108 = vmatprep.subr.bf16.mxu0 0
      %1109 = vmatpush1.bf16.msra.mxu0 %v1085
      %1110 = vmatprep.subr.bf16.mxu0 0
      %1111 = vmatpush1.bf16.msra.mxu0 0
      %1112 = vmatprep.subr.bf16.mxu0 0
      %1113 = vmatpush1.bf16.msra.mxu0 0
      %1114 = vmatprep.subr.bf16.mxu0 0
      %1115 = vmatpush1.bf16.msra.mxu0 0
      %1116 = vmatprep.subr.bf16.mxu0 0
      %1117 = vmatpush1.bf16.msra.mxu0 0
      %1118 = vmatprep.subr.bf16.mxu0 0
      %1119 = vmatpush1.bf16.msra.mxu0 0
      %1120 = vmatprep.subr.bf16.mxu0 0
      %1121 = vmatpush1.bf16.msra.mxu0 0
      %1122 = vmatprep.subr.bf16.mxu0 0
      %1123 = vmatpush1.bf16.msra.mxu0 0
      %1124 = vmatprep.subr.bf16.mxu0 0
      %1125 = vmatpush1.bf16.msra.mxu0 0
      %1126 = vmatprep.mubr.bf16.mxu0 0
      %1127 = vmatmul.mubr.bf16.gmra.mrb[0].mxu0 %v1040
      %v1128 = vpop.f32.mrb[0].mxu0
      %v1129 = vadd.f32 0.0, %v1128
      %v1130 = vpop.f32.mrb[0].mxu0
      %v1131 = vpop.f32.mrb[0].mxu0
      %v1132 = vadd.f32 0.0, %v1131
      %v1133 = vpop.f32.mrb[0].mxu0
      %1134 = vmatprep.mubr.bf16.mxu0 0
      %1135 = vmatmul.mubr.bf16.gmra.mrb[0].mxu0 %v1041
      %v1136 = vpop.f32.mrb[0].mxu0
      %v1137 = vadd.f32 0.0, %v1136
      %v1138 = vpop.f32.mrb[0].mxu0
      %v1139 = vpop.f32.mrb[0].mxu0
      %v1140 = vadd.f32 0.0, %v1139
      %v1141 = vpop.f32.mrb[0].mxu0
      %1142 = vmatprep.mubr.bf16.mxu0 0
      %1143 = vmatmul.mubr.bf16.gmra.mrb[0].mxu0 %v1042
      %v1144 = vpop.f32.mrb[0].mxu0
      %v1145 = vadd.f32 0.0, %v1144
      %v1146 = vpop.f32.mrb[0].mxu0
      %v1147 = vpop.f32.mrb[0].mxu0
      %v1148 = vpop.f32.mrb[0].mxu0
      %1149 = vdwg.mxu0
      %v1150 = vadd.f32 %v1003, %v1129
      %v1151 = vadd.f32 %v1004, %v1132
      %v1152 = vadd.f32 %v1005, %v1137
      %v1153 = vadd.f32 %v1006, %v1140
      %v1154 = vadd.f32 %v1007, %v1145
      %v1156 = vshrl.u32 %v794, 16
      %v1158 = vrot.slane %v1156, 4
      %v1159 = vshll.u32 %v794, 16
      %v1161 = vrot.slane %v1159, 5
      %v1162 = vor.u32 %v1158, %v1161
      %v1163 = vrot.slane %v1162, 4
      %v1165 = vshll.u32 %v795, 16
      %v1167 = vrot.slane %v1165, 5
      %v1168 = vsel %vm800, %v1163, %v1167
      %s1169 = scalar_lea.vmem %s223, 576
      %v1170 = vld [vmem:[%s1169] sm:$0xf]
      %v1171 = vld [vmem:[%s1169 + $0x4] sm:$0xf]
      %v1172 = vld [vmem:[%s1169 + $0x8] sm:$0xf]
      %v1173 = vld [vmem:[%s1169 + $0xc] sm:$0xf]
      %v1174 = vld [vmem:[%s1169 + $0x10] sm:$0xf]
      %v1175 = vld [vmem:[%s1169 + $0x14] sm:$0xf]
      %v1176 = vld [vmem:[%s1169 + $0x18] sm:$0xf]
      %v1177 = vld [vmem:[%s1169 + $0x1c] sm:$0xf]
      %v1178 = vld [vmem:[%s1169 + $0x20] sm:$0xf]
      %v1179 = vld [vmem:[%s1169 + $0x24] sm:$0xf]
      %v1180 = vld [vmem:[%s1169 + $0x28] sm:$0xf]
      %v1181 = vld [vmem:[%s1169 + $0x2c] sm:$0xf]
      %v1182 = vld [vmem:[%s1169 + $0x30] sm:$0xf]
      %v1183 = vld [vmem:[%s1169 + $0x34] sm:$0xf]
      %v1184 = vld [vmem:[%s1169 + $0x38] sm:$0xf]
      %v1185 = vld [vmem:[%s1169 + $0x3c] sm:$0xf]
      %v1186 = vunpack.c.l.b16 %v1168
      %v1187 = vpack.c.b16 %v1039, %v892
      %v1188 = vpack.c.b16 %v1186, %v1186
      %v1207 = vunpack.c.l.b16 %v1170
      %v1208 = vunpack.c.l.b16 %v1171
      %v1209 = vunpack.c.l.b16 %v1172
      %v1210 = vunpack.c.l.b16 %v1173
      %v1211 = vunpack.c.l.b16 %v1174
      %v1212 = vunpack.c.l.b16 %v1175
      %v1213 = vunpack.c.l.b16 %v1176
      %v1214 = vunpack.c.l.b16 %v1177
      %v1215 = vunpack.c.l.b16 %v1178
      %v1216 = vunpack.c.l.b16 %v1179
      %v1217 = vunpack.c.l.b16 %v1180
      %v1218 = vunpack.c.l.b16 %v1181
      %v1219 = vunpack.c.l.b16 %v1182
      %v1220 = vunpack.c.l.b16 %v1183
      %v1221 = vunpack.c.l.b16 %v1184
      %v1222 = vunpack.c.l.b16 %v1185
      %v1223 = vpack.c.b16 %v1208, %v1207
      %v1224 = vpack.c.b16 %v1210, %v1209
      %v1225 = vpack.c.b16 %v1212, %v1211
      %v1226 = vpack.c.b16 %v1214, %v1213
      %v1227 = vpack.c.b16 %v1216, %v1215
      %v1228 = vpack.c.b16 %v1218, %v1217
      %v1229 = vpack.c.b16 %v1220, %v1219
      %v1230 = vpack.c.b16 %v1222, %v1221
      %1239 = vmatprep.subr.bf16.mxu0 0
      %1240 = vmatpush1.bf16.msra.mxu0 %v1223
      %1241 = vmatprep.subr.bf16.mxu0 0
      %1242 = vmatpush1.bf16.msra.mxu0 %v1224
      %1243 = vmatprep.subr.bf16.mxu0 0
      %1244 = vmatpush1.bf16.msra.mxu0 %v1225
      %1245 = vmatprep.subr.bf16.mxu0 0
      %1246 = vmatpush1.bf16.msra.mxu0 %v1226
      %1247 = vmatprep.subr.bf16.mxu0 0
      %1248 = vmatpush1.bf16.msra.mxu0 %v1227
      %1249 = vmatprep.subr.bf16.mxu0 0
      %1250 = vmatpush1.bf16.msra.mxu0 %v1228
      %1251 = vmatprep.subr.bf16.mxu0 0
      %1252 = vmatpush1.bf16.msra.mxu0 %v1229
      %1253 = vmatprep.subr.bf16.mxu0 0
      %1254 = vmatpush1.bf16.msra.mxu0 %v1230
      %1255 = vmatprep.subr.bf16.mxu0 0
      %1256 = vmatpush1.bf16.msra.mxu0 0
      %1257 = vmatprep.subr.bf16.mxu0 0
      %1258 = vmatpush1.bf16.msra.mxu0 0
      %1259 = vmatprep.subr.bf16.mxu0 0
      %1260 = vmatpush1.bf16.msra.mxu0 0
      %1261 = vmatprep.subr.bf16.mxu0 0
      %1262 = vmatpush1.bf16.msra.mxu0 0
      %1263 = vmatprep.subr.bf16.mxu0 0
      %1264 = vmatpush1.bf16.msra.mxu0 0
      %1265 = vmatprep.subr.bf16.mxu0 0
      %1266 = vmatpush1.bf16.msra.mxu0 0
      %1267 = vmatprep.subr.bf16.mxu0 0
      %1268 = vmatpush1.bf16.msra.mxu0 0
      %1269 = vmatprep.subr.bf16.mxu0 0
      %1270 = vmatpush1.bf16.msra.mxu0 0
      %1271 = vmatprep.mubr.bf16.mxu0 0
      %1272 = vmatmul.mubr.bf16.gmra.mrb[0].mxu0 %v894
      %v1273 = vpop.f32.mrb[0].mxu0
      %v1274 = vadd.f32 0.0, %v1273
      %v1275 = vpop.f32.mrb[0].mxu0
      %v1276 = vpop.f32.mrb[0].mxu0
      %v1277 = vadd.f32 0.0, %v1276
      %v1278 = vpop.f32.mrb[0].mxu0
      %1279 = vmatprep.mubr.bf16.mxu0 0
      %1280 = vmatmul.mubr.bf16.gmra.mrb[0].mxu0 %v1187
      %v1281 = vpop.f32.mrb[0].mxu0
      %v1282 = vadd.f32 0.0, %v1281
      %v1283 = vpop.f32.mrb[0].mxu0
      %v1284 = vpop.f32.mrb[0].mxu0
      %v1285 = vadd.f32 0.0, %v1284
      %v1286 = vpop.f32.mrb[0].mxu0
      %1287 = vmatprep.mubr.bf16.mxu0 0
      %1288 = vmatmul.mubr.bf16.gmra.mrb[0].mxu0 %v1188
      %v1289 = vpop.f32.mrb[0].mxu0
      %v1290 = vadd.f32 0.0, %v1289
      %v1291 = vpop.f32.mrb[0].mxu0
      %v1292 = vpop.f32.mrb[0].mxu0
      %v1293 = vpop.f32.mrb[0].mxu0
      %1294 = vdwg.mxu0
      %v1295 = vadd.f32 %v1150, %v1274
      %v1296 = vadd.f32 %v1151, %v1277
      %v1297 = vadd.f32 %v1152, %v1282
      %v1298 = vadd.f32 %v1153, %v1285
      %v1299 = vadd.f32 %v1154, %v1290
      %v1301 = vshrl.u32 %v796, 16
      %v1303 = vrot.slane %v1301, 4
      %v1304 = vshll.u32 %v796, 16
      %v1306 = vrot.slane %v1304, 5
      %v1307 = vor.u32 %v1303, %v1306
      %v1308 = vrot.slane %v1307, 4
      %v1310 = vshll.u32 %v797, 16
      %v1312 = vrot.slane %v1310, 5
      %v1313 = vsel %vm800, %v1308, %v1312
      %s1314 = scalar_lea.vmem %s223, 832
      %v1315 = vld [vmem:[%s1314] sm:$0xf]
      %v1316 = vld [vmem:[%s1314 + $0x4] sm:$0xf]
      %v1317 = vld [vmem:[%s1314 + $0x8] sm:$0xf]
      %v1318 = vld [vmem:[%s1314 + $0xc] sm:$0xf]
      %v1319 = vld [vmem:[%s1314 + $0x10] sm:$0xf]
      %v1320 = vld [vmem:[%s1314 + $0x14] sm:$0xf]
      %v1321 = vld [vmem:[%s1314 + $0x18] sm:$0xf]
      %v1322 = vld [vmem:[%s1314 + $0x1c] sm:$0xf]
      %v1323 = vld [vmem:[%s1314 + $0x20] sm:$0xf]
      %v1324 = vld [vmem:[%s1314 + $0x24] sm:$0xf]
      %v1325 = vld [vmem:[%s1314 + $0x28] sm:$0xf]
      %v1326 = vld [vmem:[%s1314 + $0x2c] sm:$0xf]
      %v1327 = vld [vmem:[%s1314 + $0x30] sm:$0xf]
      %v1328 = vld [vmem:[%s1314 + $0x34] sm:$0xf]
      %v1329 = vld [vmem:[%s1314 + $0x38] sm:$0xf]
      %v1330 = vld [vmem:[%s1314 + $0x3c] sm:$0xf]
      %v1331 = vunpack.c.l.b16 %v1313
      %v1332 = vpack.c.b16 %v1186, %v1039
      %v1333 = vpack.c.b16 %v1331, %v1331
      %v1352 = vunpack.c.l.b16 %v1315
      %v1353 = vunpack.c.l.b16 %v1316
      %v1354 = vunpack.c.l.b16 %v1317
      %v1355 = vunpack.c.l.b16 %v1318
      %v1356 = vunpack.c.l.b16 %v1319
      %v1357 = vunpack.c.l.b16 %v1320
      %v1358 = vunpack.c.l.b16 %v1321
      %v1359 = vunpack.c.l.b16 %v1322
      %v1360 = vunpack.c.l.b16 %v1323
      %v1361 = vunpack.c.l.b16 %v1324
      %v1362 = vunpack.c.l.b16 %v1325
      %v1363 = vunpack.c.l.b16 %v1326
      %v1364 = vunpack.c.l.b16 %v1327
      %v1365 = vunpack.c.l.b16 %v1328
      %v1366 = vunpack.c.l.b16 %v1329
      %v1367 = vunpack.c.l.b16 %v1330
      %v1368 = vpack.c.b16 %v1353, %v1352
      %v1369 = vpack.c.b16 %v1355, %v1354
      %v1370 = vpack.c.b16 %v1357, %v1356
      %v1371 = vpack.c.b16 %v1359, %v1358
      %v1372 = vpack.c.b16 %v1361, %v1360
      %v1373 = vpack.c.b16 %v1363, %v1362
      %v1374 = vpack.c.b16 %v1365, %v1364
      %v1375 = vpack.c.b16 %v1367, %v1366
      %1384 = vmatprep.subr.bf16.mxu0 0
      %1385 = vmatpush1.bf16.msra.mxu0 %v1368
      %1386 = vmatprep.subr.bf16.mxu0 0
      %1387 = vmatpush1.bf16.msra.mxu0 %v1369
      %1388 = vmatprep.subr.bf16.mxu0 0
      %1389 = vmatpush1.bf16.msra.mxu0 %v1370
      %1390 = vmatprep.subr.bf16.mxu0 0
      %1391 = vmatpush1.bf16.msra.mxu0 %v1371
      %1392 = vmatprep.subr.bf16.mxu0 0
      %1393 = vmatpush1.bf16.msra.mxu0 %v1372
      %1394 = vmatprep.subr.bf16.mxu0 0
      %1395 = vmatpush1.bf16.msra.mxu0 %v1373
      %1396 = vmatprep.subr.bf16.mxu0 0
      %1397 = vmatpush1.bf16.msra.mxu0 %v1374
      %1398 = vmatprep.subr.bf16.mxu0 0
      %1399 = vmatpush1.bf16.msra.mxu0 %v1375
      %1400 = vmatprep.subr.bf16.mxu0 0
      %1401 = vmatpush1.bf16.msra.mxu0 0
      %1402 = vmatprep.subr.bf16.mxu0 0
      %1403 = vmatpush1.bf16.msra.mxu0 0
      %1404 = vmatprep.subr.bf16.mxu0 0
      %1405 = vmatpush1.bf16.msra.mxu0 0
      %1406 = vmatprep.subr.bf16.mxu0 0
      %1407 = vmatpush1.bf16.msra.mxu0 0
      %1408 = vmatprep.subr.bf16.mxu0 0
      %1409 = vmatpush1.bf16.msra.mxu0 0
      %1410 = vmatprep.subr.bf16.mxu0 0
      %1411 = vmatpush1.bf16.msra.mxu0 0
      %1412 = vmatprep.subr.bf16.mxu0 0
      %1413 = vmatpush1.bf16.msra.mxu0 0
      %1414 = vmatprep.subr.bf16.mxu0 0
      %1415 = vmatpush1.bf16.msra.mxu0 0
      %1416 = vmatprep.mubr.bf16.mxu0 0
      %1417 = vmatmul.mubr.bf16.gmra.mrb[0].mxu0 %v1041
      %v1418 = vpop.f32.mrb[0].mxu0
      %v1419 = vadd.f32 0.0, %v1418
      %v1420 = vpop.f32.mrb[0].mxu0
      %v1421 = vpop.f32.mrb[0].mxu0
      %v1422 = vadd.f32 0.0, %v1421
      %v1423 = vpop.f32.mrb[0].mxu0
      %1424 = vmatprep.mubr.bf16.mxu0 0
      %1425 = vmatmul.mubr.bf16.gmra.mrb[0].mxu0 %v1332
      %v1426 = vpop.f32.mrb[0].mxu0
      %v1427 = vadd.f32 0.0, %v1426
      %v1428 = vpop.f32.mrb[0].mxu0
      %v1429 = vpop.f32.mrb[0].mxu0
      %v1430 = vadd.f32 0.0, %v1429
      %v1431 = vpop.f32.mrb[0].mxu0
      %1432 = vmatprep.mubr.bf16.mxu0 0
      %1433 = vmatmul.mubr.bf16.gmra.mrb[0].mxu0 %v1333
      %v1434 = vpop.f32.mrb[0].mxu0
      %v1435 = vadd.f32 0.0, %v1434
      %v1436 = vpop.f32.mrb[0].mxu0
      %v1437 = vpop.f32.mrb[0].mxu0
      %v1438 = vpop.f32.mrb[0].mxu0
      %1439 = vdwg.mxu0
      %v1440 = vadd.f32 %v1295, %v1419
      %v1441 = vadd.f32 %v1296, %v1422
      %v1442 = vadd.f32 %v1297, %v1427
      %v1443 = vadd.f32 %v1298, %v1430
      %v1444 = vadd.f32 %v1299, %v1435
      %v1445 = vld [vmem:[%s244] sm:$0xe]
      %v1446 = vld [vmem:[%s244 + $0x8] sm:$0xe]
      %v1447 = vld [vmem:[%s244 + $0x10] sm:$0xe]
      %v1448 = vld [vmem:[%s244 + $0x18] sm:$0xe]
      %v1449 = vld [vmem:[%s244 + $0x20] sm:$0xe]
      %v1450 = vld [vmem:[%s244 + $0x28] sm:$0xe]
      %v1451 = vld [vmem:[%s244 + $0x30] sm:$0xe]
      %v1452 = vld [vmem:[%s244 + $0x38] sm:$0xe]
      %vm1463 = vcmask 1042432
      %vm1464 = vcmask 1046532
      %vm1465 = vmor %vm1463, %vm1464
      %v1466 = vrot.slane %v1445, 5
      %v1467 = vrot.slane %v1466, 4
      %v1468 = vrot.slane %v783, 5
      %v1469 = vsel %vm1465, %v1467, %v1468
      %v1470 = vrot.slane %v1446, 5
      %v1471 = vrot.slane %v1470, 4
      %v1472 = vrot.slane %v785, 5
      %v1473 = vsel %vm1465, %v1471, %v1472
      %v1474 = vrot.slane %v1447, 5
      %v1475 = vrot.slane %v1474, 4
      %v1476 = vrot.slane %v787, 5
      %v1477 = vsel %vm1465, %v1475, %v1476
      %v1478 = vrot.slane %v1448, 5
      %v1479 = vrot.slane %v1478, 4
      %v1480 = vrot.slane %v789, 5
      %v1481 = vsel %vm1465, %v1479, %v1480
      %v1482 = vrot.slane %v1449, 5
      %v1483 = vrot.slane %v1482, 4
      %v1484 = vrot.slane %v791, 5
      %v1485 = vsel %vm1465, %v1483, %v1484
      %s1486 = scalar_lea.vmem %s223, 128
      %v1487 = vld [vmem:[%s1486] sm:$0xf]
      %v1488 = vld [vmem:[%s1486 + $0x4] sm:$0xf]
      %v1489 = vld [vmem:[%s1486 + $0x8] sm:$0xf]
      %v1490 = vld [vmem:[%s1486 + $0xc] sm:$0xf]
      %v1491 = vld [vmem:[%s1486 + $0x10] sm:$0xf]
      %v1492 = vld [vmem:[%s1486 + $0x14] sm:$0xf]
      %v1493 = vld [vmem:[%s1486 + $0x18] sm:$0xf]
      %v1494 = vld [vmem:[%s1486 + $0x1c] sm:$0xf]
      %v1495 = vld [vmem:[%s1486 + $0x20] sm:$0xf]
      %v1496 = vld [vmem:[%s1486 + $0x24] sm:$0xf]
      %v1497 = vld [vmem:[%s1486 + $0x28] sm:$0xf]
      %v1498 = vld [vmem:[%s1486 + $0x2c] sm:$0xf]
      %v1499 = vld [vmem:[%s1486 + $0x30] sm:$0xf]
      %v1500 = vld [vmem:[%s1486 + $0x34] sm:$0xf]
      %v1501 = vld [vmem:[%s1486 + $0x38] sm:$0xf]
      %v1502 = vld [vmem:[%s1486 + $0x3c] sm:$0xf]
      %v1503 = vunpack.c.l.b16 %v1469
      %v1504 = vunpack.c.l.b16 %v1473
      %v1505 = vunpack.c.l.b16 %v1477
      %v1506 = vunpack.c.l.b16 %v1481
      %v1507 = vunpack.c.l.b16 %v1485
      %v1508 = vpack.c.b16 %v1504, %v1503
      %v1509 = vpack.c.b16 %v1506, %v1505
      %v1510 = vpack.c.b16 %v1507, %v1507
      %v1530 = vunpack.c.l.b16 %v1487
      %v1531 = vunpack.c.l.b16 %v1488
      %v1532 = vunpack.c.l.b16 %v1489
      %v1533 = vunpack.c.l.b16 %v1490
      %v1534 = vunpack.c.l.b16 %v1491
      %v1535 = vunpack.c.l.b16 %v1492
      %v1536 = vunpack.c.l.b16 %v1493
      %v1537 = vunpack.c.l.b16 %v1494
      %v1538 = vunpack.c.l.b16 %v1495
      %v1539 = vunpack.c.l.b16 %v1496
      %v1540 = vunpack.c.l.b16 %v1497
      %v1541 = vunpack.c.l.b16 %v1498
      %v1542 = vunpack.c.l.b16 %v1499
      %v1543 = vunpack.c.l.b16 %v1500
      %v1544 = vunpack.c.l.b16 %v1501
      %v1545 = vunpack.c.l.b16 %v1502
      %v1546 = vpack.c.b16 %v1531, %v1530
      %v1547 = vpack.c.b16 %v1533, %v1532
      %v1548 = vpack.c.b16 %v1535, %v1534
      %v1549 = vpack.c.b16 %v1537, %v1536
      %v1550 = vpack.c.b16 %v1539, %v1538
      %v1551 = vpack.c.b16 %v1541, %v1540
      %v1552 = vpack.c.b16 %v1543, %v1542
      %v1553 = vpack.c.b16 %v1545, %v1544
      %1562 = vmatprep.subr.bf16.mxu0 0
      %1563 = vmatpush1.bf16.msra.mxu0 %v1546
      %1564 = vmatprep.subr.bf16.mxu0 0
      %1565 = vmatpush1.bf16.msra.mxu0 %v1547
      %1566 = vmatprep.subr.bf16.mxu0 0
      %1567 = vmatpush1.bf16.msra.mxu0 %v1548
      %1568 = vmatprep.subr.bf16.mxu0 0
      %1569 = vmatpush1.bf16.msra.mxu0 %v1549
      %1570 = vmatprep.subr.bf16.mxu0 0
      %1571 = vmatpush1.bf16.msra.mxu0 %v1550
      %1572 = vmatprep.subr.bf16.mxu0 0
      %1573 = vmatpush1.bf16.msra.mxu0 %v1551
      %1574 = vmatprep.subr.bf16.mxu0 0
      %1575 = vmatpush1.bf16.msra.mxu0 %v1552
      %1576 = vmatprep.subr.bf16.mxu0 0
      %1577 = vmatpush1.bf16.msra.mxu0 %v1553
      %1578 = vmatprep.subr.bf16.mxu0 0
      %1579 = vmatpush1.bf16.msra.mxu0 0
      %1580 = vmatprep.subr.bf16.mxu0 0
      %1581 = vmatpush1.bf16.msra.mxu0 0
      %1582 = vmatprep.subr.bf16.mxu0 0
      %1583 = vmatpush1.bf16.msra.mxu0 0
      %1584 = vmatprep.subr.bf16.mxu0 0
      %1585 = vmatpush1.bf16.msra.mxu0 0
      %1586 = vmatprep.subr.bf16.mxu0 0
      %1587 = vmatpush1.bf16.msra.mxu0 0
      %1588 = vmatprep.subr.bf16.mxu0 0
      %1589 = vmatpush1.bf16.msra.mxu0 0
      %1590 = vmatprep.subr.bf16.mxu0 0
      %1591 = vmatpush1.bf16.msra.mxu0 0
      %1592 = vmatprep.subr.bf16.mxu0 0
      %1593 = vmatpush1.bf16.msra.mxu0 0
      %1594 = vmatprep.mubr.bf16.mxu0 0
      %1595 = vmatmul.mubr.bf16.gmra.mrb[0].mxu0 %v1508
      %v1596 = vpop.f32.mrb[0].mxu0
      %v1597 = vadd.f32 0.0, %v1596
      %v1598 = vpop.f32.mrb[0].mxu0
      %v1599 = vpop.f32.mrb[0].mxu0
      %v1600 = vadd.f32 0.0, %v1599
      %v1601 = vpop.f32.mrb[0].mxu0
      %1602 = vmatprep.mubr.bf16.mxu0 0
      %1603 = vmatmul.mubr.bf16.gmra.mrb[0].mxu0 %v1509
      %v1604 = vpop.f32.mrb[0].mxu0
      %v1605 = vadd.f32 0.0, %v1604
      %v1606 = vpop.f32.mrb[0].mxu0
      %v1607 = vpop.f32.mrb[0].mxu0
      %v1608 = vadd.f32 0.0, %v1607
      %v1609 = vpop.f32.mrb[0].mxu0
      %1610 = vmatprep.mubr.bf16.mxu0 0
      %1611 = vmatmul.mubr.bf16.gmra.mrb[0].mxu0 %v1510
      %v1612 = vpop.f32.mrb[0].mxu0
      %v1613 = vadd.f32 0.0, %v1612
      %v1614 = vpop.f32.mrb[0].mxu0
      %v1615 = vpop.f32.mrb[0].mxu0
      %v1616 = vpop.f32.mrb[0].mxu0
      %1617 = vdwg.mxu0
      %v1618 = vadd.f32 %v1440, %v1597
      %v1619 = vadd.f32 %v1441, %v1600
      %v1620 = vadd.f32 %v1442, %v1605
      %v1621 = vadd.f32 %v1443, %v1608
      %v1622 = vadd.f32 %v1444, %v1613
      %v1625 = vrot.slane %v1450, 5
      %v1626 = vrot.slane %v1625, 4
      %v1627 = vrot.slane %v793, 5
      %v1628 = vsel %vm1465, %v1626, %v1627
      %s1629 = scalar_lea.vmem %s223, 384
      %v1630 = vld [vmem:[%s1629] sm:$0xf]
      %v1631 = vld [vmem:[%s1629 + $0x4] sm:$0xf]
      %v1632 = vld [vmem:[%s1629 + $0x8] sm:$0xf]
      %v1633 = vld [vmem:[%s1629 + $0xc] sm:$0xf]
      %v1634 = vld [vmem:[%s1629 + $0x10] sm:$0xf]
      %v1635 = vld [vmem:[%s1629 + $0x14] sm:$0xf]
      %v1636 = vld [vmem:[%s1629 + $0x18] sm:$0xf]
      %v1637 = vld [vmem:[%s1629 + $0x1c] sm:$0xf]
      %v1638 = vld [vmem:[%s1629 + $0x20] sm:$0xf]
      %v1639 = vld [vmem:[%s1629 + $0x24] sm:$0xf]
      %v1640 = vld [vmem:[%s1629 + $0x28] sm:$0xf]
      %v1641 = vld [vmem:[%s1629 + $0x2c] sm:$0xf]
      %v1642 = vld [vmem:[%s1629 + $0x30] sm:$0xf]
      %v1643 = vld [vmem:[%s1629 + $0x34] sm:$0xf]
      %v1644 = vld [vmem:[%s1629 + $0x38] sm:$0xf]
      %v1645 = vld [vmem:[%s1629 + $0x3c] sm:$0xf]
      %v1646 = vunpack.c.l.b16 %v1628
      %v1647 = vpack.c.b16 %v1505, %v1504
      %v1648 = vpack.c.b16 %v1507, %v1506
      %v1649 = vpack.c.b16 %v1646, %v1646
      %v1669 = vunpack.c.l.b16 %v1630
      %v1670 = vunpack.c.l.b16 %v1631
      %v1671 = vunpack.c.l.b16 %v1632
      %v1672 = vunpack.c.l.b16 %v1633
      %v1673 = vunpack.c.l.b16 %v1634
      %v1674 = vunpack.c.l.b16 %v1635
      %v1675 = vunpack.c.l.b16 %v1636
      %v1676 = vunpack.c.l.b16 %v1637
      %v1677 = vunpack.c.l.b16 %v1638
      %v1678 = vunpack.c.l.b16 %v1639
      %v1679 = vunpack.c.l.b16 %v1640
      %v1680 = vunpack.c.l.b16 %v1641
      %v1681 = vunpack.c.l.b16 %v1642
      %v1682 = vunpack.c.l.b16 %v1643
      %v1683 = vunpack.c.l.b16 %v1644
      %v1684 = vunpack.c.l.b16 %v1645
      %v1685 = vpack.c.b16 %v1670, %v1669
      %v1686 = vpack.c.b16 %v1672, %v1671
      %v1687 = vpack.c.b16 %v1674, %v1673
      %v1688 = vpack.c.b16 %v1676, %v1675
      %v1689 = vpack.c.b16 %v1678, %v1677
      %v1690 = vpack.c.b16 %v1680, %v1679
      %v1691 = vpack.c.b16 %v1682, %v1681
      %v1692 = vpack.c.b16 %v1684, %v1683
      %1701 = vmatprep.subr.bf16.mxu0 0
      %1702 = vmatpush1.bf16.msra.mxu0 %v1685
      %1703 = vmatprep.subr.bf16.mxu0 0
      %1704 = vmatpush1.bf16.msra.mxu0 %v1686
      %1705 = vmatprep.subr.bf16.mxu0 0
      %1706 = vmatpush1.bf16.msra.mxu0 %v1687
      %1707 = vmatprep.subr.bf16.mxu0 0
      %1708 = vmatpush1.bf16.msra.mxu0 %v1688
      %1709 = vmatprep.subr.bf16.mxu0 0
      %1710 = vmatpush1.bf16.msra.mxu0 %v1689
      %1711 = vmatprep.subr.bf16.mxu0 0
      %1712 = vmatpush1.bf16.msra.mxu0 %v1690
      %1713 = vmatprep.subr.bf16.mxu0 0
      %1714 = vmatpush1.bf16.msra.mxu0 %v1691
      %1715 = vmatprep.subr.bf16.mxu0 0
      %1716 = vmatpush1.bf16.msra.mxu0 %v1692
      %1717 = vmatprep.subr.bf16.mxu0 0
      %1718 = vmatpush1.bf16.msra.mxu0 0
      %1719 = vmatprep.subr.bf16.mxu0 0
      %1720 = vmatpush1.bf16.msra.mxu0 0
      %1721 = vmatprep.subr.bf16.mxu0 0
      %1722 = vmatpush1.bf16.msra.mxu0 0
      %1723 = vmatprep.subr.bf16.mxu0 0
      %1724 = vmatpush1.bf16.msra.mxu0 0
      %1725 = vmatprep.subr.bf16.mxu0 0
      %1726 = vmatpush1.bf16.msra.mxu0 0
      %1727 = vmatprep.subr.bf16.mxu0 0
      %1728 = vmatpush1.bf16.msra.mxu0 0
      %1729 = vmatprep.subr.bf16.mxu0 0
      %1730 = vmatpush1.bf16.msra.mxu0 0
      %1731 = vmatprep.subr.bf16.mxu0 0
      %1732 = vmatpush1.bf16.msra.mxu0 0
      %1733 = vmatprep.mubr.bf16.mxu0 0
      %1734 = vmatmul.mubr.bf16.gmra.mrb[0].mxu0 %v1647
      %v1735 = vpop.f32.mrb[0].mxu0
      %v1736 = vadd.f32 0.0, %v1735
      %v1737 = vpop.f32.mrb[0].mxu0
      %v1738 = vpop.f32.mrb[0].mxu0
      %v1739 = vadd.f32 0.0, %v1738
      %v1740 = vpop.f32.mrb[0].mxu0
      %1741 = vmatprep.mubr.bf16.mxu0 0
      %1742 = vmatmul.mubr.bf16.gmra.mrb[0].mxu0 %v1648
      %v1743 = vpop.f32.mrb[0].mxu0
      %v1744 = vadd.f32 0.0, %v1743
      %v1745 = vpop.f32.mrb[0].mxu0
      %v1746 = vpop.f32.mrb[0].mxu0
      %v1747 = vadd.f32 0.0, %v1746
      %v1748 = vpop.f32.mrb[0].mxu0
      %1749 = vmatprep.mubr.bf16.mxu0 0
      %1750 = vmatmul.mubr.bf16.gmra.mrb[0].mxu0 %v1649
      %v1751 = vpop.f32.mrb[0].mxu0
      %v1752 = vadd.f32 0.0, %v1751
      %v1753 = vpop.f32.mrb[0].mxu0
      %v1754 = vpop.f32.mrb[0].mxu0
      %v1755 = vpop.f32.mrb[0].mxu0
      %1756 = vdwg.mxu0
      %v1757 = vadd.f32 %v1618, %v1736
      %v1758 = vadd.f32 %v1619, %v1739
      %v1759 = vadd.f32 %v1620, %v1744
      %v1760 = vadd.f32 %v1621, %v1747
      %v1761 = vadd.f32 %v1622, %v1752
      %v1764 = vrot.slane %v1451, 5
      %v1765 = vrot.slane %v1764, 4
      %v1766 = vrot.slane %v795, 5
      %v1767 = vsel %vm1465, %v1765, %v1766
      %s1768 = scalar_lea.vmem %s223, 640
      %v1769 = vld [vmem:[%s1768] sm:$0xf]
      %v1770 = vld [vmem:[%s1768 + $0x4] sm:$0xf]
      %v1771 = vld [vmem:[%s1768 + $0x8] sm:$0xf]
      %v1772 = vld [vmem:[%s1768 + $0xc] sm:$0xf]
      %v1773 = vld [vmem:[%s1768 + $0x10] sm:$0xf]
      %v1774 = vld [vmem:[%s1768 + $0x14] sm:$0xf]
      %v1775 = vld [vmem:[%s1768 + $0x18] sm:$0xf]
      %v1776 = vld [vmem:[%s1768 + $0x1c] sm:$0xf]
      %v1777 = vld [vmem:[%s1768 + $0x20] sm:$0xf]
      %v1778 = vld [vmem:[%s1768 + $0x24] sm:$0xf]
      %v1779 = vld [vmem:[%s1768 + $0x28] sm:$0xf]
      %v1780 = vld [vmem:[%s1768 + $0x2c] sm:$0xf]
      %v1781 = vld [vmem:[%s1768 + $0x30] sm:$0xf]
      %v1782 = vld [vmem:[%s1768 + $0x34] sm:$0xf]
      %v1783 = vld [vmem:[%s1768 + $0x38] sm:$0xf]
      %v1784 = vld [vmem:[%s1768 + $0x3c] sm:$0xf]
      %v1785 = vunpack.c.l.b16 %v1767
      %v1786 = vpack.c.b16 %v1646, %v1507
      %v1787 = vpack.c.b16 %v1785, %v1785
      %v1806 = vunpack.c.l.b16 %v1769
      %v1807 = vunpack.c.l.b16 %v1770
      %v1808 = vunpack.c.l.b16 %v1771
      %v1809 = vunpack.c.l.b16 %v1772
      %v1810 = vunpack.c.l.b16 %v1773
      %v1811 = vunpack.c.l.b16 %v1774
      %v1812 = vunpack.c.l.b16 %v1775
      %v1813 = vunpack.c.l.b16 %v1776
      %v1814 = vunpack.c.l.b16 %v1777
      %v1815 = vunpack.c.l.b16 %v1778
      %v1816 = vunpack.c.l.b16 %v1779
      %v1817 = vunpack.c.l.b16 %v1780
      %v1818 = vunpack.c.l.b16 %v1781
      %v1819 = vunpack.c.l.b16 %v1782
      %v1820 = vunpack.c.l.b16 %v1783
      %v1821 = vunpack.c.l.b16 %v1784
      %v1822 = vpack.c.b16 %v1807, %v1806
      %v1823 = vpack.c.b16 %v1809, %v1808
      %v1824 = vpack.c.b16 %v1811, %v1810
      %v1825 = vpack.c.b16 %v1813, %v1812
      %v1826 = vpack.c.b16 %v1815, %v1814
      %v1827 = vpack.c.b16 %v1817, %v1816
      %v1828 = vpack.c.b16 %v1819, %v1818
      %v1829 = vpack.c.b16 %v1821, %v1820
      %1838 = vmatprep.subr.bf16.mxu0 0
      %1839 = vmatpush1.bf16.msra.mxu0 %v1822
      %1840 = vmatprep.subr.bf16.mxu0 0
      %1841 = vmatpush1.bf16.msra.mxu0 %v1823
      %1842 = vmatprep.subr.bf16.mxu0 0
      %1843 = vmatpush1.bf16.msra.mxu0 %v1824
      %1844 = vmatprep.subr.bf16.mxu0 0
      %1845 = vmatpush1.bf16.msra.mxu0 %v1825
      %1846 = vmatprep.subr.bf16.mxu0 0
      %1847 = vmatpush1.bf16.msra.mxu0 %v1826
      %1848 = vmatprep.subr.bf16.mxu0 0
      %1849 = vmatpush1.bf16.msra.mxu0 %v1827
      %1850 = vmatprep.subr.bf16.mxu0 0
      %1851 = vmatpush1.bf16.msra.mxu0 %v1828
      %1852 = vmatprep.subr.bf16.mxu0 0
      %1853 = vmatpush1.bf16.msra.mxu0 %v1829
      %1854 = vmatprep.subr.bf16.mxu0 0
      %1855 = vmatpush1.bf16.msra.mxu0 0
      %1856 = vmatprep.subr.bf16.mxu0 0
      %1857 = vmatpush1.bf16.msra.mxu0 0
      %1858 = vmatprep.subr.bf16.mxu0 0
      %1859 = vmatpush1.bf16.msra.mxu0 0
      %1860 = vmatprep.subr.bf16.mxu0 0
      %1861 = vmatpush1.bf16.msra.mxu0 0
      %1862 = vmatprep.subr.bf16.mxu0 0
      %1863 = vmatpush1.bf16.msra.mxu0 0
      %1864 = vmatprep.subr.bf16.mxu0 0
      %1865 = vmatpush1.bf16.msra.mxu0 0
      %1866 = vmatprep.subr.bf16.mxu0 0
      %1867 = vmatpush1.bf16.msra.mxu0 0
      %1868 = vmatprep.subr.bf16.mxu0 0
      %1869 = vmatpush1.bf16.msra.mxu0 0
      %1870 = vmatprep.mubr.bf16.mxu0 0
      %1871 = vmatmul.mubr.bf16.gmra.mrb[0].mxu0 %v1509
      %v1872 = vpop.f32.mrb[0].mxu0
      %v1873 = vadd.f32 0.0, %v1872
      %v1874 = vpop.f32.mrb[0].mxu0
      %v1875 = vpop.f32.mrb[0].mxu0
      %v1876 = vadd.f32 0.0, %v1875
      %v1877 = vpop.f32.mrb[0].mxu0
      %1878 = vmatprep.mubr.bf16.mxu0 0
      %1879 = vmatmul.mubr.bf16.gmra.mrb[0].mxu0 %v1786
      %v1880 = vpop.f32.mrb[0].mxu0
      %v1881 = vadd.f32 0.0, %v1880
      %v1882 = vpop.f32.mrb[0].mxu0
      %v1883 = vpop.f32.mrb[0].mxu0
      %v1884 = vadd.f32 0.0, %v1883
      %v1885 = vpop.f32.mrb[0].mxu0
      %1886 = vmatprep.mubr.bf16.mxu0 0
      %1887 = vmatmul.mubr.bf16.gmra.mrb[0].mxu0 %v1787
      %v1888 = vpop.f32.mrb[0].mxu0
      %v1889 = vadd.f32 0.0, %v1888
      %v1890 = vpop.f32.mrb[0].mxu0
      %v1891 = vpop.f32.mrb[0].mxu0
      %v1892 = vpop.f32.mrb[0].mxu0
      %1893 = vdwg.mxu0
      %v1894 = vadd.f32 %v1757, %v1873
      %v1895 = vadd.f32 %v1758, %v1876
      %v1896 = vadd.f32 %v1759, %v1881
      %v1897 = vadd.f32 %v1760, %v1884
      %v1898 = vadd.f32 %v1761, %v1889
      %v1901 = vrot.slane %v1452, 5
      %v1902 = vrot.slane %v1901, 4
      %v1903 = vrot.slane %v797, 5
      %v1904 = vsel %vm1465, %v1902, %v1903
      %s1905 = scalar_lea.vmem %s223, 896
      %v1906 = vld [vmem:[%s1905] sm:$0xf]
      %v1907 = vld [vmem:[%s1905 + $0x4] sm:$0xf]
      %v1908 = vld [vmem:[%s1905 + $0x8] sm:$0xf]
      %v1909 = vld [vmem:[%s1905 + $0xc] sm:$0xf]
      %v1910 = vld [vmem:[%s1905 + $0x10] sm:$0xf]
      %v1911 = vld [vmem:[%s1905 + $0x14] sm:$0xf]
      %v1912 = vld [vmem:[%s1905 + $0x18] sm:$0xf]
      %v1913 = vld [vmem:[%s1905 + $0x1c] sm:$0xf]
      %v1914 = vld [vmem:[%s1905 + $0x20] sm:$0xf]
      %v1915 = vld [vmem:[%s1905 + $0x24] sm:$0xf]
      %v1916 = vld [vmem:[%s1905 + $0x28] sm:$0xf]
      %v1917 = vld [vmem:[%s1905 + $0x2c] sm:$0xf]
      %v1918 = vld [vmem:[%s1905 + $0x30] sm:$0xf]
      %v1919 = vld [vmem:[%s1905 + $0x34] sm:$0xf]
      %v1920 = vld [vmem:[%s1905 + $0x38] sm:$0xf]
      %v1921 = vld [vmem:[%s1905 + $0x3c] sm:$0xf]
      %v1922 = vunpack.c.l.b16 %v1904
      %v1923 = vpack.c.b16 %v1785, %v1646
      %v1924 = vpack.c.b16 %v1922, %v1922
      %v1943 = vunpack.c.l.b16 %v1906
      %v1944 = vunpack.c.l.b16 %v1907
      %v1945 = vunpack.c.l.b16 %v1908
      %v1946 = vunpack.c.l.b16 %v1909
      %v1947 = vunpack.c.l.b16 %v1910
      %v1948 = vunpack.c.l.b16 %v1911
      %v1949 = vunpack.c.l.b16 %v1912
      %v1950 = vunpack.c.l.b16 %v1913
      %v1951 = vunpack.c.l.b16 %v1914
      %v1952 = vunpack.c.l.b16 %v1915
      %v1953 = vunpack.c.l.b16 %v1916
      %v1954 = vunpack.c.l.b16 %v1917
      %v1955 = vunpack.c.l.b16 %v1918
      %v1956 = vunpack.c.l.b16 %v1919
      %v1957 = vunpack.c.l.b16 %v1920
      %v1958 = vunpack.c.l.b16 %v1921
      %v1959 = vpack.c.b16 %v1944, %v1943
      %v1960 = vpack.c.b16 %v1946, %v1945
      %v1961 = vpack.c.b16 %v1948, %v1947
      %v1962 = vpack.c.b16 %v1950, %v1949
      %v1963 = vpack.c.b16 %v1952, %v1951
      %v1964 = vpack.c.b16 %v1954, %v1953
      %v1965 = vpack.c.b16 %v1956, %v1955
      %v1966 = vpack.c.b16 %v1958, %v1957
      %1975 = vmatprep.subr.bf16.mxu0 0
      %1976 = vmatpush1.bf16.msra.mxu0 %v1959
      %1977 = vmatprep.subr.bf16.mxu0 0
      %1978 = vmatpush1.bf16.msra.mxu0 %v1960
      %1979 = vmatprep.subr.bf16.mxu0 0
      %1980 = vmatpush1.bf16.msra.mxu0 %v1961
      %1981 = vmatprep.subr.bf16.mxu0 0
      %1982 = vmatpush1.bf16.msra.mxu0 %v1962
      %1983 = vmatprep.subr.bf16.mxu0 0
      %1984 = vmatpush1.bf16.msra.mxu0 %v1963
      %1985 = vmatprep.subr.bf16.mxu0 0
      %1986 = vmatpush1.bf16.msra.mxu0 %v1964
      %1987 = vmatprep.subr.bf16.mxu0 0
      %1988 = vmatpush1.bf16.msra.mxu0 %v1965
      %1989 = vmatprep.subr.bf16.mxu0 0
      %1990 = vmatpush1.bf16.msra.mxu0 %v1966
      %1991 = vmatprep.subr.bf16.mxu0 0
      %1992 = vmatpush1.bf16.msra.mxu0 0
      %1993 = vmatprep.subr.bf16.mxu0 0
      %1994 = vmatpush1.bf16.msra.mxu0 0
      %1995 = vmatprep.subr.bf16.mxu0 0
      %1996 = vmatpush1.bf16.msra.mxu0 0
      %1997 = vmatprep.subr.bf16.mxu0 0
      %1998 = vmatpush1.bf16.msra.mxu0 0
      %1999 = vmatprep.subr.bf16.mxu0 0
      %2000 = vmatpush1.bf16.msra.mxu0 0
      %2001 = vmatprep.subr.bf16.mxu0 0
      %2002 = vmatpush1.bf16.msra.mxu0 0
      %2003 = vmatprep.subr.bf16.mxu0 0
      %2004 = vmatpush1.bf16.msra.mxu0 0
      %2005 = vmatprep.subr.bf16.mxu0 0
      %2006 = vmatpush1.bf16.msra.mxu0 0
      %2007 = vmatprep.mubr.bf16.mxu0 0
      %2008 = vmatmul.mubr.bf16.gmra.mrb[0].mxu0 %v1648
      %v2009 = vpop.f32.mrb[0].mxu0
      %v2010 = vadd.f32 0.0, %v2009
      %v2011 = vpop.f32.mrb[0].mxu0
      %v2012 = vpop.f32.mrb[0].mxu0
      %v2013 = vadd.f32 0.0, %v2012
      %v2014 = vpop.f32.mrb[0].mxu0
      %2015 = vmatprep.mubr.bf16.mxu0 0
      %2016 = vmatmul.mubr.bf16.gmra.mrb[0].mxu0 %v1923
      %v2017 = vpop.f32.mrb[0].mxu0
      %v2018 = vadd.f32 0.0, %v2017
      %v2019 = vpop.f32.mrb[0].mxu0
      %v2020 = vpop.f32.mrb[0].mxu0
      %v2021 = vadd.f32 0.0, %v2020
      %v2022 = vpop.f32.mrb[0].mxu0
      %2023 = vmatprep.mubr.bf16.mxu0 0
      %2024 = vmatmul.mubr.bf16.gmra.mrb[0].mxu0 %v1924
      %v2025 = vpop.f32.mrb[0].mxu0
      %v2026 = vadd.f32 0.0, %v2025
      %v2027 = vpop.f32.mrb[0].mxu0
      %v2028 = vpop.f32.mrb[0].mxu0
      %v2029 = vpop.f32.mrb[0].mxu0
      %2030 = vdwg.mxu0
      %v2031 = vadd.f32 %v1894, %v2010
      %v2032 = vadd.f32 %v1895, %v2013
      %v2033 = vadd.f32 %v1896, %v2018
      %v2034 = vadd.f32 %v1897, %v2021
      %v2035 = vadd.f32 %v1898, %v2026
      %v2036 = vld [vmem:[%s244 + $0x4] sm:$0x3]
      %v2037 = vld [vmem:[%s244 + $0xc] sm:$0x3]
      %v2038 = vld [vmem:[%s244 + $0x14] sm:$0x3]
      %v2039 = vld [vmem:[%s244 + $0x1c] sm:$0x3]
      %v2040 = vld [vmem:[%s244 + $0x24] sm:$0x3]
      %v2041 = vld [vmem:[%s244 + $0x2c] sm:$0x3]
      %v2042 = vld [vmem:[%s244 + $0x34] sm:$0x3]
      %v2043 = vld [vmem:[%s244 + $0x3c] sm:$0x3]
      %vm2044 = vsmask.f32 2304
      %vm2045 = vsmask.f32 6416
      %vm2046 = vmor %vm2044, %vm2045
      %v2048 = vshrl.u32 %v1445, 16
      %v2050 = vrot.slane %v2048, 5
      %v2051 = vshll.u32 %v1445, 16
      %v2053 = vrot.slane %v2051, 6
      %v2054 = vor.u32 %v2050, %v2053
      %v2055 = vrot.slane %v2054, 4
      %v2057 = vshrl.u32 %v2036, 16
      %v2059 = vrot.slane %v2057, 5
      %v2060 = vshll.u32 %v2036, 16
      %v2062 = vrot.slane %v2060, 6
      %v2063 = vor.u32 %v2059, %v2062
      %v2064 = vsel %vm2046, %v2055, %v2063
      %v2066 = vshrl.u32 %v1446, 16
      %v2068 = vrot.slane %v2066, 5
      %v2069 = vshll.u32 %v1446, 16
      %v2071 = vrot.slane %v2069, 6
      %v2072 = vor.u32 %v2068, %v2071
      %v2073 = vrot.slane %v2072, 4
      %v2075 = vshrl.u32 %v2037, 16
      %v2077 = vrot.slane %v2075, 5
      %v2078 = vshll.u32 %v2037, 16
      %v2080 = vrot.slane %v2078, 6
      %v2081 = vor.u32 %v2077, %v2080
      %v2082 = vsel %vm2046, %v2073, %v2081
      %v2084 = vshrl.u32 %v1447, 16
      %v2086 = vrot.slane %v2084, 5
      %v2087 = vshll.u32 %v1447, 16
      %v2089 = vrot.slane %v2087, 6
      %v2090 = vor.u32 %v2086, %v2089
      %v2091 = vrot.slane %v2090, 4
      %v2093 = vshrl.u32 %v2038, 16
      %v2095 = vrot.slane %v2093, 5
      %v2096 = vshll.u32 %v2038, 16
      %v2098 = vrot.slane %v2096, 6
      %v2099 = vor.u32 %v2095, %v2098
      %v2100 = vsel %vm2046, %v2091, %v2099
      %v2102 = vshrl.u32 %v1448, 16
      %v2104 = vrot.slane %v2102, 5
      %v2105 = vshll.u32 %v1448, 16
      %v2107 = vrot.slane %v2105, 6
      %v2108 = vor.u32 %v2104, %v2107
      %v2109 = vrot.slane %v2108, 4
      %v2111 = vshrl.u32 %v2039, 16
      %v2113 = vrot.slane %v2111, 5
      %v2114 = vshll.u32 %v2039, 16
      %v2116 = vrot.slane %v2114, 6
      %v2117 = vor.u32 %v2113, %v2116
      %v2118 = vsel %vm2046, %v2109, %v2117
      %v2120 = vshrl.u32 %v1449, 16
      %v2122 = vrot.slane %v2120, 5
      %v2123 = vshll.u32 %v1449, 16
      %v2125 = vrot.slane %v2123, 6
      %v2126 = vor.u32 %v2122, %v2125
      %v2127 = vrot.slane %v2126, 4
      %v2129 = vshrl.u32 %v2040, 16
      %v2131 = vrot.slane %v2129, 5
      %v2132 = vshll.u32 %v2040, 16
      %v2134 = vrot.slane %v2132, 6
      %v2135 = vor.u32 %v2131, %v2134
      %v2136 = vsel %vm2046, %v2127, %v2135
      %s2137 = scalar_lea.vmem %s223, 192
      %v2138 = vld [vmem:[%s2137] sm:$0xf]
      %v2139 = vld [vmem:[%s2137 + $0x4] sm:$0xf]
      %v2140 = vld [vmem:[%s2137 + $0x8] sm:$0xf]
      %v2141 = vld [vmem:[%s2137 + $0xc] sm:$0xf]
      %v2142 = vld [vmem:[%s2137 + $0x10] sm:$0xf]
      %v2143 = vld [vmem:[%s2137 + $0x14] sm:$0xf]
      %v2144 = vld [vmem:[%s2137 + $0x18] sm:$0xf]
      %v2145 = vld [vmem:[%s2137 + $0x1c] sm:$0xf]
      %v2146 = vld [vmem:[%s2137 + $0x20] sm:$0xf]
      %v2147 = vld [vmem:[%s2137 + $0x24] sm:$0xf]
      %v2148 = vld [vmem:[%s2137 + $0x28] sm:$0xf]
      %v2149 = vld [vmem:[%s2137 + $0x2c] sm:$0xf]
      %v2150 = vld [vmem:[%s2137 + $0x30] sm:$0xf]
      %v2151 = vld [vmem:[%s2137 + $0x34] sm:$0xf]
      %v2152 = vld [vmem:[%s2137 + $0x38] sm:$0xf]
      %v2153 = vld [vmem:[%s2137 + $0x3c] sm:$0xf]
      %v2154 = vunpack.c.l.b16 %v2064
      %v2155 = vunpack.c.l.b16 %v2082
      %v2156 = vunpack.c.l.b16 %v2100
      %v2157 = vunpack.c.l.b16 %v2118
      %v2158 = vunpack.c.l.b16 %v2136
      %v2159 = vpack.c.b16 %v2155, %v2154
      %v2160 = vpack.c.b16 %v2157, %v2156
      %v2161 = vpack.c.b16 %v2158, %v2158
      %v2181 = vunpack.c.l.b16 %v2138
      %v2182 = vunpack.c.l.b16 %v2139
      %v2183 = vunpack.c.l.b16 %v2140
      %v2184 = vunpack.c.l.b16 %v2141
      %v2185 = vunpack.c.l.b16 %v2142
      %v2186 = vunpack.c.l.b16 %v2143
      %v2187 = vunpack.c.l.b16 %v2144
      %v2188 = vunpack.c.l.b16 %v2145
      %v2189 = vunpack.c.l.b16 %v2146
      %v2190 = vunpack.c.l.b16 %v2147
      %v2191 = vunpack.c.l.b16 %v2148
      %v2192 = vunpack.c.l.b16 %v2149
      %v2193 = vunpack.c.l.b16 %v2150
      %v2194 = vunpack.c.l.b16 %v2151
      %v2195 = vunpack.c.l.b16 %v2152
      %v2196 = vunpack.c.l.b16 %v2153
      %v2197 = vpack.c.b16 %v2182, %v2181
      %v2198 = vpack.c.b16 %v2184, %v2183
      %v2199 = vpack.c.b16 %v2186, %v2185
      %v2200 = vpack.c.b16 %v2188, %v2187
      %v2201 = vpack.c.b16 %v2190, %v2189
      %v2202 = vpack.c.b16 %v2192, %v2191
      %v2203 = vpack.c.b16 %v2194, %v2193
      %v2204 = vpack.c.b16 %v2196, %v2195
      %2213 = vmatprep.subr.bf16.mxu0 0
      %2214 = vmatpush1.bf16.msra.mxu0 %v2197
      %2215 = vmatprep.subr.bf16.mxu0 0
      %2216 = vmatpush1.bf16.msra.mxu0 %v2198
      %2217 = vmatprep.subr.bf16.mxu0 0
      %2218 = vmatpush1.bf16.msra.mxu0 %v2199
      %2219 = vmatprep.subr.bf16.mxu0 0
      %2220 = vmatpush1.bf16.msra.mxu0 %v2200
      %2221 = vmatprep.subr.bf16.mxu0 0
      %2222 = vmatpush1.bf16.msra.mxu0 %v2201
      %2223 = vmatprep.subr.bf16.mxu0 0
      %2224 = vmatpush1.bf16.msra.mxu0 %v2202
      %2225 = vmatprep.subr.bf16.mxu0 0
      %2226 = vmatpush1.bf16.msra.mxu0 %v2203
      %2227 = vmatprep.subr.bf16.mxu0 0
      %2228 = vmatpush1.bf16.msra.mxu0 %v2204
      %2229 = vmatprep.subr.bf16.mxu0 0
      %2230 = vmatpush1.bf16.msra.mxu0 0
      %2231 = vmatprep.subr.bf16.mxu0 0
      %2232 = vmatpush1.bf16.msra.mxu0 0
      %2233 = vmatprep.subr.bf16.mxu0 0
      %2234 = vmatpush1.bf16.msra.mxu0 0
      %2235 = vmatprep.subr.bf16.mxu0 0
      %2236 = vmatpush1.bf16.msra.mxu0 0
      %2237 = vmatprep.subr.bf16.mxu0 0
      %2238 = vmatpush1.bf16.msra.mxu0 0
      %2239 = vmatprep.subr.bf16.mxu0 0
      %2240 = vmatpush1.bf16.msra.mxu0 0
      %2241 = vmatprep.subr.bf16.mxu0 0
      %2242 = vmatpush1.bf16.msra.mxu0 0
      %2243 = vmatprep.subr.bf16.mxu0 0
      %2244 = vmatpush1.bf16.msra.mxu0 0
      %2245 = vmatprep.mubr.bf16.mxu0 0
      %2246 = vmatmul.mubr.bf16.gmra.mrb[0].mxu0 %v2159
      %v2247 = vpop.f32.mrb[0].mxu0
      %v2248 = vadd.f32 0.0, %v2247
      %v2249 = vpop.f32.mrb[0].mxu0
      %v2250 = vpop.f32.mrb[0].mxu0
      %v2251 = vadd.f32 0.0, %v2250
      %v2252 = vpop.f32.mrb[0].mxu0
      %2253 = vmatprep.mubr.bf16.mxu0 0
      %2254 = vmatmul.mubr.bf16.gmra.mrb[0].mxu0 %v2160
      %v2255 = vpop.f32.mrb[0].mxu0
      %v2256 = vadd.f32 0.0, %v2255
      %v2257 = vpop.f32.mrb[0].mxu0
      %v2258 = vpop.f32.mrb[0].mxu0
      %v2259 = vadd.f32 0.0, %v2258
      %v2260 = vpop.f32.mrb[0].mxu0
      %2261 = vmatprep.mubr.bf16.mxu0 0
      %2262 = vmatmul.mubr.bf16.gmra.mrb[0].mxu0 %v2161
      %v2263 = vpop.f32.mrb[0].mxu0
      %v2264 = vadd.f32 0.0, %v2263
      %v2265 = vpop.f32.mrb[0].mxu0
      %v2266 = vpop.f32.mrb[0].mxu0
      %v2267 = vpop.f32.mrb[0].mxu0
      %2268 = vdwg.mxu0
      %v2269 = vadd.f32 %v2031, %v2248
      %v2270 = vadd.f32 %v2032, %v2251
      %v2271 = vadd.f32 %v2033, %v2256
      %v2272 = vadd.f32 %v2034, %v2259
      %v2273 = vadd.f32 %v2035, %v2264
      %v2275 = vshrl.u32 %v1450, 16
      %v2277 = vrot.slane %v2275, 5
      %v2278 = vshll.u32 %v1450, 16
      %v2280 = vrot.slane %v2278, 6
      %v2281 = vor.u32 %v2277, %v2280
      %v2282 = vrot.slane %v2281, 4
      %v2284 = vshrl.u32 %v2041, 16
      %v2286 = vrot.slane %v2284, 5
      %v2287 = vshll.u32 %v2041, 16
      %v2289 = vrot.slane %v2287, 6
      %v2290 = vor.u32 %v2286, %v2289
      %v2291 = vsel %vm2046, %v2282, %v2290
      %s2292 = scalar_lea.vmem %s223, 448
      %v2293 = vld [vmem:[%s2292] sm:$0xf]
      %v2294 = vld [vmem:[%s2292 + $0x4] sm:$0xf]
      %v2295 = vld [vmem:[%s2292 + $0x8] sm:$0xf]
      %v2296 = vld [vmem:[%s2292 + $0xc] sm:$0xf]
      %v2297 = vld [vmem:[%s2292 + $0x10] sm:$0xf]
      %v2298 = vld [vmem:[%s2292 + $0x14] sm:$0xf]
      %v2299 = vld [vmem:[%s2292 + $0x18] sm:$0xf]
      %v2300 = vld [vmem:[%s2292 + $0x1c] sm:$0xf]
      %v2301 = vld [vmem:[%s2292 + $0x20] sm:$0xf]
      %v2302 = vld [vmem:[%s2292 + $0x24] sm:$0xf]
      %v2303 = vld [vmem:[%s2292 + $0x28] sm:$0xf]
      %v2304 = vld [vmem:[%s2292 + $0x2c] sm:$0xf]
      %v2305 = vld [vmem:[%s2292 + $0x30] sm:$0xf]
      %v2306 = vld [vmem:[%s2292 + $0x34] sm:$0xf]
      %v2307 = vld [vmem:[%s2292 + $0x38] sm:$0xf]
      %v2308 = vld [vmem:[%s2292 + $0x3c] sm:$0xf]
      %v2309 = vunpack.c.l.b16 %v2291
      %v2310 = vpack.c.b16 %v2156, %v2155
      %v2311 = vpack.c.b16 %v2158, %v2157
      %v2312 = vpack.c.b16 %v2309, %v2309
      %v2332 = vunpack.c.l.b16 %v2293
      %v2333 = vunpack.c.l.b16 %v2294
      %v2334 = vunpack.c.l.b16 %v2295
      %v2335 = vunpack.c.l.b16 %v2296
      %v2336 = vunpack.c.l.b16 %v2297
      %v2337 = vunpack.c.l.b16 %v2298
      %v2338 = vunpack.c.l.b16 %v2299
      %v2339 = vunpack.c.l.b16 %v2300
      %v2340 = vunpack.c.l.b16 %v2301
      %v2341 = vunpack.c.l.b16 %v2302
      %v2342 = vunpack.c.l.b16 %v2303
      %v2343 = vunpack.c.l.b16 %v2304
      %v2344 = vunpack.c.l.b16 %v2305
      %v2345 = vunpack.c.l.b16 %v2306
      %v2346 = vunpack.c.l.b16 %v2307
      %v2347 = vunpack.c.l.b16 %v2308
      %v2348 = vpack.c.b16 %v2333, %v2332
      %v2349 = vpack.c.b16 %v2335, %v2334
      %v2350 = vpack.c.b16 %v2337, %v2336
      %v2351 = vpack.c.b16 %v2339, %v2338
      %v2352 = vpack.c.b16 %v2341, %v2340
      %v2353 = vpack.c.b16 %v2343, %v2342
      %v2354 = vpack.c.b16 %v2345, %v2344
      %v2355 = vpack.c.b16 %v2347, %v2346
      %2364 = vmatprep.subr.bf16.mxu0 0
      %2365 = vmatpush1.bf16.msra.mxu0 %v2348
      %2366 = vmatprep.subr.bf16.mxu0 0
      %2367 = vmatpush1.bf16.msra.mxu0 %v2349
      %2368 = vmatprep.subr.bf16.mxu0 0
      %2369 = vmatpush1.bf16.msra.mxu0 %v2350
      %2370 = vmatprep.subr.bf16.mxu0 0
      %2371 = vmatpush1.bf16.msra.mxu0 %v2351
      %2372 = vmatprep.subr.bf16.mxu0 0
      %2373 = vmatpush1.bf16.msra.mxu0 %v2352
      %2374 = vmatprep.subr.bf16.mxu0 0
      %2375 = vmatpush1.bf16.msra.mxu0 %v2353
      %2376 = vmatprep.subr.bf16.mxu0 0
      %2377 = vmatpush1.bf16.msra.mxu0 %v2354
      %2378 = vmatprep.subr.bf16.mxu0 0
      %2379 = vmatpush1.bf16.msra.mxu0 %v2355
      %2380 = vmatprep.subr.bf16.mxu0 0
      %2381 = vmatpush1.bf16.msra.mxu0 0
      %2382 = vmatprep.subr.bf16.mxu0 0
      %2383 = vmatpush1.bf16.msra.mxu0 0
      %2384 = vmatprep.subr.bf16.mxu0 0
      %2385 = vmatpush1.bf16.msra.mxu0 0
      %2386 = vmatprep.subr.bf16.mxu0 0
      %2387 = vmatpush1.bf16.msra.mxu0 0
      %2388 = vmatprep.subr.bf16.mxu0 0
      %2389 = vmatpush1.bf16.msra.mxu0 0
      %2390 = vmatprep.subr.bf16.mxu0 0
      %2391 = vmatpush1.bf16.msra.mxu0 0
      %2392 = vmatprep.subr.bf16.mxu0 0
      %2393 = vmatpush1.bf16.msra.mxu0 0
      %2394 = vmatprep.subr.bf16.mxu0 0
      %2395 = vmatpush1.bf16.msra.mxu0 0
      %2396 = vmatprep.mubr.bf16.mxu0 0
      %2397 = vmatmul.mubr.bf16.gmra.mrb[0].mxu0 %v2310
      %v2398 = vpop.f32.mrb[0].mxu0
      %v2399 = vadd.f32 0.0, %v2398
      %v2400 = vpop.f32.mrb[0].mxu0
      %v2401 = vpop.f32.mrb[0].mxu0
      %v2402 = vadd.f32 0.0, %v2401
      %v2403 = vpop.f32.mrb[0].mxu0
      %2404 = vmatprep.mubr.bf16.mxu0 0
      %2405 = vmatmul.mubr.bf16.gmra.mrb[0].mxu0 %v2311
      %v2406 = vpop.f32.mrb[0].mxu0
      %v2407 = vadd.f32 0.0, %v2406
      %v2408 = vpop.f32.mrb[0].mxu0
      %v2409 = vpop.f32.mrb[0].mxu0
      %v2410 = vadd.f32 0.0, %v2409
      %v2411 = vpop.f32.mrb[0].mxu0
      %2412 = vmatprep.mubr.bf16.mxu0 0
      %2413 = vmatmul.mubr.bf16.gmra.mrb[0].mxu0 %v2312
      %v2414 = vpop.f32.mrb[0].mxu0
      %v2415 = vadd.f32 0.0, %v2414
      %v2416 = vpop.f32.mrb[0].mxu0
      %v2417 = vpop.f32.mrb[0].mxu0
      %v2418 = vpop.f32.mrb[0].mxu0
      %2419 = vdwg.mxu0
      %v2420 = vadd.f32 %v2269, %v2399
      %v2421 = vadd.f32 %v2270, %v2402
      %v2422 = vadd.f32 %v2271, %v2407
      %v2423 = vadd.f32 %v2272, %v2410
      %v2424 = vadd.f32 %v2273, %v2415
      %v2426 = vshrl.u32 %v1451, 16
      %v2428 = vrot.slane %v2426, 5
      %v2429 = vshll.u32 %v1451, 16
      %v2431 = vrot.slane %v2429, 6
      %v2432 = vor.u32 %v2428, %v2431
      %v2433 = vrot.slane %v2432, 4
      %v2435 = vshrl.u32 %v2042, 16
      %v2437 = vrot.slane %v2435, 5
      %v2438 = vshll.u32 %v2042, 16
      %v2440 = vrot.slane %v2438, 6
      %v2441 = vor.u32 %v2437, %v2440
      %v2442 = vsel %vm2046, %v2433, %v2441
      %s2443 = scalar_lea.vmem %s223, 704
      %v2444 = vld [vmem:[%s2443] sm:$0xf]
      %v2445 = vld [vmem:[%s2443 + $0x4] sm:$0xf]
      %v2446 = vld [vmem:[%s2443 + $0x8] sm:$0xf]
      %v2447 = vld [vmem:[%s2443 + $0xc] sm:$0xf]
      %v2448 = vld [vmem:[%s2443 + $0x10] sm:$0xf]
      %v2449 = vld [vmem:[%s2443 + $0x14] sm:$0xf]
      %v2450 = vld [vmem:[%s2443 + $0x18] sm:$0xf]
      %v2451 = vld [vmem:[%s2443 + $0x1c] sm:$0xf]
      %v2452 = vld [vmem:[%s2443 + $0x20] sm:$0xf]
      %v2453 = vld [vmem:[%s2443 + $0x24] sm:$0xf]
      %v2454 = vld [vmem:[%s2443 + $0x28] sm:$0xf]
      %v2455 = vld [vmem:[%s2443 + $0x2c] sm:$0xf]
      %v2456 = vld [vmem:[%s2443 + $0x30] sm:$0xf]
      %v2457 = vld [vmem:[%s2443 + $0x34] sm:$0xf]
      %v2458 = vld [vmem:[%s2443 + $0x38] sm:$0xf]
      %v2459 = vld [vmem:[%s2443 + $0x3c] sm:$0xf]
      %v2460 = vunpack.c.l.b16 %v2442
      %v2461 = vpack.c.b16 %v2309, %v2158
      %v2462 = vpack.c.b16 %v2460, %v2460
      %v2481 = vunpack.c.l.b16 %v2444
      %v2482 = vunpack.c.l.b16 %v2445
      %v2483 = vunpack.c.l.b16 %v2446
      %v2484 = vunpack.c.l.b16 %v2447
      %v2485 = vunpack.c.l.b16 %v2448
      %v2486 = vunpack.c.l.b16 %v2449
      %v2487 = vunpack.c.l.b16 %v2450
      %v2488 = vunpack.c.l.b16 %v2451
      %v2489 = vunpack.c.l.b16 %v2452
      %v2490 = vunpack.c.l.b16 %v2453
      %v2491 = vunpack.c.l.b16 %v2454
      %v2492 = vunpack.c.l.b16 %v2455
      %v2493 = vunpack.c.l.b16 %v2456
      %v2494 = vunpack.c.l.b16 %v2457
      %v2495 = vunpack.c.l.b16 %v2458
      %v2496 = vunpack.c.l.b16 %v2459
      %v2497 = vpack.c.b16 %v2482, %v2481
      %v2498 = vpack.c.b16 %v2484, %v2483
      %v2499 = vpack.c.b16 %v2486, %v2485
      %v2500 = vpack.c.b16 %v2488, %v2487
      %v2501 = vpack.c.b16 %v2490, %v2489
      %v2502 = vpack.c.b16 %v2492, %v2491
      %v2503 = vpack.c.b16 %v2494, %v2493
      %v2504 = vpack.c.b16 %v2496, %v2495
      %2513 = vmatprep.subr.bf16.mxu0 0
      %2514 = vmatpush1.bf16.msra.mxu0 %v2497
      %2515 = vmatprep.subr.bf16.mxu0 0
      %2516 = vmatpush1.bf16.msra.mxu0 %v2498
      %2517 = vmatprep.subr.bf16.mxu0 0
      %2518 = vmatpush1.bf16.msra.mxu0 %v2499
      %2519 = vmatprep.subr.bf16.mxu0 0
      %2520 = vmatpush1.bf16.msra.mxu0 %v2500
      %2521 = vmatprep.subr.bf16.mxu0 0
      %2522 = vmatpush1.bf16.msra.mxu0 %v2501
      %2523 = vmatprep.subr.bf16.mxu0 0
      %2524 = vmatpush1.bf16.msra.mxu0 %v2502
      %2525 = vmatprep.subr.bf16.mxu0 0
      %2526 = vmatpush1.bf16.msra.mxu0 %v2503
      %2527 = vmatprep.subr.bf16.mxu0 0
      %2528 = vmatpush1.bf16.msra.mxu0 %v2504
      %2529 = vmatprep.subr.bf16.mxu0 0
      %2530 = vmatpush1.bf16.msra.mxu0 0
      %2531 = vmatprep.subr.bf16.mxu0 0
      %2532 = vmatpush1.bf16.msra.mxu0 0
      %2533 = vmatprep.subr.bf16.mxu0 0
      %2534 = vmatpush1.bf16.msra.mxu0 0
      %2535 = vmatprep.subr.bf16.mxu0 0
      %2536 = vmatpush1.bf16.msra.mxu0 0
      %2537 = vmatprep.subr.bf16.mxu0 0
      %2538 = vmatpush1.bf16.msra.mxu0 0
      %2539 = vmatprep.subr.bf16.mxu0 0
      %2540 = vmatpush1.bf16.msra.mxu0 0
      %2541 = vmatprep.subr.bf16.mxu0 0
      %2542 = vmatpush1.bf16.msra.mxu0 0
      %2543 = vmatprep.subr.bf16.mxu0 0
      %2544 = vmatpush1.bf16.msra.mxu0 0
      %2545 = vmatprep.mubr.bf16.mxu0 0
      %2546 = vmatmul.mubr.bf16.gmra.mrb[0].mxu0 %v2160
      %v2547 = vpop.f32.mrb[0].mxu0
      %v2548 = vadd.f32 0.0, %v2547
      %v2549 = vpop.f32.mrb[0].mxu0
      %v2550 = vpop.f32.mrb[0].mxu0
      %v2551 = vadd.f32 0.0, %v2550
      %v2552 = vpop.f32.mrb[0].mxu0
      %2553 = vmatprep.mubr.bf16.mxu0 0
      %2554 = vmatmul.mubr.bf16.gmra.mrb[0].mxu0 %v2461
      %v2555 = vpop.f32.mrb[0].mxu0
      %v2556 = vadd.f32 0.0, %v2555
      %v2557 = vpop.f32.mrb[0].mxu0
      %v2558 = vpop.f32.mrb[0].mxu0
      %v2559 = vadd.f32 0.0, %v2558
      %v2560 = vpop.f32.mrb[0].mxu0
      %2561 = vmatprep.mubr.bf16.mxu0 0
      %2562 = vmatmul.mubr.bf16.gmra.mrb[0].mxu0 %v2462
      %v2563 = vpop.f32.mrb[0].mxu0
      %v2564 = vadd.f32 0.0, %v2563
      %v2565 = vpop.f32.mrb[0].mxu0
      %v2566 = vpop.f32.mrb[0].mxu0
      %v2567 = vpop.f32.mrb[0].mxu0
      %2568 = vdwg.mxu0
      %v2569 = vadd.f32 %v2420, %v2548
      %v2570 = vadd.f32 %v2421, %v2551
      %v2571 = vadd.f32 %v2422, %v2556
      %v2572 = vadd.f32 %v2423, %v2559
      %v2573 = vadd.f32 %v2424, %v2564
      %v2575 = vshrl.u32 %v1452, 16
      %v2577 = vrot.slane %v2575, 5
      %v2578 = vshll.u32 %v1452, 16
      %v2580 = vrot.slane %v2578, 6
      %v2581 = vor.u32 %v2577, %v2580
      %v2582 = vrot.slane %v2581, 4
      %v2584 = vshrl.u32 %v2043, 16
      %v2586 = vrot.slane %v2584, 5
      %v2587 = vshll.u32 %v2043, 16
      %v2589 = vrot.slane %v2587, 6
      %v2590 = vor.u32 %v2586, %v2589
      %v2591 = vsel %vm2046, %v2582, %v2590
      %s2592 = scalar_lea.vmem %s223, 960
      %v2593 = vld [vmem:[%s2592] sm:$0xf]
      %v2594 = vld [vmem:[%s2592 + $0x4] sm:$0xf]
      %v2595 = vld [vmem:[%s2592 + $0x8] sm:$0xf]
      %v2596 = vld [vmem:[%s2592 + $0xc] sm:$0xf]
      %v2597 = vld [vmem:[%s2592 + $0x10] sm:$0xf]
      %v2598 = vld [vmem:[%s2592 + $0x14] sm:$0xf]
      %v2599 = vld [vmem:[%s2592 + $0x18] sm:$0xf]
      %v2600 = vld [vmem:[%s2592 + $0x1c] sm:$0xf]
      %v2601 = vld [vmem:[%s2592 + $0x20] sm:$0xf]
      %v2602 = vld [vmem:[%s2592 + $0x24] sm:$0xf]
      %v2603 = vld [vmem:[%s2592 + $0x28] sm:$0xf]
      %v2604 = vld [vmem:[%s2592 + $0x2c] sm:$0xf]
      %v2605 = vld [vmem:[%s2592 + $0x30] sm:$0xf]
      %v2606 = vld [vmem:[%s2592 + $0x34] sm:$0xf]
      %v2607 = vld [vmem:[%s2592 + $0x38] sm:$0xf]
      %v2608 = vld [vmem:[%s2592 + $0x3c] sm:$0xf]
      %v2609 = vunpack.c.l.b16 %v2591
      %v2610 = vpack.c.b16 %v2460, %v2309
      %v2611 = vpack.c.b16 %v2609, %v2609
      %v2630 = vunpack.c.l.b16 %v2593
      %v2631 = vunpack.c.l.b16 %v2594
      %v2632 = vunpack.c.l.b16 %v2595
      %v2633 = vunpack.c.l.b16 %v2596
      %v2634 = vunpack.c.l.b16 %v2597
      %v2635 = vunpack.c.l.b16 %v2598
      %v2636 = vunpack.c.l.b16 %v2599
      %v2637 = vunpack.c.l.b16 %v2600
      %v2638 = vunpack.c.l.b16 %v2601
      %v2639 = vunpack.c.l.b16 %v2602
      %v2640 = vunpack.c.l.b16 %v2603
      %v2641 = vunpack.c.l.b16 %v2604
      %v2642 = vunpack.c.l.b16 %v2605
      %v2643 = vunpack.c.l.b16 %v2606
      %v2644 = vunpack.c.l.b16 %v2607
      %v2645 = vunpack.c.l.b16 %v2608
      %v2646 = vpack.c.b16 %v2631, %v2630
      %v2647 = vpack.c.b16 %v2633, %v2632
      %v2648 = vpack.c.b16 %v2635, %v2634
      %v2649 = vpack.c.b16 %v2637, %v2636
      %v2650 = vpack.c.b16 %v2639, %v2638
      %v2651 = vpack.c.b16 %v2641, %v2640
      %v2652 = vpack.c.b16 %v2643, %v2642
      %v2653 = vpack.c.b16 %v2645, %v2644
      %2662 = vmatprep.subr.bf16.mxu0 0
      %2663 = vmatpush1.bf16.msra.mxu0 %v2646
      %2664 = vmatprep.subr.bf16.mxu0 0
      %2665 = vmatpush1.bf16.msra.mxu0 %v2647
      %2666 = vmatprep.subr.bf16.mxu0 0
      %2667 = vmatpush1.bf16.msra.mxu0 %v2648
      %2668 = vmatprep.subr.bf16.mxu0 0
      %2669 = vmatpush1.bf16.msra.mxu0 %v2649
      %2670 = vmatprep.subr.bf16.mxu0 0
      %2671 = vmatpush1.bf16.msra.mxu0 %v2650
      %2672 = vmatprep.subr.bf16.mxu0 0
      %2673 = vmatpush1.bf16.msra.mxu0 %v2651
      %2674 = vmatprep.subr.bf16.mxu0 0
      %2675 = vmatpush1.bf16.msra.mxu0 %v2652
      %2676 = vmatprep.subr.bf16.mxu0 0
      %2677 = vmatpush1.bf16.msra.mxu0 %v2653
      %2678 = vmatprep.subr.bf16.mxu0 0
      %2679 = vmatpush1.bf16.msra.mxu0 0
      %2680 = vmatprep.subr.bf16.mxu0 0
      %2681 = vmatpush1.bf16.msra.mxu0 0
      %2682 = vmatprep.subr.bf16.mxu0 0
      %2683 = vmatpush1.bf16.msra.mxu0 0
      %2684 = vmatprep.subr.bf16.mxu0 0
      %2685 = vmatpush1.bf16.msra.mxu0 0
      %2686 = vmatprep.subr.bf16.mxu0 0
      %2687 = vmatpush1.bf16.msra.mxu0 0
      %2688 = vmatprep.subr.bf16.mxu0 0
      %2689 = vmatpush1.bf16.msra.mxu0 0
      %2690 = vmatprep.subr.bf16.mxu0 0
      %2691 = vmatpush1.bf16.msra.mxu0 0
      %2692 = vmatprep.subr.bf16.mxu0 0
      %2693 = vmatpush1.bf16.msra.mxu0 0
      %2694 = vmatprep.mubr.bf16.mxu0 0
      %2695 = vmatmul.mubr.bf16.gmra.mrb[0].mxu0 %v2311
      %v2696 = vpop.f32.mrb[0].mxu0
      %v2697 = vadd.f32 0.0, %v2696
      %v2698 = vpop.f32.mrb[0].mxu0
      %v2699 = vpop.f32.mrb[0].mxu0
      %v2700 = vadd.f32 0.0, %v2699
      %v2701 = vpop.f32.mrb[0].mxu0
      %2702 = vmatprep.mubr.bf16.mxu0 0
      %2703 = vmatmul.mubr.bf16.gmra.mrb[0].mxu0 %v2610
      %v2704 = vpop.f32.mrb[0].mxu0
      %v2705 = vadd.f32 0.0, %v2704
      %v2706 = vpop.f32.mrb[0].mxu0
      %v2707 = vpop.f32.mrb[0].mxu0
      %v2708 = vadd.f32 0.0, %v2707
      %v2709 = vpop.f32.mrb[0].mxu0
      %2710 = vmatprep.mubr.bf16.mxu0 0
      %2711 = vmatmul.mubr.bf16.gmra.mrb[0].mxu0 %v2611
      %v2712 = vpop.f32.mrb[0].mxu0
      %v2713 = vadd.f32 0.0, %v2712
      %v2714 = vpop.f32.mrb[0].mxu0
      %v2715 = vpop.f32.mrb[0].mxu0
      %v2716 = vpop.f32.mrb[0].mxu0
      %2717 = vdwg.mxu0
      %v2718 = vadd.f32 %v2569, %v2697
      %v2719 = vadd.f32 %v2570, %v2700
      %v2720 = vadd.f32 %v2571, %v2705
      %v2721 = vadd.f32 %v2572, %v2708
      %v2722 = vadd.f32 %v2573, %v2713
      %v2723 = vld [vmem:[%s226] sm:$0x1]
      %v2725 = vlaneseq
      %v2726 = vshrl.u32 %v2725, 7
      %v2727 = vsub.s32 0, %v2726
      %v2728 = vrot.slane %v2723, %v2727
      %v2730 = vadd.f32 %v2718, %v2728
      %v2731 = vadd.f32 %v2719, %v2728
      %v2732 = vadd.f32 %v2720, %v2728
      %v2733 = vadd.f32 %v2721, %v2728
      %v2734 = vadd.f32 %v2722, %v2728
      %v2735 = vlaneseq
      %v2736 = vshrl.u32 %v2735, 7
      %vm2737 = vcmp.lt.s32.totalorder %v2736, 5
      %v2738 = vsel %vm2737, 1, 0
      %vm2739 = vcmp.eq.s32.totalorder %v2738, 1
      %v2740 = vsel %vm2739, %v2730, 0.0
      %v2741 = vsel %vm2739, %v2731, 0.0
      %v2742 = vsel %vm2739, %v2732, 0.0
      %v2743 = vsel %vm2739, %v2733, 0.0
      %v2744 = vsel %vm2739, %v2734, 0.0
      %v2745 = vpack.c.bf16 %v2740, %v2740
      %v2746 = vpack.c.bf16 %v2741, %v2741
      %v2747 = vpack.c.bf16 %v2742, %v2742
      %v2748 = vpack.c.bf16 %v2743, %v2743
      %v2749 = vpack.c.bf16 %v2744, %v2744
      %2750 = vst [vmem:[%s238] sm:$0xf] %v2745
      %2751 = vst [vmem:[%s238 + $0x4] sm:$0xf] %v2746
      %2752 = vst [vmem:[%s238 + $0x8] sm:$0xf] %v2747
      %2753 = vst [vmem:[%s238 + $0xc] sm:$0xf] %v2748
      %2754 = vst [vmem:[%s238 + $0x10] sm:$0xf] %v2749
      %s2755 = smul.u32 5, %s20
      %p2756 = scmp.lt.s32.totalorder %s19, 1
      %s2757 = scalar_select %p2756, %s19, 1
      %p2758 = scmp.lt.s32.totalorder %s2755, 4
      %s2759 = scalar_select %p2758, %s2755, 4
      %p2760 = scmp.lt.s32.totalorder %s21, 0
      %s2761 = scalar_select %p2760, %s21, 0
      %s2762 = sadd.s32 %s2761, %s2759
      %s2763 = smul.addr %s2757, 5
      %s2764 = sadd.s32 %s2762, %s2763
      %s2765 = smul.addr %s2764, 4
      %s2766 = scalar_lea.vmem %s3, %s2765
      // Predicated region
      $region33: #{_lambda_.9} parent=31 // pred_check
        %p2767 = pneg %p133
      $region34: #{_lambda_.9} parent=31 // pred_check_branch
        %2769 = sbr.rel (%p2767) target = $region36
      $region35: #{_lambda_.9} parent=31 // pred_region
        %s2770 = smul.u32 5, %s20
      $region36: #{_lambda_.9} parent=31 // pred_fallthru
        _
    $region32: #{_lambda_.9} parent=5 // pred_fallthru
      _
    %p2771 = scmp.le.s32.totalorder 2, %s9
    // Predicated region
    $region37: #{_lambda_.9} parent=5 // pred_check
      %p2772 = pneg %p2771
    $region38: #{_lambda_.9} parent=5 // pred_check_branch
      %2774 = sbr.rel (%p2772) target = $region40
    $region39: #{_lambda_.9} parent=5 // pred_region
      %s2775 = ssub.s32 %s9, 2
      // Predicated region
      $region41: #{_lambda_.9} parent=39 // pred_check
        %p2776 = pneg %p139
      $region42: #{_lambda_.9} parent=39 // pred_check_branch
        %2778 = sbr.rel (%p2776) target = $region44
      $region43: #{_lambda_.9} parent=39 // pred_region
        %s2779 = smul.u32 5, %s23
        %p2780 = scmp.lt.s32.totalorder %s22, 1
        %s2781 = scalar_select %p2780, %s22, 1
        %p2782 = scmp.lt.s32.totalorder %s2779, 4
        %s2783 = scalar_select %p2782, %s2779, 4
        %p2784 = scmp.lt.s32.totalorder %s24, 0
        %s2785 = scalar_select %p2784, %s24, 0
        %s2786 = sadd.s32 %s2785, %s2783
        %s2787 = smul.addr %s2781, 5
        %s2788 = sadd.s32 %s2786, %s2787
        %s2789 = smul.addr %s2788, 4
        %s2790 = scalar_lea.vmem %s3, %s2789
      $region44: #{_lambda_.9} parent=39 // pred_fallthru
        _
    $region40: #{_lambda_.9} parent=5 // pred_fallthru
      _
  $region6: #{_lambda_.9} parent=0 // loop_footer
    %s13 = sadd.s32 1, %s9
  $region7: #{_lambda_.9} parent=0 // loop_footer_branch
    %8 = sbr.rel target = $region3
  $region8: #{_lambda_.9} parent=0 // loop_exit
    _

</llo_original>
